<compile_context>
chip_gen: v7x
topology: tpu7x:2x2x1
jax: 0.10.0
libtpu: 0.0.40
codegen_flags: <defaults>
</compile_context>

<pallas_src>
import jax
import jax.numpy as jnp
from jax.experimental import pallas as pl
from jax.experimental.pallas import tpu as pltpu


def _round_up(n, m):
    return ((n + m - 1) // m) * m


# ----------------------------------------------------------------------------
# Weight preparation (runs once, outside the hot path)
# ----------------------------------------------------------------------------
def _make_banded(w_oihw, W, Wo, bw_pad, np_pad):
    """Banded conv->matmul weight, padded to lane-aligned band widths.

    BND[ky*bw_pad + j*Cin + ci, px*np_pad + jo*Cout + co] = w[co, ci, ky, kx]
    where kx = j - 2*jo - px + 1 if 0 <= kx <= 2, else 0.  This folds the horizontal
    3 taps, SAME zero padding, the stride-2 column decimation and the column-pool
    parity (px) into a single matmul RHS.  Pad rows/cols are exact zeros, so the
    zero-filled LHS pad lanes are numerically inert.
    """
    Cout, Cin, _, _ = w_oihw.shape
    j = jnp.arange(W)[:, None, None]                    # (W, 1, 1)
    px = jnp.arange(2)[None, :, None]                   # (1, 2, 1)
    jo = jnp.arange(Wo)[None, None, :]                  # (1, 1, Wo)
    kx = j - 2 * jo - px + 1                            # (W, 2, Wo)
    valid = (kx >= 0) & (kx <= 2)
    kxc = jnp.clip(kx, 0, 2)
    wt = jnp.transpose(w_oihw, (2, 3, 1, 0))            # (ky, kx, Cin, Cout)
    g = wt[:, kxc, :, :]                                # (ky, W, 2, Wo, Cin, Cout)
    g = jnp.where(valid[None, :, :, :, None, None], g, 0.0)
    g = jnp.transpose(g, (0, 1, 4, 2, 3, 5))            # (ky, j, ci, px, jo, co)
    g = g.reshape(3, W * Cin, 2, Wo * Cout)
    g = jnp.pad(g, ((0, 0), (0, bw_pad - W * Cin),
                    (0, 0), (0, np_pad - Wo * Cout)))
    return g.reshape(3 * bw_pad, 2 * np_pad)


def prepare_params(params, matmul_dtype=jnp.bfloat16):
    """One-time conversion of PyTorch-layout params into kernel-ready (padded) tensors."""
    convs = params["convs"]
    assert len(convs) == 3, "fused kernel expects the default 3 conv blocks"
    H = W = 28
    geom, bnds, biases = [], [], []
    for (w, b) in convs:
        Cout, Cin = int(w.shape[0]), int(w.shape[1])
        Ho, Wo = H // 2, W // 2
        bw = _round_up(W * Cin, 128)        # padded per-ky band width of this layer's LHS
        npad = _round_up(Wo * Cout, 128)    # padded per-px output half width
        geom.append(dict(H=H, W=W, Cin=Cin, Ho=Ho, Wo=Wo, Cout=Cout, BW=bw, NP=npad))
        bnds.append(_make_banded(w, W, Wo, bw, npad).astype(matmul_dtype))
        # bias tiled over output columns (lane = jo*Cout + co), pad lanes = 0
        bias = jnp.pad(jnp.tile(b, Wo), (0, npad - Wo * Cout))
        biases.append(bias.reshape(1, npad).astype(jnp.float32))
        H, W = Ho, Wo
    # layer-(l) padded output width must equal layer-(l+1) padded band width
    for l in range(1, 3):
        assert geom[l]["BW"] == geom[l - 1]["NP"]

    g3 = geom[-1]
    Hl, Wl, Cl, NPl = g3["Ho"], g3["Wo"], g3["Cout"], g3["NP"]
    fc1_w = params["fc1_w"]
    F = int(fc1_w.shape[0])
    assert fc1_w.shape[1] == Hl * Wl * Cl
    Fp = _round_up(F, 128)
    # PyTorch flattens NCHW: fc1 input index = c*Hl*Wl + i*Wl + j.
    # The kernel emits the flattened conv output as i*NPl + (j*Cl + c) with zero pads.
    w1 = (fc1_w.reshape(F, Cl, Hl, Wl)
               .transpose(2, 3, 1, 0)                       # (i, j, c, F)
               .reshape(Hl, Wl * Cl, F))
    w1 = jnp.pad(w1, ((0, 0), (0, NPl - Wl * Cl), (0, Fp - F)))
    w1 = w1.reshape(Hl * NPl, Fp)
    b1 = jnp.pad(params["fc1_b"], (0, Fp - F)).reshape(1, Fp)

    fc2_w = params["fc2_w"]
    out_dim = int(fc2_w.shape[0])
    out_pad = _round_up(out_dim, 128)                       # lane-dense logits block
    w2 = jnp.pad(fc2_w.T, ((0, Fp - F), (0, out_pad - out_dim)))
    b2 = jnp.pad(params["fc2_b"], (0, out_pad - out_dim)).reshape(1, out_pad)

    return {
        "geom": tuple(geom),
        "bnd": bnds,
        "bias": biases,
        "w1": w1.astype(matmul_dtype),
        "b1": b1.astype(jnp.float32),
        "w2": w2.astype(matmul_dtype),
        "b2": b2.astype(jnp.float32),
        "out_dim": out_dim,
        "out_pad": out_pad,
    }


# ----------------------------------------------------------------------------
# Fused Pallas kernel (whole network)
# ----------------------------------------------------------------------------
def _make_kernel(geom):
    g1, g2, g3 = geom
    H1, BW1, Ho1, NP1 = g1["H"], g1["BW"], g1["Ho"], g1["NP"]
    H2, BW2, Ho2, NP2 = g2["H"], g2["BW"], g2["Ho"], g2["NP"]
    H3, BW3, Ho3, NP3 = g3["H"], g3["BW"], g3["Ho"], g3["NP"]

    def kernel(x_ref,
               bnd1_ref, bias1_ref, bnd2_ref, bias2_ref, bnd3_ref, bias3_ref,
               w1_ref, b1_ref, w2_ref, b2_ref,
               out_ref,
               lhs1, lhs2, lhs3, fc_in):
        f32, bf16 = jnp.float32, jnp.bfloat16
        TB = x_ref.shape[1]                                 # batch tile

        # ---- Stage layer-1 LHS: three ky-shifted copies of the width-padded image.
        # All stores start at lane offsets that are multiples of 128 and sublane
        # offsets that are multiples of TB -> unmasked, aligned vst.
        xv = x_ref[...].reshape(H1 * TB, BW1)               # rows = (i, b), i-major
        zr1 = jnp.zeros((TB, BW1), bf16)
        lhs1[:, BW1:2 * BW1] = xv                                    # ky=1: act[i]
        lhs1[0:TB, 0:BW1] = zr1                                      # ky=0: row -1 pad
        lhs1[TB:H1 * TB, 0:BW1] = xv[0:(H1 - 1) * TB, :]             # ky=0: act[i-1]
        lhs1[0:(H1 - 1) * TB, 2 * BW1:3 * BW1] = xv[TB:H1 * TB, :]   # ky=2: act[i+1]
        lhs1[(H1 - 1) * TB:H1 * TB, 2 * BW1:3 * BW1] = zr1           # ky=2: row H pad

        def conv_pool_relu(lhs_ref, bnd_ref, bias_ref, Ho, NP):
            # Fused Conv3x3(SAME) + MaxPool2x2 + bias + ReLU: one MXU matmul + bulk ops.
            y = jnp.dot(lhs_ref[...], bnd_ref[...],
                        preferred_element_type=f32)          # (H*TB, 2*NP) f32 acc
            yc = jnp.maximum(y[:, 0:NP], y[:, NP:2 * NP])    # column (px) pool, aligned
            yr = yc[0:2 * Ho * TB, :].reshape(Ho, 2 * TB, NP)
            p = jnp.maximum(yr[:, 0:TB, :], yr[:, TB:2 * TB, :])     # row pool (bulk)
            p = p.reshape(Ho * TB, NP)
            return jnp.maximum(p + bias_ref[...], 0.0).astype(bf16)  # bias + ReLU (bulk)

        def emit_bands(lhs_next, r_all, Hn, BWn):
            # One store per ky band: activation row a feeds conv rows a+1 / a / a-1.
            z = jnp.zeros((TB, BWn), bf16)
            lhs_next[:, BWn:2 * BWn] = r_all                          # ky=1
            lhs_next[0:TB, 0:BWn] = z                                 # ky=0: row -1 pad
            lhs_next[TB:Hn * TB, 0:BWn] = r_all[0:(Hn - 1) * TB, :]   # ky=0
            lhs_next[0:(Hn - 1) * TB, 2 * BWn:3 * BWn] = r_all[TB:Hn * TB, :]  # ky=2
            lhs_next[(Hn - 1) * TB:Hn * TB, 2 * BWn:3 * BWn] = z      # ky=2: row H pad

        r1 = conv_pool_relu(lhs1, bnd1_ref, bias1_ref, Ho1, NP1)      # (Ho1*TB, NP1)
        emit_bands(lhs2, r1, H2, BW2)
        r2 = conv_pool_relu(lhs2, bnd2_ref, bias2_ref, Ho2, NP2)      # (Ho2*TB, NP2)
        emit_bands(lhs3, r2, H3, BW3)
        r3 = conv_pool_relu(lhs3, bnd3_ref, bias3_ref, Ho3, NP3)      # (Ho3*TB, NP3)
        for io in range(Ho3):                                         # 3 aligned stores
            fc_in[:, io * NP3:(io + 1) * NP3] = r3[io * TB:(io + 1) * TB, :]

        # ---- FC head: Linear -> ReLU -> Linear, lane-dense 128-wide output block.
        h = jnp.dot(fc_in[...], w1_ref[...], preferred_element_type=f32) + b1_ref[...]
        h = jnp.maximum(h, 0.0).astype(bf16)
        logits = jnp.dot(h, w2_ref[...], preferred_element_type=f32) + b2_ref[...]
        out_ref[...] = logits.astype(out_ref.dtype)

    return kernel


# ----------------------------------------------------------------------------
# Forward wrapper
# ----------------------------------------------------------------------------
def acaig_cnn_forward(x_nchw, prep, block_b=None):
    """Full ACAIGCNN forward (eval mode). x_nchw: (B, 1, 28, 28) float32."""
    geom = prep["geom"]
    g1 = geom[0]
    H1, W1, BW1 = g1["H"], g1["W"], g1["BW"]
    B = x_nchw.shape[0]
    assert x_nchw.shape[1:] == (1, H1, W1)

    if block_b is None:
        b16 = _round_up(max(B, 1), 16)
        if b16 <= 128:
            block_b = b16                            # whole batch in one grid step
        elif b16 <= 256:
            block_b = _round_up((b16 + 1) // 2, 16)  # >=2 steps -> both v7x cores busy
        else:
            block_b = 128                            # amortize step overhead, fit VMEM
    TB = _round_up(block_b, 16)
    Bp = _round_up(B, TB)
    out_dim, out_pad = prep["out_dim"], prep["out_pad"]

    # Layout plumbing only: (B,1,H,W) -> (H, Bp, BW1) with batch on the sublane axis
    # and image width zero-padded to the lane-aligned band width BW1.
    x = x_nchw.reshape(B, H1, W1).astype(jnp.bfloat16)
    x = jnp.transpose(x, (1, 0, 2))
    x = jnp.pad(x, ((0, 0), (0, Bp - B), (0, BW1 - W1)))

    weights = [prep["bnd"][0], prep["bias"][0],
               prep["bnd"][1], prep["bias"][1],
               prep["bnd"][2], prep["bias"][2],
               prep["w1"], prep["b1"], prep["w2"], prep["b2"]]

    in_specs = ([pl.BlockSpec((H1, TB, BW1), lambda i: (0, i, 0))]
                + [pl.BlockSpec(w.shape, lambda i: (0, 0)) for w in weights])
    out_specs = pl.BlockSpec((TB, out_pad), lambda i: (i, 0))

    scratch_shapes = [
        pltpu.VMEM((geom[0]["H"] * TB, 3 * geom[0]["BW"]), jnp.bfloat16),  # lhs1
        pltpu.VMEM((geom[1]["H"] * TB, 3 * geom[1]["BW"]), jnp.bfloat16),  # lhs2
        pltpu.VMEM((geom[2]["H"] * TB, 3 * geom[2]["BW"]), jnp.bfloat16),  # lhs3
        pltpu.VMEM((TB, geom[2]["Ho"] * geom[2]["NP"]), jnp.bfloat16),     # fc_in
    ]

    out = pl.pallas_call(
        _make_kernel(geom),
        out_shape=jax.ShapeDtypeStruct((Bp, out_pad), jnp.float32),
        grid=(Bp // TB,),
        in_specs=in_specs,
        out_specs=out_specs,
        scratch_shapes=scratch_shapes,
        compiler_params=pltpu.CompilerParams(
            dimension_semantics=("parallel",),
            vmem_limit_bytes=48 * 1024 * 1024),
    )(x, *weights)
    return out[:B, :out_dim]


# ----------------------------------------------------------------------------
# Pure-JAX reference (for correctness check)
# ----------------------------------------------------------------------------
def reference_forward(x_nchw, params):
    x = x_nchw
    for (w, b) in params["convs"]:
        x = jax.lax.conv_general_dilated(
            x, w, window_strides=(1, 1), padding="SAME",
            dimension_numbers=("NCHW", "OIHW", "NCHW")) + b[None, :, None, None]
        x = jax.lax.reduce_window(x, -jnp.inf, jax.lax.max,
                                  (1, 1, 2, 2), (1, 1, 2, 2), "VALID")
        x = jnp.maximum(x, 0.0)
    x = x.reshape(x.shape[0], -1)
    x = jnp.maximum(x @ params["fc1_w"].T + params["fc1_b"], 0.0)
    return x @ params["fc2_w"].T + params["fc2_b"]


# ----------------------------------------------------------------------------
# Main
# ----------------------------------------------------------------------------
if __name__ == "__main__":
    key = jax.random.PRNGKey(0)
    B, output_dim = 2, 10
    conv_channels = [16, 32, 64]
    fc_size = 128
    flattened = conv_channels[-1] * 3 * 3                # 576 (implies 28x28 input)

    ks = jax.random.split(key, 10)
    x = jax.random.normal(ks[0], (B, 1, 28, 28), jnp.float32)

    convs = []
    in_c = 1
    for li, out_c in enumerate(conv_channels):
        w = 0.1 * jax.random.normal(ks[1 + 2 * li], (out_c, in_c, 3, 3), jnp.float32)
        b = 0.05 * jax.random.normal(ks[2 + 2 * li], (out_c,), jnp.float32)
        convs.append((w, b))
        in_c = out_c

    params = {
        "convs": convs,
        "fc1_w": 0.05 * jax.random.normal(ks[7], (fc_size, flattened), jnp.float32),
        "fc1_b": 0.05 * jax.random.normal(ks[8], (fc_size,), jnp.float32),
        "fc2_w": 0.05 * jax.random.normal(ks[9], (output_dim, fc_size), jnp.float32),
        "fc2_b": jnp.zeros((output_dim,), jnp.float32),
    }

    prep = prepare_params(params)
    fwd = jax.jit(lambda xx: acaig_cnn_forward(xx, prep))

    out = jax.block_until_ready(fwd(x))
    ref = jax.block_until_ready(reference_forward(x, params))

    assert out.shape == (B, output_dim), out.shape
    err = float(jnp.max(jnp.abs(out - ref)))
    # bf16 MXU operands => ~1e-2-level agreement vs the f32 reference.
    assert jnp.allclose(out, ref, rtol=5e-2, atol=5e-2), f"max abs err {err}"
    print("KERNEL_OK")
</pallas_src>

<mosaic_0001>
module attributes {stable_mosaic.version = 11 : i64} {
  func.func @kernel(%arg0: i32, %arg1: memref<28x16x128xbf16, #tpu.memory_space<vmem>>, %arg2: memref<384x512xbf16, #tpu.memory_space<vmem>>, %arg3: memref<1x256xf32, #tpu.memory_space<vmem>>, %arg4: memref<768x512xbf16, #tpu.memory_space<vmem>>, %arg5: memref<1x256xf32, #tpu.memory_space<vmem>>, %arg6: memref<768x512xbf16, #tpu.memory_space<vmem>>, %arg7: memref<1x256xf32, #tpu.memory_space<vmem>>, %arg8: memref<768x128xbf16, #tpu.memory_space<vmem>>, %arg9: memref<1x128xf32, #tpu.memory_space<vmem>>, %arg10: memref<128x128xbf16, #tpu.memory_space<vmem>>, %arg11: memref<1x128xf32, #tpu.memory_space<vmem>>, %arg12: memref<16x128xf32, #tpu.memory_space<vmem>>, %arg13: memref<448x384xbf16, #tpu.memory_space<vmem>>, %arg14: memref<224x768xbf16, #tpu.memory_space<vmem>>, %arg15: memref<112x768xbf16, #tpu.memory_space<vmem>>, %arg16: memref<16x768xbf16, #tpu.memory_space<vmem>>) attributes {dimension_semantics = [#tpu.dimension_semantics<parallel>], iteration_bounds = array<i64: 1>, scalar_prefetch = 0 : i64, scratch_operands = 4 : i64, tpu.core_type = #tpu.core_type<tc>, window_params = [{transform_indices = @transform_0, window_bounds = array<i64: 28, 16, 128>}, {pipeline_mode = #tpu.pipeline_mode<synchronous>, transform_indices = @transform_1, window_bounds = array<i64: 384, 512>}, {pipeline_mode = #tpu.pipeline_mode<synchronous>, transform_indices = @transform_2, window_bounds = array<i64: 1, 256>}, {pipeline_mode = #tpu.pipeline_mode<synchronous>, transform_indices = @transform_3, window_bounds = array<i64: 768, 512>}, {pipeline_mode = #tpu.pipeline_mode<synchronous>, transform_indices = @transform_4, window_bounds = array<i64: 1, 256>}, {pipeline_mode = #tpu.pipeline_mode<synchronous>, transform_indices = @transform_5, window_bounds = array<i64: 768, 512>}, {pipeline_mode = #tpu.pipeline_mode<synchronous>, transform_indices = @transform_6, window_bounds = array<i64: 1, 256>}, {pipeline_mode = #tpu.pipeline_mode<synchronous>, transform_indices = @transform_7, window_bounds = array<i64: 768, 128>}, {pipeline_mode = #tpu.pipeline_mode<synchronous>, transform_indices = @transform_8, window_bounds = array<i64: 1, 128>}, {pipeline_mode = #tpu.pipeline_mode<synchronous>, transform_indices = @transform_9, window_bounds = array<i64: 128, 128>}, {pipeline_mode = #tpu.pipeline_mode<synchronous>, transform_indices = @transform_10, window_bounds = array<i64: 1, 128>}, {transform_indices = @transform_11, window_bounds = array<i64: 16, 128>}]} {
    %c0 = arith.constant 0 : index
    %c0_0 = arith.constant 0 : index
    %c0_1 = arith.constant 0 : index
    %0 = vector.load %arg1[%c0, %c0_0, %c0_1] : memref<28x16x128xbf16, #tpu.memory_space<vmem>>, vector<28x16x128xbf16>
    %1 = vector.shape_cast %0 : vector<28x16x128xbf16> to vector<448x128xbf16>
    %cst = arith.constant 0.000000e+00 : bf16
    %2 = vector.broadcast %cst : bf16 to vector<16x128xbf16>
    %c0_2 = arith.constant 0 : index
    %c128 = arith.constant 128 : index
    %3 = vector.load %arg13[%c0_2, %c128] : memref<448x384xbf16, #tpu.memory_space<vmem>>, vector<448x128xbf16>
    tpu.vector_store %arg13[%c0_2, %c128], %1 {strides = array<i32>} : memref<448x384xbf16, #tpu.memory_space<vmem>>, vector<448x128xbf16>,
    %c0_3 = arith.constant 0 : index
    %c0_4 = arith.constant 0 : index
    %4 = vector.load %arg13[%c0_3, %c0_4] : memref<448x384xbf16, #tpu.memory_space<vmem>>, vector<16x128xbf16>
    tpu.vector_store %arg13[%c0_3, %c0_4], %2 {strides = array<i32>} : memref<448x384xbf16, #tpu.memory_space<vmem>>, vector<16x128xbf16>,
    %5 = vector.extract_strided_slice %1 {offsets = [0, 0], sizes = [432, 128], strides = [1, 1]} : vector<448x128xbf16> to vector<432x128xbf16>
    %c16 = arith.constant 16 : index
    %c0_5 = arith.constant 0 : index
    %6 = vector.load %arg13[%c16, %c0_5] : memref<448x384xbf16, #tpu.memory_space<vmem>>, vector<432x128xbf16>
    tpu.vector_store %arg13[%c16, %c0_5], %5 {strides = array<i32>} : memref<448x384xbf16, #tpu.memory_space<vmem>>, vector<432x128xbf16>,
    %7 = vector.extract_strided_slice %1 {offsets = [16, 0], sizes = [432, 128], strides = [1, 1]} : vector<448x128xbf16> to vector<432x128xbf16>
    %c0_6 = arith.constant 0 : index
    %c256 = arith.constant 256 : index
    %8 = vector.load %arg13[%c0_6, %c256] : memref<448x384xbf16, #tpu.memory_space<vmem>>, vector<432x128xbf16>
    tpu.vector_store %arg13[%c0_6, %c256], %7 {strides = array<i32>} : memref<448x384xbf16, #tpu.memory_space<vmem>>, vector<432x128xbf16>,
    %c432 = arith.constant 432 : index
    %c256_7 = arith.constant 256 : index
    %9 = vector.load %arg13[%c432, %c256_7] : memref<448x384xbf16, #tpu.memory_space<vmem>>, vector<16x128xbf16>
    tpu.vector_store %arg13[%c432, %c256_7], %2 {strides = array<i32>} : memref<448x384xbf16, #tpu.memory_space<vmem>>, vector<16x128xbf16>,
    %c0_8 = arith.constant 0 : index
    %c0_9 = arith.constant 0 : index
    %10 = vector.load %arg13[%c0_8, %c0_9] : memref<448x384xbf16, #tpu.memory_space<vmem>>, vector<448x384xbf16>
    %c0_10 = arith.constant 0 : index
    %c0_11 = arith.constant 0 : index
    %11 = vector.load %arg2[%c0_10, %c0_11] : memref<384x512xbf16, #tpu.memory_space<vmem>>, vector<384x512xbf16>
    %cst_12 = arith.constant dense<0.000000e+00> : vector<448x512xf32>
    %12 = tpu.matmul %10, %11, %cst_12 {dimension_numbers = #tpu.dot_dimension_numbers<[1], [0], [0], [1], [0, 0, 1, 1], [], []>} : vector<448x384xbf16>, vector<384x512xbf16>, vector<448x512xf32> -> vector<448x512xf32>
    %13 = vector.extract_strided_slice %12 {offsets = [0, 0], sizes = [448, 256], strides = [1, 1]} : vector<448x512xf32> to vector<448x256xf32>
    %14 = vector.extract_strided_slice %12 {offsets = [0, 256], sizes = [448, 256], strides = [1, 1]} : vector<448x512xf32> to vector<448x256xf32>
    %15 = arith.maximumf %13, %14 : vector<448x256xf32>
    %16 = vector.shape_cast %15 : vector<448x256xf32> to vector<14x32x256xf32>
    %17 = vector.extract_strided_slice %16 {offsets = [0, 0, 0], sizes = [14, 16, 256], strides = [1, 1, 1]} : vector<14x32x256xf32> to vector<14x16x256xf32>
    %18 = vector.extract_strided_slice %16 {offsets = [0, 16, 0], sizes = [14, 16, 256], strides = [1, 1, 1]} : vector<14x32x256xf32> to vector<14x16x256xf32>
    %19 = arith.maximumf %17, %18 : vector<14x16x256xf32>
    %20 = vector.shape_cast %19 : vector<14x16x256xf32> to vector<224x256xf32>
    %c0_13 = arith.constant 0 : index
    %c0_14 = arith.constant 0 : index
    %21 = vector.load %arg3[%c0_13, %c0_14] : memref<1x256xf32, #tpu.memory_space<vmem>>, vector<1x256xf32>
    %22 = vector.broadcast %21 : vector<1x256xf32> to vector<224x256xf32>
    %23 = arith.addf %20, %22 : vector<224x256xf32>
    %cst_15 = arith.constant 0.000000e+00 : f32
    %24 = vector.broadcast %cst_15 : f32 to vector<224x256xf32>
    %25 = arith.maximumf %23, %24 : vector<224x256xf32>
    %26 = arith.truncf %25 : vector<224x256xf32> to vector<224x256xbf16>
    %cst_16 = arith.constant 0.000000e+00 : bf16
    %27 = vector.broadcast %cst_16 : bf16 to vector<16x256xbf16>
    %c0_17 = arith.constant 0 : index
    %c256_18 = arith.constant 256 : index
    %28 = vector.load %arg14[%c0_17, %c256_18] : memref<224x768xbf16, #tpu.memory_space<vmem>>, vector<224x256xbf16>
    tpu.vector_store %arg14[%c0_17, %c256_18], %26 {strides = array<i32>} : memref<224x768xbf16, #tpu.memory_space<vmem>>, vector<224x256xbf16>,
    %c0_19 = arith.constant 0 : index
    %c0_20 = arith.constant 0 : index
    %29 = vector.load %arg14[%c0_19, %c0_20] : memref<224x768xbf16, #tpu.memory_space<vmem>>, vector<16x256xbf16>
    tpu.vector_store %arg14[%c0_19, %c0_20], %27 {strides = array<i32>} : memref<224x768xbf16, #tpu.memory_space<vmem>>, vector<16x256xbf16>,
    %30 = vector.extract_strided_slice %26 {offsets = [0, 0], sizes = [208, 256], strides = [1, 1]} : vector<224x256xbf16> to vector<208x256xbf16>
    %c16_21 = arith.constant 16 : index
    %c0_22 = arith.constant 0 : index
    %31 = vector.load %arg14[%c16_21, %c0_22] : memref<224x768xbf16, #tpu.memory_space<vmem>>, vector<208x256xbf16>
    tpu.vector_store %arg14[%c16_21, %c0_22], %30 {strides = array<i32>} : memref<224x768xbf16, #tpu.memory_space<vmem>>, vector<208x256xbf16>,
    %32 = vector.extract_strided_slice %26 {offsets = [16, 0], sizes = [208, 256], strides = [1, 1]} : vector<224x256xbf16> to vector<208x256xbf16>
    %c0_23 = arith.constant 0 : index
    %c512 = arith.constant 512 : index
    %33 = vector.load %arg14[%c0_23, %c512] : memref<224x768xbf16, #tpu.memory_space<vmem>>, vector<208x256xbf16>
    tpu.vector_store %arg14[%c0_23, %c512], %32 {strides = array<i32>} : memref<224x768xbf16, #tpu.memory_space<vmem>>, vector<208x256xbf16>,
    %c208 = arith.constant 208 : index
    %c512_24 = arith.constant 512 : index
    %34 = vector.load %arg14[%c208, %c512_24] : memref<224x768xbf16, #tpu.memory_space<vmem>>, vector<16x256xbf16>
    tpu.vector_store %arg14[%c208, %c512_24], %27 {strides = array<i32>} : memref<224x768xbf16, #tpu.memory_space<vmem>>, vector<16x256xbf16>,
    %c0_25 = arith.constant 0 : index
    %c0_26 = arith.constant 0 : index
    %35 = vector.load %arg14[%c0_25, %c0_26] : memref<224x768xbf16, #tpu.memory_space<vmem>>, vector<224x768xbf16>
    %c0_27 = arith.constant 0 : index
    %c0_28 = arith.constant 0 : index
    %36 = vector.load %arg4[%c0_27, %c0_28] : memref<768x512xbf16, #tpu.memory_space<vmem>>, vector<768x512xbf16>
    %cst_29 = arith.constant dense<0.000000e+00> : vector<224x512xf32>
    %37 = tpu.matmul %35, %36, %cst_29 {dimension_numbers = #tpu.dot_dimension_numbers<[1], [0], [0], [1], [0, 0, 1, 1], [], []>} : vector<224x768xbf16>, vector<768x512xbf16>, vector<224x512xf32> -> vector<224x512xf32>
    %38 = vector.extract_strided_slice %37 {offsets = [0, 0], sizes = [224, 256], strides = [1, 1]} : vector<224x512xf32> to vector<224x256xf32>
    %39 = vector.extract_strided_slice %37 {offsets = [0, 256], sizes = [224, 256], strides = [1, 1]} : vector<224x512xf32> to vector<224x256xf32>
    %40 = arith.maximumf %38, %39 : vector<224x256xf32>
    %41 = vector.shape_cast %40 : vector<224x256xf32> to vector<7x32x256xf32>
    %42 = vector.extract_strided_slice %41 {offsets = [0, 0, 0], sizes = [7, 16, 256], strides = [1, 1, 1]} : vector<7x32x256xf32> to vector<7x16x256xf32>
    %43 = vector.extract_strided_slice %41 {offsets = [0, 16, 0], sizes = [7, 16, 256], strides = [1, 1, 1]} : vector<7x32x256xf32> to vector<7x16x256xf32>
    %44 = arith.maximumf %42, %43 : vector<7x16x256xf32>
    %45 = vector.shape_cast %44 : vector<7x16x256xf32> to vector<112x256xf32>
    %c0_30 = arith.constant 0 : index
    %c0_31 = arith.constant 0 : index
    %46 = vector.load %arg5[%c0_30, %c0_31] : memref<1x256xf32, #tpu.memory_space<vmem>>, vector<1x256xf32>
    %47 = vector.broadcast %46 : vector<1x256xf32> to vector<112x256xf32>
    %48 = arith.addf %45, %47 : vector<112x256xf32>
    %cst_32 = arith.constant 0.000000e+00 : f32
    %49 = vector.broadcast %cst_32 : f32 to vector<112x256xf32>
    %50 = arith.maximumf %48, %49 : vector<112x256xf32>
    %51 = arith.truncf %50 : vector<112x256xf32> to vector<112x256xbf16>
    %cst_33 = arith.constant 0.000000e+00 : bf16
    %52 = vector.broadcast %cst_33 : bf16 to vector<16x256xbf16>
    %c0_34 = arith.constant 0 : index
    %c256_35 = arith.constant 256 : index
    %53 = vector.load %arg15[%c0_34, %c256_35] : memref<112x768xbf16, #tpu.memory_space<vmem>>, vector<112x256xbf16>
    tpu.vector_store %arg15[%c0_34, %c256_35], %51 {strides = array<i32>} : memref<112x768xbf16, #tpu.memory_space<vmem>>, vector<112x256xbf16>,
    %c0_36 = arith.constant 0 : index
    %c0_37 = arith.constant 0 : index
    %54 = vector.load %arg15[%c0_36, %c0_37] : memref<112x768xbf16, #tpu.memory_space<vmem>>, vector<16x256xbf16>
    tpu.vector_store %arg15[%c0_36, %c0_37], %52 {strides = array<i32>} : memref<112x768xbf16, #tpu.memory_space<vmem>>, vector<16x256xbf16>,
    %55 = vector.extract_strided_slice %51 {offsets = [0, 0], sizes = [96, 256], strides = [1, 1]} : vector<112x256xbf16> to vector<96x256xbf16>
    %c16_38 = arith.constant 16 : index
    %c0_39 = arith.constant 0 : index
    %56 = vector.load %arg15[%c16_38, %c0_39] : memref<112x768xbf16, #tpu.memory_space<vmem>>, vector<96x256xbf16>
    tpu.vector_store %arg15[%c16_38, %c0_39], %55 {strides = array<i32>} : memref<112x768xbf16, #tpu.memory_space<vmem>>, vector<96x256xbf16>,
    %57 = vector.extract_strided_slice %51 {offsets = [16, 0], sizes = [96, 256], strides = [1, 1]} : vector<112x256xbf16> to vector<96x256xbf16>
    %c0_40 = arith.constant 0 : index
    %c512_41 = arith.constant 512 : index
    %58 = vector.load %arg15[%c0_40, %c512_41] : memref<112x768xbf16, #tpu.memory_space<vmem>>, vector<96x256xbf16>
    tpu.vector_store %arg15[%c0_40, %c512_41], %57 {strides = array<i32>} : memref<112x768xbf16, #tpu.memory_space<vmem>>, vector<96x256xbf16>,
    %c96 = arith.constant 96 : index
    %c512_42 = arith.constant 512 : index
    %59 = vector.load %arg15[%c96, %c512_42] : memref<112x768xbf16, #tpu.memory_space<vmem>>, vector<16x256xbf16>
    tpu.vector_store %arg15[%c96, %c512_42], %52 {strides = array<i32>} : memref<112x768xbf16, #tpu.memory_space<vmem>>, vector<16x256xbf16>,
    %c0_43 = arith.constant 0 : index
    %c0_44 = arith.constant 0 : index
    %60 = vector.load %arg15[%c0_43, %c0_44] : memref<112x768xbf16, #tpu.memory_space<vmem>>, vector<112x768xbf16>
    %c0_45 = arith.constant 0 : index
    %c0_46 = arith.constant 0 : index
    %61 = vector.load %arg6[%c0_45, %c0_46] : memref<768x512xbf16, #tpu.memory_space<vmem>>, vector<768x512xbf16>
    %cst_47 = arith.constant dense<0.000000e+00> : vector<112x512xf32>
    %62 = tpu.matmul %60, %61, %cst_47 {dimension_numbers = #tpu.dot_dimension_numbers<[1], [0], [0], [1], [0, 0, 1, 1], [], []>} : vector<112x768xbf16>, vector<768x512xbf16>, vector<112x512xf32> -> vector<112x512xf32>
    %63 = vector.extract_strided_slice %62 {offsets = [0, 0], sizes = [112, 256], strides = [1, 1]} : vector<112x512xf32> to vector<112x256xf32>
    %64 = vector.extract_strided_slice %62 {offsets = [0, 256], sizes = [112, 256], strides = [1, 1]} : vector<112x512xf32> to vector<112x256xf32>
    %65 = arith.maximumf %63, %64 : vector<112x256xf32>
    %66 = vector.extract_strided_slice %65 {offsets = [0, 0], sizes = [96, 256], strides = [1, 1]} : vector<112x256xf32> to vector<96x256xf32>
    %67 = vector.shape_cast %66 : vector<96x256xf32> to vector<3x32x256xf32>
    %68 = vector.extract_strided_slice %67 {offsets = [0, 0, 0], sizes = [3, 16, 256], strides = [1, 1, 1]} : vector<3x32x256xf32> to vector<3x16x256xf32>
    %69 = vector.extract_strided_slice %67 {offsets = [0, 16, 0], sizes = [3, 16, 256], strides = [1, 1, 1]} : vector<3x32x256xf32> to vector<3x16x256xf32>
    %70 = arith.maximumf %68, %69 : vector<3x16x256xf32>
    %71 = vector.shape_cast %70 : vector<3x16x256xf32> to vector<48x256xf32>
    %c0_48 = arith.constant 0 : index
    %c0_49 = arith.constant 0 : index
    %72 = vector.load %arg7[%c0_48, %c0_49] : memref<1x256xf32, #tpu.memory_space<vmem>>, vector<1x256xf32>
    %73 = vector.broadcast %72 : vector<1x256xf32> to vector<48x256xf32>
    %74 = arith.addf %71, %73 : vector<48x256xf32>
    %cst_50 = arith.constant 0.000000e+00 : f32
    %75 = vector.broadcast %cst_50 : f32 to vector<48x256xf32>
    %76 = arith.maximumf %74, %75 : vector<48x256xf32>
    %77 = arith.truncf %76 : vector<48x256xf32> to vector<48x256xbf16>
    %78 = vector.extract_strided_slice %77 {offsets = [0, 0], sizes = [16, 256], strides = [1, 1]} : vector<48x256xbf16> to vector<16x256xbf16>
    %c0_51 = arith.constant 0 : index
    %c0_52 = arith.constant 0 : index
    %79 = vector.load %arg16[%c0_51, %c0_52] : memref<16x768xbf16, #tpu.memory_space<vmem>>, vector<16x256xbf16>
    tpu.vector_store %arg16[%c0_51, %c0_52], %78 {strides = array<i32>} : memref<16x768xbf16, #tpu.memory_space<vmem>>, vector<16x256xbf16>,
    %80 = vector.extract_strided_slice %77 {offsets = [16, 0], sizes = [16, 256], strides = [1, 1]} : vector<48x256xbf16> to vector<16x256xbf16>
    %c0_53 = arith.constant 0 : index
    %c256_54 = arith.constant 256 : index
    %81 = vector.load %arg16[%c0_53, %c256_54] : memref<16x768xbf16, #tpu.memory_space<vmem>>, vector<16x256xbf16>
    tpu.vector_store %arg16[%c0_53, %c256_54], %80 {strides = array<i32>} : memref<16x768xbf16, #tpu.memory_space<vmem>>, vector<16x256xbf16>,
    %82 = vector.extract_strided_slice %77 {offsets = [32, 0], sizes = [16, 256], strides = [1, 1]} : vector<48x256xbf16> to vector<16x256xbf16>
    %c0_55 = arith.constant 0 : index
    %c512_56 = arith.constant 512 : index
    %83 = vector.load %arg16[%c0_55, %c512_56] : memref<16x768xbf16, #tpu.memory_space<vmem>>, vector<16x256xbf16>
    tpu.vector_store %arg16[%c0_55, %c512_56], %82 {strides = array<i32>} : memref<16x768xbf16, #tpu.memory_space<vmem>>, vector<16x256xbf16>,
    %c0_57 = arith.constant 0 : index
    %c0_58 = arith.constant 0 : index
    %84 = vector.load %arg16[%c0_57, %c0_58] : memref<16x768xbf16, #tpu.memory_space<vmem>>, vector<16x768xbf16>
    %c0_59 = arith.constant 0 : index
    %c0_60 = arith.constant 0 : index
    %85 = vector.load %arg8[%c0_59, %c0_60] : memref<768x128xbf16, #tpu.memory_space<vmem>>, vector<768x128xbf16>
    %cst_61 = arith.constant dense<0.000000e+00> : vector<16x128xf32>
    %86 = tpu.matmul %84, %85, %cst_61 {dimension_numbers = #tpu.dot_dimension_numbers<[1], [0], [0], [1], [0, 0, 1, 1], [], []>} : vector<16x768xbf16>, vector<768x128xbf16>, vector<16x128xf32> -> vector<16x128xf32>
    %c0_62 = arith.constant 0 : index
    %c0_63 = arith.constant 0 : index
    %87 = vector.load %arg9[%c0_62, %c0_63] : memref<1x128xf32, #tpu.memory_space<vmem>>, vector<1x128xf32>
    %88 = vector.broadcast %87 : vector<1x128xf32> to vector<16x128xf32>
    %89 = arith.addf %86, %88 : vector<16x128xf32>
    %cst_64 = arith.constant 0.000000e+00 : f32
    %90 = vector.broadcast %cst_64 : f32 to vector<16x128xf32>
    %91 = arith.maximumf %89, %90 : vector<16x128xf32>
    %92 = arith.truncf %91 : vector<16x128xf32> to vector<16x128xbf16>
    %c0_65 = arith.constant 0 : index
    %c0_66 = arith.constant 0 : index
    %93 = vector.load %arg10[%c0_65, %c0_66] : memref<128x128xbf16, #tpu.memory_space<vmem>>, vector<128x128xbf16>
    %cst_67 = arith.constant dense<0.000000e+00> : vector<16x128xf32>
    %94 = tpu.matmul %92, %93, %cst_67 {dimension_numbers = #tpu.dot_dimension_numbers<[1], [0], [0], [1], [0, 0, 1, 1], [], []>} : vector<16x128xbf16>, vector<128x128xbf16>, vector<16x128xf32> -> vector<16x128xf32>
    %c0_68 = arith.constant 0 : index
    %c0_69 = arith.constant 0 : index
    %95 = vector.load %arg11[%c0_68, %c0_69] : memref<1x128xf32, #tpu.memory_space<vmem>>, vector<1x128xf32>
    %96 = vector.broadcast %95 : vector<1x128xf32> to vector<16x128xf32>
    %97 = arith.addf %94, %96 : vector<16x128xf32>
    %c0_70 = arith.constant 0 : index
    %c0_71 = arith.constant 0 : index
    %98 = vector.load %arg12[%c0_70, %c0_71] : memref<16x128xf32, #tpu.memory_space<vmem>>, vector<16x128xf32>
    tpu.vector_store %arg12[%c0_70, %c0_71], %97 {strides = array<i32>} : memref<16x128xf32, #tpu.memory_space<vmem>>, vector<16x128xf32>,
    return
  }
  func.func @transform_0(%arg0: i32) -> (i32, i32, i32) {
    %c0_i32 = arith.constant 0 : i32
    %c0_i32_0 = arith.constant 0 : i32
    %c0_i32_1 = arith.constant 0 : i32
    return %c0_i32, %arg0, %c0_i32_0 : i32, i32, i32
  }
  func.func @transform_1(%arg0: i32) -> (i32, i32) {
    %c0_i32 = arith.constant 0 : i32
    %c0_i32_0 = arith.constant 0 : i32
    %c0_i32_1 = arith.constant 0 : i32
    return %c0_i32, %c0_i32_0 : i32, i32
  }
  func.func @transform_2(%arg0: i32) -> (i32, i32) {
    %c0_i32 = arith.constant 0 : i32
    %c0_i32_0 = arith.constant 0 : i32
    %c0_i32_1 = arith.constant 0 : i32
    return %c0_i32, %c0_i32_0 : i32, i32
  }
  func.func @transform_3(%arg0: i32) -> (i32, i32) {
    %c0_i32 = arith.constant 0 : i32
    %c0_i32_0 = arith.constant 0 : i32
    %c0_i32_1 = arith.constant 0 : i32
    return %c0_i32, %c0_i32_0 : i32, i32
  }
  func.func @transform_4(%arg0: i32) -> (i32, i32) {
    %c0_i32 = arith.constant 0 : i32
    %c0_i32_0 = arith.constant 0 : i32
    %c0_i32_1 = arith.constant 0 : i32
    return %c0_i32, %c0_i32_0 : i32, i32
  }
  func.func @transform_5(%arg0: i32) -> (i32, i32) {
    %c0_i32 = arith.constant 0 : i32
    %c0_i32_0 = arith.constant 0 : i32
    %c0_i32_1 = arith.constant 0 : i32
    return %c0_i32, %c0_i32_0 : i32, i32
  }
  func.func @transform_6(%arg0: i32) -> (i32, i32) {
    %c0_i32 = arith.constant 0 : i32
    %c0_i32_0 = arith.constant 0 : i32
    %c0_i32_1 = arith.constant 0 : i32
    return %c0_i32, %c0_i32_0 : i32, i32
  }
  func.func @transform_7(%arg0: i32) -> (i32, i32) {
    %c0_i32 = arith.constant 0 : i32
    %c0_i32_0 = arith.constant 0 : i32
    %c0_i32_1 = arith.constant 0 : i32
    return %c0_i32, %c0_i32_0 : i32, i32
  }
  func.func @transform_8(%arg0: i32) -> (i32, i32) {
    %c0_i32 = arith.constant 0 : i32
    %c0_i32_0 = arith.constant 0 : i32
    %c0_i32_1 = arith.constant 0 : i32
    return %c0_i32, %c0_i32_0 : i32, i32
  }
  func.func @transform_9(%arg0: i32) -> (i32, i32) {
    %c0_i32 = arith.constant 0 : i32
    %c0_i32_0 = arith.constant 0 : i32
    %c0_i32_1 = arith.constant 0 : i32
    return %c0_i32, %c0_i32_0 : i32, i32
  }
  func.func @transform_10(%arg0: i32) -> (i32, i32) {
    %c0_i32 = arith.constant 0 : i32
    %c0_i32_0 = arith.constant 0 : i32
    %c0_i32_1 = arith.constant 0 : i32
    return %c0_i32, %c0_i32_0 : i32, i32
  }
  func.func @transform_11(%arg0: i32) -> (i32, i32) {
    %c0_i32 = arith.constant 0 : i32
    %c0_i32_0 = arith.constant 0 : i32
    return %arg0, %c0_i32 : i32, i32
  }
}

</mosaic_0001>

<llo_original>
// kernel: _lambda_.1
$region0: #{_lambda_.1}
  #allocation0 [shape = 'u32[]', space=smem, size = 0x4, offset = 0x4, fixed_abs, tag = 'smem constant byte address 0x4 - core index']
  #allocation1 [shape = 'u32[144,128]{1,0:T(1,128)}', space=vmem, size = 0x12000, scoped, tag = 'internal scratch']
  #allocation2 [shape = 'bf16[448,384]{1,0:T(16,128)(2,1)}', space=vmem, size = 0x54000, scoped, tag = 'scratch operand']
  #allocation3 [shape = 'bf16[224,768]{1,0:T(16,128)(2,1)}', space=vmem, size = 0x54000, scoped, tag = 'scratch operand']
  #allocation4 [shape = 'bf16[112,768]{1,0:T(16,128)(2,1)}', space=vmem, size = 0x2a000, scoped, tag = 'scratch operand']
  #allocation5 [shape = 'bf16[16,768]{1,0:T(16,128)(2,1)}', space=vmem, size = 0x6000, scoped, tag = 'scratch operand']
  %s0 = inlined_call_operand.vmem [shape: bf16[28,16,128], index: 0, kind: input, shape index: {}]
  %s1 = inlined_call_operand.vmem [shape: bf16[384,512], index: 1, kind: input, shape index: {}]
  %s2 = inlined_call_operand.vmem [shape: f32[1,256], index: 2, kind: input, shape index: {}]
  %s3 = inlined_call_operand.vmem [shape: bf16[768,512], index: 3, kind: input, shape index: {}]
  %s4 = inlined_call_operand.vmem [shape: f32[1,256], index: 4, kind: input, shape index: {}]
  %s5 = inlined_call_operand.vmem [shape: bf16[768,512], index: 5, kind: input, shape index: {}]
  %s6 = inlined_call_operand.vmem [shape: f32[1,256], index: 6, kind: input, shape index: {}]
  %s7 = inlined_call_operand.vmem [shape: bf16[768,128], index: 7, kind: input, shape index: {}]
  %s8 = inlined_call_operand.vmem [shape: f32[1,128], index: 8, kind: input, shape index: {}]
  %s9 = inlined_call_operand.vmem [shape: bf16[128,128], index: 9, kind: input, shape index: {}]
  %s10 = inlined_call_operand.vmem [shape: f32[1,128], index: 10, kind: input, shape index: {}]
  %s11 = inlined_call_operand.vmem [shape: f32[16,128], index: 11, kind: output, shape index: {}]
  %s12 = sld [smem:[#allocation0]]
  $region54: #{_lambda_.1} parent=0
    _
  %s14 = ssub.s32 1, %s12
  %s15 = scalar_select 0, %s14, %s12
  // Predicated region
  $region2: #{_lambda_.1} parent=0 // pred_check
    _
  $region3: #{_lambda_.1} parent=0 // pred_check_branch
    %17 = sbr.rel (0) target = $region5
  $region4: #{_lambda_.1} parent=0 // pred_region
    _
  $region5: #{_lambda_.1} parent=0 // pred_fallthru
    _
  // Predicated region
  $region6: #{_lambda_.1} parent=0 // pred_check
    _
  $region7: #{_lambda_.1} parent=0 // pred_check_branch
    %19 = sbr.rel (0) target = $region9
  $region8: #{_lambda_.1} parent=0 // pred_region
    _
  $region9: #{_lambda_.1} parent=0 // pred_fallthru
    _
  // Predicated region
  $region10: #{_lambda_.1} parent=0 // pred_check
    _
  $region11: #{_lambda_.1} parent=0 // pred_check_branch
    %21 = sbr.rel (0) target = $region13
  $region12: #{_lambda_.1} parent=0 // pred_region
    _
  $region13: #{_lambda_.1} parent=0 // pred_fallthru
    _
  // Predicated region
  $region14: #{_lambda_.1} parent=0 // pred_check
    _
  $region15: #{_lambda_.1} parent=0 // pred_check_branch
    %23 = sbr.rel (0) target = $region17
  $region16: #{_lambda_.1} parent=0 // pred_region
    _
  $region17: #{_lambda_.1} parent=0 // pred_fallthru
    _
  // Predicated region
  $region18: #{_lambda_.1} parent=0 // pred_check
    _
  $region19: #{_lambda_.1} parent=0 // pred_check_branch
    %25 = sbr.rel (0) target = $region21
  $region20: #{_lambda_.1} parent=0 // pred_region
    _
  $region21: #{_lambda_.1} parent=0 // pred_fallthru
    _
  // Predicated region
  $region22: #{_lambda_.1} parent=0 // pred_check
    _
  $region23: #{_lambda_.1} parent=0 // pred_check_branch
    %27 = sbr.rel (0) target = $region25
  $region24: #{_lambda_.1} parent=0 // pred_region
    _
  $region25: #{_lambda_.1} parent=0 // pred_fallthru
    _
  // Predicated region
  $region26: #{_lambda_.1} parent=0 // pred_check
    _
  $region27: #{_lambda_.1} parent=0 // pred_check_branch
    %29 = sbr.rel (0) target = $region29
  $region28: #{_lambda_.1} parent=0 // pred_region
    _
  $region29: #{_lambda_.1} parent=0 // pred_fallthru
    _
  // Predicated region
  $region30: #{_lambda_.1} parent=0 // pred_check
    _
  $region31: #{_lambda_.1} parent=0 // pred_check_branch
    %31 = sbr.rel (0) target = $region33
  $region32: #{_lambda_.1} parent=0 // pred_region
    _
  $region33: #{_lambda_.1} parent=0 // pred_fallthru
    _
  // Predicated region
  $region34: #{_lambda_.1} parent=0 // pred_check
    _
  $region35: #{_lambda_.1} parent=0 // pred_check_branch
    %33 = sbr.rel (0) target = $region37
  $region36: #{_lambda_.1} parent=0 // pred_region
    _
  $region37: #{_lambda_.1} parent=0 // pred_fallthru
    _
  // Predicated region
  $region38: #{_lambda_.1} parent=0 // pred_check
    _
  $region39: #{_lambda_.1} parent=0 // pred_check_branch
    %35 = sbr.rel (0) target = $region41
  $region40: #{_lambda_.1} parent=0 // pred_region
    _
  $region41: #{_lambda_.1} parent=0 // pred_fallthru
    _
  // Predicated region
  $region42: #{_lambda_.1} parent=0 // pred_check
    _
  $region43: #{_lambda_.1} parent=0 // pred_check_branch
    %37 = sbr.rel (0) target = $region45
  $region44: #{_lambda_.1} parent=0 // pred_region
    _
  $region45: #{_lambda_.1} parent=0 // pred_fallthru
    _
  %v39 = vld [vmem:[%s0] sm:$0xf]
  %v40 = vld [vmem:[%s0 + $0x4] sm:$0xf]
  %v41 = vld [vmem:[%s0 + $0x8] sm:$0xf]
  %v42 = vld [vmem:[%s0 + $0xc] sm:$0xf]
  %v43 = vld [vmem:[%s0 + $0x10] sm:$0xf]
  %v44 = vld [vmem:[%s0 + $0x14] sm:$0xf]
  %v45 = vld [vmem:[%s0 + $0x18] sm:$0xf]
  %v46 = vld [vmem:[%s0 + $0x1c] sm:$0xf]
  %v47 = vld [vmem:[%s0 + $0x20] sm:$0xf]
  %v48 = vld [vmem:[%s0 + $0x24] sm:$0xf]
  %v49 = vld [vmem:[%s0 + $0x28] sm:$0xf]
  %v50 = vld [vmem:[%s0 + $0x2c] sm:$0xf]
  %v51 = vld [vmem:[%s0 + $0x30] sm:$0xf]
  %v52 = vld [vmem:[%s0 + $0x34] sm:$0xf]
  %v53 = vld [vmem:[%s0 + $0x38] sm:$0xf]
  %v54 = vld [vmem:[%s0 + $0x3c] sm:$0xf]
  %v55 = vld [vmem:[%s0 + $0x40] sm:$0xf]
  %v56 = vld [vmem:[%s0 + $0x44] sm:$0xf]
  %v57 = vld [vmem:[%s0 + $0x48] sm:$0xf]
  %v58 = vld [vmem:[%s0 + $0x4c] sm:$0xf]
  %v59 = vld [vmem:[%s0 + $0x50] sm:$0xf]
  %v60 = vld [vmem:[%s0 + $0x54] sm:$0xf]
  %v61 = vld [vmem:[%s0 + $0x58] sm:$0xf]
  %v62 = vld [vmem:[%s0 + $0x5c] sm:$0xf]
  %v63 = vld [vmem:[%s0 + $0x60] sm:$0xf]
  %v64 = vld [vmem:[%s0 + $0x64] sm:$0xf]
  %v65 = vld [vmem:[%s0 + $0x68] sm:$0xf]
  %v66 = vld [vmem:[%s0 + $0x6c] sm:$0xf]
  %v67 = vld [vmem:[%s0 + $0x70] sm:$0xf]
  %v68 = vld [vmem:[%s0 + $0x74] sm:$0xf]
  %v69 = vld [vmem:[%s0 + $0x78] sm:$0xf]
  %v70 = vld [vmem:[%s0 + $0x7c] sm:$0xf]
  %v71 = vld [vmem:[%s0 + $0x80] sm:$0xf]
  %v72 = vld [vmem:[%s0 + $0x84] sm:$0xf]
  %v73 = vld [vmem:[%s0 + $0x88] sm:$0xf]
  %v74 = vld [vmem:[%s0 + $0x8c] sm:$0xf]
  %v75 = vld [vmem:[%s0 + $0x90] sm:$0xf]
  %v76 = vld [vmem:[%s0 + $0x94] sm:$0xf]
  %v77 = vld [vmem:[%s0 + $0x98] sm:$0xf]
  %v78 = vld [vmem:[%s0 + $0x9c] sm:$0xf]
  %v79 = vld [vmem:[%s0 + $0xa0] sm:$0xf]
  %v80 = vld [vmem:[%s0 + $0xa4] sm:$0xf]
  %v81 = vld [vmem:[%s0 + $0xa8] sm:$0xf]
  %v82 = vld [vmem:[%s0 + $0xac] sm:$0xf]
  %v83 = vld [vmem:[%s0 + $0xb0] sm:$0xf]
  %v84 = vld [vmem:[%s0 + $0xb4] sm:$0xf]
  %v85 = vld [vmem:[%s0 + $0xb8] sm:$0xf]
  %v86 = vld [vmem:[%s0 + $0xbc] sm:$0xf]
  %v87 = vld [vmem:[%s0 + $0xc0] sm:$0xf]
  %v88 = vld [vmem:[%s0 + $0xc4] sm:$0xf]
  %v89 = vld [vmem:[%s0 + $0xc8] sm:$0xf]
  %v90 = vld [vmem:[%s0 + $0xcc] sm:$0xf]
  %v91 = vld [vmem:[%s0 + $0xd0] sm:$0xf]
  %v92 = vld [vmem:[%s0 + $0xd4] sm:$0xf]
  %v93 = vld [vmem:[%s0 + $0xd8] sm:$0xf]
  %v94 = vld [vmem:[%s0 + $0xdc] sm:$0xf]
  %v151 = vunpack.c.l.b16 %v39
  %v152 = vunpack.c.l.b16 %v40
  %v153 = vunpack.c.l.b16 %v41
  %v154 = vunpack.c.l.b16 %v42
  %v155 = vunpack.c.l.b16 %v43
  %v156 = vunpack.c.l.b16 %v44
  %v157 = vunpack.c.l.b16 %v45
  %v158 = vunpack.c.l.b16 %v46
  %v159 = vunpack.c.l.b16 %v47
  %v160 = vunpack.c.l.b16 %v48
  %v161 = vunpack.c.l.b16 %v49
  %v162 = vunpack.c.l.b16 %v50
  %v163 = vunpack.c.l.b16 %v51
  %v164 = vunpack.c.l.b16 %v52
  %v165 = vunpack.c.l.b16 %v53
  %v166 = vunpack.c.l.b16 %v54
  %v167 = vunpack.c.l.b16 %v55
  %v168 = vunpack.c.l.b16 %v56
  %v169 = vunpack.c.l.b16 %v57
  %v170 = vunpack.c.l.b16 %v58
  %v171 = vunpack.c.l.b16 %v59
  %v172 = vunpack.c.l.b16 %v60
  %v173 = vunpack.c.l.b16 %v61
  %v174 = vunpack.c.l.b16 %v62
  %v175 = vunpack.c.l.b16 %v63
  %v176 = vunpack.c.l.b16 %v64
  %v177 = vunpack.c.l.b16 %v65
  %v178 = vunpack.c.l.b16 %v66
  %v179 = vunpack.c.l.b16 %v67
  %v180 = vunpack.c.l.b16 %v68
  %v181 = vunpack.c.l.b16 %v69
  %v182 = vunpack.c.l.b16 %v70
  %v183 = vunpack.c.l.b16 %v71
  %v184 = vunpack.c.l.b16 %v72
  %v185 = vunpack.c.l.b16 %v73
  %v186 = vunpack.c.l.b16 %v74
  %v187 = vunpack.c.l.b16 %v75
  %v188 = vunpack.c.l.b16 %v76
  %v189 = vunpack.c.l.b16 %v77
  %v190 = vunpack.c.l.b16 %v78
  %v191 = vunpack.c.l.b16 %v79
  %v192 = vunpack.c.l.b16 %v80
  %v193 = vunpack.c.l.b16 %v81
  %v194 = vunpack.c.l.b16 %v82
  %v195 = vunpack.c.l.b16 %v83
  %v196 = vunpack.c.l.b16 %v84
  %v197 = vunpack.c.l.b16 %v85
  %v198 = vunpack.c.l.b16 %v86
  %v199 = vunpack.c.l.b16 %v87
  %v200 = vunpack.c.l.b16 %v88
  %v201 = vunpack.c.l.b16 %v89
  %v202 = vunpack.c.l.b16 %v90
  %v203 = vunpack.c.l.b16 %v91
  %v204 = vunpack.c.l.b16 %v92
  %v205 = vunpack.c.l.b16 %v93
  %v206 = vunpack.c.l.b16 %v94
  %v207 = vpack.c.b16 %v152, %v151
  %v208 = vpack.c.b16 %v154, %v153
  %v209 = vpack.c.b16 %v156, %v155
  %v210 = vpack.c.b16 %v158, %v157
  %v211 = vpack.c.b16 %v160, %v159
  %v212 = vpack.c.b16 %v162, %v161
  %v213 = vpack.c.b16 %v164, %v163
  %v214 = vpack.c.b16 %v166, %v165
  %v215 = vpack.c.b16 %v168, %v167
  %v216 = vpack.c.b16 %v170, %v169
  %v217 = vpack.c.b16 %v172, %v171
  %v218 = vpack.c.b16 %v174, %v173
  %v219 = vpack.c.b16 %v176, %v175
  %v220 = vpack.c.b16 %v178, %v177
  %v221 = vpack.c.b16 %v180, %v179
  %v222 = vpack.c.b16 %v182, %v181
  %v223 = vpack.c.b16 %v184, %v183
  %v224 = vpack.c.b16 %v186, %v185
  %v225 = vpack.c.b16 %v188, %v187
  %v226 = vpack.c.b16 %v190, %v189
  %v227 = vpack.c.b16 %v192, %v191
  %v228 = vpack.c.b16 %v194, %v193
  %v229 = vpack.c.b16 %v196, %v195
  %v230 = vpack.c.b16 %v198, %v197
  %v231 = vpack.c.b16 %v200, %v199
  %v232 = vpack.c.b16 %v202, %v201
  %v233 = vpack.c.b16 %v204, %v203
  %v234 = vpack.c.b16 %v206, %v205
  %263 = vst [vmem:[#allocation2 + $0x8] sm:$0xff] %v207
  %264 = vst [vmem:[#allocation2 + $0x20] sm:$0xff] %v208
  %265 = vst [vmem:[#allocation2 + $0x38] sm:$0xff] %v209
  %266 = vst [vmem:[#allocation2 + $0x50] sm:$0xff] %v210
  %267 = vst [vmem:[#allocation2 + $0x68] sm:$0xff] %v211
  %268 = vst [vmem:[#allocation2 + $0x80] sm:$0xff] %v212
  %269 = vst [vmem:[#allocation2 + $0x98] sm:$0xff] %v213
  %270 = vst [vmem:[#allocation2 + $0xb0] sm:$0xff] %v214
  %271 = vst [vmem:[#allocation2 + $0xc8] sm:$0xff] %v215
  %272 = vst [vmem:[#allocation2 + $0xe0] sm:$0xff] %v216
  %273 = vst [vmem:[#allocation2 + $0xf8] sm:$0xff] %v217
  %274 = vst [vmem:[#allocation2 + $0x110] sm:$0xff] %v218
  %275 = vst [vmem:[#allocation2 + $0x128] sm:$0xff] %v219
  %276 = vst [vmem:[#allocation2 + $0x140] sm:$0xff] %v220
  %277 = vst [vmem:[#allocation2 + $0x158] sm:$0xff] %v221
  %278 = vst [vmem:[#allocation2 + $0x170] sm:$0xff] %v222
  %279 = vst [vmem:[#allocation2 + $0x188] sm:$0xff] %v223
  %280 = vst [vmem:[#allocation2 + $0x1a0] sm:$0xff] %v224
  %281 = vst [vmem:[#allocation2 + $0x1b8] sm:$0xff] %v225
  %282 = vst [vmem:[#allocation2 + $0x1d0] sm:$0xff] %v226
  %283 = vst [vmem:[#allocation2 + $0x1e8] sm:$0xff] %v227
  %284 = vst [vmem:[#allocation2 + $0x200] sm:$0xff] %v228
  %285 = vst [vmem:[#allocation2 + $0x218] sm:$0xff] %v229
  %286 = vst [vmem:[#allocation2 + $0x230] sm:$0xff] %v230
  %287 = vst [vmem:[#allocation2 + $0x248] sm:$0xff] %v231
  %288 = vst [vmem:[#allocation2 + $0x260] sm:$0xff] %v232
  %289 = vst [vmem:[#allocation2 + $0x278] sm:$0xff] %v233
  %290 = vst [vmem:[#allocation2 + $0x290] sm:$0xff] %v234
  %291 = vst [vmem:[#allocation2] sm:$0xff] 0
  %292 = vst [vmem:[#allocation2 + $0x18] sm:$0xff] %v207
  %293 = vst [vmem:[#allocation2 + $0x30] sm:$0xff] %v208
  %294 = vst [vmem:[#allocation2 + $0x48] sm:$0xff] %v209
  %295 = vst [vmem:[#allocation2 + $0x60] sm:$0xff] %v210
  %296 = vst [vmem:[#allocation2 + $0x78] sm:$0xff] %v211
  %297 = vst [vmem:[#allocation2 + $0x90] sm:$0xff] %v212
  %298 = vst [vmem:[#allocation2 + $0xa8] sm:$0xff] %v213
  %299 = vst [vmem:[#allocation2 + $0xc0] sm:$0xff] %v214
  %300 = vst [vmem:[#allocation2 + $0xd8] sm:$0xff] %v215
  %301 = vst [vmem:[#allocation2 + $0xf0] sm:$0xff] %v216
  %302 = vst [vmem:[#allocation2 + $0x108] sm:$0xff] %v217
  %303 = vst [vmem:[#allocation2 + $0x120] sm:$0xff] %v218
  %304 = vst [vmem:[#allocation2 + $0x138] sm:$0xff] %v219
  %305 = vst [vmem:[#allocation2 + $0x150] sm:$0xff] %v220
  %306 = vst [vmem:[#allocation2 + $0x168] sm:$0xff] %v221
  %307 = vst [vmem:[#allocation2 + $0x180] sm:$0xff] %v222
  %308 = vst [vmem:[#allocation2 + $0x198] sm:$0xff] %v223
  %309 = vst [vmem:[#allocation2 + $0x1b0] sm:$0xff] %v224
  %310 = vst [vmem:[#allocation2 + $0x1c8] sm:$0xff] %v225
  %311 = vst [vmem:[#allocation2 + $0x1e0] sm:$0xff] %v226
  %312 = vst [vmem:[#allocation2 + $0x1f8] sm:$0xff] %v227
  %313 = vst [vmem:[#allocation2 + $0x210] sm:$0xff] %v228
  %314 = vst [vmem:[#allocation2 + $0x228] sm:$0xff] %v229
  %315 = vst [vmem:[#allocation2 + $0x240] sm:$0xff] %v230
  %316 = vst [vmem:[#allocation2 + $0x258] sm:$0xff] %v231
  %317 = vst [vmem:[#allocation2 + $0x270] sm:$0xff] %v232
  %318 = vst [vmem:[#allocation2 + $0x288] sm:$0xff] %v233
  %319 = vst [vmem:[#allocation2 + $0x10] sm:$0xff] %v208
  %320 = vst [vmem:[#allocation2 + $0x28] sm:$0xff] %v209
  %321 = vst [vmem:[#allocation2 + $0x40] sm:$0xff] %v210
  %322 = vst [vmem:[#allocation2 + $0x58] sm:$0xff] %v211
  %323 = vst [vmem:[#allocation2 + $0x70] sm:$0xff] %v212
  %324 = vst [vmem:[#allocation2 + $0x88] sm:$0xff] %v213
  %325 = vst [vmem:[#allocation2 + $0xa0] sm:$0xff] %v214
  %326 = vst [vmem:[#allocation2 + $0xb8] sm:$0xff] %v215
  %327 = vst [vmem:[#allocation2 + $0xd0] sm:$0xff] %v216
  %328 = vst [vmem:[#allocation2 + $0xe8] sm:$0xff] %v217
  %329 = vst [vmem:[#allocation2 + $0x100] sm:$0xff] %v218
  %330 = vst [vmem:[#allocation2 + $0x118] sm:$0xff] %v219
  %331 = vst [vmem:[#allocation2 + $0x130] sm:$0xff] %v220
  %332 = vst [vmem:[#allocation2 + $0x148] sm:$0xff] %v221
  %333 = vst [vmem:[#allocation2 + $0x160] sm:$0xff] %v222
  %334 = vst [vmem:[#allocation2 + $0x178] sm:$0xff] %v223
  %335 = vst [vmem:[#allocation2 + $0x190] sm:$0xff] %v224
  %336 = vst [vmem:[#allocation2 + $0x1a8] sm:$0xff] %v225
  %337 = vst [vmem:[#allocation2 + $0x1c0] sm:$0xff] %v226
  %338 = vst [vmem:[#allocation2 + $0x1d8] sm:$0xff] %v227
  %339 = vst [vmem:[#allocation2 + $0x1f0] sm:$0xff] %v228
  %340 = vst [vmem:[#allocation2 + $0x208] sm:$0xff] %v229
  %341 = vst [vmem:[#allocation2 + $0x220] sm:$0xff] %v230
  %342 = vst [vmem:[#allocation2 + $0x238] sm:$0xff] %v231
  %343 = vst [vmem:[#allocation2 + $0x250] sm:$0xff] %v232
  %344 = vst [vmem:[#allocation2 + $0x268] sm:$0xff] %v233
  %345 = vst [vmem:[#allocation2 + $0x280] sm:$0xff] %v234
  %346 = vst [vmem:[#allocation2 + $0x298] sm:$0xff] 0
  %v347 = vld [vmem:[#allocation2] sm:$0xff]
  %v348 = vld [vmem:[#allocation2 + $0x8] sm:$0xff]
  %v349 = vld [vmem:[#allocation2 + $0x10] sm:$0xff]
  %v350 = vld [vmem:[#allocation2 + $0x18] sm:$0xff]
  %v351 = vld [vmem:[#allocation2 + $0x20] sm:$0xff]
  %v352 = vld [vmem:[#allocation2 + $0x28] sm:$0xff]
  %v353 = vld [vmem:[#allocation2 + $0x30] sm:$0xff]
  %v354 = vld [vmem:[#allocation2 + $0x38] sm:$0xff]
  %v355 = vld [vmem:[#allocation2 + $0x40] sm:$0xff]
  %v356 = vld [vmem:[#allocation2 + $0x48] sm:$0xff]
  %v357 = vld [vmem:[#allocation2 + $0x50] sm:$0xff]
  %v358 = vld [vmem:[#allocation2 + $0x58] sm:$0xff]
  %v359 = vld [vmem:[#allocation2 + $0x60] sm:$0xff]
  %v360 = vld [vmem:[#allocation2 + $0x68] sm:$0xff]
  %v361 = vld [vmem:[#allocation2 + $0x70] sm:$0xff]
  %v362 = vld [vmem:[#allocation2 + $0x78] sm:$0xff]
  %v363 = vld [vmem:[#allocation2 + $0x80] sm:$0xff]
  %v364 = vld [vmem:[#allocation2 + $0x88] sm:$0xff]
  %v365 = vld [vmem:[#allocation2 + $0x90] sm:$0xff]
  %v366 = vld [vmem:[#allocation2 + $0x98] sm:$0xff]
  %v367 = vld [vmem:[#allocation2 + $0xa0] sm:$0xff]
  %v368 = vld [vmem:[#allocation2 + $0xa8] sm:$0xff]
  %v369 = vld [vmem:[#allocation2 + $0xb0] sm:$0xff]
  %v370 = vld [vmem:[#allocation2 + $0xb8] sm:$0xff]
  %v371 = vld [vmem:[#allocation2 + $0xc0] sm:$0xff]
  %v372 = vld [vmem:[#allocation2 + $0xc8] sm:$0xff]
  %v373 = vld [vmem:[#allocation2 + $0xd0] sm:$0xff]
  %v374 = vld [vmem:[#allocation2 + $0xd8] sm:$0xff]
  %v375 = vld [vmem:[#allocation2 + $0xe0] sm:$0xff]
  %v376 = vld [vmem:[#allocation2 + $0xe8] sm:$0xff]
  %v377 = vld [vmem:[#allocation2 + $0xf0] sm:$0xff]
  %v378 = vld [vmem:[#allocation2 + $0xf8] sm:$0xff]
  %v379 = vld [vmem:[#allocation2 + $0x100] sm:$0xff]
  %v380 = vld [vmem:[#allocation2 + $0x108] sm:$0xff]
  %v381 = vld [vmem:[#allocation2 + $0x110] sm:$0xff]
  %v382 = vld [vmem:[#allocation2 + $0x118] sm:$0xff]
  %v383 = vld [vmem:[#allocation2 + $0x120] sm:$0xff]
  %v384 = vld [vmem:[#allocation2 + $0x128] sm:$0xff]
  %v385 = vld [vmem:[#allocation2 + $0x130] sm:$0xff]
  %v386 = vld [vmem:[#allocation2 + $0x138] sm:$0xff]
  %v387 = vld [vmem:[#allocation2 + $0x140] sm:$0xff]
  %v388 = vld [vmem:[#allocation2 + $0x148] sm:$0xff]
  %v389 = vld [vmem:[#allocation2 + $0x150] sm:$0xff]
  %v390 = vld [vmem:[#allocation2 + $0x158] sm:$0xff]
  %v391 = vld [vmem:[#allocation2 + $0x160] sm:$0xff]
  %v392 = vld [vmem:[#allocation2 + $0x168] sm:$0xff]
  %v393 = vld [vmem:[#allocation2 + $0x170] sm:$0xff]
  %v394 = vld [vmem:[#allocation2 + $0x178] sm:$0xff]
  %v395 = vld [vmem:[#allocation2 + $0x180] sm:$0xff]
  %v396 = vld [vmem:[#allocation2 + $0x188] sm:$0xff]
  %v397 = vld [vmem:[#allocation2 + $0x190] sm:$0xff]
  %v398 = vld [vmem:[#allocation2 + $0x198] sm:$0xff]
  %v399 = vld [vmem:[#allocation2 + $0x1a0] sm:$0xff]
  %v400 = vld [vmem:[#allocation2 + $0x1a8] sm:$0xff]
  %v401 = vld [vmem:[#allocation2 + $0x1b0] sm:$0xff]
  %v402 = vld [vmem:[#allocation2 + $0x1b8] sm:$0xff]
  %v403 = vld [vmem:[#allocation2 + $0x1c0] sm:$0xff]
  %v404 = vld [vmem:[#allocation2 + $0x1c8] sm:$0xff]
  %v405 = vld [vmem:[#allocation2 + $0x1d0] sm:$0xff]
  %v406 = vld [vmem:[#allocation2 + $0x1d8] sm:$0xff]
  %v407 = vld [vmem:[#allocation2 + $0x1e0] sm:$0xff]
  %v408 = vld [vmem:[#allocation2 + $0x1e8] sm:$0xff]
  %v409 = vld [vmem:[#allocation2 + $0x1f0] sm:$0xff]
  %v410 = vld [vmem:[#allocation2 + $0x1f8] sm:$0xff]
  %v411 = vld [vmem:[#allocation2 + $0x200] sm:$0xff]
  %v412 = vld [vmem:[#allocation2 + $0x208] sm:$0xff]
  %v413 = vld [vmem:[#allocation2 + $0x210] sm:$0xff]
  %v414 = vld [vmem:[#allocation2 + $0x218] sm:$0xff]
  %v415 = vld [vmem:[#allocation2 + $0x220] sm:$0xff]
  %v416 = vld [vmem:[#allocation2 + $0x228] sm:$0xff]
  %v417 = vld [vmem:[#allocation2 + $0x230] sm:$0xff]
  %v418 = vld [vmem:[#allocation2 + $0x238] sm:$0xff]
  %v419 = vld [vmem:[#allocation2 + $0x240] sm:$0xff]
  %v420 = vld [vmem:[#allocation2 + $0x248] sm:$0xff]
  %v421 = vld [vmem:[#allocation2 + $0x250] sm:$0xff]
  %v422 = vld [vmem:[#allocation2 + $0x258] sm:$0xff]
  %v423 = vld [vmem:[#allocation2 + $0x260] sm:$0xff]
  %v424 = vld [vmem:[#allocation2 + $0x268] sm:$0xff]
  %v425 = vld [vmem:[#allocation2 + $0x270] sm:$0xff]
  %v426 = vld [vmem:[#allocation2 + $0x278] sm:$0xff]
  %v427 = vld [vmem:[#allocation2 + $0x280] sm:$0xff]
  %v428 = vld [vmem:[#allocation2 + $0x288] sm:$0xff]
  %v429 = vld [vmem:[#allocation2 + $0x290] sm:$0xff]
  %v430 = vld [vmem:[#allocation2 + $0x298] sm:$0xff]
  %v431 = vld [vmem:[%s1] sm:$0xff]
  %v432 = vld [vmem:[%s1 + $0x8] sm:$0xff]
  %v433 = vld [vmem:[%s1 + $0x10] sm:$0xff]
  %v434 = vld [vmem:[%s1 + $0x18] sm:$0xff]
  %v435 = vld [vmem:[%s1 + $0x20] sm:$0xff]
  %v436 = vld [vmem:[%s1 + $0x28] sm:$0xff]
  %v437 = vld [vmem:[%s1 + $0x30] sm:$0xff]
  %v438 = vld [vmem:[%s1 + $0x38] sm:$0xff]
  %v439 = vld [vmem:[%s1 + $0x40] sm:$0xff]
  %v440 = vld [vmem:[%s1 + $0x48] sm:$0xff]
  %v441 = vld [vmem:[%s1 + $0x50] sm:$0xff]
  %v442 = vld [vmem:[%s1 + $0x58] sm:$0xff]
  %v443 = vld [vmem:[%s1 + $0x60] sm:$0xff]
  %v444 = vld [vmem:[%s1 + $0x68] sm:$0xff]
  %v445 = vld [vmem:[%s1 + $0x70] sm:$0xff]
  %v446 = vld [vmem:[%s1 + $0x78] sm:$0xff]
  %v447 = vld [vmem:[%s1 + $0x80] sm:$0xff]
  %v448 = vld [vmem:[%s1 + $0x88] sm:$0xff]
  %v449 = vld [vmem:[%s1 + $0x90] sm:$0xff]
  %v450 = vld [vmem:[%s1 + $0x98] sm:$0xff]
  %v451 = vld [vmem:[%s1 + $0xa0] sm:$0xff]
  %v452 = vld [vmem:[%s1 + $0xa8] sm:$0xff]
  %v453 = vld [vmem:[%s1 + $0xb0] sm:$0xff]
  %v454 = vld [vmem:[%s1 + $0xb8] sm:$0xff]
  %v455 = vld [vmem:[%s1 + $0xc0] sm:$0xff]
  %v456 = vld [vmem:[%s1 + $0xc8] sm:$0xff]
  %v457 = vld [vmem:[%s1 + $0xd0] sm:$0xff]
  %v458 = vld [vmem:[%s1 + $0xd8] sm:$0xff]
  %v459 = vld [vmem:[%s1 + $0xe0] sm:$0xff]
  %v460 = vld [vmem:[%s1 + $0xe8] sm:$0xff]
  %v461 = vld [vmem:[%s1 + $0xf0] sm:$0xff]
  %v462 = vld [vmem:[%s1 + $0xf8] sm:$0xff]
  %v463 = vld [vmem:[%s1 + $0x100] sm:$0xff]
  %v464 = vld [vmem:[%s1 + $0x108] sm:$0xff]
  %v465 = vld [vmem:[%s1 + $0x110] sm:$0xff]
  %v466 = vld [vmem:[%s1 + $0x118] sm:$0xff]
  %v467 = vld [vmem:[%s1 + $0x120] sm:$0xff]
  %v468 = vld [vmem:[%s1 + $0x128] sm:$0xff]
  %v469 = vld [vmem:[%s1 + $0x130] sm:$0xff]
  %v470 = vld [vmem:[%s1 + $0x138] sm:$0xff]
  %v471 = vld [vmem:[%s1 + $0x140] sm:$0xff]
  %v472 = vld [vmem:[%s1 + $0x148] sm:$0xff]
  %v473 = vld [vmem:[%s1 + $0x150] sm:$0xff]
  %v474 = vld [vmem:[%s1 + $0x158] sm:$0xff]
  %v475 = vld [vmem:[%s1 + $0x160] sm:$0xff]
  %v476 = vld [vmem:[%s1 + $0x168] sm:$0xff]
  %v477 = vld [vmem:[%s1 + $0x170] sm:$0xff]
  %v478 = vld [vmem:[%s1 + $0x178] sm:$0xff]
  %v479 = vld [vmem:[%s1 + $0x180] sm:$0xff]
  %v480 = vld [vmem:[%s1 + $0x188] sm:$0xff]
  %v481 = vld [vmem:[%s1 + $0x190] sm:$0xff]
  %v482 = vld [vmem:[%s1 + $0x198] sm:$0xff]
  %v483 = vld [vmem:[%s1 + $0x1a0] sm:$0xff]
  %v484 = vld [vmem:[%s1 + $0x1a8] sm:$0xff]
  %v485 = vld [vmem:[%s1 + $0x1b0] sm:$0xff]
  %v486 = vld [vmem:[%s1 + $0x1b8] sm:$0xff]
  %v487 = vld [vmem:[%s1 + $0x1c0] sm:$0xff]
  %v488 = vld [vmem:[%s1 + $0x1c8] sm:$0xff]
  %v489 = vld [vmem:[%s1 + $0x1d0] sm:$0xff]
  %v490 = vld [vmem:[%s1 + $0x1d8] sm:$0xff]
  %v491 = vld [vmem:[%s1 + $0x1e0] sm:$0xff]
  %v492 = vld [vmem:[%s1 + $0x1e8] sm:$0xff]
  %v493 = vld [vmem:[%s1 + $0x1f0] sm:$0xff]
  %v494 = vld [vmem:[%s1 + $0x1f8] sm:$0xff]
  %v495 = vld [vmem:[%s1 + $0x200] sm:$0xff]
  %v496 = vld [vmem:[%s1 + $0x208] sm:$0xff]
  %v497 = vld [vmem:[%s1 + $0x210] sm:$0xff]
  %v498 = vld [vmem:[%s1 + $0x218] sm:$0xff]
  %v499 = vld [vmem:[%s1 + $0x220] sm:$0xff]
  %v500 = vld [vmem:[%s1 + $0x228] sm:$0xff]
  %v501 = vld [vmem:[%s1 + $0x230] sm:$0xff]
  %v502 = vld [vmem:[%s1 + $0x238] sm:$0xff]
  %v503 = vld [vmem:[%s1 + $0x240] sm:$0xff]
  %v504 = vld [vmem:[%s1 + $0x248] sm:$0xff]
  %v505 = vld [vmem:[%s1 + $0x250] sm:$0xff]
  %v506 = vld [vmem:[%s1 + $0x258] sm:$0xff]
  %v507 = vld [vmem:[%s1 + $0x260] sm:$0xff]
  %v508 = vld [vmem:[%s1 + $0x268] sm:$0xff]
  %v509 = vld [vmem:[%s1 + $0x270] sm:$0xff]
  %v510 = vld [vmem:[%s1 + $0x278] sm:$0xff]
  %v511 = vld [vmem:[%s1 + $0x280] sm:$0xff]
  %v512 = vld [vmem:[%s1 + $0x288] sm:$0xff]
  %v513 = vld [vmem:[%s1 + $0x290] sm:$0xff]
  %v514 = vld [vmem:[%s1 + $0x298] sm:$0xff]
  %v515 = vld [vmem:[%s1 + $0x2a0] sm:$0xff]
  %v516 = vld [vmem:[%s1 + $0x2a8] sm:$0xff]
  %v517 = vld [vmem:[%s1 + $0x2b0] sm:$0xff]
  %v518 = vld [vmem:[%s1 + $0x2b8] sm:$0xff]
  %v519 = vld [vmem:[%s1 + $0x2c0] sm:$0xff]
  %v520 = vld [vmem:[%s1 + $0x2c8] sm:$0xff]
  %v521 = vld [vmem:[%s1 + $0x2d0] sm:$0xff]
  %v522 = vld [vmem:[%s1 + $0x2d8] sm:$0xff]
  %v523 = vld [vmem:[%s1 + $0x2e0] sm:$0xff]
  %v524 = vld [vmem:[%s1 + $0x2e8] sm:$0xff]
  %v525 = vld [vmem:[%s1 + $0x2f0] sm:$0xff]
  %v526 = vld [vmem:[%s1 + $0x2f8] sm:$0xff]
  %v623 = vunpack.c.l.b16 %v431
  %v624 = vunpack.c.h.b16 %v431
  %v625 = vunpack.c.l.b16 %v432
  %v626 = vunpack.c.h.b16 %v432
  %v627 = vunpack.c.l.b16 %v433
  %v628 = vunpack.c.h.b16 %v433
  %v629 = vunpack.c.l.b16 %v434
  %v630 = vunpack.c.h.b16 %v434
  %v631 = vunpack.c.l.b16 %v435
  %v632 = vunpack.c.h.b16 %v435
  %v633 = vunpack.c.l.b16 %v436
  %v634 = vunpack.c.h.b16 %v436
  %v635 = vunpack.c.l.b16 %v437
  %v636 = vunpack.c.h.b16 %v437
  %v637 = vunpack.c.l.b16 %v438
  %v638 = vunpack.c.h.b16 %v438
  %v639 = vunpack.c.l.b16 %v439
  %v640 = vunpack.c.h.b16 %v439
  %v641 = vunpack.c.l.b16 %v440
  %v642 = vunpack.c.h.b16 %v440
  %v643 = vunpack.c.l.b16 %v441
  %v644 = vunpack.c.h.b16 %v441
  %v645 = vunpack.c.l.b16 %v442
  %v646 = vunpack.c.h.b16 %v442
  %v647 = vunpack.c.l.b16 %v443
  %v648 = vunpack.c.h.b16 %v443
  %v649 = vunpack.c.l.b16 %v444
  %v650 = vunpack.c.h.b16 %v444
  %v651 = vunpack.c.l.b16 %v445
  %v652 = vunpack.c.h.b16 %v445
  %v653 = vunpack.c.l.b16 %v446
  %v654 = vunpack.c.h.b16 %v446
  %v655 = vunpack.c.l.b16 %v447
  %v656 = vunpack.c.h.b16 %v447
  %v657 = vunpack.c.l.b16 %v448
  %v658 = vunpack.c.h.b16 %v448
  %v659 = vunpack.c.l.b16 %v449
  %v660 = vunpack.c.h.b16 %v449
  %v661 = vunpack.c.l.b16 %v450
  %v662 = vunpack.c.h.b16 %v450
  %v663 = vunpack.c.l.b16 %v451
  %v664 = vunpack.c.h.b16 %v451
  %v665 = vunpack.c.l.b16 %v452
  %v666 = vunpack.c.h.b16 %v452
  %v667 = vunpack.c.l.b16 %v453
  %v668 = vunpack.c.h.b16 %v453
  %v669 = vunpack.c.l.b16 %v454
  %v670 = vunpack.c.h.b16 %v454
  %v671 = vunpack.c.l.b16 %v455
  %v672 = vunpack.c.h.b16 %v455
  %v673 = vunpack.c.l.b16 %v456
  %v674 = vunpack.c.h.b16 %v456
  %v675 = vunpack.c.l.b16 %v457
  %v676 = vunpack.c.h.b16 %v457
  %v677 = vunpack.c.l.b16 %v458
  %v678 = vunpack.c.h.b16 %v458
  %v679 = vunpack.c.l.b16 %v459
  %v680 = vunpack.c.h.b16 %v459
  %v681 = vunpack.c.l.b16 %v460
  %v682 = vunpack.c.h.b16 %v460
  %v683 = vunpack.c.l.b16 %v461
  %v684 = vunpack.c.h.b16 %v461
  %v685 = vunpack.c.l.b16 %v462
  %v686 = vunpack.c.h.b16 %v462
  %v687 = vunpack.c.l.b16 %v463
  %v688 = vunpack.c.h.b16 %v463
  %v689 = vunpack.c.l.b16 %v464
  %v690 = vunpack.c.h.b16 %v464
  %v691 = vunpack.c.l.b16 %v465
  %v692 = vunpack.c.h.b16 %v465
  %v693 = vunpack.c.l.b16 %v466
  %v694 = vunpack.c.h.b16 %v466
  %v695 = vunpack.c.l.b16 %v467
  %v696 = vunpack.c.h.b16 %v467
  %v697 = vunpack.c.l.b16 %v468
  %v698 = vunpack.c.h.b16 %v468
  %v699 = vunpack.c.l.b16 %v469
  %v700 = vunpack.c.h.b16 %v469
  %v701 = vunpack.c.l.b16 %v470
  %v702 = vunpack.c.h.b16 %v470
  %v703 = vunpack.c.l.b16 %v471
  %v704 = vunpack.c.h.b16 %v471
  %v705 = vunpack.c.l.b16 %v472
  %v706 = vunpack.c.h.b16 %v472
  %v707 = vunpack.c.l.b16 %v473
  %v708 = vunpack.c.h.b16 %v473
  %v709 = vunpack.c.l.b16 %v474
  %v710 = vunpack.c.h.b16 %v474
  %v711 = vunpack.c.l.b16 %v475
  %v712 = vunpack.c.h.b16 %v475
  %v713 = vunpack.c.l.b16 %v476
  %v714 = vunpack.c.h.b16 %v476
  %v715 = vunpack.c.l.b16 %v477
  %v716 = vunpack.c.h.b16 %v477
  %v717 = vunpack.c.l.b16 %v478
  %v718 = vunpack.c.h.b16 %v478
  %v719 = vunpack.c.l.b16 %v479
  %v720 = vunpack.c.h.b16 %v479
  %v721 = vunpack.c.l.b16 %v480
  %v722 = vunpack.c.h.b16 %v480
  %v723 = vunpack.c.l.b16 %v481
  %v724 = vunpack.c.h.b16 %v481
  %v725 = vunpack.c.l.b16 %v482
  %v726 = vunpack.c.h.b16 %v482
  %v727 = vunpack.c.l.b16 %v483
  %v728 = vunpack.c.h.b16 %v483
  %v729 = vunpack.c.l.b16 %v484
  %v730 = vunpack.c.h.b16 %v484
  %v731 = vunpack.c.l.b16 %v485
  %v732 = vunpack.c.h.b16 %v485
  %v733 = vunpack.c.l.b16 %v486
  %v734 = vunpack.c.h.b16 %v486
  %v735 = vunpack.c.l.b16 %v487
  %v736 = vunpack.c.h.b16 %v487
  %v737 = vunpack.c.l.b16 %v488
  %v738 = vunpack.c.h.b16 %v488
  %v739 = vunpack.c.l.b16 %v489
  %v740 = vunpack.c.h.b16 %v489
  %v741 = vunpack.c.l.b16 %v490
  %v742 = vunpack.c.h.b16 %v490
  %v743 = vunpack.c.l.b16 %v491
  %v744 = vunpack.c.h.b16 %v491
  %v745 = vunpack.c.l.b16 %v492
  %v746 = vunpack.c.h.b16 %v492
  %v747 = vunpack.c.l.b16 %v493
  %v748 = vunpack.c.h.b16 %v493
  %v749 = vunpack.c.l.b16 %v494
  %v750 = vunpack.c.h.b16 %v494
  %v751 = vunpack.c.l.b16 %v495
  %v752 = vunpack.c.h.b16 %v495
  %v753 = vunpack.c.l.b16 %v496
  %v754 = vunpack.c.h.b16 %v496
  %v755 = vunpack.c.l.b16 %v497
  %v756 = vunpack.c.h.b16 %v497
  %v757 = vunpack.c.l.b16 %v498
  %v758 = vunpack.c.h.b16 %v498
  %v759 = vunpack.c.l.b16 %v499
  %v760 = vunpack.c.h.b16 %v499
  %v761 = vunpack.c.l.b16 %v500
  %v762 = vunpack.c.h.b16 %v500
  %v763 = vunpack.c.l.b16 %v501
  %v764 = vunpack.c.h.b16 %v501
  %v765 = vunpack.c.l.b16 %v502
  %v766 = vunpack.c.h.b16 %v502
  %v767 = vunpack.c.l.b16 %v503
  %v768 = vunpack.c.h.b16 %v503
  %v769 = vunpack.c.l.b16 %v504
  %v770 = vunpack.c.h.b16 %v504
  %v771 = vunpack.c.l.b16 %v505
  %v772 = vunpack.c.h.b16 %v505
  %v773 = vunpack.c.l.b16 %v506
  %v774 = vunpack.c.h.b16 %v506
  %v775 = vunpack.c.l.b16 %v507
  %v776 = vunpack.c.h.b16 %v507
  %v777 = vunpack.c.l.b16 %v508
  %v778 = vunpack.c.h.b16 %v508
  %v779 = vunpack.c.l.b16 %v509
  %v780 = vunpack.c.h.b16 %v509
  %v781 = vunpack.c.l.b16 %v510
  %v782 = vunpack.c.h.b16 %v510
  %v783 = vunpack.c.l.b16 %v511
  %v784 = vunpack.c.h.b16 %v511
  %v785 = vunpack.c.l.b16 %v512
  %v786 = vunpack.c.h.b16 %v512
  %v787 = vunpack.c.l.b16 %v513
  %v788 = vunpack.c.h.b16 %v513
  %v789 = vunpack.c.l.b16 %v514
  %v790 = vunpack.c.h.b16 %v514
  %v791 = vunpack.c.l.b16 %v515
  %v792 = vunpack.c.h.b16 %v515
  %v793 = vunpack.c.l.b16 %v516
  %v794 = vunpack.c.h.b16 %v516
  %v795 = vunpack.c.l.b16 %v517
  %v796 = vunpack.c.h.b16 %v517
  %v797 = vunpack.c.l.b16 %v518
  %v798 = vunpack.c.h.b16 %v518
  %v799 = vunpack.c.l.b16 %v519
  %v800 = vunpack.c.h.b16 %v519
  %v801 = vunpack.c.l.b16 %v520
  %v802 = vunpack.c.h.b16 %v520
  %v803 = vunpack.c.l.b16 %v521
  %v804 = vunpack.c.h.b16 %v521
  %v805 = vunpack.c.l.b16 %v522
  %v806 = vunpack.c.h.b16 %v522
  %v807 = vunpack.c.l.b16 %v523
  %v808 = vunpack.c.h.b16 %v523
  %v809 = vunpack.c.l.b16 %v524
  %v810 = vunpack.c.h.b16 %v524
  %v811 = vunpack.c.l.b16 %v525
  %v812 = vunpack.c.h.b16 %v525
  %v813 = vunpack.c.l.b16 %v526
  %v814 = vunpack.c.h.b16 %v526
  %v815 = vpack.c.b16 %v627, %v623
  %v816 = vpack.c.b16 %v628, %v624
  %v817 = vpack.c.b16 %v629, %v625
  %v818 = vpack.c.b16 %v630, %v626
  %v819 = vpack.c.b16 %v635, %v631
  %v820 = vpack.c.b16 %v636, %v632
  %v821 = vpack.c.b16 %v637, %v633
  %v822 = vpack.c.b16 %v638, %v634
  %v823 = vpack.c.b16 %v643, %v639
  %v824 = vpack.c.b16 %v644, %v640
  %v825 = vpack.c.b16 %v645, %v641
  %v826 = vpack.c.b16 %v646, %v642
  %v827 = vpack.c.b16 %v651, %v647
  %v828 = vpack.c.b16 %v652, %v648
  %v829 = vpack.c.b16 %v653, %v649
  %v830 = vpack.c.b16 %v654, %v650
  %v831 = vpack.c.b16 %v659, %v655
  %v832 = vpack.c.b16 %v660, %v656
  %v833 = vpack.c.b16 %v661, %v657
  %v834 = vpack.c.b16 %v662, %v658
  %v835 = vpack.c.b16 %v667, %v663
  %v836 = vpack.c.b16 %v668, %v664
  %v837 = vpack.c.b16 %v669, %v665
  %v838 = vpack.c.b16 %v670, %v666
  %v839 = vpack.c.b16 %v675, %v671
  %v840 = vpack.c.b16 %v676, %v672
  %v841 = vpack.c.b16 %v677, %v673
  %v842 = vpack.c.b16 %v678, %v674
  %v843 = vpack.c.b16 %v683, %v679
  %v844 = vpack.c.b16 %v684, %v680
  %v845 = vpack.c.b16 %v685, %v681
  %v846 = vpack.c.b16 %v686, %v682
  %v847 = vpack.c.b16 %v691, %v687
  %v848 = vpack.c.b16 %v692, %v688
  %v849 = vpack.c.b16 %v693, %v689
  %v850 = vpack.c.b16 %v694, %v690
  %v851 = vpack.c.b16 %v699, %v695
  %v852 = vpack.c.b16 %v700, %v696
  %v853 = vpack.c.b16 %v701, %v697
  %v854 = vpack.c.b16 %v702, %v698
  %v855 = vpack.c.b16 %v707, %v703
  %v856 = vpack.c.b16 %v708, %v704
  %v857 = vpack.c.b16 %v709, %v705
  %v858 = vpack.c.b16 %v710, %v706
  %v859 = vpack.c.b16 %v715, %v711
  %v860 = vpack.c.b16 %v716, %v712
  %v861 = vpack.c.b16 %v717, %v713
  %v862 = vpack.c.b16 %v718, %v714
  %v863 = vpack.c.b16 %v723, %v719
  %v864 = vpack.c.b16 %v724, %v720
  %v865 = vpack.c.b16 %v725, %v721
  %v866 = vpack.c.b16 %v726, %v722
  %v867 = vpack.c.b16 %v731, %v727
  %v868 = vpack.c.b16 %v732, %v728
  %v869 = vpack.c.b16 %v733, %v729
  %v870 = vpack.c.b16 %v734, %v730
  %v871 = vpack.c.b16 %v739, %v735
  %v872 = vpack.c.b16 %v740, %v736
  %v873 = vpack.c.b16 %v741, %v737
  %v874 = vpack.c.b16 %v742, %v738
  %v875 = vpack.c.b16 %v747, %v743
  %v876 = vpack.c.b16 %v748, %v744
  %v877 = vpack.c.b16 %v749, %v745
  %v878 = vpack.c.b16 %v750, %v746
  %v879 = vpack.c.b16 %v755, %v751
  %v880 = vpack.c.b16 %v756, %v752
  %v881 = vpack.c.b16 %v757, %v753
  %v882 = vpack.c.b16 %v758, %v754
  %v883 = vpack.c.b16 %v763, %v759
  %v884 = vpack.c.b16 %v764, %v760
  %v885 = vpack.c.b16 %v765, %v761
  %v886 = vpack.c.b16 %v766, %v762
  %v887 = vpack.c.b16 %v771, %v767
  %v888 = vpack.c.b16 %v772, %v768
  %v889 = vpack.c.b16 %v773, %v769
  %v890 = vpack.c.b16 %v774, %v770
  %v891 = vpack.c.b16 %v779, %v775
  %v892 = vpack.c.b16 %v780, %v776
  %v893 = vpack.c.b16 %v781, %v777
  %v894 = vpack.c.b16 %v782, %v778
  %v895 = vpack.c.b16 %v787, %v783
  %v896 = vpack.c.b16 %v788, %v784
  %v897 = vpack.c.b16 %v789, %v785
  %v898 = vpack.c.b16 %v790, %v786
  %v899 = vpack.c.b16 %v795, %v791
  %v900 = vpack.c.b16 %v796, %v792
  %v901 = vpack.c.b16 %v797, %v793
  %v902 = vpack.c.b16 %v798, %v794
  %v903 = vpack.c.b16 %v803, %v799
  %v904 = vpack.c.b16 %v804, %v800
  %v905 = vpack.c.b16 %v805, %v801
  %v906 = vpack.c.b16 %v806, %v802
  %v907 = vpack.c.b16 %v811, %v807
  %v908 = vpack.c.b16 %v812, %v808
  %v909 = vpack.c.b16 %v813, %v809
  %v910 = vpack.c.b16 %v814, %v810
  %1007 = vmatprep.subr.bf16.mxu0 %v816
  %1008 = vmatpush1.bf16.msra.mxu0 %v815
  %1009 = vmatprep.subr.bf16.mxu0 %v820
  %1010 = vmatpush1.bf16.msra.mxu0 %v819
  %1011 = vmatprep.subr.bf16.mxu0 %v824
  %1012 = vmatpush1.bf16.msra.mxu0 %v823
  %1013 = vmatprep.subr.bf16.mxu0 %v828
  %1014 = vmatpush1.bf16.msra.mxu0 %v827
  %1015 = vmatprep.subr.bf16.mxu0 %v832
  %1016 = vmatpush1.bf16.msra.mxu0 %v831
  %1017 = vmatprep.subr.bf16.mxu0 %v836
  %1018 = vmatpush1.bf16.msra.mxu0 %v835
  %1019 = vmatprep.subr.bf16.mxu0 %v840
  %1020 = vmatpush1.bf16.msra.mxu0 %v839
  %1021 = vmatprep.subr.bf16.mxu0 %v844
  %1022 = vmatpush1.bf16.msra.mxu0 %v843
  %1023 = vmatprep.subr.bf16.mxu0 %v848
  %1024 = vmatpush1.bf16.msra.mxu0 %v847
  %1025 = vmatprep.subr.bf16.mxu0 %v852
  %1026 = vmatpush1.bf16.msra.mxu0 %v851
  %1027 = vmatprep.subr.bf16.mxu0 %v856
  %1028 = vmatpush1.bf16.msra.mxu0 %v855
  %1029 = vmatprep.subr.bf16.mxu0 %v860
  %1030 = vmatpush1.bf16.msra.mxu0 %v859
  %1031 = vmatprep.subr.bf16.mxu0 %v864
  %1032 = vmatpush1.bf16.msra.mxu0 %v863
  %1033 = vmatprep.subr.bf16.mxu0 %v868
  %1034 = vmatpush1.bf16.msra.mxu0 %v867
  %1035 = vmatprep.subr.bf16.mxu0 %v872
  %1036 = vmatpush1.bf16.msra.mxu0 %v871
  %1037 = vmatprep.subr.bf16.mxu0 %v876
  %1038 = vmatpush1.bf16.msra.mxu0 %v875
  %1039 = vmatprep.mubr.bf16.mxu0 %v348
  %1040 = vmatmul.mubr.bf16.gmra.mrb[0].mxu0 %v347
  %v1041 = vpop.f32.mrb[0].mxu0
  %v1042 = vadd.f32 0.0, %v1041
  %v1043 = vpop.f32.mrb[0].mxu0
  %v1044 = vadd.f32 0.0, %v1043
  %v1045 = vpop.f32.mrb[0].mxu0
  %v1046 = vadd.f32 0.0, %v1045
  %v1047 = vpop.f32.mrb[0].mxu0
  %v1048 = vadd.f32 0.0, %v1047
  %1049 = vmatprep.mubr.bf16.mxu0 %v351
  %1050 = vmatmul.mubr.bf16.gmra.mrb[0].mxu0 %v350
  %v1051 = vpop.f32.mrb[0].mxu0
  %v1052 = vadd.f32 0.0, %v1051
  %v1053 = vpop.f32.mrb[0].mxu0
  %v1054 = vadd.f32 0.0, %v1053
  %v1055 = vpop.f32.mrb[0].mxu0
  %v1056 = vadd.f32 0.0, %v1055
  %v1057 = vpop.f32.mrb[0].mxu0
  %v1058 = vadd.f32 0.0, %v1057
  %1059 = vmatprep.mubr.bf16.mxu0 %v354
  %1060 = vmatmul.mubr.bf16.gmra.mrb[0].mxu0 %v353
  %v1061 = vpop.f32.mrb[0].mxu0
  %v1062 = vadd.f32 0.0, %v1061
  %v1063 = vpop.f32.mrb[0].mxu0
  %v1064 = vadd.f32 0.0, %v1063
  %v1065 = vpop.f32.mrb[0].mxu0
  %v1066 = vadd.f32 0.0, %v1065
  %v1067 = vpop.f32.mrb[0].mxu0
  %v1068 = vadd.f32 0.0, %v1067
  %1069 = vmatprep.mubr.bf16.mxu0 %v357
  %1070 = vmatmul.mubr.bf16.gmra.mrb[0].mxu0 %v356
  %v1071 = vpop.f32.mrb[0].mxu0
  %v1072 = vadd.f32 0.0, %v1071
  %v1073 = vpop.f32.mrb[0].mxu0
  %v1074 = vadd.f32 0.0, %v1073
  %v1075 = vpop.f32.mrb[0].mxu0
  %v1076 = vadd.f32 0.0, %v1075
  %v1077 = vpop.f32.mrb[0].mxu0
  %v1078 = vadd.f32 0.0, %v1077
  %1079 = vmatprep.mubr.bf16.mxu0 %v360
  %1080 = vmatmul.mubr.bf16.gmra.mrb[0].mxu0 %v359
  %v1081 = vpop.f32.mrb[0].mxu0
  %v1082 = vadd.f32 0.0, %v1081
  %v1083 = vpop.f32.mrb[0].mxu0
  %v1084 = vadd.f32 0.0, %v1083
  %v1085 = vpop.f32.mrb[0].mxu0
  %v1086 = vadd.f32 0.0, %v1085
  %v1087 = vpop.f32.mrb[0].mxu0
  %v1088 = vadd.f32 0.0, %v1087
  %1089 = vmatprep.mubr.bf16.mxu0 %v363
  %1090 = vmatmul.mubr.bf16.gmra.mrb[0].mxu0 %v362
  %v1091 = vpop.f32.mrb[0].mxu0
  %v1092 = vadd.f32 0.0, %v1091
  %v1093 = vpop.f32.mrb[0].mxu0
  %v1094 = vadd.f32 0.0, %v1093
  %v1095 = vpop.f32.mrb[0].mxu0
  %v1096 = vadd.f32 0.0, %v1095
  %v1097 = vpop.f32.mrb[0].mxu0
  %v1098 = vadd.f32 0.0, %v1097
  %1099 = vmatprep.mubr.bf16.mxu0 %v366
  %1100 = vmatmul.mubr.bf16.gmra.mrb[0].mxu0 %v365
  %v1101 = vpop.f32.mrb[0].mxu0
  %v1102 = vadd.f32 0.0, %v1101
  %v1103 = vpop.f32.mrb[0].mxu0
  %v1104 = vadd.f32 0.0, %v1103
  %v1105 = vpop.f32.mrb[0].mxu0
  %v1106 = vadd.f32 0.0, %v1105
  %v1107 = vpop.f32.mrb[0].mxu0
  %v1108 = vadd.f32 0.0, %v1107
  %1109 = vmatprep.mubr.bf16.mxu0 %v369
  %1110 = vmatmul.mubr.bf16.gmra.mrb[0].mxu0 %v368
  %v1111 = vpop.f32.mrb[0].mxu0
  %v1112 = vadd.f32 0.0, %v1111
  %v1113 = vpop.f32.mrb[0].mxu0
  %v1114 = vadd.f32 0.0, %v1113
  %v1115 = vpop.f32.mrb[0].mxu0
  %v1116 = vadd.f32 0.0, %v1115
  %v1117 = vpop.f32.mrb[0].mxu0
  %v1118 = vadd.f32 0.0, %v1117
  %1119 = vmatprep.mubr.bf16.mxu0 %v372
  %1120 = vmatmul.mubr.bf16.gmra.mrb[0].mxu0 %v371
  %v1121 = vpop.f32.mrb[0].mxu0
  %v1122 = vadd.f32 0.0, %v1121
  %v1123 = vpop.f32.mrb[0].mxu0
  %v1124 = vadd.f32 0.0, %v1123
  %v1125 = vpop.f32.mrb[0].mxu0
  %v1126 = vadd.f32 0.0, %v1125
  %v1127 = vpop.f32.mrb[0].mxu0
  %v1128 = vadd.f32 0.0, %v1127
  %1129 = vmatprep.mubr.bf16.mxu0 %v375
  %1130 = vmatmul.mubr.bf16.gmra.mrb[0].mxu0 %v374
  %v1131 = vpop.f32.mrb[0].mxu0
  %v1132 = vadd.f32 0.0, %v1131
  %v1133 = vpop.f32.mrb[0].mxu0
  %v1134 = vadd.f32 0.0, %v1133
  %v1135 = vpop.f32.mrb[0].mxu0
  %v1136 = vadd.f32 0.0, %v1135
  %v1137 = vpop.f32.mrb[0].mxu0
  %v1138 = vadd.f32 0.0, %v1137
  %1139 = vmatprep.mubr.bf16.mxu0 %v378
  %1140 = vmatmul.mubr.bf16.gmra.mrb[0].mxu0 %v377
  %v1141 = vpop.f32.mrb[0].mxu0
  %v1142 = vadd.f32 0.0, %v1141
  %v1143 = vpop.f32.mrb[0].mxu0
  %v1144 = vadd.f32 0.0, %v1143
  %v1145 = vpop.f32.mrb[0].mxu0
  %v1146 = vadd.f32 0.0, %v1145
  %v1147 = vpop.f32.mrb[0].mxu0
  %v1148 = vadd.f32 0.0, %v1147
  %1149 = vmatprep.mubr.bf16.mxu0 %v381
  %1150 = vmatmul.mubr.bf16.gmra.mrb[0].mxu0 %v380
  %v1151 = vpop.f32.mrb[0].mxu0
  %v1152 = vadd.f32 0.0, %v1151
  %v1153 = vpop.f32.mrb[0].mxu0
  %v1154 = vadd.f32 0.0, %v1153
  %v1155 = vpop.f32.mrb[0].mxu0
  %v1156 = vadd.f32 0.0, %v1155
  %v1157 = vpop.f32.mrb[0].mxu0
  %v1158 = vadd.f32 0.0, %v1157
  %1159 = vmatprep.mubr.bf16.mxu0 %v384
  %1160 = vmatmul.mubr.bf16.gmra.mrb[0].mxu0 %v383
  %v1161 = vpop.f32.mrb[0].mxu0
  %v1162 = vadd.f32 0.0, %v1161
  %v1163 = vpop.f32.mrb[0].mxu0
  %v1164 = vadd.f32 0.0, %v1163
  %v1165 = vpop.f32.mrb[0].mxu0
  %v1166 = vadd.f32 0.0, %v1165
  %v1167 = vpop.f32.mrb[0].mxu0
  %v1168 = vadd.f32 0.0, %v1167
  %1169 = vmatprep.mubr.bf16.mxu0 %v387
  %1170 = vmatmul.mubr.bf16.gmra.mrb[0].mxu0 %v386
  %v1171 = vpop.f32.mrb[0].mxu0
  %v1172 = vadd.f32 0.0, %v1171
  %v1173 = vpop.f32.mrb[0].mxu0
  %v1174 = vadd.f32 0.0, %v1173
  %v1175 = vpop.f32.mrb[0].mxu0
  %v1176 = vadd.f32 0.0, %v1175
  %v1177 = vpop.f32.mrb[0].mxu0
  %v1178 = vadd.f32 0.0, %v1177
  %1179 = vmatprep.mubr.bf16.mxu0 %v390
  %1180 = vmatmul.mubr.bf16.gmra.mrb[0].mxu0 %v389
  %v1181 = vpop.f32.mrb[0].mxu0
  %v1182 = vadd.f32 0.0, %v1181
  %v1183 = vpop.f32.mrb[0].mxu0
  %v1184 = vadd.f32 0.0, %v1183
  %v1185 = vpop.f32.mrb[0].mxu0
  %v1186 = vadd.f32 0.0, %v1185
  %v1187 = vpop.f32.mrb[0].mxu0
  %v1188 = vadd.f32 0.0, %v1187
  %1189 = vmatprep.mubr.bf16.mxu0 %v393
  %1190 = vmatmul.mubr.bf16.gmra.mrb[0].mxu0 %v392
  %v1191 = vpop.f32.mrb[0].mxu0
  %v1192 = vadd.f32 0.0, %v1191
  %v1193 = vpop.f32.mrb[0].mxu0
  %v1194 = vadd.f32 0.0, %v1193
  %v1195 = vpop.f32.mrb[0].mxu0
  %v1196 = vadd.f32 0.0, %v1195
  %v1197 = vpop.f32.mrb[0].mxu0
  %v1198 = vadd.f32 0.0, %v1197
  %1199 = vmatprep.mubr.bf16.mxu0 %v396
  %1200 = vmatmul.mubr.bf16.gmra.mrb[0].mxu0 %v395
  %v1201 = vpop.f32.mrb[0].mxu0
  %v1202 = vadd.f32 0.0, %v1201
  %v1203 = vpop.f32.mrb[0].mxu0
  %v1204 = vadd.f32 0.0, %v1203
  %v1205 = vpop.f32.mrb[0].mxu0
  %v1206 = vadd.f32 0.0, %v1205
  %v1207 = vpop.f32.mrb[0].mxu0
  %v1208 = vadd.f32 0.0, %v1207
  %1209 = vmatprep.mubr.bf16.mxu0 %v399
  %1210 = vmatmul.mubr.bf16.gmra.mrb[0].mxu0 %v398
  %v1211 = vpop.f32.mrb[0].mxu0
  %v1212 = vadd.f32 0.0, %v1211
  %v1213 = vpop.f32.mrb[0].mxu0
  %v1214 = vadd.f32 0.0, %v1213
  %v1215 = vpop.f32.mrb[0].mxu0
  %v1216 = vadd.f32 0.0, %v1215
  %v1217 = vpop.f32.mrb[0].mxu0
  %v1218 = vadd.f32 0.0, %v1217
  %1219 = vmatprep.mubr.bf16.mxu0 %v402
  %1220 = vmatmul.mubr.bf16.gmra.mrb[0].mxu0 %v401
  %v1221 = vpop.f32.mrb[0].mxu0
  %v1222 = vadd.f32 0.0, %v1221
  %v1223 = vpop.f32.mrb[0].mxu0
  %v1224 = vadd.f32 0.0, %v1223
  %v1225 = vpop.f32.mrb[0].mxu0
  %v1226 = vadd.f32 0.0, %v1225
  %v1227 = vpop.f32.mrb[0].mxu0
  %v1228 = vadd.f32 0.0, %v1227
  %1229 = vmatprep.mubr.bf16.mxu0 %v405
  %1230 = vmatmul.mubr.bf16.gmra.mrb[0].mxu0 %v404
  %v1231 = vpop.f32.mrb[0].mxu0
  %v1232 = vadd.f32 0.0, %v1231
  %v1233 = vpop.f32.mrb[0].mxu0
  %v1234 = vadd.f32 0.0, %v1233
  %v1235 = vpop.f32.mrb[0].mxu0
  %v1236 = vadd.f32 0.0, %v1235
  %v1237 = vpop.f32.mrb[0].mxu0
  %v1238 = vadd.f32 0.0, %v1237
  %1239 = vmatprep.mubr.bf16.mxu0 %v408
  %1240 = vmatmul.mubr.bf16.gmra.mrb[0].mxu0 %v407
  %v1241 = vpop.f32.mrb[0].mxu0
  %v1242 = vadd.f32 0.0, %v1241
  %v1243 = vpop.f32.mrb[0].mxu0
  %v1244 = vadd.f32 0.0, %v1243
  %v1245 = vpop.f32.mrb[0].mxu0
  %v1246 = vadd.f32 0.0, %v1245
  %v1247 = vpop.f32.mrb[0].mxu0
  %v1248 = vadd.f32 0.0, %v1247
  %1249 = vmatprep.mubr.bf16.mxu0 %v411
  %1250 = vmatmul.mubr.bf16.gmra.mrb[0].mxu0 %v410
  %v1251 = vpop.f32.mrb[0].mxu0
  %v1252 = vadd.f32 0.0, %v1251
  %v1253 = vpop.f32.mrb[0].mxu0
  %v1254 = vadd.f32 0.0, %v1253
  %v1255 = vpop.f32.mrb[0].mxu0
  %v1256 = vadd.f32 0.0, %v1255
  %v1257 = vpop.f32.mrb[0].mxu0
  %v1258 = vadd.f32 0.0, %v1257
  %1259 = vmatprep.mubr.bf16.mxu0 %v414
  %1260 = vmatmul.mubr.bf16.gmra.mrb[0].mxu0 %v413
  %v1261 = vpop.f32.mrb[0].mxu0
  %v1262 = vadd.f32 0.0, %v1261
  %v1263 = vpop.f32.mrb[0].mxu0
  %v1264 = vadd.f32 0.0, %v1263
  %v1265 = vpop.f32.mrb[0].mxu0
  %v1266 = vadd.f32 0.0, %v1265
  %v1267 = vpop.f32.mrb[0].mxu0
  %v1268 = vadd.f32 0.0, %v1267
  %1269 = vmatprep.mubr.bf16.mxu0 %v417
  %1270 = vmatmul.mubr.bf16.gmra.mrb[0].mxu0 %v416
  %v1271 = vpop.f32.mrb[0].mxu0
  %v1272 = vadd.f32 0.0, %v1271
  %v1273 = vpop.f32.mrb[0].mxu0
  %v1274 = vadd.f32 0.0, %v1273
  %v1275 = vpop.f32.mrb[0].mxu0
  %v1276 = vadd.f32 0.0, %v1275
  %v1277 = vpop.f32.mrb[0].mxu0
  %v1278 = vadd.f32 0.0, %v1277
  %1279 = vmatprep.mubr.bf16.mxu0 %v420
  %1280 = vmatmul.mubr.bf16.gmra.mrb[0].mxu0 %v419
  %v1281 = vpop.f32.mrb[0].mxu0
  %v1282 = vadd.f32 0.0, %v1281
  %v1283 = vpop.f32.mrb[0].mxu0
  %v1284 = vadd.f32 0.0, %v1283
  %v1285 = vpop.f32.mrb[0].mxu0
  %v1286 = vadd.f32 0.0, %v1285
  %v1287 = vpop.f32.mrb[0].mxu0
  %v1288 = vadd.f32 0.0, %v1287
  %1289 = vmatprep.mubr.bf16.mxu0 %v423
  %1290 = vmatmul.mubr.bf16.gmra.mrb[0].mxu0 %v422
  %v1291 = vpop.f32.mrb[0].mxu0
  %v1292 = vadd.f32 0.0, %v1291
  %v1293 = vpop.f32.mrb[0].mxu0
  %v1294 = vadd.f32 0.0, %v1293
  %v1295 = vpop.f32.mrb[0].mxu0
  %v1296 = vadd.f32 0.0, %v1295
  %v1297 = vpop.f32.mrb[0].mxu0
  %v1298 = vadd.f32 0.0, %v1297
  %1299 = vmatprep.mubr.bf16.mxu0 %v426
  %1300 = vmatmul.mubr.bf16.gmra.mrb[0].mxu0 %v425
  %v1301 = vpop.f32.mrb[0].mxu0
  %v1302 = vadd.f32 0.0, %v1301
  %v1303 = vpop.f32.mrb[0].mxu0
  %v1304 = vadd.f32 0.0, %v1303
  %v1305 = vpop.f32.mrb[0].mxu0
  %v1306 = vadd.f32 0.0, %v1305
  %v1307 = vpop.f32.mrb[0].mxu0
  %v1308 = vadd.f32 0.0, %v1307
  %1309 = vmatprep.mubr.bf16.mxu0 %v429
  %1310 = vmatmul.mubr.bf16.gmra.mrb[0].mxu0 %v428
  %v1311 = vpop.f32.mrb[0].mxu0
  %v1312 = vadd.f32 0.0, %v1311
  %v1313 = vpop.f32.mrb[0].mxu0
  %v1314 = vadd.f32 0.0, %v1313
  %v1315 = vpop.f32.mrb[0].mxu0
  %v1316 = vadd.f32 0.0, %v1315
  %v1317 = vpop.f32.mrb[0].mxu0
  %v1318 = vadd.f32 0.0, %v1317
  %1319 = vdwg.mxu0
  %1320 = vmatprep.subr.bf16.mxu0 %v880
  %1321 = vmatpush1.bf16.msra.mxu0 %v879
  %1322 = vmatprep.subr.bf16.mxu0 %v884
  %1323 = vmatpush1.bf16.msra.mxu0 %v883
  %1324 = vmatprep.subr.bf16.mxu0 %v888
  %1325 = vmatpush1.bf16.msra.mxu0 %v887
  %1326 = vmatprep.subr.bf16.mxu0 %v892
  %1327 = vmatpush1.bf16.msra.mxu0 %v891
  %1328 = vmatprep.subr.bf16.mxu0 %v896
  %1329 = vmatpush1.bf16.msra.mxu0 %v895
  %1330 = vmatprep.subr.bf16.mxu0 %v900
  %1331 = vmatpush1.bf16.msra.mxu0 %v899
  %1332 = vmatprep.subr.bf16.mxu0 %v904
  %1333 = vmatpush1.bf16.msra.mxu0 %v903
  %1334 = vmatprep.subr.bf16.mxu0 %v908
  %1335 = vmatpush1.bf16.msra.mxu0 %v907
  %1336 = vmatprep.subr.bf16.mxu0 0
  %1337 = vmatpush1.bf16.msra.mxu0 0
  %1338 = vmatprep.subr.bf16.mxu0 0
  %1339 = vmatpush1.bf16.msra.mxu0 0
  %1340 = vmatprep.subr.bf16.mxu0 0
  %1341 = vmatpush1.bf16.msra.mxu0 0
  %1342 = vmatprep.subr.bf16.mxu0 0
  %1343 = vmatpush1.bf16.msra.mxu0 0
  %1344 = vmatprep.subr.bf16.mxu0 0
  %1345 = vmatpush1.bf16.msra.mxu0 0
  %1346 = vmatprep.subr.bf16.mxu0 0
  %1347 = vmatpush1.bf16.msra.mxu0 0
  %1348 = vmatprep.subr.bf16.mxu0 0
  %1349 = vmatpush1.bf16.msra.mxu0 0
  %1350 = vmatprep.subr.bf16.mxu0 0
  %1351 = vmatpush1.bf16.msra.mxu0 0
  %1352 = vmatprep.mubr.bf16.mxu0 0
  %1353 = vmatmul.mubr.bf16.gmra.mrb[0].mxu0 %v349
  %v1354 = vpop.f32.mrb[0].mxu0
  %v1355 = vadd.f32 %v1042, %v1354
  %v1356 = vpop.f32.mrb[0].mxu0
  %v1357 = vadd.f32 %v1044, %v1356
  %v1358 = vpop.f32.mrb[0].mxu0
  %v1359 = vadd.f32 %v1046, %v1358
  %v1360 = vpop.f32.mrb[0].mxu0
  %v1361 = vadd.f32 %v1048, %v1360
  %1362 = vmatprep.mubr.bf16.mxu0 0
  %1363 = vmatmul.mubr.bf16.gmra.mrb[0].mxu0 %v352
  %v1364 = vpop.f32.mrb[0].mxu0
  %v1365 = vadd.f32 %v1052, %v1364
  %v1366 = vpop.f32.mrb[0].mxu0
  %v1367 = vadd.f32 %v1054, %v1366
  %v1368 = vpop.f32.mrb[0].mxu0
  %v1369 = vadd.f32 %v1056, %v1368
  %v1370 = vpop.f32.mrb[0].mxu0
  %v1371 = vadd.f32 %v1058, %v1370
  %1372 = vmatprep.mubr.bf16.mxu0 0
  %1373 = vmatmul.mubr.bf16.gmra.mrb[0].mxu0 %v355
  %v1374 = vpop.f32.mrb[0].mxu0
  %v1375 = vadd.f32 %v1062, %v1374
  %v1376 = vpop.f32.mrb[0].mxu0
  %v1377 = vadd.f32 %v1064, %v1376
  %v1378 = vpop.f32.mrb[0].mxu0
  %v1379 = vadd.f32 %v1066, %v1378
  %v1380 = vpop.f32.mrb[0].mxu0
  %v1381 = vadd.f32 %v1068, %v1380
  %1382 = vmatprep.mubr.bf16.mxu0 0
  %1383 = vmatmul.mubr.bf16.gmra.mrb[0].mxu0 %v358
  %v1384 = vpop.f32.mrb[0].mxu0
  %v1385 = vadd.f32 %v1072, %v1384
  %v1386 = vpop.f32.mrb[0].mxu0
  %v1387 = vadd.f32 %v1074, %v1386
  %v1388 = vpop.f32.mrb[0].mxu0
  %v1389 = vadd.f32 %v1076, %v1388
  %v1390 = vpop.f32.mrb[0].mxu0
  %v1391 = vadd.f32 %v1078, %v1390
  %1392 = vmatprep.mubr.bf16.mxu0 0
  %1393 = vmatmul.mubr.bf16.gmra.mrb[0].mxu0 %v361
  %v1394 = vpop.f32.mrb[0].mxu0
  %v1395 = vadd.f32 %v1082, %v1394
  %v1396 = vpop.f32.mrb[0].mxu0
  %v1397 = vadd.f32 %v1084, %v1396
  %v1398 = vpop.f32.mrb[0].mxu0
  %v1399 = vadd.f32 %v1086, %v1398
  %v1400 = vpop.f32.mrb[0].mxu0
  %v1401 = vadd.f32 %v1088, %v1400
  %1402 = vmatprep.mubr.bf16.mxu0 0
  %1403 = vmatmul.mubr.bf16.gmra.mrb[0].mxu0 %v364
  %v1404 = vpop.f32.mrb[0].mxu0
  %v1405 = vadd.f32 %v1092, %v1404
  %v1406 = vpop.f32.mrb[0].mxu0
  %v1407 = vadd.f32 %v1094, %v1406
  %v1408 = vpop.f32.mrb[0].mxu0
  %v1409 = vadd.f32 %v1096, %v1408
  %v1410 = vpop.f32.mrb[0].mxu0
  %v1411 = vadd.f32 %v1098, %v1410
  %1412 = vmatprep.mubr.bf16.mxu0 0
  %1413 = vmatmul.mubr.bf16.gmra.mrb[0].mxu0 %v367
  %v1414 = vpop.f32.mrb[0].mxu0
  %v1415 = vadd.f32 %v1102, %v1414
  %v1416 = vpop.f32.mrb[0].mxu0
  %v1417 = vadd.f32 %v1104, %v1416
  %v1418 = vpop.f32.mrb[0].mxu0
  %v1419 = vadd.f32 %v1106, %v1418
  %v1420 = vpop.f32.mrb[0].mxu0
  %v1421 = vadd.f32 %v1108, %v1420
  %1422 = vmatprep.mubr.bf16.mxu0 0
  %1423 = vmatmul.mubr.bf16.gmra.mrb[0].mxu0 %v370
  %v1424 = vpop.f32.mrb[0].mxu0
  %v1425 = vadd.f32 %v1112, %v1424
  %v1426 = vpop.f32.mrb[0].mxu0
  %v1427 = vadd.f32 %v1114, %v1426
  %v1428 = vpop.f32.mrb[0].mxu0
  %v1429 = vadd.f32 %v1116, %v1428
  %v1430 = vpop.f32.mrb[0].mxu0
  %v1431 = vadd.f32 %v1118, %v1430
  %1432 = vmatprep.mubr.bf16.mxu0 0
  %1433 = vmatmul.mubr.bf16.gmra.mrb[0].mxu0 %v373
  %v1434 = vpop.f32.mrb[0].mxu0
  %v1435 = vadd.f32 %v1122, %v1434
  %v1436 = vpop.f32.mrb[0].mxu0
  %v1437 = vadd.f32 %v1124, %v1436
  %v1438 = vpop.f32.mrb[0].mxu0
  %v1439 = vadd.f32 %v1126, %v1438
  %v1440 = vpop.f32.mrb[0].mxu0
  %v1441 = vadd.f32 %v1128, %v1440
  %1442 = vmatprep.mubr.bf16.mxu0 0
  %1443 = vmatmul.mubr.bf16.gmra.mrb[0].mxu0 %v376
  %v1444 = vpop.f32.mrb[0].mxu0
  %v1445 = vadd.f32 %v1132, %v1444
  %v1446 = vpop.f32.mrb[0].mxu0
  %v1447 = vadd.f32 %v1134, %v1446
  %v1448 = vpop.f32.mrb[0].mxu0
  %v1449 = vadd.f32 %v1136, %v1448
  %v1450 = vpop.f32.mrb[0].mxu0
  %v1451 = vadd.f32 %v1138, %v1450
  %1452 = vmatprep.mubr.bf16.mxu0 0
  %1453 = vmatmul.mubr.bf16.gmra.mrb[0].mxu0 %v379
  %v1454 = vpop.f32.mrb[0].mxu0
  %v1455 = vadd.f32 %v1142, %v1454
  %v1456 = vpop.f32.mrb[0].mxu0
  %v1457 = vadd.f32 %v1144, %v1456
  %v1458 = vpop.f32.mrb[0].mxu0
  %v1459 = vadd.f32 %v1146, %v1458
  %v1460 = vpop.f32.mrb[0].mxu0
  %v1461 = vadd.f32 %v1148, %v1460
  %1462 = vmatprep.mubr.bf16.mxu0 0
  %1463 = vmatmul.mubr.bf16.gmra.mrb[0].mxu0 %v382
  %v1464 = vpop.f32.mrb[0].mxu0
  %v1465 = vadd.f32 %v1152, %v1464
  %v1466 = vpop.f32.mrb[0].mxu0
  %v1467 = vadd.f32 %v1154, %v1466
  %v1468 = vpop.f32.mrb[0].mxu0
  %v1469 = vadd.f32 %v1156, %v1468
  %v1470 = vpop.f32.mrb[0].mxu0
  %v1471 = vadd.f32 %v1158, %v1470
  %1472 = vmatprep.mubr.bf16.mxu0 0
  %1473 = vmatmul.mubr.bf16.gmra.mrb[0].mxu0 %v385
  %v1474 = vpop.f32.mrb[0].mxu0
  %v1475 = vadd.f32 %v1162, %v1474
  %v1476 = vpop.f32.mrb[0].mxu0
  %v1477 = vadd.f32 %v1164, %v1476
  %v1478 = vpop.f32.mrb[0].mxu0
  %v1479 = vadd.f32 %v1166, %v1478
  %v1480 = vpop.f32.mrb[0].mxu0
  %v1481 = vadd.f32 %v1168, %v1480
  %1482 = vmatprep.mubr.bf16.mxu0 0
  %1483 = vmatmul.mubr.bf16.gmra.mrb[0].mxu0 %v388
  %v1484 = vpop.f32.mrb[0].mxu0
  %v1485 = vadd.f32 %v1172, %v1484
  %v1486 = vpop.f32.mrb[0].mxu0
  %v1487 = vadd.f32 %v1174, %v1486
  %v1488 = vpop.f32.mrb[0].mxu0
  %v1489 = vadd.f32 %v1176, %v1488
  %v1490 = vpop.f32.mrb[0].mxu0
  %v1491 = vadd.f32 %v1178, %v1490
  %1492 = vmatprep.mubr.bf16.mxu0 0
  %1493 = vmatmul.mubr.bf16.gmra.mrb[0].mxu0 %v391
  %v1494 = vpop.f32.mrb[0].mxu0
  %v1495 = vadd.f32 %v1182, %v1494
  %v1496 = vpop.f32.mrb[0].mxu0
  %v1497 = vadd.f32 %v1184, %v1496
  %v1498 = vpop.f32.mrb[0].mxu0
  %v1499 = vadd.f32 %v1186, %v1498
  %v1500 = vpop.f32.mrb[0].mxu0
  %v1501 = vadd.f32 %v1188, %v1500
  %1502 = vmatprep.mubr.bf16.mxu0 0
  %1503 = vmatmul.mubr.bf16.gmra.mrb[0].mxu0 %v394
  %v1504 = vpop.f32.mrb[0].mxu0
  %v1505 = vadd.f32 %v1192, %v1504
  %v1506 = vpop.f32.mrb[0].mxu0
  %v1507 = vadd.f32 %v1194, %v1506
  %v1508 = vpop.f32.mrb[0].mxu0
  %v1509 = vadd.f32 %v1196, %v1508
  %v1510 = vpop.f32.mrb[0].mxu0
  %v1511 = vadd.f32 %v1198, %v1510
  %1512 = vmatprep.mubr.bf16.mxu0 0
  %1513 = vmatmul.mubr.bf16.gmra.mrb[0].mxu0 %v397
  %v1514 = vpop.f32.mrb[0].mxu0
  %v1515 = vadd.f32 %v1202, %v1514
  %v1516 = vpop.f32.mrb[0].mxu0
  %v1517 = vadd.f32 %v1204, %v1516
  %v1518 = vpop.f32.mrb[0].mxu0
  %v1519 = vadd.f32 %v1206, %v1518
  %v1520 = vpop.f32.mrb[0].mxu0
  %v1521 = vadd.f32 %v1208, %v1520
  %1522 = vmatprep.mubr.bf16.mxu0 0
  %1523 = vmatmul.mubr.bf16.gmra.mrb[0].mxu0 %v400
  %v1524 = vpop.f32.mrb[0].mxu0
  %v1525 = vadd.f32 %v1212, %v1524
  %v1526 = vpop.f32.mrb[0].mxu0
  %v1527 = vadd.f32 %v1214, %v1526
  %v1528 = vpop.f32.mrb[0].mxu0
  %v1529 = vadd.f32 %v1216, %v1528
  %v1530 = vpop.f32.mrb[0].mxu0
  %v1531 = vadd.f32 %v1218, %v1530
  %1532 = vmatprep.mubr.bf16.mxu0 0
  %1533 = vmatmul.mubr.bf16.gmra.mrb[0].mxu0 %v403
  %v1534 = vpop.f32.mrb[0].mxu0
  %v1535 = vadd.f32 %v1222, %v1534
  %v1536 = vpop.f32.mrb[0].mxu0
  %v1537 = vadd.f32 %v1224, %v1536
  %v1538 = vpop.f32.mrb[0].mxu0
  %v1539 = vadd.f32 %v1226, %v1538
  %v1540 = vpop.f32.mrb[0].mxu0
  %v1541 = vadd.f32 %v1228, %v1540
  %1542 = vmatprep.mubr.bf16.mxu0 0
  %1543 = vmatmul.mubr.bf16.gmra.mrb[0].mxu0 %v406
  %v1544 = vpop.f32.mrb[0].mxu0
  %v1545 = vadd.f32 %v1232, %v1544
  %v1546 = vpop.f32.mrb[0].mxu0
  %v1547 = vadd.f32 %v1234, %v1546
  %v1548 = vpop.f32.mrb[0].mxu0
  %v1549 = vadd.f32 %v1236, %v1548
  %v1550 = vpop.f32.mrb[0].mxu0
  %v1551 = vadd.f32 %v1238, %v1550
  %1552 = vmatprep.mubr.bf16.mxu0 0
  %1553 = vmatmul.mubr.bf16.gmra.mrb[0].mxu0 %v409
  %v1554 = vpop.f32.mrb[0].mxu0
  %v1555 = vadd.f32 %v1242, %v1554
  %v1556 = vpop.f32.mrb[0].mxu0
  %v1557 = vadd.f32 %v1244, %v1556
  %v1558 = vpop.f32.mrb[0].mxu0
  %v1559 = vadd.f32 %v1246, %v1558
  %v1560 = vpop.f32.mrb[0].mxu0
  %v1561 = vadd.f32 %v1248, %v1560
  %1562 = vmatprep.mubr.bf16.mxu0 0
  %1563 = vmatmul.mubr.bf16.gmra.mrb[0].mxu0 %v412
  %v1564 = vpop.f32.mrb[0].mxu0
  %v1565 = vadd.f32 %v1252, %v1564
  %v1566 = vpop.f32.mrb[0].mxu0
  %v1567 = vadd.f32 %v1254, %v1566
  %v1568 = vpop.f32.mrb[0].mxu0
  %v1569 = vadd.f32 %v1256, %v1568
  %v1570 = vpop.f32.mrb[0].mxu0
  %v1571 = vadd.f32 %v1258, %v1570
  %1572 = vmatprep.mubr.bf16.mxu0 0
  %1573 = vmatmul.mubr.bf16.gmra.mrb[0].mxu0 %v415
  %v1574 = vpop.f32.mrb[0].mxu0
  %v1575 = vadd.f32 %v1262, %v1574
  %v1576 = vpop.f32.mrb[0].mxu0
  %v1577 = vadd.f32 %v1264, %v1576
  %v1578 = vpop.f32.mrb[0].mxu0
  %v1579 = vadd.f32 %v1266, %v1578
  %v1580 = vpop.f32.mrb[0].mxu0
  %v1581 = vadd.f32 %v1268, %v1580
  %1582 = vmatprep.mubr.bf16.mxu0 0
  %1583 = vmatmul.mubr.bf16.gmra.mrb[0].mxu0 %v418
  %v1584 = vpop.f32.mrb[0].mxu0
  %v1585 = vadd.f32 %v1272, %v1584
  %v1586 = vpop.f32.mrb[0].mxu0
  %v1587 = vadd.f32 %v1274, %v1586
  %v1588 = vpop.f32.mrb[0].mxu0
  %v1589 = vadd.f32 %v1276, %v1588
  %v1590 = vpop.f32.mrb[0].mxu0
  %v1591 = vadd.f32 %v1278, %v1590
  %1592 = vmatprep.mubr.bf16.mxu0 0
  %1593 = vmatmul.mubr.bf16.gmra.mrb[0].mxu0 %v421
  %v1594 = vpop.f32.mrb[0].mxu0
  %v1595 = vadd.f32 %v1282, %v1594
  %v1596 = vpop.f32.mrb[0].mxu0
  %v1597 = vadd.f32 %v1284, %v1596
  %v1598 = vpop.f32.mrb[0].mxu0
  %v1599 = vadd.f32 %v1286, %v1598
  %v1600 = vpop.f32.mrb[0].mxu0
  %v1601 = vadd.f32 %v1288, %v1600
  %1602 = vmatprep.mubr.bf16.mxu0 0
  %1603 = vmatmul.mubr.bf16.gmra.mrb[0].mxu0 %v424
  %v1604 = vpop.f32.mrb[0].mxu0
  %v1605 = vadd.f32 %v1292, %v1604
  %v1606 = vpop.f32.mrb[0].mxu0
  %v1607 = vadd.f32 %v1294, %v1606
  %v1608 = vpop.f32.mrb[0].mxu0
  %v1609 = vadd.f32 %v1296, %v1608
  %v1610 = vpop.f32.mrb[0].mxu0
  %v1611 = vadd.f32 %v1298, %v1610
  %1612 = vmatprep.mubr.bf16.mxu0 0
  %1613 = vmatmul.mubr.bf16.gmra.mrb[0].mxu0 %v427
  %v1614 = vpop.f32.mrb[0].mxu0
  %v1615 = vadd.f32 %v1302, %v1614
  %v1616 = vpop.f32.mrb[0].mxu0
  %v1617 = vadd.f32 %v1304, %v1616
  %v1618 = vpop.f32.mrb[0].mxu0
  %v1619 = vadd.f32 %v1306, %v1618
  %v1620 = vpop.f32.mrb[0].mxu0
  %v1621 = vadd.f32 %v1308, %v1620
  %1622 = vmatprep.mubr.bf16.mxu0 0
  %1623 = vmatmul.mubr.bf16.gmra.mrb[0].mxu0 %v430
  %v1624 = vpop.f32.mrb[0].mxu0
  %v1625 = vadd.f32 %v1312, %v1624
  %v1626 = vpop.f32.mrb[0].mxu0
  %v1627 = vadd.f32 %v1314, %v1626
  %v1628 = vpop.f32.mrb[0].mxu0
  %v1629 = vadd.f32 %v1316, %v1628
  %v1630 = vpop.f32.mrb[0].mxu0
  %v1631 = vadd.f32 %v1318, %v1630
  %1632 = vdwg.mxu0
  %1633 = vmatprep.subr.bf16.mxu0 %v818
  %1634 = vmatpush1.bf16.msra.mxu0 %v817
  %1635 = vmatprep.subr.bf16.mxu0 %v822
  %1636 = vmatpush1.bf16.msra.mxu0 %v821
  %1637 = vmatprep.subr.bf16.mxu0 %v826
  %1638 = vmatpush1.bf16.msra.mxu0 %v825
  %1639 = vmatprep.subr.bf16.mxu0 %v830
  %1640 = vmatpush1.bf16.msra.mxu0 %v829
  %1641 = vmatprep.subr.bf16.mxu0 %v834
  %1642 = vmatpush1.bf16.msra.mxu0 %v833
  %1643 = vmatprep.subr.bf16.mxu0 %v838
  %1644 = vmatpush1.bf16.msra.mxu0 %v837
  %1645 = vmatprep.subr.bf16.mxu0 %v842
  %1646 = vmatpush1.bf16.msra.mxu0 %v841
  %1647 = vmatprep.subr.bf16.mxu0 %v846
  %1648 = vmatpush1.bf16.msra.mxu0 %v845
  %1649 = vmatprep.subr.bf16.mxu0 %v850
  %1650 = vmatpush1.bf16.msra.mxu0 %v849
  %1651 = vmatprep.subr.bf16.mxu0 %v854
  %1652 = vmatpush1.bf16.msra.mxu0 %v853
  %1653 = vmatprep.subr.bf16.mxu0 %v858
  %1654 = vmatpush1.bf16.msra.mxu0 %v857
  %1655 = vmatprep.subr.bf16.mxu0 %v862
  %1656 = vmatpush1.bf16.msra.mxu0 %v861
  %1657 = vmatprep.subr.bf16.mxu0 %v866
  %1658 = vmatpush1.bf16.msra.mxu0 %v865
  %1659 = vmatprep.subr.bf16.mxu0 %v870
  %1660 = vmatpush1.bf16.msra.mxu0 %v869
  %1661 = vmatprep.subr.bf16.mxu0 %v874
  %1662 = vmatpush1.bf16.msra.mxu0 %v873
  %1663 = vmatprep.subr.bf16.mxu0 %v878
  %1664 = vmatpush1.bf16.msra.mxu0 %v877
  %1665 = vmatprep.mubr.bf16.mxu0 %v348
  %1666 = vmatmul.mubr.bf16.gmra.mrb[0].mxu0 %v347
  %v1667 = vpop.f32.mrb[0].mxu0
  %v1668 = vadd.f32 0.0, %v1667
  %v1669 = vpop.f32.mrb[0].mxu0
  %v1670 = vadd.f32 0.0, %v1669
  %v1671 = vpop.f32.mrb[0].mxu0
  %v1672 = vadd.f32 0.0, %v1671
  %v1673 = vpop.f32.mrb[0].mxu0
  %v1674 = vadd.f32 0.0, %v1673
  %1675 = vmatprep.mubr.bf16.mxu0 %v351
  %1676 = vmatmul.mubr.bf16.gmra.mrb[0].mxu0 %v350
  %v1677 = vpop.f32.mrb[0].mxu0
  %v1678 = vadd.f32 0.0, %v1677
  %v1679 = vpop.f32.mrb[0].mxu0
  %v1680 = vadd.f32 0.0, %v1679
  %v1681 = vpop.f32.mrb[0].mxu0
  %v1682 = vadd.f32 0.0, %v1681
  %v1683 = vpop.f32.mrb[0].mxu0
  %v1684 = vadd.f32 0.0, %v1683
  %1685 = vmatprep.mubr.bf16.mxu0 %v354
  %1686 = vmatmul.mubr.bf16.gmra.mrb[0].mxu0 %v353
  %v1687 = vpop.f32.mrb[0].mxu0
  %v1688 = vadd.f32 0.0, %v1687
  %v1689 = vpop.f32.mrb[0].mxu0
  %v1690 = vadd.f32 0.0, %v1689
  %v1691 = vpop.f32.mrb[0].mxu0
  %v1692 = vadd.f32 0.0, %v1691
  %v1693 = vpop.f32.mrb[0].mxu0
  %v1694 = vadd.f32 0.0, %v1693
  %1695 = vmatprep.mubr.bf16.mxu0 %v357
  %1696 = vmatmul.mubr.bf16.gmra.mrb[0].mxu0 %v356
  %v1697 = vpop.f32.mrb[0].mxu0
  %v1698 = vadd.f32 0.0, %v1697
  %v1699 = vpop.f32.mrb[0].mxu0
  %v1700 = vadd.f32 0.0, %v1699
  %v1701 = vpop.f32.mrb[0].mxu0
  %v1702 = vadd.f32 0.0, %v1701
  %v1703 = vpop.f32.mrb[0].mxu0
  %v1704 = vadd.f32 0.0, %v1703
  %1705 = vmatprep.mubr.bf16.mxu0 %v360
  %1706 = vmatmul.mubr.bf16.gmra.mrb[0].mxu0 %v359
  %v1707 = vpop.f32.mrb[0].mxu0
  %v1708 = vadd.f32 0.0, %v1707
  %v1709 = vpop.f32.mrb[0].mxu0
  %v1710 = vadd.f32 0.0, %v1709
  %v1711 = vpop.f32.mrb[0].mxu0
  %v1712 = vadd.f32 0.0, %v1711
  %v1713 = vpop.f32.mrb[0].mxu0
  %v1714 = vadd.f32 0.0, %v1713
  %1715 = vmatprep.mubr.bf16.mxu0 %v363
  %1716 = vmatmul.mubr.bf16.gmra.mrb[0].mxu0 %v362
  %v1717 = vpop.f32.mrb[0].mxu0
  %v1718 = vadd.f32 0.0, %v1717
  %v1719 = vpop.f32.mrb[0].mxu0
  %v1720 = vadd.f32 0.0, %v1719
  %v1721 = vpop.f32.mrb[0].mxu0
  %v1722 = vadd.f32 0.0, %v1721
  %v1723 = vpop.f32.mrb[0].mxu0
  %v1724 = vadd.f32 0.0, %v1723
  %1725 = vmatprep.mubr.bf16.mxu0 %v366
  %1726 = vmatmul.mubr.bf16.gmra.mrb[0].mxu0 %v365
  %v1727 = vpop.f32.mrb[0].mxu0
  %v1728 = vadd.f32 0.0, %v1727
  %v1729 = vpop.f32.mrb[0].mxu0
  %v1730 = vadd.f32 0.0, %v1729
  %v1731 = vpop.f32.mrb[0].mxu0
  %v1732 = vadd.f32 0.0, %v1731
  %v1733 = vpop.f32.mrb[0].mxu0
  %v1734 = vadd.f32 0.0, %v1733
  %1735 = vmatprep.mubr.bf16.mxu0 %v369
  %1736 = vmatmul.mubr.bf16.gmra.mrb[0].mxu0 %v368
  %v1737 = vpop.f32.mrb[0].mxu0
  %v1738 = vadd.f32 0.0, %v1737
  %v1739 = vpop.f32.mrb[0].mxu0
  %v1740 = vadd.f32 0.0, %v1739
  %v1741 = vpop.f32.mrb[0].mxu0
  %v1742 = vadd.f32 0.0, %v1741
  %v1743 = vpop.f32.mrb[0].mxu0
  %v1744 = vadd.f32 0.0, %v1743
  %1745 = vmatprep.mubr.bf16.mxu0 %v372
  %1746 = vmatmul.mubr.bf16.gmra.mrb[0].mxu0 %v371
  %v1747 = vpop.f32.mrb[0].mxu0
  %v1748 = vadd.f32 0.0, %v1747
  %v1749 = vpop.f32.mrb[0].mxu0
  %v1750 = vadd.f32 0.0, %v1749
  %v1751 = vpop.f32.mrb[0].mxu0
  %v1752 = vadd.f32 0.0, %v1751
  %v1753 = vpop.f32.mrb[0].mxu0
  %v1754 = vadd.f32 0.0, %v1753
  %1755 = vmatprep.mubr.bf16.mxu0 %v375
  %1756 = vmatmul.mubr.bf16.gmra.mrb[0].mxu0 %v374
  %v1757 = vpop.f32.mrb[0].mxu0
  %v1758 = vadd.f32 0.0, %v1757
  %v1759 = vpop.f32.mrb[0].mxu0
  %v1760 = vadd.f32 0.0, %v1759
  %v1761 = vpop.f32.mrb[0].mxu0
  %v1762 = vadd.f32 0.0, %v1761
  %v1763 = vpop.f32.mrb[0].mxu0
  %v1764 = vadd.f32 0.0, %v1763
  %1765 = vmatprep.mubr.bf16.mxu0 %v378
  %1766 = vmatmul.mubr.bf16.gmra.mrb[0].mxu0 %v377
  %v1767 = vpop.f32.mrb[0].mxu0
  %v1768 = vadd.f32 0.0, %v1767
  %v1769 = vpop.f32.mrb[0].mxu0
  %v1770 = vadd.f32 0.0, %v1769
  %v1771 = vpop.f32.mrb[0].mxu0
  %v1772 = vadd.f32 0.0, %v1771
  %v1773 = vpop.f32.mrb[0].mxu0
  %v1774 = vadd.f32 0.0, %v1773
  %1775 = vmatprep.mubr.bf16.mxu0 %v381
  %1776 = vmatmul.mubr.bf16.gmra.mrb[0].mxu0 %v380
  %v1777 = vpop.f32.mrb[0].mxu0
  %v1778 = vadd.f32 0.0, %v1777
  %v1779 = vpop.f32.mrb[0].mxu0
  %v1780 = vadd.f32 0.0, %v1779
  %v1781 = vpop.f32.mrb[0].mxu0
  %v1782 = vadd.f32 0.0, %v1781
  %v1783 = vpop.f32.mrb[0].mxu0
  %v1784 = vadd.f32 0.0, %v1783
  %1785 = vmatprep.mubr.bf16.mxu0 %v384
  %1786 = vmatmul.mubr.bf16.gmra.mrb[0].mxu0 %v383
  %v1787 = vpop.f32.mrb[0].mxu0
  %v1788 = vadd.f32 0.0, %v1787
  %v1789 = vpop.f32.mrb[0].mxu0
  %v1790 = vadd.f32 0.0, %v1789
  %v1791 = vpop.f32.mrb[0].mxu0
  %v1792 = vadd.f32 0.0, %v1791
  %v1793 = vpop.f32.mrb[0].mxu0
  %v1794 = vadd.f32 0.0, %v1793
  %1795 = vmatprep.mubr.bf16.mxu0 %v387
  %1796 = vmatmul.mubr.bf16.gmra.mrb[0].mxu0 %v386
  %v1797 = vpop.f32.mrb[0].mxu0
  %v1798 = vadd.f32 0.0, %v1797
  %v1799 = vpop.f32.mrb[0].mxu0
  %v1800 = vadd.f32 0.0, %v1799
  %v1801 = vpop.f32.mrb[0].mxu0
  %v1802 = vadd.f32 0.0, %v1801
  %v1803 = vpop.f32.mrb[0].mxu0
  %v1804 = vadd.f32 0.0, %v1803
  %1805 = vmatprep.mubr.bf16.mxu0 %v390
  %1806 = vmatmul.mubr.bf16.gmra.mrb[0].mxu0 %v389
  %v1807 = vpop.f32.mrb[0].mxu0
  %v1808 = vadd.f32 0.0, %v1807
  %v1809 = vpop.f32.mrb[0].mxu0
  %v1810 = vadd.f32 0.0, %v1809
  %v1811 = vpop.f32.mrb[0].mxu0
  %v1812 = vadd.f32 0.0, %v1811
  %v1813 = vpop.f32.mrb[0].mxu0
  %v1814 = vadd.f32 0.0, %v1813
  %1815 = vmatprep.mubr.bf16.mxu0 %v393
  %1816 = vmatmul.mubr.bf16.gmra.mrb[0].mxu0 %v392
  %v1817 = vpop.f32.mrb[0].mxu0
  %v1818 = vadd.f32 0.0, %v1817
  %v1819 = vpop.f32.mrb[0].mxu0
  %v1820 = vadd.f32 0.0, %v1819
  %v1821 = vpop.f32.mrb[0].mxu0
  %v1822 = vadd.f32 0.0, %v1821
  %v1823 = vpop.f32.mrb[0].mxu0
  %v1824 = vadd.f32 0.0, %v1823
  %1825 = vmatprep.mubr.bf16.mxu0 %v396
  %1826 = vmatmul.mubr.bf16.gmra.mrb[0].mxu0 %v395
  %v1827 = vpop.f32.mrb[0].mxu0
  %v1828 = vadd.f32 0.0, %v1827
  %v1829 = vpop.f32.mrb[0].mxu0
  %v1830 = vadd.f32 0.0, %v1829
  %v1831 = vpop.f32.mrb[0].mxu0
  %v1832 = vadd.f32 0.0, %v1831
  %v1833 = vpop.f32.mrb[0].mxu0
  %v1834 = vadd.f32 0.0, %v1833
  %1835 = vmatprep.mubr.bf16.mxu0 %v399
  %1836 = vmatmul.mubr.bf16.gmra.mrb[0].mxu0 %v398
  %v1837 = vpop.f32.mrb[0].mxu0
  %v1838 = vadd.f32 0.0, %v1837
  %v1839 = vpop.f32.mrb[0].mxu0
  %v1840 = vadd.f32 0.0, %v1839
  %v1841 = vpop.f32.mrb[0].mxu0
  %v1842 = vadd.f32 0.0, %v1841
  %v1843 = vpop.f32.mrb[0].mxu0
  %v1844 = vadd.f32 0.0, %v1843
  %1845 = vmatprep.mubr.bf16.mxu0 %v402
  %1846 = vmatmul.mubr.bf16.gmra.mrb[0].mxu0 %v401
  %v1847 = vpop.f32.mrb[0].mxu0
  %v1848 = vadd.f32 0.0, %v1847
  %v1849 = vpop.f32.mrb[0].mxu0
  %v1850 = vadd.f32 0.0, %v1849
  %v1851 = vpop.f32.mrb[0].mxu0
  %v1852 = vadd.f32 0.0, %v1851
  %v1853 = vpop.f32.mrb[0].mxu0
  %v1854 = vadd.f32 0.0, %v1853
  %1855 = vmatprep.mubr.bf16.mxu0 %v405
  %1856 = vmatmul.mubr.bf16.gmra.mrb[0].mxu0 %v404
  %v1857 = vpop.f32.mrb[0].mxu0
  %v1858 = vadd.f32 0.0, %v1857
  %v1859 = vpop.f32.mrb[0].mxu0
  %v1860 = vadd.f32 0.0, %v1859
  %v1861 = vpop.f32.mrb[0].mxu0
  %v1862 = vadd.f32 0.0, %v1861
  %v1863 = vpop.f32.mrb[0].mxu0
  %v1864 = vadd.f32 0.0, %v1863
  %1865 = vmatprep.mubr.bf16.mxu0 %v408
  %1866 = vmatmul.mubr.bf16.gmra.mrb[0].mxu0 %v407
  %v1867 = vpop.f32.mrb[0].mxu0
  %v1868 = vadd.f32 0.0, %v1867
  %v1869 = vpop.f32.mrb[0].mxu0
  %v1870 = vadd.f32 0.0, %v1869
  %v1871 = vpop.f32.mrb[0].mxu0
  %v1872 = vadd.f32 0.0, %v1871
  %v1873 = vpop.f32.mrb[0].mxu0
  %v1874 = vadd.f32 0.0, %v1873
  %1875 = vmatprep.mubr.bf16.mxu0 %v411
  %1876 = vmatmul.mubr.bf16.gmra.mrb[0].mxu0 %v410
  %v1877 = vpop.f32.mrb[0].mxu0
  %v1878 = vadd.f32 0.0, %v1877
  %v1879 = vpop.f32.mrb[0].mxu0
  %v1880 = vadd.f32 0.0, %v1879
  %v1881 = vpop.f32.mrb[0].mxu0
  %v1882 = vadd.f32 0.0, %v1881
  %v1883 = vpop.f32.mrb[0].mxu0
  %v1884 = vadd.f32 0.0, %v1883
  %1885 = vmatprep.mubr.bf16.mxu0 %v414
  %1886 = vmatmul.mubr.bf16.gmra.mrb[0].mxu0 %v413
  %v1887 = vpop.f32.mrb[0].mxu0
  %v1888 = vadd.f32 0.0, %v1887
  %v1889 = vpop.f32.mrb[0].mxu0
  %v1890 = vadd.f32 0.0, %v1889
  %v1891 = vpop.f32.mrb[0].mxu0
  %v1892 = vadd.f32 0.0, %v1891
  %v1893 = vpop.f32.mrb[0].mxu0
  %v1894 = vadd.f32 0.0, %v1893
  %1895 = vmatprep.mubr.bf16.mxu0 %v417
  %1896 = vmatmul.mubr.bf16.gmra.mrb[0].mxu0 %v416
  %v1897 = vpop.f32.mrb[0].mxu0
  %v1898 = vadd.f32 0.0, %v1897
  %v1899 = vpop.f32.mrb[0].mxu0
  %v1900 = vadd.f32 0.0, %v1899
  %v1901 = vpop.f32.mrb[0].mxu0
  %v1902 = vadd.f32 0.0, %v1901
  %v1903 = vpop.f32.mrb[0].mxu0
  %v1904 = vadd.f32 0.0, %v1903
  %1905 = vmatprep.mubr.bf16.mxu0 %v420
  %1906 = vmatmul.mubr.bf16.gmra.mrb[0].mxu0 %v419
  %v1907 = vpop.f32.mrb[0].mxu0
  %v1908 = vadd.f32 0.0, %v1907
  %v1909 = vpop.f32.mrb[0].mxu0
  %v1910 = vadd.f32 0.0, %v1909
  %v1911 = vpop.f32.mrb[0].mxu0
  %v1912 = vadd.f32 0.0, %v1911
  %v1913 = vpop.f32.mrb[0].mxu0
  %v1914 = vadd.f32 0.0, %v1913
  %1915 = vmatprep.mubr.bf16.mxu0 %v423
  %1916 = vmatmul.mubr.bf16.gmra.mrb[0].mxu0 %v422
  %v1917 = vpop.f32.mrb[0].mxu0
  %v1918 = vadd.f32 0.0, %v1917
  %v1919 = vpop.f32.mrb[0].mxu0
  %v1920 = vadd.f32 0.0, %v1919
  %v1921 = vpop.f32.mrb[0].mxu0
  %v1922 = vadd.f32 0.0, %v1921
  %v1923 = vpop.f32.mrb[0].mxu0
  %v1924 = vadd.f32 0.0, %v1923
  %1925 = vmatprep.mubr.bf16.mxu0 %v426
  %1926 = vmatmul.mubr.bf16.gmra.mrb[0].mxu0 %v425
  %v1927 = vpop.f32.mrb[0].mxu0
  %v1928 = vadd.f32 0.0, %v1927
  %v1929 = vpop.f32.mrb[0].mxu0
  %v1930 = vadd.f32 0.0, %v1929
  %v1931 = vpop.f32.mrb[0].mxu0
  %v1932 = vadd.f32 0.0, %v1931
  %v1933 = vpop.f32.mrb[0].mxu0
  %v1934 = vadd.f32 0.0, %v1933
  %1935 = vmatprep.mubr.bf16.mxu0 %v429
  %1936 = vmatmul.mubr.bf16.gmra.mrb[0].mxu0 %v428
  %v1937 = vpop.f32.mrb[0].mxu0
  %v1938 = vadd.f32 0.0, %v1937
  %v1939 = vpop.f32.mrb[0].mxu0
  %v1940 = vadd.f32 0.0, %v1939
  %v1941 = vpop.f32.mrb[0].mxu0
  %v1942 = vadd.f32 0.0, %v1941
  %v1943 = vpop.f32.mrb[0].mxu0
  %v1944 = vadd.f32 0.0, %v1943
  %1945 = vdwg.mxu0
  %1946 = vmatprep.subr.bf16.mxu0 %v882
  %1947 = vmatpush1.bf16.msra.mxu0 %v881
  %1948 = vmatprep.subr.bf16.mxu0 %v886
  %1949 = vmatpush1.bf16.msra.mxu0 %v885
  %1950 = vmatprep.subr.bf16.mxu0 %v890
  %1951 = vmatpush1.bf16.msra.mxu0 %v889
  %1952 = vmatprep.subr.bf16.mxu0 %v894
  %1953 = vmatpush1.bf16.msra.mxu0 %v893
  %1954 = vmatprep.subr.bf16.mxu0 %v898
  %1955 = vmatpush1.bf16.msra.mxu0 %v897
  %1956 = vmatprep.subr.bf16.mxu0 %v902
  %1957 = vmatpush1.bf16.msra.mxu0 %v901
  %1958 = vmatprep.subr.bf16.mxu0 %v906
  %1959 = vmatpush1.bf16.msra.mxu0 %v905
  %1960 = vmatprep.subr.bf16.mxu0 %v910
  %1961 = vmatpush1.bf16.msra.mxu0 %v909
  %1962 = vmatprep.subr.bf16.mxu0 0
  %1963 = vmatpush1.bf16.msra.mxu0 0
  %1964 = vmatprep.subr.bf16.mxu0 0
  %1965 = vmatpush1.bf16.msra.mxu0 0
  %1966 = vmatprep.subr.bf16.mxu0 0
  %1967 = vmatpush1.bf16.msra.mxu0 0
  %1968 = vmatprep.subr.bf16.mxu0 0
  %1969 = vmatpush1.bf16.msra.mxu0 0
  %1970 = vmatprep.subr.bf16.mxu0 0
  %1971 = vmatpush1.bf16.msra.mxu0 0
  %1972 = vmatprep.subr.bf16.mxu0 0
  %1973 = vmatpush1.bf16.msra.mxu0 0
  %1974 = vmatprep.subr.bf16.mxu0 0
  %1975 = vmatpush1.bf16.msra.mxu0 0
  %1976 = vmatprep.subr.bf16.mxu0 0
  %1977 = vmatpush1.bf16.msra.mxu0 0
  %1978 = vmatprep.mubr.bf16.mxu0 0
  %1979 = vmatmul.mubr.bf16.gmra.mrb[0].mxu0 %v349
  %v1980 = vpop.f32.mrb[0].mxu0
  %v1981 = vadd.f32 %v1668, %v1980
  %v1982 = vpop.f32.mrb[0].mxu0
  %v1983 = vadd.f32 %v1670, %v1982
  %v1984 = vpop.f32.mrb[0].mxu0
  %v1985 = vadd.f32 %v1672, %v1984
  %v1986 = vpop.f32.mrb[0].mxu0
  %v1987 = vadd.f32 %v1674, %v1986
  %1988 = vmatprep.mubr.bf16.mxu0 0
  %1989 = vmatmul.mubr.bf16.gmra.mrb[0].mxu0 %v352
  %v1990 = vpop.f32.mrb[0].mxu0
  %v1991 = vadd.f32 %v1678, %v1990
  %v1992 = vpop.f32.mrb[0].mxu0
  %v1993 = vadd.f32 %v1680, %v1992
  %v1994 = vpop.f32.mrb[0].mxu0
  %v1995 = vadd.f32 %v1682, %v1994
  %v1996 = vpop.f32.mrb[0].mxu0
  %v1997 = vadd.f32 %v1684, %v1996
  %1998 = vmatprep.mubr.bf16.mxu0 0
  %1999 = vmatmul.mubr.bf16.gmra.mrb[0].mxu0 %v355
  %v2000 = vpop.f32.mrb[0].mxu0
  %v2001 = vadd.f32 %v1688, %v2000
  %v2002 = vpop.f32.mrb[0].mxu0
  %v2003 = vadd.f32 %v1690, %v2002
  %v2004 = vpop.f32.mrb[0].mxu0
  %v2005 = vadd.f32 %v1692, %v2004
  %v2006 = vpop.f32.mrb[0].mxu0
  %v2007 = vadd.f32 %v1694, %v2006
  %2008 = vmatprep.mubr.bf16.mxu0 0
  %2009 = vmatmul.mubr.bf16.gmra.mrb[0].mxu0 %v358
  %v2010 = vpop.f32.mrb[0].mxu0
  %v2011 = vadd.f32 %v1698, %v2010
  %v2012 = vpop.f32.mrb[0].mxu0
  %v2013 = vadd.f32 %v1700, %v2012
  %v2014 = vpop.f32.mrb[0].mxu0
  %v2015 = vadd.f32 %v1702, %v2014
  %v2016 = vpop.f32.mrb[0].mxu0
  %v2017 = vadd.f32 %v1704, %v2016
  %2018 = vmatprep.mubr.bf16.mxu0 0
  %2019 = vmatmul.mubr.bf16.gmra.mrb[0].mxu0 %v361
  %v2020 = vpop.f32.mrb[0].mxu0
  %v2021 = vadd.f32 %v1708, %v2020
  %v2022 = vpop.f32.mrb[0].mxu0
  %v2023 = vadd.f32 %v1710, %v2022
  %v2024 = vpop.f32.mrb[0].mxu0
  %v2025 = vadd.f32 %v1712, %v2024
  %v2026 = vpop.f32.mrb[0].mxu0
  %v2027 = vadd.f32 %v1714, %v2026
  %2028 = vmatprep.mubr.bf16.mxu0 0
  %2029 = vmatmul.mubr.bf16.gmra.mrb[0].mxu0 %v364
  %v2030 = vpop.f32.mrb[0].mxu0
  %v2031 = vadd.f32 %v1718, %v2030
  %v2032 = vpop.f32.mrb[0].mxu0
  %v2033 = vadd.f32 %v1720, %v2032
  %v2034 = vpop.f32.mrb[0].mxu0
  %v2035 = vadd.f32 %v1722, %v2034
  %v2036 = vpop.f32.mrb[0].mxu0
  %v2037 = vadd.f32 %v1724, %v2036
  %2038 = vmatprep.mubr.bf16.mxu0 0
  %2039 = vmatmul.mubr.bf16.gmra.mrb[0].mxu0 %v367
  %v2040 = vpop.f32.mrb[0].mxu0
  %v2041 = vadd.f32 %v1728, %v2040
  %v2042 = vpop.f32.mrb[0].mxu0
  %v2043 = vadd.f32 %v1730, %v2042
  %v2044 = vpop.f32.mrb[0].mxu0
  %v2045 = vadd.f32 %v1732, %v2044
  %v2046 = vpop.f32.mrb[0].mxu0
  %v2047 = vadd.f32 %v1734, %v2046
  %2048 = vmatprep.mubr.bf16.mxu0 0
  %2049 = vmatmul.mubr.bf16.gmra.mrb[0].mxu0 %v370
  %v2050 = vpop.f32.mrb[0].mxu0
  %v2051 = vadd.f32 %v1738, %v2050
  %v2052 = vpop.f32.mrb[0].mxu0
  %v2053 = vadd.f32 %v1740, %v2052
  %v2054 = vpop.f32.mrb[0].mxu0
  %v2055 = vadd.f32 %v1742, %v2054
  %v2056 = vpop.f32.mrb[0].mxu0
  %v2057 = vadd.f32 %v1744, %v2056
  %2058 = vmatprep.mubr.bf16.mxu0 0
  %2059 = vmatmul.mubr.bf16.gmra.mrb[0].mxu0 %v373
  %v2060 = vpop.f32.mrb[0].mxu0
  %v2061 = vadd.f32 %v1748, %v2060
  %v2062 = vpop.f32.mrb[0].mxu0
  %v2063 = vadd.f32 %v1750, %v2062
  %v2064 = vpop.f32.mrb[0].mxu0
  %v2065 = vadd.f32 %v1752, %v2064
  %v2066 = vpop.f32.mrb[0].mxu0
  %v2067 = vadd.f32 %v1754, %v2066
  %2068 = vmatprep.mubr.bf16.mxu0 0
  %2069 = vmatmul.mubr.bf16.gmra.mrb[0].mxu0 %v376
  %v2070 = vpop.f32.mrb[0].mxu0
  %v2071 = vadd.f32 %v1758, %v2070
  %v2072 = vpop.f32.mrb[0].mxu0
  %v2073 = vadd.f32 %v1760, %v2072
  %v2074 = vpop.f32.mrb[0].mxu0
  %v2075 = vadd.f32 %v1762, %v2074
  %v2076 = vpop.f32.mrb[0].mxu0
  %v2077 = vadd.f32 %v1764, %v2076
  %2078 = vmatprep.mubr.bf16.mxu0 0
  %2079 = vmatmul.mubr.bf16.gmra.mrb[0].mxu0 %v379
  %v2080 = vpop.f32.mrb[0].mxu0
  %v2081 = vadd.f32 %v1768, %v2080
  %v2082 = vpop.f32.mrb[0].mxu0
  %v2083 = vadd.f32 %v1770, %v2082
  %v2084 = vpop.f32.mrb[0].mxu0
  %v2085 = vadd.f32 %v1772, %v2084
  %v2086 = vpop.f32.mrb[0].mxu0
  %v2087 = vadd.f32 %v1774, %v2086
  %2088 = vmatprep.mubr.bf16.mxu0 0
  %2089 = vmatmul.mubr.bf16.gmra.mrb[0].mxu0 %v382
  %v2090 = vpop.f32.mrb[0].mxu0
  %v2091 = vadd.f32 %v1778, %v2090
  %v2092 = vpop.f32.mrb[0].mxu0
  %v2093 = vadd.f32 %v1780, %v2092
  %v2094 = vpop.f32.mrb[0].mxu0
  %v2095 = vadd.f32 %v1782, %v2094
  %v2096 = vpop.f32.mrb[0].mxu0
  %v2097 = vadd.f32 %v1784, %v2096
  %2098 = vmatprep.mubr.bf16.mxu0 0
  %2099 = vmatmul.mubr.bf16.gmra.mrb[0].mxu0 %v385
  %v2100 = vpop.f32.mrb[0].mxu0
  %v2101 = vadd.f32 %v1788, %v2100
  %v2102 = vpop.f32.mrb[0].mxu0
  %v2103 = vadd.f32 %v1790, %v2102
  %v2104 = vpop.f32.mrb[0].mxu0
  %v2105 = vadd.f32 %v1792, %v2104
  %v2106 = vpop.f32.mrb[0].mxu0
  %v2107 = vadd.f32 %v1794, %v2106
  %2108 = vmatprep.mubr.bf16.mxu0 0
  %2109 = vmatmul.mubr.bf16.gmra.mrb[0].mxu0 %v388
  %v2110 = vpop.f32.mrb[0].mxu0
  %v2111 = vadd.f32 %v1798, %v2110
  %v2112 = vpop.f32.mrb[0].mxu0
  %v2113 = vadd.f32 %v1800, %v2112
  %v2114 = vpop.f32.mrb[0].mxu0
  %v2115 = vadd.f32 %v1802, %v2114
  %v2116 = vpop.f32.mrb[0].mxu0
  %v2117 = vadd.f32 %v1804, %v2116
  %2118 = vmatprep.mubr.bf16.mxu0 0
  %2119 = vmatmul.mubr.bf16.gmra.mrb[0].mxu0 %v391
  %v2120 = vpop.f32.mrb[0].mxu0
  %v2121 = vadd.f32 %v1808, %v2120
  %v2122 = vpop.f32.mrb[0].mxu0
  %v2123 = vadd.f32 %v1810, %v2122
  %v2124 = vpop.f32.mrb[0].mxu0
  %v2125 = vadd.f32 %v1812, %v2124
  %v2126 = vpop.f32.mrb[0].mxu0
  %v2127 = vadd.f32 %v1814, %v2126
  %2128 = vmatprep.mubr.bf16.mxu0 0
  %2129 = vmatmul.mubr.bf16.gmra.mrb[0].mxu0 %v394
  %v2130 = vpop.f32.mrb[0].mxu0
  %v2131 = vadd.f32 %v1818, %v2130
  %v2132 = vpop.f32.mrb[0].mxu0
  %v2133 = vadd.f32 %v1820, %v2132
  %v2134 = vpop.f32.mrb[0].mxu0
  %v2135 = vadd.f32 %v1822, %v2134
  %v2136 = vpop.f32.mrb[0].mxu0
  %v2137 = vadd.f32 %v1824, %v2136
  %2138 = vmatprep.mubr.bf16.mxu0 0
  %2139 = vmatmul.mubr.bf16.gmra.mrb[0].mxu0 %v397
  %v2140 = vpop.f32.mrb[0].mxu0
  %v2141 = vadd.f32 %v1828, %v2140
  %v2142 = vpop.f32.mrb[0].mxu0
  %v2143 = vadd.f32 %v1830, %v2142
  %v2144 = vpop.f32.mrb[0].mxu0
  %v2145 = vadd.f32 %v1832, %v2144
  %v2146 = vpop.f32.mrb[0].mxu0
  %v2147 = vadd.f32 %v1834, %v2146
  %2148 = vmatprep.mubr.bf16.mxu0 0
  %2149 = vmatmul.mubr.bf16.gmra.mrb[0].mxu0 %v400
  %v2150 = vpop.f32.mrb[0].mxu0
  %v2151 = vadd.f32 %v1838, %v2150
  %v2152 = vpop.f32.mrb[0].mxu0
  %v2153 = vadd.f32 %v1840, %v2152
  %v2154 = vpop.f32.mrb[0].mxu0
  %v2155 = vadd.f32 %v1842, %v2154
  %v2156 = vpop.f32.mrb[0].mxu0
  %v2157 = vadd.f32 %v1844, %v2156
  %2158 = vmatprep.mubr.bf16.mxu0 0
  %2159 = vmatmul.mubr.bf16.gmra.mrb[0].mxu0 %v403
  %v2160 = vpop.f32.mrb[0].mxu0
  %v2161 = vadd.f32 %v1848, %v2160
  %v2162 = vpop.f32.mrb[0].mxu0
  %v2163 = vadd.f32 %v1850, %v2162
  %v2164 = vpop.f32.mrb[0].mxu0
  %v2165 = vadd.f32 %v1852, %v2164
  %v2166 = vpop.f32.mrb[0].mxu0
  %v2167 = vadd.f32 %v1854, %v2166
  %2168 = vmatprep.mubr.bf16.mxu0 0
  %2169 = vmatmul.mubr.bf16.gmra.mrb[0].mxu0 %v406
  %v2170 = vpop.f32.mrb[0].mxu0
  %v2171 = vadd.f32 %v1858, %v2170
  %v2172 = vpop.f32.mrb[0].mxu0
  %v2173 = vadd.f32 %v1860, %v2172
  %v2174 = vpop.f32.mrb[0].mxu0
  %v2175 = vadd.f32 %v1862, %v2174
  %v2176 = vpop.f32.mrb[0].mxu0
  %v2177 = vadd.f32 %v1864, %v2176
  %2178 = vmatprep.mubr.bf16.mxu0 0
  %2179 = vmatmul.mubr.bf16.gmra.mrb[0].mxu0 %v409
  %v2180 = vpop.f32.mrb[0].mxu0
  %v2181 = vadd.f32 %v1868, %v2180
  %v2182 = vpop.f32.mrb[0].mxu0
  %v2183 = vadd.f32 %v1870, %v2182
  %v2184 = vpop.f32.mrb[0].mxu0
  %v2185 = vadd.f32 %v1872, %v2184
  %v2186 = vpop.f32.mrb[0].mxu0
  %v2187 = vadd.f32 %v1874, %v2186
  %2188 = vmatprep.mubr.bf16.mxu0 0
  %2189 = vmatmul.mubr.bf16.gmra.mrb[0].mxu0 %v412
  %v2190 = vpop.f32.mrb[0].mxu0
  %v2191 = vadd.f32 %v1878, %v2190
  %v2192 = vpop.f32.mrb[0].mxu0
  %v2193 = vadd.f32 %v1880, %v2192
  %v2194 = vpop.f32.mrb[0].mxu0
  %v2195 = vadd.f32 %v1882, %v2194
  %v2196 = vpop.f32.mrb[0].mxu0
  %v2197 = vadd.f32 %v1884, %v2196
  %2198 = vmatprep.mubr.bf16.mxu0 0
  %2199 = vmatmul.mubr.bf16.gmra.mrb[0].mxu0 %v415
  %v2200 = vpop.f32.mrb[0].mxu0
  %v2201 = vadd.f32 %v1888, %v2200
  %v2202 = vpop.f32.mrb[0].mxu0
  %v2203 = vadd.f32 %v1890, %v2202
  %v2204 = vpop.f32.mrb[0].mxu0
  %v2205 = vadd.f32 %v1892, %v2204
  %v2206 = vpop.f32.mrb[0].mxu0
  %v2207 = vadd.f32 %v1894, %v2206
  %2208 = vmatprep.mubr.bf16.mxu0 0
  %2209 = vmatmul.mubr.bf16.gmra.mrb[0].mxu0 %v418
  %v2210 = vpop.f32.mrb[0].mxu0
  %v2211 = vadd.f32 %v1898, %v2210
  %v2212 = vpop.f32.mrb[0].mxu0
  %v2213 = vadd.f32 %v1900, %v2212
  %v2214 = vpop.f32.mrb[0].mxu0
  %v2215 = vadd.f32 %v1902, %v2214
  %v2216 = vpop.f32.mrb[0].mxu0
  %v2217 = vadd.f32 %v1904, %v2216
  %2218 = vmatprep.mubr.bf16.mxu0 0
  %2219 = vmatmul.mubr.bf16.gmra.mrb[0].mxu0 %v421
  %v2220 = vpop.f32.mrb[0].mxu0
  %v2221 = vadd.f32 %v1908, %v2220
  %v2222 = vpop.f32.mrb[0].mxu0
  %v2223 = vadd.f32 %v1910, %v2222
  %v2224 = vpop.f32.mrb[0].mxu0
  %v2225 = vadd.f32 %v1912, %v2224
  %v2226 = vpop.f32.mrb[0].mxu0
  %v2227 = vadd.f32 %v1914, %v2226
  %2228 = vmatprep.mubr.bf16.mxu0 0
  %2229 = vmatmul.mubr.bf16.gmra.mrb[0].mxu0 %v424
  %v2230 = vpop.f32.mrb[0].mxu0
  %v2231 = vadd.f32 %v1918, %v2230
  %v2232 = vpop.f32.mrb[0].mxu0
  %v2233 = vadd.f32 %v1920, %v2232
  %v2234 = vpop.f32.mrb[0].mxu0
  %v2235 = vadd.f32 %v1922, %v2234
  %v2236 = vpop.f32.mrb[0].mxu0
  %v2237 = vadd.f32 %v1924, %v2236
  %2238 = vmatprep.mubr.bf16.mxu0 0
  %2239 = vmatmul.mubr.bf16.gmra.mrb[0].mxu0 %v427
  %v2240 = vpop.f32.mrb[0].mxu0
  %v2241 = vadd.f32 %v1928, %v2240
  %v2242 = vpop.f32.mrb[0].mxu0
  %v2243 = vadd.f32 %v1930, %v2242
  %v2244 = vpop.f32.mrb[0].mxu0
  %v2245 = vadd.f32 %v1932, %v2244
  %v2246 = vpop.f32.mrb[0].mxu0
  %v2247 = vadd.f32 %v1934, %v2246
  %2248 = vmatprep.mubr.bf16.mxu0 0
  %2249 = vmatmul.mubr.bf16.gmra.mrb[0].mxu0 %v430
  %v2250 = vpop.f32.mrb[0].mxu0
  %v2251 = vadd.f32 %v1938, %v2250
  %v2252 = vpop.f32.mrb[0].mxu0
  %v2253 = vadd.f32 %v1940, %v2252
  %v2254 = vpop.f32.mrb[0].mxu0
  %v2255 = vadd.f32 %v1942, %v2254
  %v2256 = vpop.f32.mrb[0].mxu0
  %v2257 = vadd.f32 %v1944, %v2256
  %2258 = vdwg.mxu0
  %v2259 = vmax.f32 %v1355, %v1981
  %v2260 = vmax.f32 %v1357, %v1983
  %v2261 = vmax.f32 %v1359, %v1985
  %v2262 = vmax.f32 %v1361, %v1987
  %v2263 = vmax.f32 %v1365, %v1991
  %v2264 = vmax.f32 %v1367, %v1993
  %v2265 = vmax.f32 %v1369, %v1995
  %v2266 = vmax.f32 %v1371, %v1997
  %v2267 = vmax.f32 %v1375, %v2001
  %v2268 = vmax.f32 %v1377, %v2003
  %v2269 = vmax.f32 %v1379, %v2005
  %v2270 = vmax.f32 %v1381, %v2007
  %v2271 = vmax.f32 %v1385, %v2011
  %v2272 = vmax.f32 %v1387, %v2013
  %v2273 = vmax.f32 %v1389, %v2015
  %v2274 = vmax.f32 %v1391, %v2017
  %v2275 = vmax.f32 %v1395, %v2021
  %v2276 = vmax.f32 %v1397, %v2023
  %v2277 = vmax.f32 %v1399, %v2025
  %v2278 = vmax.f32 %v1401, %v2027
  %v2279 = vmax.f32 %v1405, %v2031
  %v2280 = vmax.f32 %v1407, %v2033
  %v2281 = vmax.f32 %v1409, %v2035
  %v2282 = vmax.f32 %v1411, %v2037
  %v2283 = vmax.f32 %v1415, %v2041
  %v2284 = vmax.f32 %v1417, %v2043
  %v2285 = vmax.f32 %v1419, %v2045
  %v2286 = vmax.f32 %v1421, %v2047
  %v2287 = vmax.f32 %v1425, %v2051
  %v2288 = vmax.f32 %v1427, %v2053
  %v2289 = vmax.f32 %v1429, %v2055
  %v2290 = vmax.f32 %v1431, %v2057
  %v2291 = vmax.f32 %v1435, %v2061
  %v2292 = vmax.f32 %v1437, %v2063
  %v2293 = vmax.f32 %v1439, %v2065
  %v2294 = vmax.f32 %v1441, %v2067
  %v2295 = vmax.f32 %v1445, %v2071
  %v2296 = vmax.f32 %v1447, %v2073
  %v2297 = vmax.f32 %v1449, %v2075
  %v2298 = vmax.f32 %v1451, %v2077
  %v2299 = vmax.f32 %v1455, %v2081
  %v2300 = vmax.f32 %v1457, %v2083
  %v2301 = vmax.f32 %v1459, %v2085
  %v2302 = vmax.f32 %v1461, %v2087
  %v2303 = vmax.f32 %v1465, %v2091
  %v2304 = vmax.f32 %v1467, %v2093
  %v2305 = vmax.f32 %v1469, %v2095
  %v2306 = vmax.f32 %v1471, %v2097
  %v2307 = vmax.f32 %v1475, %v2101
  %v2308 = vmax.f32 %v1477, %v2103
  %v2309 = vmax.f32 %v1479, %v2105
  %v2310 = vmax.f32 %v1481, %v2107
  %v2311 = vmax.f32 %v1485, %v2111
  %v2312 = vmax.f32 %v1487, %v2113
  %v2313 = vmax.f32 %v1489, %v2115
  %v2314 = vmax.f32 %v1491, %v2117
  %v2315 = vmax.f32 %v1495, %v2121
  %v2316 = vmax.f32 %v1497, %v2123
  %v2317 = vmax.f32 %v1499, %v2125
  %v2318 = vmax.f32 %v1501, %v2127
  %v2319 = vmax.f32 %v1505, %v2131
  %v2320 = vmax.f32 %v1507, %v2133
  %v2321 = vmax.f32 %v1509, %v2135
  %v2322 = vmax.f32 %v1511, %v2137
  %v2323 = vmax.f32 %v1515, %v2141
  %v2324 = vmax.f32 %v1517, %v2143
  %v2325 = vmax.f32 %v1519, %v2145
  %v2326 = vmax.f32 %v1521, %v2147
  %v2327 = vmax.f32 %v1525, %v2151
  %v2328 = vmax.f32 %v1527, %v2153
  %v2329 = vmax.f32 %v1529, %v2155
  %v2330 = vmax.f32 %v1531, %v2157
  %v2331 = vmax.f32 %v1535, %v2161
  %v2332 = vmax.f32 %v1537, %v2163
  %v2333 = vmax.f32 %v1539, %v2165
  %v2334 = vmax.f32 %v1541, %v2167
  %v2335 = vmax.f32 %v1545, %v2171
  %v2336 = vmax.f32 %v1547, %v2173
  %v2337 = vmax.f32 %v1549, %v2175
  %v2338 = vmax.f32 %v1551, %v2177
  %v2339 = vmax.f32 %v1555, %v2181
  %v2340 = vmax.f32 %v1557, %v2183
  %v2341 = vmax.f32 %v1559, %v2185
  %v2342 = vmax.f32 %v1561, %v2187
  %v2343 = vmax.f32 %v1565, %v2191
  %v2344 = vmax.f32 %v1567, %v2193
  %v2345 = vmax.f32 %v1569, %v2195
  %v2346 = vmax.f32 %v1571, %v2197
  %v2347 = vmax.f32 %v1575, %v2201
  %v2348 = vmax.f32 %v1577, %v2203
  %v2349 = vmax.f32 %v1579, %v2205
  %v2350 = vmax.f32 %v1581, %v2207
  %v2351 = vmax.f32 %v1585, %v2211
  %v2352 = vmax.f32 %v1587, %v2213
  %v2353 = vmax.f32 %v1589, %v2215
  %v2354 = vmax.f32 %v1591, %v2217
  %v2355 = vmax.f32 %v1595, %v2221
  %v2356 = vmax.f32 %v1597, %v2223
  %v2357 = vmax.f32 %v1599, %v2225
  %v2358 = vmax.f32 %v1601, %v2227
  %v2359 = vmax.f32 %v1605, %v2231
  %v2360 = vmax.f32 %v1607, %v2233
  %v2361 = vmax.f32 %v1609, %v2235
  %v2362 = vmax.f32 %v1611, %v2237
  %v2363 = vmax.f32 %v1615, %v2241
  %v2364 = vmax.f32 %v1617, %v2243
  %v2365 = vmax.f32 %v1619, %v2245
  %v2366 = vmax.f32 %v1621, %v2247
  %v2367 = vmax.f32 %v1625, %v2251
  %v2368 = vmax.f32 %v1627, %v2253
  %v2369 = vmax.f32 %v1629, %v2255
  %v2370 = vmax.f32 %v1631, %v2257
  %v2371 = vmax.f32 %v2259, %v2263
  %v2372 = vmax.f32 %v2260, %v2264
  %v2373 = vmax.f32 %v2261, %v2265
  %v2374 = vmax.f32 %v2262, %v2266
  %v2375 = vmax.f32 %v2267, %v2271
  %v2376 = vmax.f32 %v2268, %v2272
  %v2377 = vmax.f32 %v2269, %v2273
  %v2378 = vmax.f32 %v2270, %v2274
  %v2379 = vmax.f32 %v2275, %v2279
  %v2380 = vmax.f32 %v2276, %v2280
  %v2381 = vmax.f32 %v2277, %v2281
  %v2382 = vmax.f32 %v2278, %v2282
  %v2383 = vmax.f32 %v2283, %v2287
  %v2384 = vmax.f32 %v2284, %v2288
  %v2385 = vmax.f32 %v2285, %v2289
  %v2386 = vmax.f32 %v2286, %v2290
  %v2387 = vmax.f32 %v2291, %v2295
  %v2388 = vmax.f32 %v2292, %v2296
  %v2389 = vmax.f32 %v2293, %v2297
  %v2390 = vmax.f32 %v2294, %v2298
  %v2391 = vmax.f32 %v2299, %v2303
  %v2392 = vmax.f32 %v2300, %v2304
  %v2393 = vmax.f32 %v2301, %v2305
  %v2394 = vmax.f32 %v2302, %v2306
  %v2395 = vmax.f32 %v2307, %v2311
  %v2396 = vmax.f32 %v2308, %v2312
  %v2397 = vmax.f32 %v2309, %v2313
  %v2398 = vmax.f32 %v2310, %v2314
  %v2399 = vmax.f32 %v2315, %v2319
  %v2400 = vmax.f32 %v2316, %v2320
  %v2401 = vmax.f32 %v2317, %v2321
  %v2402 = vmax.f32 %v2318, %v2322
  %v2403 = vmax.f32 %v2323, %v2327
  %v2404 = vmax.f32 %v2324, %v2328
  %v2405 = vmax.f32 %v2325, %v2329
  %v2406 = vmax.f32 %v2326, %v2330
  %v2407 = vmax.f32 %v2331, %v2335
  %v2408 = vmax.f32 %v2332, %v2336
  %v2409 = vmax.f32 %v2333, %v2337
  %v2410 = vmax.f32 %v2334, %v2338
  %v2411 = vmax.f32 %v2339, %v2343
  %v2412 = vmax.f32 %v2340, %v2344
  %v2413 = vmax.f32 %v2341, %v2345
  %v2414 = vmax.f32 %v2342, %v2346
  %v2415 = vmax.f32 %v2347, %v2351
  %v2416 = vmax.f32 %v2348, %v2352
  %v2417 = vmax.f32 %v2349, %v2353
  %v2418 = vmax.f32 %v2350, %v2354
  %v2419 = vmax.f32 %v2355, %v2359
  %v2420 = vmax.f32 %v2356, %v2360
  %v2421 = vmax.f32 %v2357, %v2361
  %v2422 = vmax.f32 %v2358, %v2362
  %v2423 = vmax.f32 %v2363, %v2367
  %v2424 = vmax.f32 %v2364, %v2368
  %v2425 = vmax.f32 %v2365, %v2369
  %v2426 = vmax.f32 %v2366, %v2370
  %v2427 = vld [vmem:[%s2] sm:$0x3]
  %v2429 = vlaneseq
  %v2430 = vshrl.u32 %v2429, 7
  %v2431 = vsub.s32 0, %v2430
  %v2432 = vrot.slane %v2427, %v2431
  %v2433 = vlaneseq
  %v2434 = vshrl.u32 %v2433, 7
  %v2435 = vsub.s32 1, %v2434
  %v2436 = vrot.slane %v2427, %v2435
  %v2439 = vadd.f32 %v2371, %v2432
  %v2440 = vadd.f32 %v2372, %v2436
  %v2441 = vadd.f32 %v2373, %v2432
  %v2442 = vadd.f32 %v2374, %v2436
  %v2443 = vadd.f32 %v2375, %v2432
  %v2444 = vadd.f32 %v2376, %v2436
  %v2445 = vadd.f32 %v2377, %v2432
  %v2446 = vadd.f32 %v2378, %v2436
  %v2447 = vadd.f32 %v2379, %v2432
  %v2448 = vadd.f32 %v2380, %v2436
  %v2449 = vadd.f32 %v2381, %v2432
  %v2450 = vadd.f32 %v2382, %v2436
  %v2451 = vadd.f32 %v2383, %v2432
  %v2452 = vadd.f32 %v2384, %v2436
  %v2453 = vadd.f32 %v2385, %v2432
  %v2454 = vadd.f32 %v2386, %v2436
  %v2455 = vadd.f32 %v2387, %v2432
  %v2456 = vadd.f32 %v2388, %v2436
  %v2457 = vadd.f32 %v2389, %v2432
  %v2458 = vadd.f32 %v2390, %v2436
  %v2459 = vadd.f32 %v2391, %v2432
  %v2460 = vadd.f32 %v2392, %v2436
  %v2461 = vadd.f32 %v2393, %v2432
  %v2462 = vadd.f32 %v2394, %v2436
  %v2463 = vadd.f32 %v2395, %v2432
  %v2464 = vadd.f32 %v2396, %v2436
  %v2465 = vadd.f32 %v2397, %v2432
  %v2466 = vadd.f32 %v2398, %v2436
  %v2467 = vadd.f32 %v2399, %v2432
  %v2468 = vadd.f32 %v2400, %v2436
  %v2469 = vadd.f32 %v2401, %v2432
  %v2470 = vadd.f32 %v2402, %v2436
  %v2471 = vadd.f32 %v2403, %v2432
  %v2472 = vadd.f32 %v2404, %v2436
  %v2473 = vadd.f32 %v2405, %v2432
  %v2474 = vadd.f32 %v2406, %v2436
  %v2475 = vadd.f32 %v2407, %v2432
  %v2476 = vadd.f32 %v2408, %v2436
  %v2477 = vadd.f32 %v2409, %v2432
  %v2478 = vadd.f32 %v2410, %v2436
  %v2479 = vadd.f32 %v2411, %v2432
  %v2480 = vadd.f32 %v2412, %v2436
  %v2481 = vadd.f32 %v2413, %v2432
  %v2482 = vadd.f32 %v2414, %v2436
  %v2483 = vadd.f32 %v2415, %v2432
  %v2484 = vadd.f32 %v2416, %v2436
  %v2485 = vadd.f32 %v2417, %v2432
  %v2486 = vadd.f32 %v2418, %v2436
  %v2487 = vadd.f32 %v2419, %v2432
  %v2488 = vadd.f32 %v2420, %v2436
  %v2489 = vadd.f32 %v2421, %v2432
  %v2490 = vadd.f32 %v2422, %v2436
  %v2491 = vadd.f32 %v2423, %v2432
  %v2492 = vadd.f32 %v2424, %v2436
  %v2493 = vadd.f32 %v2425, %v2432
  %v2494 = vadd.f32 %v2426, %v2436
  %v2495 = vmax.f32 %v2439, 0.0
  %v2496 = vmax.f32 %v2440, 0.0
  %v2497 = vmax.f32 %v2441, 0.0
  %v2498 = vmax.f32 %v2442, 0.0
  %v2499 = vmax.f32 %v2443, 0.0
  %v2500 = vmax.f32 %v2444, 0.0
  %v2501 = vmax.f32 %v2445, 0.0
  %v2502 = vmax.f32 %v2446, 0.0
  %v2503 = vmax.f32 %v2447, 0.0
  %v2504 = vmax.f32 %v2448, 0.0
  %v2505 = vmax.f32 %v2449, 0.0
  %v2506 = vmax.f32 %v2450, 0.0
  %v2507 = vmax.f32 %v2451, 0.0
  %v2508 = vmax.f32 %v2452, 0.0
  %v2509 = vmax.f32 %v2453, 0.0
  %v2510 = vmax.f32 %v2454, 0.0
  %v2511 = vmax.f32 %v2455, 0.0
  %v2512 = vmax.f32 %v2456, 0.0
  %v2513 = vmax.f32 %v2457, 0.0
  %v2514 = vmax.f32 %v2458, 0.0
  %v2515 = vmax.f32 %v2459, 0.0
  %v2516 = vmax.f32 %v2460, 0.0
  %v2517 = vmax.f32 %v2461, 0.0
  %v2518 = vmax.f32 %v2462, 0.0
  %v2519 = vmax.f32 %v2463, 0.0
  %v2520 = vmax.f32 %v2464, 0.0
  %v2521 = vmax.f32 %v2465, 0.0
  %v2522 = vmax.f32 %v2466, 0.0
  %v2523 = vmax.f32 %v2467, 0.0
  %v2524 = vmax.f32 %v2468, 0.0
  %v2525 = vmax.f32 %v2469, 0.0
  %v2526 = vmax.f32 %v2470, 0.0
  %v2527 = vmax.f32 %v2471, 0.0
  %v2528 = vmax.f32 %v2472, 0.0
  %v2529 = vmax.f32 %v2473, 0.0
  %v2530 = vmax.f32 %v2474, 0.0
  %v2531 = vmax.f32 %v2475, 0.0
  %v2532 = vmax.f32 %v2476, 0.0
  %v2533 = vmax.f32 %v2477, 0.0
  %v2534 = vmax.f32 %v2478, 0.0
  %v2535 = vmax.f32 %v2479, 0.0
  %v2536 = vmax.f32 %v2480, 0.0
  %v2537 = vmax.f32 %v2481, 0.0
  %v2538 = vmax.f32 %v2482, 0.0
  %v2539 = vmax.f32 %v2483, 0.0
  %v2540 = vmax.f32 %v2484, 0.0
  %v2541 = vmax.f32 %v2485, 0.0
  %v2542 = vmax.f32 %v2486, 0.0
  %v2543 = vmax.f32 %v2487, 0.0
  %v2544 = vmax.f32 %v2488, 0.0
  %v2545 = vmax.f32 %v2489, 0.0
  %v2546 = vmax.f32 %v2490, 0.0
  %v2547 = vmax.f32 %v2491, 0.0
  %v2548 = vmax.f32 %v2492, 0.0
  %v2549 = vmax.f32 %v2493, 0.0
  %v2550 = vmax.f32 %v2494, 0.0
  %v2551 = vpack.c.bf16 %v2497, %v2495
  %v2552 = vpack.c.bf16 %v2498, %v2496
  %v2553 = vpack.c.bf16 %v2501, %v2499
  %v2554 = vpack.c.bf16 %v2502, %v2500
  %v2555 = vpack.c.bf16 %v2505, %v2503
  %v2556 = vpack.c.bf16 %v2506, %v2504
  %v2557 = vpack.c.bf16 %v2509, %v2507
  %v2558 = vpack.c.bf16 %v2510, %v2508
  %v2559 = vpack.c.bf16 %v2513, %v2511
  %v2560 = vpack.c.bf16 %v2514, %v2512
  %v2561 = vpack.c.bf16 %v2517, %v2515
  %v2562 = vpack.c.bf16 %v2518, %v2516
  %v2563 = vpack.c.bf16 %v2521, %v2519
  %v2564 = vpack.c.bf16 %v2522, %v2520
  %v2565 = vpack.c.bf16 %v2525, %v2523
  %v2566 = vpack.c.bf16 %v2526, %v2524
  %v2567 = vpack.c.bf16 %v2529, %v2527
  %v2568 = vpack.c.bf16 %v2530, %v2528
  %v2569 = vpack.c.bf16 %v2533, %v2531
  %v2570 = vpack.c.bf16 %v2534, %v2532
  %v2571 = vpack.c.bf16 %v2537, %v2535
  %v2572 = vpack.c.bf16 %v2538, %v2536
  %v2573 = vpack.c.bf16 %v2541, %v2539
  %v2574 = vpack.c.bf16 %v2542, %v2540
  %v2575 = vpack.c.bf16 %v2545, %v2543
  %v2576 = vpack.c.bf16 %v2546, %v2544
  %v2577 = vpack.c.bf16 %v2549, %v2547
  %v2578 = vpack.c.bf16 %v2550, %v2548
  %2579 = vst [vmem:[#allocation3 + $0x10] sm:$0xff] %v2551
  %2580 = vst [vmem:[#allocation3 + $0x18] sm:$0xff] %v2552
  %2581 = vst [vmem:[#allocation3 + $0x40] sm:$0xff] %v2553
  %2582 = vst [vmem:[#allocation3 + $0x48] sm:$0xff] %v2554
  %2583 = vst [vmem:[#allocation3 + $0x70] sm:$0xff] %v2555
  %2584 = vst [vmem:[#allocation3 + $0x78] sm:$0xff] %v2556
  %2585 = vst [vmem:[#allocation3 + $0xa0] sm:$0xff] %v2557
  %2586 = vst [vmem:[#allocation3 + $0xa8] sm:$0xff] %v2558
  %2587 = vst [vmem:[#allocation3 + $0xd0] sm:$0xff] %v2559
  %2588 = vst [vmem:[#allocation3 + $0xd8] sm:$0xff] %v2560
  %2589 = vst [vmem:[#allocation3 + $0x100] sm:$0xff] %v2561
  %2590 = vst [vmem:[#allocation3 + $0x108] sm:$0xff] %v2562
  %2591 = vst [vmem:[#allocation3 + $0x130] sm:$0xff] %v2563
  %2592 = vst [vmem:[#allocation3 + $0x138] sm:$0xff] %v2564
  %2593 = vst [vmem:[#allocation3 + $0x160] sm:$0xff] %v2565
  %2594 = vst [vmem:[#allocation3 + $0x168] sm:$0xff] %v2566
  %2595 = vst [vmem:[#allocation3 + $0x190] sm:$0xff] %v2567
  %2596 = vst [vmem:[#allocation3 + $0x198] sm:$0xff] %v2568
  %2597 = vst [vmem:[#allocation3 + $0x1c0] sm:$0xff] %v2569
  %2598 = vst [vmem:[#allocation3 + $0x1c8] sm:$0xff] %v2570
  %2599 = vst [vmem:[#allocation3 + $0x1f0] sm:$0xff] %v2571
  %2600 = vst [vmem:[#allocation3 + $0x1f8] sm:$0xff] %v2572
  %2601 = vst [vmem:[#allocation3 + $0x220] sm:$0xff] %v2573
  %2602 = vst [vmem:[#allocation3 + $0x228] sm:$0xff] %v2574
  %2603 = vst [vmem:[#allocation3 + $0x250] sm:$0xff] %v2575
  %2604 = vst [vmem:[#allocation3 + $0x258] sm:$0xff] %v2576
  %2605 = vst [vmem:[#allocation3 + $0x280] sm:$0xff] %v2577
  %2606 = vst [vmem:[#allocation3 + $0x288] sm:$0xff] %v2578
  %2607 = vst [vmem:[#allocation3] sm:$0xff] 0
  %2608 = vst [vmem:[#allocation3 + $0x8] sm:$0xff] 0
  %2609 = vst [vmem:[#allocation3 + $0x30] sm:$0xff] %v2551
  %2610 = vst [vmem:[#allocation3 + $0x38] sm:$0xff] %v2552
  %2611 = vst [vmem:[#allocation3 + $0x60] sm:$0xff] %v2553
  %2612 = vst [vmem:[#allocation3 + $0x68] sm:$0xff] %v2554
  %2613 = vst [vmem:[#allocation3 + $0x90] sm:$0xff] %v2555
  %2614 = vst [vmem:[#allocation3 + $0x98] sm:$0xff] %v2556
  %2615 = vst [vmem:[#allocation3 + $0xc0] sm:$0xff] %v2557
  %2616 = vst [vmem:[#allocation3 + $0xc8] sm:$0xff] %v2558
  %2617 = vst [vmem:[#allocation3 + $0xf0] sm:$0xff] %v2559
  %2618 = vst [vmem:[#allocation3 + $0xf8] sm:$0xff] %v2560
  %2619 = vst [vmem:[#allocation3 + $0x120] sm:$0xff] %v2561
  %2620 = vst [vmem:[#allocation3 + $0x128] sm:$0xff] %v2562
  %2621 = vst [vmem:[#allocation3 + $0x150] sm:$0xff] %v2563
  %2622 = vst [vmem:[#allocation3 + $0x158] sm:$0xff] %v2564
  %2623 = vst [vmem:[#allocation3 + $0x180] sm:$0xff] %v2565
  %2624 = vst [vmem:[#allocation3 + $0x188] sm:$0xff] %v2566
  %2625 = vst [vmem:[#allocation3 + $0x1b0] sm:$0xff] %v2567
  %2626 = vst [vmem:[#allocation3 + $0x1b8] sm:$0xff] %v2568
  %2627 = vst [vmem:[#allocation3 + $0x1e0] sm:$0xff] %v2569
  %2628 = vst [vmem:[#allocation3 + $0x1e8] sm:$0xff] %v2570
  %2629 = vst [vmem:[#allocation3 + $0x210] sm:$0xff] %v2571
  %2630 = vst [vmem:[#allocation3 + $0x218] sm:$0xff] %v2572
  %2631 = vst [vmem:[#allocation3 + $0x240] sm:$0xff] %v2573
  %2632 = vst [vmem:[#allocation3 + $0x248] sm:$0xff] %v2574
  %2633 = vst [vmem:[#allocation3 + $0x270] sm:$0xff] %v2575
  %2634 = vst [vmem:[#allocation3 + $0x278] sm:$0xff] %v2576
  %2635 = vst [vmem:[#allocation3 + $0x20] sm:$0xff] %v2553
  %2636 = vst [vmem:[#allocation3 + $0x28] sm:$0xff] %v2554
  %2637 = vst [vmem:[#allocation3 + $0x50] sm:$0xff] %v2555
  %2638 = vst [vmem:[#allocation3 + $0x58] sm:$0xff] %v2556
  %2639 = vst [vmem:[#allocation3 + $0x80] sm:$0xff] %v2557
  %2640 = vst [vmem:[#allocation3 + $0x88] sm:$0xff] %v2558
  %2641 = vst [vmem:[#allocation3 + $0xb0] sm:$0xff] %v2559
  %2642 = vst [vmem:[#allocation3 + $0xb8] sm:$0xff] %v2560
  %2643 = vst [vmem:[#allocation3 + $0xe0] sm:$0xff] %v2561
  %2644 = vst [vmem:[#allocation3 + $0xe8] sm:$0xff] %v2562
  %2645 = vst [vmem:[#allocation3 + $0x110] sm:$0xff] %v2563
  %2646 = vst [vmem:[#allocation3 + $0x118] sm:$0xff] %v2564
  %2647 = vst [vmem:[#allocation3 + $0x140] sm:$0xff] %v2565
  %2648 = vst [vmem:[#allocation3 + $0x148] sm:$0xff] %v2566
  %2649 = vst [vmem:[#allocation3 + $0x170] sm:$0xff] %v2567
  %2650 = vst [vmem:[#allocation3 + $0x178] sm:$0xff] %v2568
  %2651 = vst [vmem:[#allocation3 + $0x1a0] sm:$0xff] %v2569
  %2652 = vst [vmem:[#allocation3 + $0x1a8] sm:$0xff] %v2570
  %2653 = vst [vmem:[#allocation3 + $0x1d0] sm:$0xff] %v2571
  %2654 = vst [vmem:[#allocation3 + $0x1d8] sm:$0xff] %v2572
  %2655 = vst [vmem:[#allocation3 + $0x200] sm:$0xff] %v2573
  %2656 = vst [vmem:[#allocation3 + $0x208] sm:$0xff] %v2574
  %2657 = vst [vmem:[#allocation3 + $0x230] sm:$0xff] %v2575
  %2658 = vst [vmem:[#allocation3 + $0x238] sm:$0xff] %v2576
  %2659 = vst [vmem:[#allocation3 + $0x260] sm:$0xff] %v2577
  %2660 = vst [vmem:[#allocation3 + $0x268] sm:$0xff] %v2578
  %2661 = vst [vmem:[#allocation3 + $0x290] sm:$0xff] 0
  %2662 = vst [vmem:[#allocation3 + $0x298] sm:$0xff] 0
  %v2663 = vld [vmem:[#allocation3] sm:$0xff]
  %v2664 = vld [vmem:[#allocation3 + $0x8] sm:$0xff]
  %v2665 = vld [vmem:[#allocation3 + $0x10] sm:$0xff]
  %v2666 = vld [vmem:[#allocation3 + $0x18] sm:$0xff]
  %v2667 = vld [vmem:[#allocation3 + $0x20] sm:$0xff]
  %v2668 = vld [vmem:[#allocation3 + $0x28] sm:$0xff]
  %v2669 = vld [vmem:[#allocation3 + $0x30] sm:$0xff]
  %v2670 = vld [vmem:[#allocation3 + $0x38] sm:$0xff]
  %v2671 = vld [vmem:[#allocation3 + $0x40] sm:$0xff]
  %v2672 = vld [vmem:[#allocation3 + $0x48] sm:$0xff]
  %v2673 = vld [vmem:[#allocation3 + $0x50] sm:$0xff]
  %v2674 = vld [vmem:[#allocation3 + $0x58] sm:$0xff]
  %v2675 = vld [vmem:[#allocation3 + $0x60] sm:$0xff]
  %v2676 = vld [vmem:[#allocation3 + $0x68] sm:$0xff]
  %v2677 = vld [vmem:[#allocation3 + $0x70] sm:$0xff]
  %v2678 = vld [vmem:[#allocation3 + $0x78] sm:$0xff]
  %v2679 = vld [vmem:[#allocation3 + $0x80] sm:$0xff]
  %v2680 = vld [vmem:[#allocation3 + $0x88] sm:$0xff]
  %v2681 = vld [vmem:[#allocation3 + $0x90] sm:$0xff]
  %v2682 = vld [vmem:[#allocation3 + $0x98] sm:$0xff]
  %v2683 = vld [vmem:[#allocation3 + $0xa0] sm:$0xff]
  %v2684 = vld [vmem:[#allocation3 + $0xa8] sm:$0xff]
  %v2685 = vld [vmem:[#allocation3 + $0xb0] sm:$0xff]
  %v2686 = vld [vmem:[#allocation3 + $0xb8] sm:$0xff]
  %v2687 = vld [vmem:[#allocation3 + $0xc0] sm:$0xff]
  %v2688 = vld [vmem:[#allocation3 + $0xc8] sm:$0xff]
  %v2689 = vld [vmem:[#allocation3 + $0xd0] sm:$0xff]
  %v2690 = vld [vmem:[#allocation3 + $0xd8] sm:$0xff]
  %v2691 = vld [vmem:[#allocation3 + $0xe0] sm:$0xff]
  %v2692 = vld [vmem:[#allocation3 + $0xe8] sm:$0xff]
  %v2693 = vld [vmem:[#allocation3 + $0xf0] sm:$0xff]
  %v2694 = vld [vmem:[#allocation3 + $0xf8] sm:$0xff]
  %v2695 = vld [vmem:[#allocation3 + $0x100] sm:$0xff]
  %v2696 = vld [vmem:[#allocation3 + $0x108] sm:$0xff]
  %v2697 = vld [vmem:[#allocation3 + $0x110] sm:$0xff]
  %v2698 = vld [vmem:[#allocation3 + $0x118] sm:$0xff]
  %v2699 = vld [vmem:[#allocation3 + $0x120] sm:$0xff]
  %v2700 = vld [vmem:[#allocation3 + $0x128] sm:$0xff]
  %v2701 = vld [vmem:[#allocation3 + $0x130] sm:$0xff]
  %v2702 = vld [vmem:[#allocation3 + $0x138] sm:$0xff]
  %v2703 = vld [vmem:[#allocation3 + $0x140] sm:$0xff]
  %v2704 = vld [vmem:[#allocation3 + $0x148] sm:$0xff]
  %v2705 = vld [vmem:[#allocation3 + $0x150] sm:$0xff]
  %v2706 = vld [vmem:[#allocation3 + $0x158] sm:$0xff]
  %v2707 = vld [vmem:[#allocation3 + $0x160] sm:$0xff]
  %v2708 = vld [vmem:[#allocation3 + $0x168] sm:$0xff]
  %v2709 = vld [vmem:[#allocation3 + $0x170] sm:$0xff]
  %v2710 = vld [vmem:[#allocation3 + $0x178] sm:$0xff]
  %v2711 = vld [vmem:[#allocation3 + $0x180] sm:$0xff]
  %v2712 = vld [vmem:[#allocation3 + $0x188] sm:$0xff]
  %v2713 = vld [vmem:[#allocation3 + $0x190] sm:$0xff]
  %v2714 = vld [vmem:[#allocation3 + $0x198] sm:$0xff]
  %v2715 = vld [vmem:[#allocation3 + $0x1a0] sm:$0xff]
  %v2716 = vld [vmem:[#allocation3 + $0x1a8] sm:$0xff]
  %v2717 = vld [vmem:[#allocation3 + $0x1b0] sm:$0xff]
  %v2718 = vld [vmem:[#allocation3 + $0x1b8] sm:$0xff]
  %v2719 = vld [vmem:[#allocation3 + $0x1c0] sm:$0xff]
  %v2720 = vld [vmem:[#allocation3 + $0x1c8] sm:$0xff]
  %v2721 = vld [vmem:[#allocation3 + $0x1d0] sm:$0xff]
  %v2722 = vld [vmem:[#allocation3 + $0x1d8] sm:$0xff]
  %v2723 = vld [vmem:[#allocation3 + $0x1e0] sm:$0xff]
  %v2724 = vld [vmem:[#allocation3 + $0x1e8] sm:$0xff]
  %v2725 = vld [vmem:[#allocation3 + $0x1f0] sm:$0xff]
  %v2726 = vld [vmem:[#allocation3 + $0x1f8] sm:$0xff]
  %v2727 = vld [vmem:[#allocation3 + $0x200] sm:$0xff]
  %v2728 = vld [vmem:[#allocation3 + $0x208] sm:$0xff]
  %v2729 = vld [vmem:[#allocation3 + $0x210] sm:$0xff]
  %v2730 = vld [vmem:[#allocation3 + $0x218] sm:$0xff]
  %v2731 = vld [vmem:[#allocation3 + $0x220] sm:$0xff]
  %v2732 = vld [vmem:[#allocation3 + $0x228] sm:$0xff]
  %v2733 = vld [vmem:[#allocation3 + $0x230] sm:$0xff]
  %v2734 = vld [vmem:[#allocation3 + $0x238] sm:$0xff]
  %v2735 = vld [vmem:[#allocation3 + $0x240] sm:$0xff]
  %v2736 = vld [vmem:[#allocation3 + $0x248] sm:$0xff]
  %v2737 = vld [vmem:[#allocation3 + $0x250] sm:$0xff]
  %v2738 = vld [vmem:[#allocation3 + $0x258] sm:$0xff]
  %v2739 = vld [vmem:[#allocation3 + $0x260] sm:$0xff]
  %v2740 = vld [vmem:[#allocation3 + $0x268] sm:$0xff]
  %v2741 = vld [vmem:[#allocation3 + $0x270] sm:$0xff]
  %v2742 = vld [vmem:[#allocation3 + $0x278] sm:$0xff]
  %v2743 = vld [vmem:[#allocation3 + $0x280] sm:$0xff]
  %v2744 = vld [vmem:[#allocation3 + $0x288] sm:$0xff]
  %v2745 = vld [vmem:[#allocation3 + $0x290] sm:$0xff]
  %v2746 = vld [vmem:[#allocation3 + $0x298] sm:$0xff]
  %v2747 = vld [vmem:[%s3] sm:$0xff]
  %v2748 = vld [vmem:[%s3 + $0x8] sm:$0xff]
  %v2749 = vld [vmem:[%s3 + $0x10] sm:$0xff]
  %v2750 = vld [vmem:[%s3 + $0x18] sm:$0xff]
  %v2751 = vld [vmem:[%s3 + $0x20] sm:$0xff]
  %v2752 = vld [vmem:[%s3 + $0x28] sm:$0xff]
  %v2753 = vld [vmem:[%s3 + $0x30] sm:$0xff]
  %v2754 = vld [vmem:[%s3 + $0x38] sm:$0xff]
  %v2755 = vld [vmem:[%s3 + $0x40] sm:$0xff]
  %v2756 = vld [vmem:[%s3 + $0x48] sm:$0xff]
  %v2757 = vld [vmem:[%s3 + $0x50] sm:$0xff]
  %v2758 = vld [vmem:[%s3 + $0x58] sm:$0xff]
  %v2759 = vld [vmem:[%s3 + $0x60] sm:$0xff]
  %v2760 = vld [vmem:[%s3 + $0x68] sm:$0xff]
  %v2761 = vld [vmem:[%s3 + $0x70] sm:$0xff]
  %v2762 = vld [vmem:[%s3 + $0x78] sm:$0xff]
  %v2763 = vld [vmem:[%s3 + $0x80] sm:$0xff]
  %v2764 = vld [vmem:[%s3 + $0x88] sm:$0xff]
  %v2765 = vld [vmem:[%s3 + $0x90] sm:$0xff]
  %v2766 = vld [vmem:[%s3 + $0x98] sm:$0xff]
  %v2767 = vld [vmem:[%s3 + $0xa0] sm:$0xff]
  %v2768 = vld [vmem:[%s3 + $0xa8] sm:$0xff]
  %v2769 = vld [vmem:[%s3 + $0xb0] sm:$0xff]
  %v2770 = vld [vmem:[%s3 + $0xb8] sm:$0xff]
  %v2771 = vld [vmem:[%s3 + $0xc0] sm:$0xff]
  %v2772 = vld [vmem:[%s3 + $0xc8] sm:$0xff]
  %v2773 = vld [vmem:[%s3 + $0xd0] sm:$0xff]
  %v2774 = vld [vmem:[%s3 + $0xd8] sm:$0xff]
  %v2775 = vld [vmem:[%s3 + $0xe0] sm:$0xff]
  %v2776 = vld [vmem:[%s3 + $0xe8] sm:$0xff]
  %v2777 = vld [vmem:[%s3 + $0xf0] sm:$0xff]
  %v2778 = vld [vmem:[%s3 + $0xf8] sm:$0xff]
  %v2779 = vld [vmem:[%s3 + $0x100] sm:$0xff]
  %v2780 = vld [vmem:[%s3 + $0x108] sm:$0xff]
  %v2781 = vld [vmem:[%s3 + $0x110] sm:$0xff]
  %v2782 = vld [vmem:[%s3 + $0x118] sm:$0xff]
  %v2783 = vld [vmem:[%s3 + $0x120] sm:$0xff]
  %v2784 = vld [vmem:[%s3 + $0x128] sm:$0xff]
  %v2785 = vld [vmem:[%s3 + $0x130] sm:$0xff]
  %v2786 = vld [vmem:[%s3 + $0x138] sm:$0xff]
  %v2787 = vld [vmem:[%s3 + $0x140] sm:$0xff]
  %v2788 = vld [vmem:[%s3 + $0x148] sm:$0xff]
  %v2789 = vld [vmem:[%s3 + $0x150] sm:$0xff]
  %v2790 = vld [vmem:[%s3 + $0x158] sm:$0xff]
  %v2791 = vld [vmem:[%s3 + $0x160] sm:$0xff]
  %v2792 = vld [vmem:[%s3 + $0x168] sm:$0xff]
  %v2793 = vld [vmem:[%s3 + $0x170] sm:$0xff]
  %v2794 = vld [vmem:[%s3 + $0x178] sm:$0xff]
  %v2795 = vld [vmem:[%s3 + $0x180] sm:$0xff]
  %v2796 = vld [vmem:[%s3 + $0x188] sm:$0xff]
  %v2797 = vld [vmem:[%s3 + $0x190] sm:$0xff]
  %v2798 = vld [vmem:[%s3 + $0x198] sm:$0xff]
  %v2799 = vld [vmem:[%s3 + $0x1a0] sm:$0xff]
  %v2800 = vld [vmem:[%s3 + $0x1a8] sm:$0xff]
  %v2801 = vld [vmem:[%s3 + $0x1b0] sm:$0xff]
  %v2802 = vld [vmem:[%s3 + $0x1b8] sm:$0xff]
  %v2803 = vld [vmem:[%s3 + $0x1c0] sm:$0xff]
  %v2804 = vld [vmem:[%s3 + $0x1c8] sm:$0xff]
  %v2805 = vld [vmem:[%s3 + $0x1d0] sm:$0xff]
  %v2806 = vld [vmem:[%s3 + $0x1d8] sm:$0xff]
  %v2807 = vld [vmem:[%s3 + $0x1e0] sm:$0xff]
  %v2808 = vld [vmem:[%s3 + $0x1e8] sm:$0xff]
  %v2809 = vld [vmem:[%s3 + $0x1f0] sm:$0xff]
  %v2810 = vld [vmem:[%s3 + $0x1f8] sm:$0xff]
  %v2811 = vld [vmem:[%s3 + $0x200] sm:$0xff]
  %v2812 = vld [vmem:[%s3 + $0x208] sm:$0xff]
  %v2813 = vld [vmem:[%s3 + $0x210] sm:$0xff]
  %v2814 = vld [vmem:[%s3 + $0x218] sm:$0xff]
  %v2815 = vld [vmem:[%s3 + $0x220] sm:$0xff]
  %v2816 = vld [vmem:[%s3 + $0x228] sm:$0xff]
  %v2817 = vld [vmem:[%s3 + $0x230] sm:$0xff]
  %v2818 = vld [vmem:[%s3 + $0x238] sm:$0xff]
  %v2819 = vld [vmem:[%s3 + $0x240] sm:$0xff]
  %v2820 = vld [vmem:[%s3 + $0x248] sm:$0xff]
  %v2821 = vld [vmem:[%s3 + $0x250] sm:$0xff]
  %v2822 = vld [vmem:[%s3 + $0x258] sm:$0xff]
  %v2823 = vld [vmem:[%s3 + $0x260] sm:$0xff]
  %v2824 = vld [vmem:[%s3 + $0x268] sm:$0xff]
  %v2825 = vld [vmem:[%s3 + $0x270] sm:$0xff]
  %v2826 = vld [vmem:[%s3 + $0x278] sm:$0xff]
  %v2827 = vld [vmem:[%s3 + $0x280] sm:$0xff]
  %v2828 = vld [vmem:[%s3 + $0x288] sm:$0xff]
  %v2829 = vld [vmem:[%s3 + $0x290] sm:$0xff]
  %v2830 = vld [vmem:[%s3 + $0x298] sm:$0xff]
  %v2831 = vld [vmem:[%s3 + $0x2a0] sm:$0xff]
  %v2832 = vld [vmem:[%s3 + $0x2a8] sm:$0xff]
  %v2833 = vld [vmem:[%s3 + $0x2b0] sm:$0xff]
  %v2834 = vld [vmem:[%s3 + $0x2b8] sm:$0xff]
  %v2835 = vld [vmem:[%s3 + $0x2c0] sm:$0xff]
  %v2836 = vld [vmem:[%s3 + $0x2c8] sm:$0xff]
  %v2837 = vld [vmem:[%s3 + $0x2d0] sm:$0xff]
  %v2838 = vld [vmem:[%s3 + $0x2d8] sm:$0xff]
  %v2839 = vld [vmem:[%s3 + $0x2e0] sm:$0xff]
  %v2840 = vld [vmem:[%s3 + $0x2e8] sm:$0xff]
  %v2841 = vld [vmem:[%s3 + $0x2f0] sm:$0xff]
  %v2842 = vld [vmem:[%s3 + $0x2f8] sm:$0xff]
  %v2843 = vld [vmem:[%s3 + $0x300] sm:$0xff]
  %v2844 = vld [vmem:[%s3 + $0x308] sm:$0xff]
  %v2845 = vld [vmem:[%s3 + $0x310] sm:$0xff]
  %v2846 = vld [vmem:[%s3 + $0x318] sm:$0xff]
  %v2847 = vld [vmem:[%s3 + $0x320] sm:$0xff]
  %v2848 = vld [vmem:[%s3 + $0x328] sm:$0xff]
  %v2849 = vld [vmem:[%s3 + $0x330] sm:$0xff]
  %v2850 = vld [vmem:[%s3 + $0x338] sm:$0xff]
  %v2851 = vld [vmem:[%s3 + $0x340] sm:$0xff]
  %v2852 = vld [vmem:[%s3 + $0x348] sm:$0xff]
  %v2853 = vld [vmem:[%s3 + $0x350] sm:$0xff]
  %v2854 = vld [vmem:[%s3 + $0x358] sm:$0xff]
  %v2855 = vld [vmem:[%s3 + $0x360] sm:$0xff]
  %v2856 = vld [vmem:[%s3 + $0x368] sm:$0xff]
  %v2857 = vld [vmem:[%s3 + $0x370] sm:$0xff]
  %v2858 = vld [vmem:[%s3 + $0x378] sm:$0xff]
  %v2859 = vld [vmem:[%s3 + $0x380] sm:$0xff]
  %v2860 = vld [vmem:[%s3 + $0x388] sm:$0xff]
  %v2861 = vld [vmem:[%s3 + $0x390] sm:$0xff]
  %v2862 = vld [vmem:[%s3 + $0x398] sm:$0xff]
  %v2863 = vld [vmem:[%s3 + $0x3a0] sm:$0xff]
  %v2864 = vld [vmem:[%s3 + $0x3a8] sm:$0xff]
  %v2865 = vld [vmem:[%s3 + $0x3b0] sm:$0xff]
  %v2866 = vld [vmem:[%s3 + $0x3b8] sm:$0xff]
  %v2867 = vld [vmem:[%s3 + $0x3c0] sm:$0xff]
  %v2868 = vld [vmem:[%s3 + $0x3c8] sm:$0xff]
  %v2869 = vld [vmem:[%s3 + $0x3d0] sm:$0xff]
  %v2870 = vld [vmem:[%s3 + $0x3d8] sm:$0xff]
  %v2871 = vld [vmem:[%s3 + $0x3e0] sm:$0xff]
  %v2872 = vld [vmem:[%s3 + $0x3e8] sm:$0xff]
  %v2873 = vld [vmem:[%s3 + $0x3f0] sm:$0xff]
  %v2874 = vld [vmem:[%s3 + $0x3f8] sm:$0xff]
  %v2875 = vld [vmem:[%s3 + $0x400] sm:$0xff]
  %v2876 = vld [vmem:[%s3 + $0x408] sm:$0xff]
  %v2877 = vld [vmem:[%s3 + $0x410] sm:$0xff]
  %v2878 = vld [vmem:[%s3 + $0x418] sm:$0xff]
  %v2879 = vld [vmem:[%s3 + $0x420] sm:$0xff]
  %v2880 = vld [vmem:[%s3 + $0x428] sm:$0xff]
  %v2881 = vld [vmem:[%s3 + $0x430] sm:$0xff]
  %v2882 = vld [vmem:[%s3 + $0x438] sm:$0xff]
  %v2883 = vld [vmem:[%s3 + $0x440] sm:$0xff]
  %v2884 = vld [vmem:[%s3 + $0x448] sm:$0xff]
  %v2885 = vld [vmem:[%s3 + $0x450] sm:$0xff]
  %v2886 = vld [vmem:[%s3 + $0x458] sm:$0xff]
  %v2887 = vld [vmem:[%s3 + $0x460] sm:$0xff]
  %v2888 = vld [vmem:[%s3 + $0x468] sm:$0xff]
  %v2889 = vld [vmem:[%s3 + $0x470] sm:$0xff]
  %v2890 = vld [vmem:[%s3 + $0x478] sm:$0xff]
  %v2891 = vld [vmem:[%s3 + $0x480] sm:$0xff]
  %v2892 = vld [vmem:[%s3 + $0x488] sm:$0xff]
  %v2893 = vld [vmem:[%s3 + $0x490] sm:$0xff]
  %v2894 = vld [vmem:[%s3 + $0x498] sm:$0xff]
  %v2895 = vld [vmem:[%s3 + $0x4a0] sm:$0xff]
  %v2896 = vld [vmem:[%s3 + $0x4a8] sm:$0xff]
  %v2897 = vld [vmem:[%s3 + $0x4b0] sm:$0xff]
  %v2898 = vld [vmem:[%s3 + $0x4b8] sm:$0xff]
  %v2899 = vld [vmem:[%s3 + $0x4c0] sm:$0xff]
  %v2900 = vld [vmem:[%s3 + $0x4c8] sm:$0xff]
  %v2901 = vld [vmem:[%s3 + $0x4d0] sm:$0xff]
  %v2902 = vld [vmem:[%s3 + $0x4d8] sm:$0xff]
  %v2903 = vld [vmem:[%s3 + $0x4e0] sm:$0xff]
  %v2904 = vld [vmem:[%s3 + $0x4e8] sm:$0xff]
  %v2905 = vld [vmem:[%s3 + $0x4f0] sm:$0xff]
  %v2906 = vld [vmem:[%s3 + $0x4f8] sm:$0xff]
  %v2907 = vld [vmem:[%s3 + $0x500] sm:$0xff]
  %v2908 = vld [vmem:[%s3 + $0x508] sm:$0xff]
  %v2909 = vld [vmem:[%s3 + $0x510] sm:$0xff]
  %v2910 = vld [vmem:[%s3 + $0x518] sm:$0xff]
  %v2911 = vld [vmem:[%s3 + $0x520] sm:$0xff]
  %v2912 = vld [vmem:[%s3 + $0x528] sm:$0xff]
  %v2913 = vld [vmem:[%s3 + $0x530] sm:$0xff]
  %v2914 = vld [vmem:[%s3 + $0x538] sm:$0xff]
  %v2915 = vld [vmem:[%s3 + $0x540] sm:$0xff]
  %v2916 = vld [vmem:[%s3 + $0x548] sm:$0xff]
  %v2917 = vld [vmem:[%s3 + $0x550] sm:$0xff]
  %v2918 = vld [vmem:[%s3 + $0x558] sm:$0xff]
  %v2919 = vld [vmem:[%s3 + $0x560] sm:$0xff]
  %v2920 = vld [vmem:[%s3 + $0x568] sm:$0xff]
  %v2921 = vld [vmem:[%s3 + $0x570] sm:$0xff]
  %v2922 = vld [vmem:[%s3 + $0x578] sm:$0xff]
  %v2923 = vld [vmem:[%s3 + $0x580] sm:$0xff]
  %v2924 = vld [vmem:[%s3 + $0x588] sm:$0xff]
  %v2925 = vld [vmem:[%s3 + $0x590] sm:$0xff]
  %v2926 = vld [vmem:[%s3 + $0x598] sm:$0xff]
  %v2927 = vld [vmem:[%s3 + $0x5a0] sm:$0xff]
  %v2928 = vld [vmem:[%s3 + $0x5a8] sm:$0xff]
  %v2929 = vld [vmem:[%s3 + $0x5b0] sm:$0xff]
  %v2930 = vld [vmem:[%s3 + $0x5b8] sm:$0xff]
  %v2931 = vld [vmem:[%s3 + $0x5c0] sm:$0xff]
  %v2932 = vld [vmem:[%s3 + $0x5c8] sm:$0xff]
  %v2933 = vld [vmem:[%s3 + $0x5d0] sm:$0xff]
  %v2934 = vld [vmem:[%s3 + $0x5d8] sm:$0xff]
  %v2935 = vld [vmem:[%s3 + $0x5e0] sm:$0xff]
  %v2936 = vld [vmem:[%s3 + $0x5e8] sm:$0xff]
  %v2937 = vld [vmem:[%s3 + $0x5f0] sm:$0xff]
  %v2938 = vld [vmem:[%s3 + $0x5f8] sm:$0xff]
  %v3131 = vunpack.c.l.b16 %v2747
  %v3132 = vunpack.c.h.b16 %v2747
  %v3133 = vunpack.c.l.b16 %v2748
  %v3134 = vunpack.c.h.b16 %v2748
  %v3135 = vunpack.c.l.b16 %v2749
  %v3136 = vunpack.c.h.b16 %v2749
  %v3137 = vunpack.c.l.b16 %v2750
  %v3138 = vunpack.c.h.b16 %v2750
  %v3139 = vunpack.c.l.b16 %v2751
  %v3140 = vunpack.c.h.b16 %v2751
  %v3141 = vunpack.c.l.b16 %v2752
  %v3142 = vunpack.c.h.b16 %v2752
  %v3143 = vunpack.c.l.b16 %v2753
  %v3144 = vunpack.c.h.b16 %v2753
  %v3145 = vunpack.c.l.b16 %v2754
  %v3146 = vunpack.c.h.b16 %v2754
  %v3147 = vunpack.c.l.b16 %v2755
  %v3148 = vunpack.c.h.b16 %v2755
  %v3149 = vunpack.c.l.b16 %v2756
  %v3150 = vunpack.c.h.b16 %v2756
  %v3151 = vunpack.c.l.b16 %v2757
  %v3152 = vunpack.c.h.b16 %v2757
  %v3153 = vunpack.c.l.b16 %v2758
  %v3154 = vunpack.c.h.b16 %v2758
  %v3155 = vunpack.c.l.b16 %v2759
  %v3156 = vunpack.c.h.b16 %v2759
  %v3157 = vunpack.c.l.b16 %v2760
  %v3158 = vunpack.c.h.b16 %v2760
  %v3159 = vunpack.c.l.b16 %v2761
  %v3160 = vunpack.c.h.b16 %v2761
  %v3161 = vunpack.c.l.b16 %v2762
  %v3162 = vunpack.c.h.b16 %v2762
  %v3163 = vunpack.c.l.b16 %v2763
  %v3164 = vunpack.c.h.b16 %v2763
  %v3165 = vunpack.c.l.b16 %v2764
  %v3166 = vunpack.c.h.b16 %v2764
  %v3167 = vunpack.c.l.b16 %v2765
  %v3168 = vunpack.c.h.b16 %v2765
  %v3169 = vunpack.c.l.b16 %v2766
  %v3170 = vunpack.c.h.b16 %v2766
  %v3171 = vunpack.c.l.b16 %v2767
  %v3172 = vunpack.c.h.b16 %v2767
  %v3173 = vunpack.c.l.b16 %v2768
  %v3174 = vunpack.c.h.b16 %v2768
  %v3175 = vunpack.c.l.b16 %v2769
  %v3176 = vunpack.c.h.b16 %v2769
  %v3177 = vunpack.c.l.b16 %v2770
  %v3178 = vunpack.c.h.b16 %v2770
  %v3179 = vunpack.c.l.b16 %v2771
  %v3180 = vunpack.c.h.b16 %v2771
  %v3181 = vunpack.c.l.b16 %v2772
  %v3182 = vunpack.c.h.b16 %v2772
  %v3183 = vunpack.c.l.b16 %v2773
  %v3184 = vunpack.c.h.b16 %v2773
  %v3185 = vunpack.c.l.b16 %v2774
  %v3186 = vunpack.c.h.b16 %v2774
  %v3187 = vunpack.c.l.b16 %v2775
  %v3188 = vunpack.c.h.b16 %v2775
  %v3189 = vunpack.c.l.b16 %v2776
  %v3190 = vunpack.c.h.b16 %v2776
  %v3191 = vunpack.c.l.b16 %v2777
  %v3192 = vunpack.c.h.b16 %v2777
  %v3193 = vunpack.c.l.b16 %v2778
  %v3194 = vunpack.c.h.b16 %v2778
  %v3195 = vunpack.c.l.b16 %v2779
  %v3196 = vunpack.c.h.b16 %v2779
  %v3197 = vunpack.c.l.b16 %v2780
  %v3198 = vunpack.c.h.b16 %v2780
  %v3199 = vunpack.c.l.b16 %v2781
  %v3200 = vunpack.c.h.b16 %v2781
  %v3201 = vunpack.c.l.b16 %v2782
  %v3202 = vunpack.c.h.b16 %v2782
  %v3203 = vunpack.c.l.b16 %v2783
  %v3204 = vunpack.c.h.b16 %v2783
  %v3205 = vunpack.c.l.b16 %v2784
  %v3206 = vunpack.c.h.b16 %v2784
  %v3207 = vunpack.c.l.b16 %v2785
  %v3208 = vunpack.c.h.b16 %v2785
  %v3209 = vunpack.c.l.b16 %v2786
  %v3210 = vunpack.c.h.b16 %v2786
  %v3211 = vunpack.c.l.b16 %v2787
  %v3212 = vunpack.c.h.b16 %v2787
  %v3213 = vunpack.c.l.b16 %v2788
  %v3214 = vunpack.c.h.b16 %v2788
  %v3215 = vunpack.c.l.b16 %v2789
  %v3216 = vunpack.c.h.b16 %v2789
  %v3217 = vunpack.c.l.b16 %v2790
  %v3218 = vunpack.c.h.b16 %v2790
  %v3219 = vunpack.c.l.b16 %v2791
  %v3220 = vunpack.c.h.b16 %v2791
  %v3221 = vunpack.c.l.b16 %v2792
  %v3222 = vunpack.c.h.b16 %v2792
  %v3223 = vunpack.c.l.b16 %v2793
  %v3224 = vunpack.c.h.b16 %v2793
  %v3225 = vunpack.c.l.b16 %v2794
  %v3226 = vunpack.c.h.b16 %v2794
  %v3227 = vunpack.c.l.b16 %v2795
  %v3228 = vunpack.c.h.b16 %v2795
  %v3229 = vunpack.c.l.b16 %v2796
  %v3230 = vunpack.c.h.b16 %v2796
  %v3231 = vunpack.c.l.b16 %v2797
  %v3232 = vunpack.c.h.b16 %v2797
  %v3233 = vunpack.c.l.b16 %v2798
  %v3234 = vunpack.c.h.b16 %v2798
  %v3235 = vunpack.c.l.b16 %v2799
  %v3236 = vunpack.c.h.b16 %v2799
  %v3237 = vunpack.c.l.b16 %v2800
  %v3238 = vunpack.c.h.b16 %v2800
  %v3239 = vunpack.c.l.b16 %v2801
  %v3240 = vunpack.c.h.b16 %v2801
  %v3241 = vunpack.c.l.b16 %v2802
  %v3242 = vunpack.c.h.b16 %v2802
  %v3243 = vunpack.c.l.b16 %v2803
  %v3244 = vunpack.c.h.b16 %v2803
  %v3245 = vunpack.c.l.b16 %v2804
  %v3246 = vunpack.c.h.b16 %v2804
  %v3247 = vunpack.c.l.b16 %v2805
  %v3248 = vunpack.c.h.b16 %v2805
  %v3249 = vunpack.c.l.b16 %v2806
  %v3250 = vunpack.c.h.b16 %v2806
  %v3251 = vunpack.c.l.b16 %v2807
  %v3252 = vunpack.c.h.b16 %v2807
  %v3253 = vunpack.c.l.b16 %v2808
  %v3254 = vunpack.c.h.b16 %v2808
  %v3255 = vunpack.c.l.b16 %v2809
  %v3256 = vunpack.c.h.b16 %v2809
  %v3257 = vunpack.c.l.b16 %v2810
  %v3258 = vunpack.c.h.b16 %v2810
  %v3259 = vunpack.c.l.b16 %v2811
  %v3260 = vunpack.c.h.b16 %v2811
  %v3261 = vunpack.c.l.b16 %v2812
  %v3262 = vunpack.c.h.b16 %v2812
  %v3263 = vunpack.c.l.b16 %v2813
  %v3264 = vunpack.c.h.b16 %v2813
  %v3265 = vunpack.c.l.b16 %v2814
  %v3266 = vunpack.c.h.b16 %v2814
  %v3267 = vunpack.c.l.b16 %v2815
  %v3268 = vunpack.c.h.b16 %v2815
  %v3269 = vunpack.c.l.b16 %v2816
  %v3270 = vunpack.c.h.b16 %v2816
  %v3271 = vunpack.c.l.b16 %v2817
  %v3272 = vunpack.c.h.b16 %v2817
  %v3273 = vunpack.c.l.b16 %v2818
  %v3274 = vunpack.c.h.b16 %v2818
  %v3275 = vunpack.c.l.b16 %v2819
  %v3276 = vunpack.c.h.b16 %v2819
  %v3277 = vunpack.c.l.b16 %v2820
  %v3278 = vunpack.c.h.b16 %v2820
  %v3279 = vunpack.c.l.b16 %v2821
  %v3280 = vunpack.c.h.b16 %v2821
  %v3281 = vunpack.c.l.b16 %v2822
  %v3282 = vunpack.c.h.b16 %v2822
  %v3283 = vunpack.c.l.b16 %v2823
  %v3284 = vunpack.c.h.b16 %v2823
  %v3285 = vunpack.c.l.b16 %v2824
  %v3286 = vunpack.c.h.b16 %v2824
  %v3287 = vunpack.c.l.b16 %v2825
  %v3288 = vunpack.c.h.b16 %v2825
  %v3289 = vunpack.c.l.b16 %v2826
  %v3290 = vunpack.c.h.b16 %v2826
  %v3291 = vunpack.c.l.b16 %v2827
  %v3292 = vunpack.c.h.b16 %v2827
  %v3293 = vunpack.c.l.b16 %v2828
  %v3294 = vunpack.c.h.b16 %v2828
  %v3295 = vunpack.c.l.b16 %v2829
  %v3296 = vunpack.c.h.b16 %v2829
  %v3297 = vunpack.c.l.b16 %v2830
  %v3298 = vunpack.c.h.b16 %v2830
  %v3299 = vunpack.c.l.b16 %v2831
  %v3300 = vunpack.c.h.b16 %v2831
  %v3301 = vunpack.c.l.b16 %v2832
  %v3302 = vunpack.c.h.b16 %v2832
  %v3303 = vunpack.c.l.b16 %v2833
  %v3304 = vunpack.c.h.b16 %v2833
  %v3305 = vunpack.c.l.b16 %v2834
  %v3306 = vunpack.c.h.b16 %v2834
  %v3307 = vunpack.c.l.b16 %v2835
  %v3308 = vunpack.c.h.b16 %v2835
  %v3309 = vunpack.c.l.b16 %v2836
  %v3310 = vunpack.c.h.b16 %v2836
  %v3311 = vunpack.c.l.b16 %v2837
  %v3312 = vunpack.c.h.b16 %v2837
  %v3313 = vunpack.c.l.b16 %v2838
  %v3314 = vunpack.c.h.b16 %v2838
  %v3315 = vunpack.c.l.b16 %v2839
  %v3316 = vunpack.c.h.b16 %v2839
  %v3317 = vunpack.c.l.b16 %v2840
  %v3318 = vunpack.c.h.b16 %v2840
  %v3319 = vunpack.c.l.b16 %v2841
  %v3320 = vunpack.c.h.b16 %v2841
  %v3321 = vunpack.c.l.b16 %v2842
  %v3322 = vunpack.c.h.b16 %v2842
  %v3323 = vunpack.c.l.b16 %v2843
  %v3324 = vunpack.c.h.b16 %v2843
  %v3325 = vunpack.c.l.b16 %v2844
  %v3326 = vunpack.c.h.b16 %v2844
  %v3327 = vunpack.c.l.b16 %v2845
  %v3328 = vunpack.c.h.b16 %v2845
  %v3329 = vunpack.c.l.b16 %v2846
  %v3330 = vunpack.c.h.b16 %v2846
  %v3331 = vunpack.c.l.b16 %v2847
  %v3332 = vunpack.c.h.b16 %v2847
  %v3333 = vunpack.c.l.b16 %v2848
  %v3334 = vunpack.c.h.b16 %v2848
  %v3335 = vunpack.c.l.b16 %v2849
  %v3336 = vunpack.c.h.b16 %v2849
  %v3337 = vunpack.c.l.b16 %v2850
  %v3338 = vunpack.c.h.b16 %v2850
  %v3339 = vunpack.c.l.b16 %v2851
  %v3340 = vunpack.c.h.b16 %v2851
  %v3341 = vunpack.c.l.b16 %v2852
  %v3342 = vunpack.c.h.b16 %v2852
  %v3343 = vunpack.c.l.b16 %v2853
  %v3344 = vunpack.c.h.b16 %v2853
  %v3345 = vunpack.c.l.b16 %v2854
  %v3346 = vunpack.c.h.b16 %v2854
  %v3347 = vunpack.c.l.b16 %v2855
  %v3348 = vunpack.c.h.b16 %v2855
  %v3349 = vunpack.c.l.b16 %v2856
  %v3350 = vunpack.c.h.b16 %v2856
  %v3351 = vunpack.c.l.b16 %v2857
  %v3352 = vunpack.c.h.b16 %v2857
  %v3353 = vunpack.c.l.b16 %v2858
  %v3354 = vunpack.c.h.b16 %v2858
  %v3355 = vunpack.c.l.b16 %v2859
  %v3356 = vunpack.c.h.b16 %v2859
  %v3357 = vunpack.c.l.b16 %v2860
  %v3358 = vunpack.c.h.b16 %v2860
  %v3359 = vunpack.c.l.b16 %v2861
  %v3360 = vunpack.c.h.b16 %v2861
  %v3361 = vunpack.c.l.b16 %v2862
  %v3362 = vunpack.c.h.b16 %v2862
  %v3363 = vunpack.c.l.b16 %v2863
  %v3364 = vunpack.c.h.b16 %v2863
  %v3365 = vunpack.c.l.b16 %v2864
  %v3366 = vunpack.c.h.b16 %v2864
  %v3367 = vunpack.c.l.b16 %v2865
  %v3368 = vunpack.c.h.b16 %v2865
  %v3369 = vunpack.c.l.b16 %v2866
  %v3370 = vunpack.c.h.b16 %v2866
  %v3371 = vunpack.c.l.b16 %v2867
  %v3372 = vunpack.c.h.b16 %v2867
  %v3373 = vunpack.c.l.b16 %v2868
  %v3374 = vunpack.c.h.b16 %v2868
  %v3375 = vunpack.c.l.b16 %v2869
  %v3376 = vunpack.c.h.b16 %v2869
  %v3377 = vunpack.c.l.b16 %v2870
  %v3378 = vunpack.c.h.b16 %v2870
  %v3379 = vunpack.c.l.b16 %v2871
  %v3380 = vunpack.c.h.b16 %v2871
  %v3381 = vunpack.c.l.b16 %v2872
  %v3382 = vunpack.c.h.b16 %v2872
  %v3383 = vunpack.c.l.b16 %v2873
  %v3384 = vunpack.c.h.b16 %v2873
  %v3385 = vunpack.c.l.b16 %v2874
  %v3386 = vunpack.c.h.b16 %v2874
  %v3387 = vunpack.c.l.b16 %v2875
  %v3388 = vunpack.c.h.b16 %v2875
  %v3389 = vunpack.c.l.b16 %v2876
  %v3390 = vunpack.c.h.b16 %v2876
  %v3391 = vunpack.c.l.b16 %v2877
  %v3392 = vunpack.c.h.b16 %v2877
  %v3393 = vunpack.c.l.b16 %v2878
  %v3394 = vunpack.c.h.b16 %v2878
  %v3395 = vunpack.c.l.b16 %v2879
  %v3396 = vunpack.c.h.b16 %v2879
  %v3397 = vunpack.c.l.b16 %v2880
  %v3398 = vunpack.c.h.b16 %v2880
  %v3399 = vunpack.c.l.b16 %v2881
  %v3400 = vunpack.c.h.b16 %v2881
  %v3401 = vunpack.c.l.b16 %v2882
  %v3402 = vunpack.c.h.b16 %v2882
  %v3403 = vunpack.c.l.b16 %v2883
  %v3404 = vunpack.c.h.b16 %v2883
  %v3405 = vunpack.c.l.b16 %v2884
  %v3406 = vunpack.c.h.b16 %v2884
  %v3407 = vunpack.c.l.b16 %v2885
  %v3408 = vunpack.c.h.b16 %v2885
  %v3409 = vunpack.c.l.b16 %v2886
  %v3410 = vunpack.c.h.b16 %v2886
  %v3411 = vunpack.c.l.b16 %v2887
  %v3412 = vunpack.c.h.b16 %v2887
  %v3413 = vunpack.c.l.b16 %v2888
  %v3414 = vunpack.c.h.b16 %v2888
  %v3415 = vunpack.c.l.b16 %v2889
  %v3416 = vunpack.c.h.b16 %v2889
  %v3417 = vunpack.c.l.b16 %v2890
  %v3418 = vunpack.c.h.b16 %v2890
  %v3419 = vunpack.c.l.b16 %v2891
  %v3420 = vunpack.c.h.b16 %v2891
  %v3421 = vunpack.c.l.b16 %v2892
  %v3422 = vunpack.c.h.b16 %v2892
  %v3423 = vunpack.c.l.b16 %v2893
  %v3424 = vunpack.c.h.b16 %v2893
  %v3425 = vunpack.c.l.b16 %v2894
  %v3426 = vunpack.c.h.b16 %v2894
  %v3427 = vunpack.c.l.b16 %v2895
  %v3428 = vunpack.c.h.b16 %v2895
  %v3429 = vunpack.c.l.b16 %v2896
  %v3430 = vunpack.c.h.b16 %v2896
  %v3431 = vunpack.c.l.b16 %v2897
  %v3432 = vunpack.c.h.b16 %v2897
  %v3433 = vunpack.c.l.b16 %v2898
  %v3434 = vunpack.c.h.b16 %v2898
  %v3435 = vunpack.c.l.b16 %v2899
  %v3436 = vunpack.c.h.b16 %v2899
  %v3437 = vunpack.c.l.b16 %v2900
  %v3438 = vunpack.c.h.b16 %v2900
  %v3439 = vunpack.c.l.b16 %v2901
  %v3440 = vunpack.c.h.b16 %v2901
  %v3441 = vunpack.c.l.b16 %v2902
  %v3442 = vunpack.c.h.b16 %v2902
  %v3443 = vunpack.c.l.b16 %v2903
  %v3444 = vunpack.c.h.b16 %v2903
  %v3445 = vunpack.c.l.b16 %v2904
  %v3446 = vunpack.c.h.b16 %v2904
  %v3447 = vunpack.c.l.b16 %v2905
  %v3448 = vunpack.c.h.b16 %v2905
  %v3449 = vunpack.c.l.b16 %v2906
  %v3450 = vunpack.c.h.b16 %v2906
  %v3451 = vunpack.c.l.b16 %v2907
  %v3452 = vunpack.c.h.b16 %v2907
  %v3453 = vunpack.c.l.b16 %v2908
  %v3454 = vunpack.c.h.b16 %v2908
  %v3455 = vunpack.c.l.b16 %v2909
  %v3456 = vunpack.c.h.b16 %v2909
  %v3457 = vunpack.c.l.b16 %v2910
  %v3458 = vunpack.c.h.b16 %v2910
  %v3459 = vunpack.c.l.b16 %v2911
  %v3460 = vunpack.c.h.b16 %v2911
  %v3461 = vunpack.c.l.b16 %v2912
  %v3462 = vunpack.c.h.b16 %v2912
  %v3463 = vunpack.c.l.b16 %v2913
  %v3464 = vunpack.c.h.b16 %v2913
  %v3465 = vunpack.c.l.b16 %v2914
  %v3466 = vunpack.c.h.b16 %v2914
  %v3467 = vunpack.c.l.b16 %v2915
  %v3468 = vunpack.c.h.b16 %v2915
  %v3469 = vunpack.c.l.b16 %v2916
  %v3470 = vunpack.c.h.b16 %v2916
  %v3471 = vunpack.c.l.b16 %v2917
  %v3472 = vunpack.c.h.b16 %v2917
  %v3473 = vunpack.c.l.b16 %v2918
  %v3474 = vunpack.c.h.b16 %v2918
  %v3475 = vunpack.c.l.b16 %v2919
  %v3476 = vunpack.c.h.b16 %v2919
  %v3477 = vunpack.c.l.b16 %v2920
  %v3478 = vunpack.c.h.b16 %v2920
  %v3479 = vunpack.c.l.b16 %v2921
  %v3480 = vunpack.c.h.b16 %v2921
  %v3481 = vunpack.c.l.b16 %v2922
  %v3482 = vunpack.c.h.b16 %v2922
  %v3483 = vunpack.c.l.b16 %v2923
  %v3484 = vunpack.c.h.b16 %v2923
  %v3485 = vunpack.c.l.b16 %v2924
  %v3486 = vunpack.c.h.b16 %v2924
  %v3487 = vunpack.c.l.b16 %v2925
  %v3488 = vunpack.c.h.b16 %v2925
  %v3489 = vunpack.c.l.b16 %v2926
  %v3490 = vunpack.c.h.b16 %v2926
  %v3491 = vunpack.c.l.b16 %v2927
  %v3492 = vunpack.c.h.b16 %v2927
  %v3493 = vunpack.c.l.b16 %v2928
  %v3494 = vunpack.c.h.b16 %v2928
  %v3495 = vunpack.c.l.b16 %v2929
  %v3496 = vunpack.c.h.b16 %v2929
  %v3497 = vunpack.c.l.b16 %v2930
  %v3498 = vunpack.c.h.b16 %v2930
  %v3499 = vunpack.c.l.b16 %v2931
  %v3500 = vunpack.c.h.b16 %v2931
  %v3501 = vunpack.c.l.b16 %v2932
  %v3502 = vunpack.c.h.b16 %v2932
  %v3503 = vunpack.c.l.b16 %v2933
  %v3504 = vunpack.c.h.b16 %v2933
  %v3505 = vunpack.c.l.b16 %v2934
  %v3506 = vunpack.c.h.b16 %v2934
  %v3507 = vunpack.c.l.b16 %v2935
  %v3508 = vunpack.c.h.b16 %v2935
  %v3509 = vunpack.c.l.b16 %v2936
  %v3510 = vunpack.c.h.b16 %v2936
  %v3511 = vunpack.c.l.b16 %v2937
  %v3512 = vunpack.c.h.b16 %v2937
  %v3513 = vunpack.c.l.b16 %v2938
  %v3514 = vunpack.c.h.b16 %v2938
  %v3515 = vpack.c.b16 %v3135, %v3131
  %v3516 = vpack.c.b16 %v3136, %v3132
  %v3517 = vpack.c.b16 %v3137, %v3133
  %v3518 = vpack.c.b16 %v3138, %v3134
  %v3519 = vpack.c.b16 %v3143, %v3139
  %v3520 = vpack.c.b16 %v3144, %v3140
  %v3521 = vpack.c.b16 %v3145, %v3141
  %v3522 = vpack.c.b16 %v3146, %v3142
  %v3523 = vpack.c.b16 %v3151, %v3147
  %v3524 = vpack.c.b16 %v3152, %v3148
  %v3525 = vpack.c.b16 %v3153, %v3149
  %v3526 = vpack.c.b16 %v3154, %v3150
  %v3527 = vpack.c.b16 %v3159, %v3155
  %v3528 = vpack.c.b16 %v3160, %v3156
  %v3529 = vpack.c.b16 %v3161, %v3157
  %v3530 = vpack.c.b16 %v3162, %v3158
  %v3531 = vpack.c.b16 %v3167, %v3163
  %v3532 = vpack.c.b16 %v3168, %v3164
  %v3533 = vpack.c.b16 %v3169, %v3165
  %v3534 = vpack.c.b16 %v3170, %v3166
  %v3535 = vpack.c.b16 %v3175, %v3171
  %v3536 = vpack.c.b16 %v3176, %v3172
  %v3537 = vpack.c.b16 %v3177, %v3173
  %v3538 = vpack.c.b16 %v3178, %v3174
  %v3539 = vpack.c.b16 %v3183, %v3179
  %v3540 = vpack.c.b16 %v3184, %v3180
  %v3541 = vpack.c.b16 %v3185, %v3181
  %v3542 = vpack.c.b16 %v3186, %v3182
  %v3543 = vpack.c.b16 %v3191, %v3187
  %v3544 = vpack.c.b16 %v3192, %v3188
  %v3545 = vpack.c.b16 %v3193, %v3189
  %v3546 = vpack.c.b16 %v3194, %v3190
  %v3547 = vpack.c.b16 %v3199, %v3195
  %v3548 = vpack.c.b16 %v3200, %v3196
  %v3549 = vpack.c.b16 %v3201, %v3197
  %v3550 = vpack.c.b16 %v3202, %v3198
  %v3551 = vpack.c.b16 %v3207, %v3203
  %v3552 = vpack.c.b16 %v3208, %v3204
  %v3553 = vpack.c.b16 %v3209, %v3205
  %v3554 = vpack.c.b16 %v3210, %v3206
  %v3555 = vpack.c.b16 %v3215, %v3211
  %v3556 = vpack.c.b16 %v3216, %v3212
  %v3557 = vpack.c.b16 %v3217, %v3213
  %v3558 = vpack.c.b16 %v3218, %v3214
  %v3559 = vpack.c.b16 %v3223, %v3219
  %v3560 = vpack.c.b16 %v3224, %v3220
  %v3561 = vpack.c.b16 %v3225, %v3221
  %v3562 = vpack.c.b16 %v3226, %v3222
  %v3563 = vpack.c.b16 %v3231, %v3227
  %v3564 = vpack.c.b16 %v3232, %v3228
  %v3565 = vpack.c.b16 %v3233, %v3229
  %v3566 = vpack.c.b16 %v3234, %v3230
  %v3567 = vpack.c.b16 %v3239, %v3235
  %v3568 = vpack.c.b16 %v3240, %v3236
  %v3569 = vpack.c.b16 %v3241, %v3237
  %v3570 = vpack.c.b16 %v3242, %v3238
  %v3571 = vpack.c.b16 %v3247, %v3243
  %v3572 = vpack.c.b16 %v3248, %v3244
  %v3573 = vpack.c.b16 %v3249, %v3245
  %v3574 = vpack.c.b16 %v3250, %v3246
  %v3575 = vpack.c.b16 %v3255, %v3251
  %v3576 = vpack.c.b16 %v3256, %v3252
  %v3577 = vpack.c.b16 %v3257, %v3253
  %v3578 = vpack.c.b16 %v3258, %v3254
  %v3579 = vpack.c.b16 %v3263, %v3259
  %v3580 = vpack.c.b16 %v3264, %v3260
  %v3581 = vpack.c.b16 %v3265, %v3261
  %v3582 = vpack.c.b16 %v3266, %v3262
  %v3583 = vpack.c.b16 %v3271, %v3267
  %v3584 = vpack.c.b16 %v3272, %v3268
  %v3585 = vpack.c.b16 %v3273, %v3269
  %v3586 = vpack.c.b16 %v3274, %v3270
  %v3587 = vpack.c.b16 %v3279, %v3275
  %v3588 = vpack.c.b16 %v3280, %v3276
  %v3589 = vpack.c.b16 %v3281, %v3277
  %v3590 = vpack.c.b16 %v3282, %v3278
  %v3591 = vpack.c.b16 %v3287, %v3283
  %v3592 = vpack.c.b16 %v3288, %v3284
  %v3593 = vpack.c.b16 %v3289, %v3285
  %v3594 = vpack.c.b16 %v3290, %v3286
  %v3595 = vpack.c.b16 %v3295, %v3291
  %v3596 = vpack.c.b16 %v3296, %v3292
  %v3597 = vpack.c.b16 %v3297, %v3293
  %v3598 = vpack.c.b16 %v3298, %v3294
  %v3599 = vpack.c.b16 %v3303, %v3299
  %v3600 = vpack.c.b16 %v3304, %v3300
  %v3601 = vpack.c.b16 %v3305, %v3301
  %v3602 = vpack.c.b16 %v3306, %v3302
  %v3603 = vpack.c.b16 %v3311, %v3307
  %v3604 = vpack.c.b16 %v3312, %v3308
  %v3605 = vpack.c.b16 %v3313, %v3309
  %v3606 = vpack.c.b16 %v3314, %v3310
  %v3607 = vpack.c.b16 %v3319, %v3315
  %v3608 = vpack.c.b16 %v3320, %v3316
  %v3609 = vpack.c.b16 %v3321, %v3317
  %v3610 = vpack.c.b16 %v3322, %v3318
  %v3611 = vpack.c.b16 %v3327, %v3323
  %v3612 = vpack.c.b16 %v3328, %v3324
  %v3613 = vpack.c.b16 %v3329, %v3325
  %v3614 = vpack.c.b16 %v3330, %v3326
  %v3615 = vpack.c.b16 %v3335, %v3331
  %v3616 = vpack.c.b16 %v3336, %v3332
  %v3617 = vpack.c.b16 %v3337, %v3333
  %v3618 = vpack.c.b16 %v3338, %v3334
  %v3619 = vpack.c.b16 %v3343, %v3339
  %v3620 = vpack.c.b16 %v3344, %v3340
  %v3621 = vpack.c.b16 %v3345, %v3341
  %v3622 = vpack.c.b16 %v3346, %v3342
  %v3623 = vpack.c.b16 %v3351, %v3347
  %v3624 = vpack.c.b16 %v3352, %v3348
  %v3625 = vpack.c.b16 %v3353, %v3349
  %v3626 = vpack.c.b16 %v3354, %v3350
  %v3627 = vpack.c.b16 %v3359, %v3355
  %v3628 = vpack.c.b16 %v3360, %v3356
  %v3629 = vpack.c.b16 %v3361, %v3357
  %v3630 = vpack.c.b16 %v3362, %v3358
  %v3631 = vpack.c.b16 %v3367, %v3363
  %v3632 = vpack.c.b16 %v3368, %v3364
  %v3633 = vpack.c.b16 %v3369, %v3365
  %v3634 = vpack.c.b16 %v3370, %v3366
  %v3635 = vpack.c.b16 %v3375, %v3371
  %v3636 = vpack.c.b16 %v3376, %v3372
  %v3637 = vpack.c.b16 %v3377, %v3373
  %v3638 = vpack.c.b16 %v3378, %v3374
  %v3639 = vpack.c.b16 %v3383, %v3379
  %v3640 = vpack.c.b16 %v3384, %v3380
  %v3641 = vpack.c.b16 %v3385, %v3381
  %v3642 = vpack.c.b16 %v3386, %v3382
  %v3643 = vpack.c.b16 %v3391, %v3387
  %v3644 = vpack.c.b16 %v3392, %v3388
  %v3645 = vpack.c.b16 %v3393, %v3389
  %v3646 = vpack.c.b16 %v3394, %v3390
  %v3647 = vpack.c.b16 %v3399, %v3395
  %v3648 = vpack.c.b16 %v3400, %v3396
  %v3649 = vpack.c.b16 %v3401, %v3397
  %v3650 = vpack.c.b16 %v3402, %v3398
  %v3651 = vpack.c.b16 %v3407, %v3403
  %v3652 = vpack.c.b16 %v3408, %v3404
  %v3653 = vpack.c.b16 %v3409, %v3405
  %v3654 = vpack.c.b16 %v3410, %v3406
  %v3655 = vpack.c.b16 %v3415, %v3411
  %v3656 = vpack.c.b16 %v3416, %v3412
  %v3657 = vpack.c.b16 %v3417, %v3413
  %v3658 = vpack.c.b16 %v3418, %v3414
  %v3659 = vpack.c.b16 %v3423, %v3419
  %v3660 = vpack.c.b16 %v3424, %v3420
  %v3661 = vpack.c.b16 %v3425, %v3421
  %v3662 = vpack.c.b16 %v3426, %v3422
  %v3663 = vpack.c.b16 %v3431, %v3427
  %v3664 = vpack.c.b16 %v3432, %v3428
  %v3665 = vpack.c.b16 %v3433, %v3429
  %v3666 = vpack.c.b16 %v3434, %v3430
  %v3667 = vpack.c.b16 %v3439, %v3435
  %v3668 = vpack.c.b16 %v3440, %v3436
  %v3669 = vpack.c.b16 %v3441, %v3437
  %v3670 = vpack.c.b16 %v3442, %v3438
  %v3671 = vpack.c.b16 %v3447, %v3443
  %v3672 = vpack.c.b16 %v3448, %v3444
  %v3673 = vpack.c.b16 %v3449, %v3445
  %v3674 = vpack.c.b16 %v3450, %v3446
  %v3675 = vpack.c.b16 %v3455, %v3451
  %v3676 = vpack.c.b16 %v3456, %v3452
  %v3677 = vpack.c.b16 %v3457, %v3453
  %v3678 = vpack.c.b16 %v3458, %v3454
  %v3679 = vpack.c.b16 %v3463, %v3459
  %v3680 = vpack.c.b16 %v3464, %v3460
  %v3681 = vpack.c.b16 %v3465, %v3461
  %v3682 = vpack.c.b16 %v3466, %v3462
  %v3683 = vpack.c.b16 %v3471, %v3467
  %v3684 = vpack.c.b16 %v3472, %v3468
  %v3685 = vpack.c.b16 %v3473, %v3469
  %v3686 = vpack.c.b16 %v3474, %v3470
  %v3687 = vpack.c.b16 %v3479, %v3475
  %v3688 = vpack.c.b16 %v3480, %v3476
  %v3689 = vpack.c.b16 %v3481, %v3477
  %v3690 = vpack.c.b16 %v3482, %v3478
  %v3691 = vpack.c.b16 %v3487, %v3483
  %v3692 = vpack.c.b16 %v3488, %v3484
  %v3693 = vpack.c.b16 %v3489, %v3485
  %v3694 = vpack.c.b16 %v3490, %v3486
  %v3695 = vpack.c.b16 %v3495, %v3491
  %v3696 = vpack.c.b16 %v3496, %v3492
  %v3697 = vpack.c.b16 %v3497, %v3493
  %v3698 = vpack.c.b16 %v3498, %v3494
  %v3699 = vpack.c.b16 %v3503, %v3499
  %v3700 = vpack.c.b16 %v3504, %v3500
  %v3701 = vpack.c.b16 %v3505, %v3501
  %v3702 = vpack.c.b16 %v3506, %v3502
  %v3703 = vpack.c.b16 %v3511, %v3507
  %v3704 = vpack.c.b16 %v3512, %v3508
  %v3705 = vpack.c.b16 %v3513, %v3509
  %v3706 = vpack.c.b16 %v3514, %v3510
  %3899 = vmatprep.subr.bf16.mxu0 %v3516
  %3900 = vmatpush1.bf16.msra.mxu0 %v3515
  %3901 = vmatprep.subr.bf16.mxu0 %v3520
  %3902 = vmatpush1.bf16.msra.mxu0 %v3519
  %3903 = vmatprep.subr.bf16.mxu0 %v3524
  %3904 = vmatpush1.bf16.msra.mxu0 %v3523
  %3905 = vmatprep.subr.bf16.mxu0 %v3528
  %3906 = vmatpush1.bf16.msra.mxu0 %v3527
  %3907 = vmatprep.subr.bf16.mxu0 %v3532
  %3908 = vmatpush1.bf16.msra.mxu0 %v3531
  %3909 = vmatprep.subr.bf16.mxu0 %v3536
  %3910 = vmatpush1.bf16.msra.mxu0 %v3535
  %3911 = vmatprep.subr.bf16.mxu0 %v3540
  %3912 = vmatpush1.bf16.msra.mxu0 %v3539
  %3913 = vmatprep.subr.bf16.mxu0 %v3544
  %3914 = vmatpush1.bf16.msra.mxu0 %v3543
  %3915 = vmatprep.subr.bf16.mxu0 %v3548
  %3916 = vmatpush1.bf16.msra.mxu0 %v3547
  %3917 = vmatprep.subr.bf16.mxu0 %v3552
  %3918 = vmatpush1.bf16.msra.mxu0 %v3551
  %3919 = vmatprep.subr.bf16.mxu0 %v3556
  %3920 = vmatpush1.bf16.msra.mxu0 %v3555
  %3921 = vmatprep.subr.bf16.mxu0 %v3560
  %3922 = vmatpush1.bf16.msra.mxu0 %v3559
  %3923 = vmatprep.subr.bf16.mxu0 %v3564
  %3924 = vmatpush1.bf16.msra.mxu0 %v3563
  %3925 = vmatprep.subr.bf16.mxu0 %v3568
  %3926 = vmatpush1.bf16.msra.mxu0 %v3567
  %3927 = vmatprep.subr.bf16.mxu0 %v3572
  %3928 = vmatpush1.bf16.msra.mxu0 %v3571
  %3929 = vmatprep.subr.bf16.mxu0 %v3576
  %3930 = vmatpush1.bf16.msra.mxu0 %v3575
  %3931 = vmatprep.mubr.bf16.mxu0 %v2664
  %3932 = vmatmul.mubr.bf16.gmra.mrb[0].mxu0 %v2663
  %v3933 = vpop.f32.mrb[0].mxu0
  %v3934 = vadd.f32 0.0, %v3933
  %v3935 = vpop.f32.mrb[0].mxu0
  %v3936 = vadd.f32 0.0, %v3935
  %v3937 = vpop.f32.mrb[0].mxu0
  %v3938 = vadd.f32 0.0, %v3937
  %v3939 = vpop.f32.mrb[0].mxu0
  %v3940 = vadd.f32 0.0, %v3939
  %3941 = vmatprep.mubr.bf16.mxu0 %v2670
  %3942 = vmatmul.mubr.bf16.gmra.mrb[0].mxu0 %v2669
  %v3943 = vpop.f32.mrb[0].mxu0
  %v3944 = vadd.f32 0.0, %v3943
  %v3945 = vpop.f32.mrb[0].mxu0
  %v3946 = vadd.f32 0.0, %v3945
  %v3947 = vpop.f32.mrb[0].mxu0
  %v3948 = vadd.f32 0.0, %v3947
  %v3949 = vpop.f32.mrb[0].mxu0
  %v3950 = vadd.f32 0.0, %v3949
  %3951 = vmatprep.mubr.bf16.mxu0 %v2676
  %3952 = vmatmul.mubr.bf16.gmra.mrb[0].mxu0 %v2675
  %v3953 = vpop.f32.mrb[0].mxu0
  %v3954 = vadd.f32 0.0, %v3953
  %v3955 = vpop.f32.mrb[0].mxu0
  %v3956 = vadd.f32 0.0, %v3955
  %v3957 = vpop.f32.mrb[0].mxu0
  %v3958 = vadd.f32 0.0, %v3957
  %v3959 = vpop.f32.mrb[0].mxu0
  %v3960 = vadd.f32 0.0, %v3959
  %3961 = vmatprep.mubr.bf16.mxu0 %v2682
  %3962 = vmatmul.mubr.bf16.gmra.mrb[0].mxu0 %v2681
  %v3963 = vpop.f32.mrb[0].mxu0
  %v3964 = vadd.f32 0.0, %v3963
  %v3965 = vpop.f32.mrb[0].mxu0
  %v3966 = vadd.f32 0.0, %v3965
  %v3967 = vpop.f32.mrb[0].mxu0
  %v3968 = vadd.f32 0.0, %v3967
  %v3969 = vpop.f32.mrb[0].mxu0
  %v3970 = vadd.f32 0.0, %v3969
  %3971 = vmatprep.mubr.bf16.mxu0 %v2688
  %3972 = vmatmul.mubr.bf16.gmra.mrb[0].mxu0 %v2687
  %v3973 = vpop.f32.mrb[0].mxu0
  %v3974 = vadd.f32 0.0, %v3973
  %v3975 = vpop.f32.mrb[0].mxu0
  %v3976 = vadd.f32 0.0, %v3975
  %v3977 = vpop.f32.mrb[0].mxu0
  %v3978 = vadd.f32 0.0, %v3977
  %v3979 = vpop.f32.mrb[0].mxu0
  %v3980 = vadd.f32 0.0, %v3979
  %3981 = vmatprep.mubr.bf16.mxu0 %v2694
  %3982 = vmatmul.mubr.bf16.gmra.mrb[0].mxu0 %v2693
  %v3983 = vpop.f32.mrb[0].mxu0
  %v3984 = vadd.f32 0.0, %v3983
  %v3985 = vpop.f32.mrb[0].mxu0
  %v3986 = vadd.f32 0.0, %v3985
  %v3987 = vpop.f32.mrb[0].mxu0
  %v3988 = vadd.f32 0.0, %v3987
  %v3989 = vpop.f32.mrb[0].mxu0
  %v3990 = vadd.f32 0.0, %v3989
  %3991 = vmatprep.mubr.bf16.mxu0 %v2700
  %3992 = vmatmul.mubr.bf16.gmra.mrb[0].mxu0 %v2699
  %v3993 = vpop.f32.mrb[0].mxu0
  %v3994 = vadd.f32 0.0, %v3993
  %v3995 = vpop.f32.mrb[0].mxu0
  %v3996 = vadd.f32 0.0, %v3995
  %v3997 = vpop.f32.mrb[0].mxu0
  %v3998 = vadd.f32 0.0, %v3997
  %v3999 = vpop.f32.mrb[0].mxu0
  %v4000 = vadd.f32 0.0, %v3999
  %4001 = vmatprep.mubr.bf16.mxu0 %v2706
  %4002 = vmatmul.mubr.bf16.gmra.mrb[0].mxu0 %v2705
  %v4003 = vpop.f32.mrb[0].mxu0
  %v4004 = vadd.f32 0.0, %v4003
  %v4005 = vpop.f32.mrb[0].mxu0
  %v4006 = vadd.f32 0.0, %v4005
  %v4007 = vpop.f32.mrb[0].mxu0
  %v4008 = vadd.f32 0.0, %v4007
  %v4009 = vpop.f32.mrb[0].mxu0
  %v4010 = vadd.f32 0.0, %v4009
  %4011 = vmatprep.mubr.bf16.mxu0 %v2712
  %4012 = vmatmul.mubr.bf16.gmra.mrb[0].mxu0 %v2711
  %v4013 = vpop.f32.mrb[0].mxu0
  %v4014 = vadd.f32 0.0, %v4013
  %v4015 = vpop.f32.mrb[0].mxu0
  %v4016 = vadd.f32 0.0, %v4015
  %v4017 = vpop.f32.mrb[0].mxu0
  %v4018 = vadd.f32 0.0, %v4017
  %v4019 = vpop.f32.mrb[0].mxu0
  %v4020 = vadd.f32 0.0, %v4019
  %4021 = vmatprep.mubr.bf16.mxu0 %v2718
  %4022 = vmatmul.mubr.bf16.gmra.mrb[0].mxu0 %v2717
  %v4023 = vpop.f32.mrb[0].mxu0
  %v4024 = vadd.f32 0.0, %v4023
  %v4025 = vpop.f32.mrb[0].mxu0
  %v4026 = vadd.f32 0.0, %v4025
  %v4027 = vpop.f32.mrb[0].mxu0
  %v4028 = vadd.f32 0.0, %v4027
  %v4029 = vpop.f32.mrb[0].mxu0
  %v4030 = vadd.f32 0.0, %v4029
  %4031 = vmatprep.mubr.bf16.mxu0 %v2724
  %4032 = vmatmul.mubr.bf16.gmra.mrb[0].mxu0 %v2723
  %v4033 = vpop.f32.mrb[0].mxu0
  %v4034 = vadd.f32 0.0, %v4033
  %v4035 = vpop.f32.mrb[0].mxu0
  %v4036 = vadd.f32 0.0, %v4035
  %v4037 = vpop.f32.mrb[0].mxu0
  %v4038 = vadd.f32 0.0, %v4037
  %v4039 = vpop.f32.mrb[0].mxu0
  %v4040 = vadd.f32 0.0, %v4039
  %4041 = vmatprep.mubr.bf16.mxu0 %v2730
  %4042 = vmatmul.mubr.bf16.gmra.mrb[0].mxu0 %v2729
  %v4043 = vpop.f32.mrb[0].mxu0
  %v4044 = vadd.f32 0.0, %v4043
  %v4045 = vpop.f32.mrb[0].mxu0
  %v4046 = vadd.f32 0.0, %v4045
  %v4047 = vpop.f32.mrb[0].mxu0
  %v4048 = vadd.f32 0.0, %v4047
  %v4049 = vpop.f32.mrb[0].mxu0
  %v4050 = vadd.f32 0.0, %v4049
  %4051 = vmatprep.mubr.bf16.mxu0 %v2736
  %4052 = vmatmul.mubr.bf16.gmra.mrb[0].mxu0 %v2735
  %v4053 = vpop.f32.mrb[0].mxu0
  %v4054 = vadd.f32 0.0, %v4053
  %v4055 = vpop.f32.mrb[0].mxu0
  %v4056 = vadd.f32 0.0, %v4055
  %v4057 = vpop.f32.mrb[0].mxu0
  %v4058 = vadd.f32 0.0, %v4057
  %v4059 = vpop.f32.mrb[0].mxu0
  %v4060 = vadd.f32 0.0, %v4059
  %4061 = vmatprep.mubr.bf16.mxu0 %v2742
  %4062 = vmatmul.mubr.bf16.gmra.mrb[0].mxu0 %v2741
  %v4063 = vpop.f32.mrb[0].mxu0
  %v4064 = vadd.f32 0.0, %v4063
  %v4065 = vpop.f32.mrb[0].mxu0
  %v4066 = vadd.f32 0.0, %v4065
  %v4067 = vpop.f32.mrb[0].mxu0
  %v4068 = vadd.f32 0.0, %v4067
  %v4069 = vpop.f32.mrb[0].mxu0
  %v4070 = vadd.f32 0.0, %v4069
  %4071 = vdwg.mxu0
  %4072 = vmatprep.subr.bf16.mxu0 %v3580
  %4073 = vmatpush1.bf16.msra.mxu0 %v3579
  %4074 = vmatprep.subr.bf16.mxu0 %v3584
  %4075 = vmatpush1.bf16.msra.mxu0 %v3583
  %4076 = vmatprep.subr.bf16.mxu0 %v3588
  %4077 = vmatpush1.bf16.msra.mxu0 %v3587
  %4078 = vmatprep.subr.bf16.mxu0 %v3592
  %4079 = vmatpush1.bf16.msra.mxu0 %v3591
  %4080 = vmatprep.subr.bf16.mxu0 %v3596
  %4081 = vmatpush1.bf16.msra.mxu0 %v3595
  %4082 = vmatprep.subr.bf16.mxu0 %v3600
  %4083 = vmatpush1.bf16.msra.mxu0 %v3599
  %4084 = vmatprep.subr.bf16.mxu0 %v3604
  %4085 = vmatpush1.bf16.msra.mxu0 %v3603
  %4086 = vmatprep.subr.bf16.mxu0 %v3608
  %4087 = vmatpush1.bf16.msra.mxu0 %v3607
  %4088 = vmatprep.subr.bf16.mxu0 %v3612
  %4089 = vmatpush1.bf16.msra.mxu0 %v3611
  %4090 = vmatprep.subr.bf16.mxu0 %v3616
  %4091 = vmatpush1.bf16.msra.mxu0 %v3615
  %4092 = vmatprep.subr.bf16.mxu0 %v3620
  %4093 = vmatpush1.bf16.msra.mxu0 %v3619
  %4094 = vmatprep.subr.bf16.mxu0 %v3624
  %4095 = vmatpush1.bf16.msra.mxu0 %v3623
  %4096 = vmatprep.subr.bf16.mxu0 %v3628
  %4097 = vmatpush1.bf16.msra.mxu0 %v3627
  %4098 = vmatprep.subr.bf16.mxu0 %v3632
  %4099 = vmatpush1.bf16.msra.mxu0 %v3631
  %4100 = vmatprep.subr.bf16.mxu0 %v3636
  %4101 = vmatpush1.bf16.msra.mxu0 %v3635
  %4102 = vmatprep.subr.bf16.mxu0 %v3640
  %4103 = vmatpush1.bf16.msra.mxu0 %v3639
  %4104 = vmatprep.mubr.bf16.mxu0 %v2666
  %4105 = vmatmul.mubr.bf16.gmra.mrb[0].mxu0 %v2665
  %v4106 = vpop.f32.mrb[0].mxu0
  %v4107 = vadd.f32 %v3934, %v4106
  %v4108 = vpop.f32.mrb[0].mxu0
  %v4109 = vadd.f32 %v3936, %v4108
  %v4110 = vpop.f32.mrb[0].mxu0
  %v4111 = vadd.f32 %v3938, %v4110
  %v4112 = vpop.f32.mrb[0].mxu0
  %v4113 = vadd.f32 %v3940, %v4112
  %4114 = vmatprep.mubr.bf16.mxu0 %v2672
  %4115 = vmatmul.mubr.bf16.gmra.mrb[0].mxu0 %v2671
  %v4116 = vpop.f32.mrb[0].mxu0
  %v4117 = vadd.f32 %v3944, %v4116
  %v4118 = vpop.f32.mrb[0].mxu0
  %v4119 = vadd.f32 %v3946, %v4118
  %v4120 = vpop.f32.mrb[0].mxu0
  %v4121 = vadd.f32 %v3948, %v4120
  %v4122 = vpop.f32.mrb[0].mxu0
  %v4123 = vadd.f32 %v3950, %v4122
  %4124 = vmatprep.mubr.bf16.mxu0 %v2678
  %4125 = vmatmul.mubr.bf16.gmra.mrb[0].mxu0 %v2677
  %v4126 = vpop.f32.mrb[0].mxu0
  %v4127 = vadd.f32 %v3954, %v4126
  %v4128 = vpop.f32.mrb[0].mxu0
  %v4129 = vadd.f32 %v3956, %v4128
  %v4130 = vpop.f32.mrb[0].mxu0
  %v4131 = vadd.f32 %v3958, %v4130
  %v4132 = vpop.f32.mrb[0].mxu0
  %v4133 = vadd.f32 %v3960, %v4132
  %4134 = vmatprep.mubr.bf16.mxu0 %v2684
  %4135 = vmatmul.mubr.bf16.gmra.mrb[0].mxu0 %v2683
  %v4136 = vpop.f32.mrb[0].mxu0
  %v4137 = vadd.f32 %v3964, %v4136
  %v4138 = vpop.f32.mrb[0].mxu0
  %v4139 = vadd.f32 %v3966, %v4138
  %v4140 = vpop.f32.mrb[0].mxu0
  %v4141 = vadd.f32 %v3968, %v4140
  %v4142 = vpop.f32.mrb[0].mxu0
  %v4143 = vadd.f32 %v3970, %v4142
  %4144 = vmatprep.mubr.bf16.mxu0 %v2690
  %4145 = vmatmul.mubr.bf16.gmra.mrb[0].mxu0 %v2689
  %v4146 = vpop.f32.mrb[0].mxu0
  %v4147 = vadd.f32 %v3974, %v4146
  %v4148 = vpop.f32.mrb[0].mxu0
  %v4149 = vadd.f32 %v3976, %v4148
  %v4150 = vpop.f32.mrb[0].mxu0
  %v4151 = vadd.f32 %v3978, %v4150
  %v4152 = vpop.f32.mrb[0].mxu0
  %v4153 = vadd.f32 %v3980, %v4152
  %4154 = vmatprep.mubr.bf16.mxu0 %v2696
  %4155 = vmatmul.mubr.bf16.gmra.mrb[0].mxu0 %v2695
  %v4156 = vpop.f32.mrb[0].mxu0
  %v4157 = vadd.f32 %v3984, %v4156
  %v4158 = vpop.f32.mrb[0].mxu0
  %v4159 = vadd.f32 %v3986, %v4158
  %v4160 = vpop.f32.mrb[0].mxu0
  %v4161 = vadd.f32 %v3988, %v4160
  %v4162 = vpop.f32.mrb[0].mxu0
  %v4163 = vadd.f32 %v3990, %v4162
  %4164 = vmatprep.mubr.bf16.mxu0 %v2702
  %4165 = vmatmul.mubr.bf16.gmra.mrb[0].mxu0 %v2701
  %v4166 = vpop.f32.mrb[0].mxu0
  %v4167 = vadd.f32 %v3994, %v4166
  %v4168 = vpop.f32.mrb[0].mxu0
  %v4169 = vadd.f32 %v3996, %v4168
  %v4170 = vpop.f32.mrb[0].mxu0
  %v4171 = vadd.f32 %v3998, %v4170
  %v4172 = vpop.f32.mrb[0].mxu0
  %v4173 = vadd.f32 %v4000, %v4172
  %4174 = vmatprep.mubr.bf16.mxu0 %v2708
  %4175 = vmatmul.mubr.bf16.gmra.mrb[0].mxu0 %v2707
  %v4176 = vpop.f32.mrb[0].mxu0
  %v4177 = vadd.f32 %v4004, %v4176
  %v4178 = vpop.f32.mrb[0].mxu0
  %v4179 = vadd.f32 %v4006, %v4178
  %v4180 = vpop.f32.mrb[0].mxu0
  %v4181 = vadd.f32 %v4008, %v4180
  %v4182 = vpop.f32.mrb[0].mxu0
  %v4183 = vadd.f32 %v4010, %v4182
  %4184 = vmatprep.mubr.bf16.mxu0 %v2714
  %4185 = vmatmul.mubr.bf16.gmra.mrb[0].mxu0 %v2713
  %v4186 = vpop.f32.mrb[0].mxu0
  %v4187 = vadd.f32 %v4014, %v4186
  %v4188 = vpop.f32.mrb[0].mxu0
  %v4189 = vadd.f32 %v4016, %v4188
  %v4190 = vpop.f32.mrb[0].mxu0
  %v4191 = vadd.f32 %v4018, %v4190
  %v4192 = vpop.f32.mrb[0].mxu0
  %v4193 = vadd.f32 %v4020, %v4192
  %4194 = vmatprep.mubr.bf16.mxu0 %v2720
  %4195 = vmatmul.mubr.bf16.gmra.mrb[0].mxu0 %v2719
  %v4196 = vpop.f32.mrb[0].mxu0
  %v4197 = vadd.f32 %v4024, %v4196
  %v4198 = vpop.f32.mrb[0].mxu0
  %v4199 = vadd.f32 %v4026, %v4198
  %v4200 = vpop.f32.mrb[0].mxu0
  %v4201 = vadd.f32 %v4028, %v4200
  %v4202 = vpop.f32.mrb[0].mxu0
  %v4203 = vadd.f32 %v4030, %v4202
  %4204 = vmatprep.mubr.bf16.mxu0 %v2726
  %4205 = vmatmul.mubr.bf16.gmra.mrb[0].mxu0 %v2725
  %v4206 = vpop.f32.mrb[0].mxu0
  %v4207 = vadd.f32 %v4034, %v4206
  %v4208 = vpop.f32.mrb[0].mxu0
  %v4209 = vadd.f32 %v4036, %v4208
  %v4210 = vpop.f32.mrb[0].mxu0
  %v4211 = vadd.f32 %v4038, %v4210
  %v4212 = vpop.f32.mrb[0].mxu0
  %v4213 = vadd.f32 %v4040, %v4212
  %4214 = vmatprep.mubr.bf16.mxu0 %v2732
  %4215 = vmatmul.mubr.bf16.gmra.mrb[0].mxu0 %v2731
  %v4216 = vpop.f32.mrb[0].mxu0
  %v4217 = vadd.f32 %v4044, %v4216
  %v4218 = vpop.f32.mrb[0].mxu0
  %v4219 = vadd.f32 %v4046, %v4218
  %v4220 = vpop.f32.mrb[0].mxu0
  %v4221 = vadd.f32 %v4048, %v4220
  %v4222 = vpop.f32.mrb[0].mxu0
  %v4223 = vadd.f32 %v4050, %v4222
  %4224 = vmatprep.mubr.bf16.mxu0 %v2738
  %4225 = vmatmul.mubr.bf16.gmra.mrb[0].mxu0 %v2737
  %v4226 = vpop.f32.mrb[0].mxu0
  %v4227 = vadd.f32 %v4054, %v4226
  %v4228 = vpop.f32.mrb[0].mxu0
  %v4229 = vadd.f32 %v4056, %v4228
  %v4230 = vpop.f32.mrb[0].mxu0
  %v4231 = vadd.f32 %v4058, %v4230
  %v4232 = vpop.f32.mrb[0].mxu0
  %v4233 = vadd.f32 %v4060, %v4232
  %4234 = vmatprep.mubr.bf16.mxu0 %v2744
  %4235 = vmatmul.mubr.bf16.gmra.mrb[0].mxu0 %v2743
  %v4236 = vpop.f32.mrb[0].mxu0
  %v4237 = vadd.f32 %v4064, %v4236
  %v4238 = vpop.f32.mrb[0].mxu0
  %v4239 = vadd.f32 %v4066, %v4238
  %v4240 = vpop.f32.mrb[0].mxu0
  %v4241 = vadd.f32 %v4068, %v4240
  %v4242 = vpop.f32.mrb[0].mxu0
  %v4243 = vadd.f32 %v4070, %v4242
  %4244 = vdwg.mxu0
  %4245 = vmatprep.subr.bf16.mxu0 %v3644
  %4246 = vmatpush1.bf16.msra.mxu0 %v3643
  %4247 = vmatprep.subr.bf16.mxu0 %v3648
  %4248 = vmatpush1.bf16.msra.mxu0 %v3647
  %4249 = vmatprep.subr.bf16.mxu0 %v3652
  %4250 = vmatpush1.bf16.msra.mxu0 %v3651
  %4251 = vmatprep.subr.bf16.mxu0 %v3656
  %4252 = vmatpush1.bf16.msra.mxu0 %v3655
  %4253 = vmatprep.subr.bf16.mxu0 %v3660
  %4254 = vmatpush1.bf16.msra.mxu0 %v3659
  %4255 = vmatprep.subr.bf16.mxu0 %v3664
  %4256 = vmatpush1.bf16.msra.mxu0 %v3663
  %4257 = vmatprep.subr.bf16.mxu0 %v3668
  %4258 = vmatpush1.bf16.msra.mxu0 %v3667
  %4259 = vmatprep.subr.bf16.mxu0 %v3672
  %4260 = vmatpush1.bf16.msra.mxu0 %v3671
  %4261 = vmatprep.subr.bf16.mxu0 %v3676
  %4262 = vmatpush1.bf16.msra.mxu0 %v3675
  %4263 = vmatprep.subr.bf16.mxu0 %v3680
  %4264 = vmatpush1.bf16.msra.mxu0 %v3679
  %4265 = vmatprep.subr.bf16.mxu0 %v3684
  %4266 = vmatpush1.bf16.msra.mxu0 %v3683
  %4267 = vmatprep.subr.bf16.mxu0 %v3688
  %4268 = vmatpush1.bf16.msra.mxu0 %v3687
  %4269 = vmatprep.subr.bf16.mxu0 %v3692
  %4270 = vmatpush1.bf16.msra.mxu0 %v3691
  %4271 = vmatprep.subr.bf16.mxu0 %v3696
  %4272 = vmatpush1.bf16.msra.mxu0 %v3695
  %4273 = vmatprep.subr.bf16.mxu0 %v3700
  %4274 = vmatpush1.bf16.msra.mxu0 %v3699
  %4275 = vmatprep.subr.bf16.mxu0 %v3704
  %4276 = vmatpush1.bf16.msra.mxu0 %v3703
  %4277 = vmatprep.mubr.bf16.mxu0 %v2668
  %4278 = vmatmul.mubr.bf16.gmra.mrb[0].mxu0 %v2667
  %v4279 = vpop.f32.mrb[0].mxu0
  %v4280 = vadd.f32 %v4107, %v4279
  %v4281 = vpop.f32.mrb[0].mxu0
  %v4282 = vadd.f32 %v4109, %v4281
  %v4283 = vpop.f32.mrb[0].mxu0
  %v4284 = vadd.f32 %v4111, %v4283
  %v4285 = vpop.f32.mrb[0].mxu0
  %v4286 = vadd.f32 %v4113, %v4285
  %4287 = vmatprep.mubr.bf16.mxu0 %v2674
  %4288 = vmatmul.mubr.bf16.gmra.mrb[0].mxu0 %v2673
  %v4289 = vpop.f32.mrb[0].mxu0
  %v4290 = vadd.f32 %v4117, %v4289
  %v4291 = vpop.f32.mrb[0].mxu0
  %v4292 = vadd.f32 %v4119, %v4291
  %v4293 = vpop.f32.mrb[0].mxu0
  %v4294 = vadd.f32 %v4121, %v4293
  %v4295 = vpop.f32.mrb[0].mxu0
  %v4296 = vadd.f32 %v4123, %v4295
  %4297 = vmatprep.mubr.bf16.mxu0 %v2680
  %4298 = vmatmul.mubr.bf16.gmra.mrb[0].mxu0 %v2679
  %v4299 = vpop.f32.mrb[0].mxu0
  %v4300 = vadd.f32 %v4127, %v4299
  %v4301 = vpop.f32.mrb[0].mxu0
  %v4302 = vadd.f32 %v4129, %v4301
  %v4303 = vpop.f32.mrb[0].mxu0
  %v4304 = vadd.f32 %v4131, %v4303
  %v4305 = vpop.f32.mrb[0].mxu0
  %v4306 = vadd.f32 %v4133, %v4305
  %4307 = vmatprep.mubr.bf16.mxu0 %v2686
  %4308 = vmatmul.mubr.bf16.gmra.mrb[0].mxu0 %v2685
  %v4309 = vpop.f32.mrb[0].mxu0
  %v4310 = vadd.f32 %v4137, %v4309
  %v4311 = vpop.f32.mrb[0].mxu0
  %v4312 = vadd.f32 %v4139, %v4311
  %v4313 = vpop.f32.mrb[0].mxu0
  %v4314 = vadd.f32 %v4141, %v4313
  %v4315 = vpop.f32.mrb[0].mxu0
  %v4316 = vadd.f32 %v4143, %v4315
  %4317 = vmatprep.mubr.bf16.mxu0 %v2692
  %4318 = vmatmul.mubr.bf16.gmra.mrb[0].mxu0 %v2691
  %v4319 = vpop.f32.mrb[0].mxu0
  %v4320 = vadd.f32 %v4147, %v4319
  %v4321 = vpop.f32.mrb[0].mxu0
  %v4322 = vadd.f32 %v4149, %v4321
  %v4323 = vpop.f32.mrb[0].mxu0
  %v4324 = vadd.f32 %v4151, %v4323
  %v4325 = vpop.f32.mrb[0].mxu0
  %v4326 = vadd.f32 %v4153, %v4325
  %4327 = vmatprep.mubr.bf16.mxu0 %v2698
  %4328 = vmatmul.mubr.bf16.gmra.mrb[0].mxu0 %v2697
  %v4329 = vpop.f32.mrb[0].mxu0
  %v4330 = vadd.f32 %v4157, %v4329
  %v4331 = vpop.f32.mrb[0].mxu0
  %v4332 = vadd.f32 %v4159, %v4331
  %v4333 = vpop.f32.mrb[0].mxu0
  %v4334 = vadd.f32 %v4161, %v4333
  %v4335 = vpop.f32.mrb[0].mxu0
  %v4336 = vadd.f32 %v4163, %v4335
  %4337 = vmatprep.mubr.bf16.mxu0 %v2704
  %4338 = vmatmul.mubr.bf16.gmra.mrb[0].mxu0 %v2703
  %v4339 = vpop.f32.mrb[0].mxu0
  %v4340 = vadd.f32 %v4167, %v4339
  %v4341 = vpop.f32.mrb[0].mxu0
  %v4342 = vadd.f32 %v4169, %v4341
  %v4343 = vpop.f32.mrb[0].mxu0
  %v4344 = vadd.f32 %v4171, %v4343
  %v4345 = vpop.f32.mrb[0].mxu0
  %v4346 = vadd.f32 %v4173, %v4345
  %4347 = vmatprep.mubr.bf16.mxu0 %v2710
  %4348 = vmatmul.mubr.bf16.gmra.mrb[0].mxu0 %v2709
  %v4349 = vpop.f32.mrb[0].mxu0
  %v4350 = vadd.f32 %v4177, %v4349
  %v4351 = vpop.f32.mrb[0].mxu0
  %v4352 = vadd.f32 %v4179, %v4351
  %v4353 = vpop.f32.mrb[0].mxu0
  %v4354 = vadd.f32 %v4181, %v4353
  %v4355 = vpop.f32.mrb[0].mxu0
  %v4356 = vadd.f32 %v4183, %v4355
  %4357 = vmatprep.mubr.bf16.mxu0 %v2716
  %4358 = vmatmul.mubr.bf16.gmra.mrb[0].mxu0 %v2715
  %v4359 = vpop.f32.mrb[0].mxu0
  %v4360 = vadd.f32 %v4187, %v4359
  %v4361 = vpop.f32.mrb[0].mxu0
  %v4362 = vadd.f32 %v4189, %v4361
  %v4363 = vpop.f32.mrb[0].mxu0
  %v4364 = vadd.f32 %v4191, %v4363
  %v4365 = vpop.f32.mrb[0].mxu0
  %v4366 = vadd.f32 %v4193, %v4365
  %4367 = vmatprep.mubr.bf16.mxu0 %v2722
  %4368 = vmatmul.mubr.bf16.gmra.mrb[0].mxu0 %v2721
  %v4369 = vpop.f32.mrb[0].mxu0
  %v4370 = vadd.f32 %v4197, %v4369
  %v4371 = vpop.f32.mrb[0].mxu0
  %v4372 = vadd.f32 %v4199, %v4371
  %v4373 = vpop.f32.mrb[0].mxu0
  %v4374 = vadd.f32 %v4201, %v4373
  %v4375 = vpop.f32.mrb[0].mxu0
  %v4376 = vadd.f32 %v4203, %v4375
  %4377 = vmatprep.mubr.bf16.mxu0 %v2728
  %4378 = vmatmul.mubr.bf16.gmra.mrb[0].mxu0 %v2727
  %v4379 = vpop.f32.mrb[0].mxu0
  %v4380 = vadd.f32 %v4207, %v4379
  %v4381 = vpop.f32.mrb[0].mxu0
  %v4382 = vadd.f32 %v4209, %v4381
  %v4383 = vpop.f32.mrb[0].mxu0
  %v4384 = vadd.f32 %v4211, %v4383
  %v4385 = vpop.f32.mrb[0].mxu0
  %v4386 = vadd.f32 %v4213, %v4385
  %4387 = vmatprep.mubr.bf16.mxu0 %v2734
  %4388 = vmatmul.mubr.bf16.gmra.mrb[0].mxu0 %v2733
  %v4389 = vpop.f32.mrb[0].mxu0
  %v4390 = vadd.f32 %v4217, %v4389
  %v4391 = vpop.f32.mrb[0].mxu0
  %v4392 = vadd.f32 %v4219, %v4391
  %v4393 = vpop.f32.mrb[0].mxu0
  %v4394 = vadd.f32 %v4221, %v4393
  %v4395 = vpop.f32.mrb[0].mxu0
  %v4396 = vadd.f32 %v4223, %v4395
  %4397 = vmatprep.mubr.bf16.mxu0 %v2740
  %4398 = vmatmul.mubr.bf16.gmra.mrb[0].mxu0 %v2739
  %v4399 = vpop.f32.mrb[0].mxu0
  %v4400 = vadd.f32 %v4227, %v4399
  %v4401 = vpop.f32.mrb[0].mxu0
  %v4402 = vadd.f32 %v4229, %v4401
  %v4403 = vpop.f32.mrb[0].mxu0
  %v4404 = vadd.f32 %v4231, %v4403
  %v4405 = vpop.f32.mrb[0].mxu0
  %v4406 = vadd.f32 %v4233, %v4405
  %4407 = vmatprep.mubr.bf16.mxu0 %v2746
  %4408 = vmatmul.mubr.bf16.gmra.mrb[0].mxu0 %v2745
  %v4409 = vpop.f32.mrb[0].mxu0
  %v4410 = vadd.f32 %v4237, %v4409
  %v4411 = vpop.f32.mrb[0].mxu0
  %v4412 = vadd.f32 %v4239, %v4411
  %v4413 = vpop.f32.mrb[0].mxu0
  %v4414 = vadd.f32 %v4241, %v4413
  %v4415 = vpop.f32.mrb[0].mxu0
  %v4416 = vadd.f32 %v4243, %v4415
  %4417 = vdwg.mxu0
  %4418 = vmatprep.subr.bf16.mxu0 %v3518
  %4419 = vmatpush1.bf16.msra.mxu0 %v3517
  %4420 = vmatprep.subr.bf16.mxu0 %v3522
  %4421 = vmatpush1.bf16.msra.mxu0 %v3521
  %4422 = vmatprep.subr.bf16.mxu0 %v3526
  %4423 = vmatpush1.bf16.msra.mxu0 %v3525
  %4424 = vmatprep.subr.bf16.mxu0 %v3530
  %4425 = vmatpush1.bf16.msra.mxu0 %v3529
  %4426 = vmatprep.subr.bf16.mxu0 %v3534
  %4427 = vmatpush1.bf16.msra.mxu0 %v3533
  %4428 = vmatprep.subr.bf16.mxu0 %v3538
  %4429 = vmatpush1.bf16.msra.mxu0 %v3537
  %4430 = vmatprep.subr.bf16.mxu0 %v3542
  %4431 = vmatpush1.bf16.msra.mxu0 %v3541
  %4432 = vmatprep.subr.bf16.mxu0 %v3546
  %4433 = vmatpush1.bf16.msra.mxu0 %v3545
  %4434 = vmatprep.subr.bf16.mxu0 %v3550
  %4435 = vmatpush1.bf16.msra.mxu0 %v3549
  %4436 = vmatprep.subr.bf16.mxu0 %v3554
  %4437 = vmatpush1.bf16.msra.mxu0 %v3553
  %4438 = vmatprep.subr.bf16.mxu0 %v3558
  %4439 = vmatpush1.bf16.msra.mxu0 %v3557
  %4440 = vmatprep.subr.bf16.mxu0 %v3562
  %4441 = vmatpush1.bf16.msra.mxu0 %v3561
  %4442 = vmatprep.subr.bf16.mxu0 %v3566
  %4443 = vmatpush1.bf16.msra.mxu0 %v3565
  %4444 = vmatprep.subr.bf16.mxu0 %v3570
  %4445 = vmatpush1.bf16.msra.mxu0 %v3569
  %4446 = vmatprep.subr.bf16.mxu0 %v3574
  %4447 = vmatpush1.bf16.msra.mxu0 %v3573
  %4448 = vmatprep.subr.bf16.mxu0 %v3578
  %4449 = vmatpush1.bf16.msra.mxu0 %v3577
  %4450 = vmatprep.mubr.bf16.mxu0 %v2664
  %4451 = vmatmul.mubr.bf16.gmra.mrb[0].mxu0 %v2663
  %v4452 = vpop.f32.mrb[0].mxu0
  %v4453 = vadd.f32 0.0, %v4452
  %v4454 = vpop.f32.mrb[0].mxu0
  %v4455 = vadd.f32 0.0, %v4454
  %v4456 = vpop.f32.mrb[0].mxu0
  %v4457 = vadd.f32 0.0, %v4456
  %v4458 = vpop.f32.mrb[0].mxu0
  %v4459 = vadd.f32 0.0, %v4458
  %4460 = vmatprep.mubr.bf16.mxu0 %v2670
  %4461 = vmatmul.mubr.bf16.gmra.mrb[0].mxu0 %v2669
  %v4462 = vpop.f32.mrb[0].mxu0
  %v4463 = vadd.f32 0.0, %v4462
  %v4464 = vpop.f32.mrb[0].mxu0
  %v4465 = vadd.f32 0.0, %v4464
  %v4466 = vpop.f32.mrb[0].mxu0
  %v4467 = vadd.f32 0.0, %v4466
  %v4468 = vpop.f32.mrb[0].mxu0
  %v4469 = vadd.f32 0.0, %v4468
  %4470 = vmatprep.mubr.bf16.mxu0 %v2676
  %4471 = vmatmul.mubr.bf16.gmra.mrb[0].mxu0 %v2675
  %v4472 = vpop.f32.mrb[0].mxu0
  %v4473 = vadd.f32 0.0, %v4472
  %v4474 = vpop.f32.mrb[0].mxu0
  %v4475 = vadd.f32 0.0, %v4474
  %v4476 = vpop.f32.mrb[0].mxu0
  %v4477 = vadd.f32 0.0, %v4476
  %v4478 = vpop.f32.mrb[0].mxu0
  %v4479 = vadd.f32 0.0, %v4478
  %4480 = vmatprep.mubr.bf16.mxu0 %v2682
  %4481 = vmatmul.mubr.bf16.gmra.mrb[0].mxu0 %v2681
  %v4482 = vpop.f32.mrb[0].mxu0
  %v4483 = vadd.f32 0.0, %v4482
  %v4484 = vpop.f32.mrb[0].mxu0
  %v4485 = vadd.f32 0.0, %v4484
  %v4486 = vpop.f32.mrb[0].mxu0
  %v4487 = vadd.f32 0.0, %v4486
  %v4488 = vpop.f32.mrb[0].mxu0
  %v4489 = vadd.f32 0.0, %v4488
  %4490 = vmatprep.mubr.bf16.mxu0 %v2688
  %4491 = vmatmul.mubr.bf16.gmra.mrb[0].mxu0 %v2687
  %v4492 = vpop.f32.mrb[0].mxu0
  %v4493 = vadd.f32 0.0, %v4492
  %v4494 = vpop.f32.mrb[0].mxu0
  %v4495 = vadd.f32 0.0, %v4494
  %v4496 = vpop.f32.mrb[0].mxu0
  %v4497 = vadd.f32 0.0, %v4496
  %v4498 = vpop.f32.mrb[0].mxu0
  %v4499 = vadd.f32 0.0, %v4498
  %4500 = vmatprep.mubr.bf16.mxu0 %v2694
  %4501 = vmatmul.mubr.bf16.gmra.mrb[0].mxu0 %v2693
  %v4502 = vpop.f32.mrb[0].mxu0
  %v4503 = vadd.f32 0.0, %v4502
  %v4504 = vpop.f32.mrb[0].mxu0
  %v4505 = vadd.f32 0.0, %v4504
  %v4506 = vpop.f32.mrb[0].mxu0
  %v4507 = vadd.f32 0.0, %v4506
  %v4508 = vpop.f32.mrb[0].mxu0
  %v4509 = vadd.f32 0.0, %v4508
  %4510 = vmatprep.mubr.bf16.mxu0 %v2700
  %4511 = vmatmul.mubr.bf16.gmra.mrb[0].mxu0 %v2699
  %v4512 = vpop.f32.mrb[0].mxu0
  %v4513 = vadd.f32 0.0, %v4512
  %v4514 = vpop.f32.mrb[0].mxu0
  %v4515 = vadd.f32 0.0, %v4514
  %v4516 = vpop.f32.mrb[0].mxu0
  %v4517 = vadd.f32 0.0, %v4516
  %v4518 = vpop.f32.mrb[0].mxu0
  %v4519 = vadd.f32 0.0, %v4518
  %4520 = vmatprep.mubr.bf16.mxu0 %v2706
  %4521 = vmatmul.mubr.bf16.gmra.mrb[0].mxu0 %v2705
  %v4522 = vpop.f32.mrb[0].mxu0
  %v4523 = vadd.f32 0.0, %v4522
  %v4524 = vpop.f32.mrb[0].mxu0
  %v4525 = vadd.f32 0.0, %v4524
  %v4526 = vpop.f32.mrb[0].mxu0
  %v4527 = vadd.f32 0.0, %v4526
  %v4528 = vpop.f32.mrb[0].mxu0
  %v4529 = vadd.f32 0.0, %v4528
  %4530 = vmatprep.mubr.bf16.mxu0 %v2712
  %4531 = vmatmul.mubr.bf16.gmra.mrb[0].mxu0 %v2711
  %v4532 = vpop.f32.mrb[0].mxu0
  %v4533 = vadd.f32 0.0, %v4532
  %v4534 = vpop.f32.mrb[0].mxu0
  %v4535 = vadd.f32 0.0, %v4534
  %v4536 = vpop.f32.mrb[0].mxu0
  %v4537 = vadd.f32 0.0, %v4536
  %v4538 = vpop.f32.mrb[0].mxu0
  %v4539 = vadd.f32 0.0, %v4538
  %4540 = vmatprep.mubr.bf16.mxu0 %v2718
  %4541 = vmatmul.mubr.bf16.gmra.mrb[0].mxu0 %v2717
  %v4542 = vpop.f32.mrb[0].mxu0
  %v4543 = vadd.f32 0.0, %v4542
  %v4544 = vpop.f32.mrb[0].mxu0
  %v4545 = vadd.f32 0.0, %v4544
  %v4546 = vpop.f32.mrb[0].mxu0
  %v4547 = vadd.f32 0.0, %v4546
  %v4548 = vpop.f32.mrb[0].mxu0
  %v4549 = vadd.f32 0.0, %v4548
  %4550 = vmatprep.mubr.bf16.mxu0 %v2724
  %4551 = vmatmul.mubr.bf16.gmra.mrb[0].mxu0 %v2723
  %v4552 = vpop.f32.mrb[0].mxu0
  %v4553 = vadd.f32 0.0, %v4552
  %v4554 = vpop.f32.mrb[0].mxu0
  %v4555 = vadd.f32 0.0, %v4554
  %v4556 = vpop.f32.mrb[0].mxu0
  %v4557 = vadd.f32 0.0, %v4556
  %v4558 = vpop.f32.mrb[0].mxu0
  %v4559 = vadd.f32 0.0, %v4558
  %4560 = vmatprep.mubr.bf16.mxu0 %v2730
  %4561 = vmatmul.mubr.bf16.gmra.mrb[0].mxu0 %v2729
  %v4562 = vpop.f32.mrb[0].mxu0
  %v4563 = vadd.f32 0.0, %v4562
  %v4564 = vpop.f32.mrb[0].mxu0
  %v4565 = vadd.f32 0.0, %v4564
  %v4566 = vpop.f32.mrb[0].mxu0
  %v4567 = vadd.f32 0.0, %v4566
  %v4568 = vpop.f32.mrb[0].mxu0
  %v4569 = vadd.f32 0.0, %v4568
  %4570 = vmatprep.mubr.bf16.mxu0 %v2736
  %4571 = vmatmul.mubr.bf16.gmra.mrb[0].mxu0 %v2735
  %v4572 = vpop.f32.mrb[0].mxu0
  %v4573 = vadd.f32 0.0, %v4572
  %v4574 = vpop.f32.mrb[0].mxu0
  %v4575 = vadd.f32 0.0, %v4574
  %v4576 = vpop.f32.mrb[0].mxu0
  %v4577 = vadd.f32 0.0, %v4576
  %v4578 = vpop.f32.mrb[0].mxu0
  %v4579 = vadd.f32 0.0, %v4578
  %4580 = vmatprep.mubr.bf16.mxu0 %v2742
  %4581 = vmatmul.mubr.bf16.gmra.mrb[0].mxu0 %v2741
  %v4582 = vpop.f32.mrb[0].mxu0
  %v4583 = vadd.f32 0.0, %v4582
  %v4584 = vpop.f32.mrb[0].mxu0
  %v4585 = vadd.f32 0.0, %v4584
  %v4586 = vpop.f32.mrb[0].mxu0
  %v4587 = vadd.f32 0.0, %v4586
  %v4588 = vpop.f32.mrb[0].mxu0
  %v4589 = vadd.f32 0.0, %v4588
  %4590 = vdwg.mxu0
  %4591 = vmatprep.subr.bf16.mxu0 %v3582
  %4592 = vmatpush1.bf16.msra.mxu0 %v3581
  %4593 = vmatprep.subr.bf16.mxu0 %v3586
  %4594 = vmatpush1.bf16.msra.mxu0 %v3585
  %4595 = vmatprep.subr.bf16.mxu0 %v3590
  %4596 = vmatpush1.bf16.msra.mxu0 %v3589
  %4597 = vmatprep.subr.bf16.mxu0 %v3594
  %4598 = vmatpush1.bf16.msra.mxu0 %v3593
  %4599 = vmatprep.subr.bf16.mxu0 %v3598
  %4600 = vmatpush1.bf16.msra.mxu0 %v3597
  %4601 = vmatprep.subr.bf16.mxu0 %v3602
  %4602 = vmatpush1.bf16.msra.mxu0 %v3601
  %4603 = vmatprep.subr.bf16.mxu0 %v3606
  %4604 = vmatpush1.bf16.msra.mxu0 %v3605
  %4605 = vmatprep.subr.bf16.mxu0 %v3610
  %4606 = vmatpush1.bf16.msra.mxu0 %v3609
  %4607 = vmatprep.subr.bf16.mxu0 %v3614
  %4608 = vmatpush1.bf16.msra.mxu0 %v3613
  %4609 = vmatprep.subr.bf16.mxu0 %v3618
  %4610 = vmatpush1.bf16.msra.mxu0 %v3617
  %4611 = vmatprep.subr.bf16.mxu0 %v3622
  %4612 = vmatpush1.bf16.msra.mxu0 %v3621
  %4613 = vmatprep.subr.bf16.mxu0 %v3626
  %4614 = vmatpush1.bf16.msra.mxu0 %v3625
  %4615 = vmatprep.subr.bf16.mxu0 %v3630
  %4616 = vmatpush1.bf16.msra.mxu0 %v3629
  %4617 = vmatprep.subr.bf16.mxu0 %v3634
  %4618 = vmatpush1.bf16.msra.mxu0 %v3633
  %4619 = vmatprep.subr.bf16.mxu0 %v3638
  %4620 = vmatpush1.bf16.msra.mxu0 %v3637
  %4621 = vmatprep.subr.bf16.mxu0 %v3642
  %4622 = vmatpush1.bf16.msra.mxu0 %v3641
  %4623 = vmatprep.mubr.bf16.mxu0 %v2666
  %4624 = vmatmul.mubr.bf16.gmra.mrb[0].mxu0 %v2665
  %v4625 = vpop.f32.mrb[0].mxu0
  %v4626 = vadd.f32 %v4453, %v4625
  %v4627 = vpop.f32.mrb[0].mxu0
  %v4628 = vadd.f32 %v4455, %v4627
  %v4629 = vpop.f32.mrb[0].mxu0
  %v4630 = vadd.f32 %v4457, %v4629
  %v4631 = vpop.f32.mrb[0].mxu0
  %v4632 = vadd.f32 %v4459, %v4631
  %4633 = vmatprep.mubr.bf16.mxu0 %v2672
  %4634 = vmatmul.mubr.bf16.gmra.mrb[0].mxu0 %v2671
  %v4635 = vpop.f32.mrb[0].mxu0
  %v4636 = vadd.f32 %v4463, %v4635
  %v4637 = vpop.f32.mrb[0].mxu0
  %v4638 = vadd.f32 %v4465, %v4637
  %v4639 = vpop.f32.mrb[0].mxu0
  %v4640 = vadd.f32 %v4467, %v4639
  %v4641 = vpop.f32.mrb[0].mxu0
  %v4642 = vadd.f32 %v4469, %v4641
  %4643 = vmatprep.mubr.bf16.mxu0 %v2678
  %4644 = vmatmul.mubr.bf16.gmra.mrb[0].mxu0 %v2677
  %v4645 = vpop.f32.mrb[0].mxu0
  %v4646 = vadd.f32 %v4473, %v4645
  %v4647 = vpop.f32.mrb[0].mxu0
  %v4648 = vadd.f32 %v4475, %v4647
  %v4649 = vpop.f32.mrb[0].mxu0
  %v4650 = vadd.f32 %v4477, %v4649
  %v4651 = vpop.f32.mrb[0].mxu0
  %v4652 = vadd.f32 %v4479, %v4651
  %4653 = vmatprep.mubr.bf16.mxu0 %v2684
  %4654 = vmatmul.mubr.bf16.gmra.mrb[0].mxu0 %v2683
  %v4655 = vpop.f32.mrb[0].mxu0
  %v4656 = vadd.f32 %v4483, %v4655
  %v4657 = vpop.f32.mrb[0].mxu0
  %v4658 = vadd.f32 %v4485, %v4657
  %v4659 = vpop.f32.mrb[0].mxu0
  %v4660 = vadd.f32 %v4487, %v4659
  %v4661 = vpop.f32.mrb[0].mxu0
  %v4662 = vadd.f32 %v4489, %v4661
  %4663 = vmatprep.mubr.bf16.mxu0 %v2690
  %4664 = vmatmul.mubr.bf16.gmra.mrb[0].mxu0 %v2689
  %v4665 = vpop.f32.mrb[0].mxu0
  %v4666 = vadd.f32 %v4493, %v4665
  %v4667 = vpop.f32.mrb[0].mxu0
  %v4668 = vadd.f32 %v4495, %v4667
  %v4669 = vpop.f32.mrb[0].mxu0
  %v4670 = vadd.f32 %v4497, %v4669
  %v4671 = vpop.f32.mrb[0].mxu0
  %v4672 = vadd.f32 %v4499, %v4671
  %4673 = vmatprep.mubr.bf16.mxu0 %v2696
  %4674 = vmatmul.mubr.bf16.gmra.mrb[0].mxu0 %v2695
  %v4675 = vpop.f32.mrb[0].mxu0
  %v4676 = vadd.f32 %v4503, %v4675
  %v4677 = vpop.f32.mrb[0].mxu0
  %v4678 = vadd.f32 %v4505, %v4677
  %v4679 = vpop.f32.mrb[0].mxu0
  %v4680 = vadd.f32 %v4507, %v4679
  %v4681 = vpop.f32.mrb[0].mxu0
  %v4682 = vadd.f32 %v4509, %v4681
  %4683 = vmatprep.mubr.bf16.mxu0 %v2702
  %4684 = vmatmul.mubr.bf16.gmra.mrb[0].mxu0 %v2701
  %v4685 = vpop.f32.mrb[0].mxu0
  %v4686 = vadd.f32 %v4513, %v4685
  %v4687 = vpop.f32.mrb[0].mxu0
  %v4688 = vadd.f32 %v4515, %v4687
  %v4689 = vpop.f32.mrb[0].mxu0
  %v4690 = vadd.f32 %v4517, %v4689
  %v4691 = vpop.f32.mrb[0].mxu0
  %v4692 = vadd.f32 %v4519, %v4691
  %4693 = vmatprep.mubr.bf16.mxu0 %v2708
  %4694 = vmatmul.mubr.bf16.gmra.mrb[0].mxu0 %v2707
  %v4695 = vpop.f32.mrb[0].mxu0
  %v4696 = vadd.f32 %v4523, %v4695
  %v4697 = vpop.f32.mrb[0].mxu0
  %v4698 = vadd.f32 %v4525, %v4697
  %v4699 = vpop.f32.mrb[0].mxu0
  %v4700 = vadd.f32 %v4527, %v4699
  %v4701 = vpop.f32.mrb[0].mxu0
  %v4702 = vadd.f32 %v4529, %v4701
  %4703 = vmatprep.mubr.bf16.mxu0 %v2714
  %4704 = vmatmul.mubr.bf16.gmra.mrb[0].mxu0 %v2713
  %v4705 = vpop.f32.mrb[0].mxu0
  %v4706 = vadd.f32 %v4533, %v4705
  %v4707 = vpop.f32.mrb[0].mxu0
  %v4708 = vadd.f32 %v4535, %v4707
  %v4709 = vpop.f32.mrb[0].mxu0
  %v4710 = vadd.f32 %v4537, %v4709
  %v4711 = vpop.f32.mrb[0].mxu0
  %v4712 = vadd.f32 %v4539, %v4711
  %4713 = vmatprep.mubr.bf16.mxu0 %v2720
  %4714 = vmatmul.mubr.bf16.gmra.mrb[0].mxu0 %v2719
  %v4715 = vpop.f32.mrb[0].mxu0
  %v4716 = vadd.f32 %v4543, %v4715
  %v4717 = vpop.f32.mrb[0].mxu0
  %v4718 = vadd.f32 %v4545, %v4717
  %v4719 = vpop.f32.mrb[0].mxu0
  %v4720 = vadd.f32 %v4547, %v4719
  %v4721 = vpop.f32.mrb[0].mxu0
  %v4722 = vadd.f32 %v4549, %v4721
  %4723 = vmatprep.mubr.bf16.mxu0 %v2726
  %4724 = vmatmul.mubr.bf16.gmra.mrb[0].mxu0 %v2725
  %v4725 = vpop.f32.mrb[0].mxu0
  %v4726 = vadd.f32 %v4553, %v4725
  %v4727 = vpop.f32.mrb[0].mxu0
  %v4728 = vadd.f32 %v4555, %v4727
  %v4729 = vpop.f32.mrb[0].mxu0
  %v4730 = vadd.f32 %v4557, %v4729
  %v4731 = vpop.f32.mrb[0].mxu0
  %v4732 = vadd.f32 %v4559, %v4731
  %4733 = vmatprep.mubr.bf16.mxu0 %v2732
  %4734 = vmatmul.mubr.bf16.gmra.mrb[0].mxu0 %v2731
  %v4735 = vpop.f32.mrb[0].mxu0
  %v4736 = vadd.f32 %v4563, %v4735
  %v4737 = vpop.f32.mrb[0].mxu0
  %v4738 = vadd.f32 %v4565, %v4737
  %v4739 = vpop.f32.mrb[0].mxu0
  %v4740 = vadd.f32 %v4567, %v4739
  %v4741 = vpop.f32.mrb[0].mxu0
  %v4742 = vadd.f32 %v4569, %v4741
  %4743 = vmatprep.mubr.bf16.mxu0 %v2738
  %4744 = vmatmul.mubr.bf16.gmra.mrb[0].mxu0 %v2737
  %v4745 = vpop.f32.mrb[0].mxu0
  %v4746 = vadd.f32 %v4573, %v4745
  %v4747 = vpop.f32.mrb[0].mxu0
  %v4748 = vadd.f32 %v4575, %v4747
  %v4749 = vpop.f32.mrb[0].mxu0
  %v4750 = vadd.f32 %v4577, %v4749
  %v4751 = vpop.f32.mrb[0].mxu0
  %v4752 = vadd.f32 %v4579, %v4751
  %4753 = vmatprep.mubr.bf16.mxu0 %v2744
  %4754 = vmatmul.mubr.bf16.gmra.mrb[0].mxu0 %v2743
  %v4755 = vpop.f32.mrb[0].mxu0
  %v4756 = vadd.f32 %v4583, %v4755
  %v4757 = vpop.f32.mrb[0].mxu0
  %v4758 = vadd.f32 %v4585, %v4757
  %v4759 = vpop.f32.mrb[0].mxu0
  %v4760 = vadd.f32 %v4587, %v4759
  %v4761 = vpop.f32.mrb[0].mxu0
  %v4762 = vadd.f32 %v4589, %v4761
  %4763 = vdwg.mxu0
  %4764 = vmatprep.subr.bf16.mxu0 %v3646
  %4765 = vmatpush1.bf16.msra.mxu0 %v3645
  %4766 = vmatprep.subr.bf16.mxu0 %v3650
  %4767 = vmatpush1.bf16.msra.mxu0 %v3649
  %4768 = vmatprep.subr.bf16.mxu0 %v3654
  %4769 = vmatpush1.bf16.msra.mxu0 %v3653
  %4770 = vmatprep.subr.bf16.mxu0 %v3658
  %4771 = vmatpush1.bf16.msra.mxu0 %v3657
  %4772 = vmatprep.subr.bf16.mxu0 %v3662
  %4773 = vmatpush1.bf16.msra.mxu0 %v3661
  %4774 = vmatprep.subr.bf16.mxu0 %v3666
  %4775 = vmatpush1.bf16.msra.mxu0 %v3665
  %4776 = vmatprep.subr.bf16.mxu0 %v3670
  %4777 = vmatpush1.bf16.msra.mxu0 %v3669
  %4778 = vmatprep.subr.bf16.mxu0 %v3674
  %4779 = vmatpush1.bf16.msra.mxu0 %v3673
  %4780 = vmatprep.subr.bf16.mxu0 %v3678
  %4781 = vmatpush1.bf16.msra.mxu0 %v3677
  %4782 = vmatprep.subr.bf16.mxu0 %v3682
  %4783 = vmatpush1.bf16.msra.mxu0 %v3681
  %4784 = vmatprep.subr.bf16.mxu0 %v3686
  %4785 = vmatpush1.bf16.msra.mxu0 %v3685
  %4786 = vmatprep.subr.bf16.mxu0 %v3690
  %4787 = vmatpush1.bf16.msra.mxu0 %v3689
  %4788 = vmatprep.subr.bf16.mxu0 %v3694
  %4789 = vmatpush1.bf16.msra.mxu0 %v3693
  %4790 = vmatprep.subr.bf16.mxu0 %v3698
  %4791 = vmatpush1.bf16.msra.mxu0 %v3697
  %4792 = vmatprep.subr.bf16.mxu0 %v3702
  %4793 = vmatpush1.bf16.msra.mxu0 %v3701
  %4794 = vmatprep.subr.bf16.mxu0 %v3706
  %4795 = vmatpush1.bf16.msra.mxu0 %v3705
  %4796 = vmatprep.mubr.bf16.mxu0 %v2668
  %4797 = vmatmul.mubr.bf16.gmra.mrb[0].mxu0 %v2667
  %v4798 = vpop.f32.mrb[0].mxu0
  %v4799 = vadd.f32 %v4626, %v4798
  %v4800 = vpop.f32.mrb[0].mxu0
  %v4801 = vadd.f32 %v4628, %v4800
  %v4802 = vpop.f32.mrb[0].mxu0
  %v4803 = vadd.f32 %v4630, %v4802
  %v4804 = vpop.f32.mrb[0].mxu0
  %v4805 = vadd.f32 %v4632, %v4804
  %4806 = vmatprep.mubr.bf16.mxu0 %v2674
  %4807 = vmatmul.mubr.bf16.gmra.mrb[0].mxu0 %v2673
  %v4808 = vpop.f32.mrb[0].mxu0
  %v4809 = vadd.f32 %v4636, %v4808
  %v4810 = vpop.f32.mrb[0].mxu0
  %v4811 = vadd.f32 %v4638, %v4810
  %v4812 = vpop.f32.mrb[0].mxu0
  %v4813 = vadd.f32 %v4640, %v4812
  %v4814 = vpop.f32.mrb[0].mxu0
  %v4815 = vadd.f32 %v4642, %v4814
  %4816 = vmatprep.mubr.bf16.mxu0 %v2680
  %4817 = vmatmul.mubr.bf16.gmra.mrb[0].mxu0 %v2679
  %v4818 = vpop.f32.mrb[0].mxu0
  %v4819 = vadd.f32 %v4646, %v4818
  %v4820 = vpop.f32.mrb[0].mxu0
  %v4821 = vadd.f32 %v4648, %v4820
  %v4822 = vpop.f32.mrb[0].mxu0
  %v4823 = vadd.f32 %v4650, %v4822
  %v4824 = vpop.f32.mrb[0].mxu0
  %v4825 = vadd.f32 %v4652, %v4824
  %4826 = vmatprep.mubr.bf16.mxu0 %v2686
  %4827 = vmatmul.mubr.bf16.gmra.mrb[0].mxu0 %v2685
  %v4828 = vpop.f32.mrb[0].mxu0
  %v4829 = vadd.f32 %v4656, %v4828
  %v4830 = vpop.f32.mrb[0].mxu0
  %v4831 = vadd.f32 %v4658, %v4830
  %v4832 = vpop.f32.mrb[0].mxu0
  %v4833 = vadd.f32 %v4660, %v4832
  %v4834 = vpop.f32.mrb[0].mxu0
  %v4835 = vadd.f32 %v4662, %v4834
  %4836 = vmatprep.mubr.bf16.mxu0 %v2692
  %4837 = vmatmul.mubr.bf16.gmra.mrb[0].mxu0 %v2691
  %v4838 = vpop.f32.mrb[0].mxu0
  %v4839 = vadd.f32 %v4666, %v4838
  %v4840 = vpop.f32.mrb[0].mxu0
  %v4841 = vadd.f32 %v4668, %v4840
  %v4842 = vpop.f32.mrb[0].mxu0
  %v4843 = vadd.f32 %v4670, %v4842
  %v4844 = vpop.f32.mrb[0].mxu0
  %v4845 = vadd.f32 %v4672, %v4844
  %4846 = vmatprep.mubr.bf16.mxu0 %v2698
  %4847 = vmatmul.mubr.bf16.gmra.mrb[0].mxu0 %v2697
  %v4848 = vpop.f32.mrb[0].mxu0
  %v4849 = vadd.f32 %v4676, %v4848
  %v4850 = vpop.f32.mrb[0].mxu0
  %v4851 = vadd.f32 %v4678, %v4850
  %v4852 = vpop.f32.mrb[0].mxu0
  %v4853 = vadd.f32 %v4680, %v4852
  %v4854 = vpop.f32.mrb[0].mxu0
  %v4855 = vadd.f32 %v4682, %v4854
  %4856 = vmatprep.mubr.bf16.mxu0 %v2704
  %4857 = vmatmul.mubr.bf16.gmra.mrb[0].mxu0 %v2703
  %v4858 = vpop.f32.mrb[0].mxu0
  %v4859 = vadd.f32 %v4686, %v4858
  %v4860 = vpop.f32.mrb[0].mxu0
  %v4861 = vadd.f32 %v4688, %v4860
  %v4862 = vpop.f32.mrb[0].mxu0
  %v4863 = vadd.f32 %v4690, %v4862
  %v4864 = vpop.f32.mrb[0].mxu0
  %v4865 = vadd.f32 %v4692, %v4864
  %4866 = vmatprep.mubr.bf16.mxu0 %v2710
  %4867 = vmatmul.mubr.bf16.gmra.mrb[0].mxu0 %v2709
  %v4868 = vpop.f32.mrb[0].mxu0
  %v4869 = vadd.f32 %v4696, %v4868
  %v4870 = vpop.f32.mrb[0].mxu0
  %v4871 = vadd.f32 %v4698, %v4870
  %v4872 = vpop.f32.mrb[0].mxu0
  %v4873 = vadd.f32 %v4700, %v4872
  %v4874 = vpop.f32.mrb[0].mxu0
  %v4875 = vadd.f32 %v4702, %v4874
  %4876 = vmatprep.mubr.bf16.mxu0 %v2716
  %4877 = vmatmul.mubr.bf16.gmra.mrb[0].mxu0 %v2715
  %v4878 = vpop.f32.mrb[0].mxu0
  %v4879 = vadd.f32 %v4706, %v4878
  %v4880 = vpop.f32.mrb[0].mxu0
  %v4881 = vadd.f32 %v4708, %v4880
  %v4882 = vpop.f32.mrb[0].mxu0
  %v4883 = vadd.f32 %v4710, %v4882
  %v4884 = vpop.f32.mrb[0].mxu0
  %v4885 = vadd.f32 %v4712, %v4884
  %4886 = vmatprep.mubr.bf16.mxu0 %v2722
  %4887 = vmatmul.mubr.bf16.gmra.mrb[0].mxu0 %v2721
  %v4888 = vpop.f32.mrb[0].mxu0
  %v4889 = vadd.f32 %v4716, %v4888
  %v4890 = vpop.f32.mrb[0].mxu0
  %v4891 = vadd.f32 %v4718, %v4890
  %v4892 = vpop.f32.mrb[0].mxu0
  %v4893 = vadd.f32 %v4720, %v4892
  %v4894 = vpop.f32.mrb[0].mxu0
  %v4895 = vadd.f32 %v4722, %v4894
  %4896 = vmatprep.mubr.bf16.mxu0 %v2728
  %4897 = vmatmul.mubr.bf16.gmra.mrb[0].mxu0 %v2727
  %v4898 = vpop.f32.mrb[0].mxu0
  %v4899 = vadd.f32 %v4726, %v4898
  %v4900 = vpop.f32.mrb[0].mxu0
  %v4901 = vadd.f32 %v4728, %v4900
  %v4902 = vpop.f32.mrb[0].mxu0
  %v4903 = vadd.f32 %v4730, %v4902
  %v4904 = vpop.f32.mrb[0].mxu0
  %v4905 = vadd.f32 %v4732, %v4904
  %4906 = vmatprep.mubr.bf16.mxu0 %v2734
  %4907 = vmatmul.mubr.bf16.gmra.mrb[0].mxu0 %v2733
  %v4908 = vpop.f32.mrb[0].mxu0
  %v4909 = vadd.f32 %v4736, %v4908
  %v4910 = vpop.f32.mrb[0].mxu0
  %v4911 = vadd.f32 %v4738, %v4910
  %v4912 = vpop.f32.mrb[0].mxu0
  %v4913 = vadd.f32 %v4740, %v4912
  %v4914 = vpop.f32.mrb[0].mxu0
  %v4915 = vadd.f32 %v4742, %v4914
  %4916 = vmatprep.mubr.bf16.mxu0 %v2740
  %4917 = vmatmul.mubr.bf16.gmra.mrb[0].mxu0 %v2739
  %v4918 = vpop.f32.mrb[0].mxu0
  %v4919 = vadd.f32 %v4746, %v4918
  %v4920 = vpop.f32.mrb[0].mxu0
  %v4921 = vadd.f32 %v4748, %v4920
  %v4922 = vpop.f32.mrb[0].mxu0
  %v4923 = vadd.f32 %v4750, %v4922
  %v4924 = vpop.f32.mrb[0].mxu0
  %v4925 = vadd.f32 %v4752, %v4924
  %4926 = vmatprep.mubr.bf16.mxu0 %v2746
  %4927 = vmatmul.mubr.bf16.gmra.mrb[0].mxu0 %v2745
  %v4928 = vpop.f32.mrb[0].mxu0
  %v4929 = vadd.f32 %v4756, %v4928
  %v4930 = vpop.f32.mrb[0].mxu0
  %v4931 = vadd.f32 %v4758, %v4930
  %v4932 = vpop.f32.mrb[0].mxu0
  %v4933 = vadd.f32 %v4760, %v4932
  %v4934 = vpop.f32.mrb[0].mxu0
  %v4935 = vadd.f32 %v4762, %v4934
  %4936 = vdwg.mxu0
  %v4937 = vmax.f32 %v4280, %v4799
  %v4938 = vmax.f32 %v4282, %v4801
  %v4939 = vmax.f32 %v4284, %v4803
  %v4940 = vmax.f32 %v4286, %v4805
  %v4941 = vmax.f32 %v4290, %v4809
  %v4942 = vmax.f32 %v4292, %v4811
  %v4943 = vmax.f32 %v4294, %v4813
  %v4944 = vmax.f32 %v4296, %v4815
  %v4945 = vmax.f32 %v4300, %v4819
  %v4946 = vmax.f32 %v4302, %v4821
  %v4947 = vmax.f32 %v4304, %v4823
  %v4948 = vmax.f32 %v4306, %v4825
  %v4949 = vmax.f32 %v4310, %v4829
  %v4950 = vmax.f32 %v4312, %v4831
  %v4951 = vmax.f32 %v4314, %v4833
  %v4952 = vmax.f32 %v4316, %v4835
  %v4953 = vmax.f32 %v4320, %v4839
  %v4954 = vmax.f32 %v4322, %v4841
  %v4955 = vmax.f32 %v4324, %v4843
  %v4956 = vmax.f32 %v4326, %v4845
  %v4957 = vmax.f32 %v4330, %v4849
  %v4958 = vmax.f32 %v4332, %v4851
  %v4959 = vmax.f32 %v4334, %v4853
  %v4960 = vmax.f32 %v4336, %v4855
  %v4961 = vmax.f32 %v4340, %v4859
  %v4962 = vmax.f32 %v4342, %v4861
  %v4963 = vmax.f32 %v4344, %v4863
  %v4964 = vmax.f32 %v4346, %v4865
  %v4965 = vmax.f32 %v4350, %v4869
  %v4966 = vmax.f32 %v4352, %v4871
  %v4967 = vmax.f32 %v4354, %v4873
  %v4968 = vmax.f32 %v4356, %v4875
  %v4969 = vmax.f32 %v4360, %v4879
  %v4970 = vmax.f32 %v4362, %v4881
  %v4971 = vmax.f32 %v4364, %v4883
  %v4972 = vmax.f32 %v4366, %v4885
  %v4973 = vmax.f32 %v4370, %v4889
  %v4974 = vmax.f32 %v4372, %v4891
  %v4975 = vmax.f32 %v4374, %v4893
  %v4976 = vmax.f32 %v4376, %v4895
  %v4977 = vmax.f32 %v4380, %v4899
  %v4978 = vmax.f32 %v4382, %v4901
  %v4979 = vmax.f32 %v4384, %v4903
  %v4980 = vmax.f32 %v4386, %v4905
  %v4981 = vmax.f32 %v4390, %v4909
  %v4982 = vmax.f32 %v4392, %v4911
  %v4983 = vmax.f32 %v4394, %v4913
  %v4984 = vmax.f32 %v4396, %v4915
  %v4985 = vmax.f32 %v4400, %v4919
  %v4986 = vmax.f32 %v4402, %v4921
  %v4987 = vmax.f32 %v4404, %v4923
  %v4988 = vmax.f32 %v4406, %v4925
  %v4989 = vmax.f32 %v4410, %v4929
  %v4990 = vmax.f32 %v4412, %v4931
  %v4991 = vmax.f32 %v4414, %v4933
  %v4992 = vmax.f32 %v4416, %v4935
  %v4993 = vmax.f32 %v4937, %v4941
  %v4994 = vmax.f32 %v4938, %v4942
  %v4995 = vmax.f32 %v4939, %v4943
  %v4996 = vmax.f32 %v4940, %v4944
  %v4997 = vmax.f32 %v4945, %v4949
  %v4998 = vmax.f32 %v4946, %v4950
  %v4999 = vmax.f32 %v4947, %v4951
  %v5000 = vmax.f32 %v4948, %v4952
  %v5001 = vmax.f32 %v4953, %v4957
  %v5002 = vmax.f32 %v4954, %v4958
  %v5003 = vmax.f32 %v4955, %v4959
  %v5004 = vmax.f32 %v4956, %v4960
  %v5005 = vmax.f32 %v4961, %v4965
  %v5006 = vmax.f32 %v4962, %v4966
  %v5007 = vmax.f32 %v4963, %v4967
  %v5008 = vmax.f32 %v4964, %v4968
  %v5009 = vmax.f32 %v4969, %v4973
  %v5010 = vmax.f32 %v4970, %v4974
  %v5011 = vmax.f32 %v4971, %v4975
  %v5012 = vmax.f32 %v4972, %v4976
  %v5013 = vmax.f32 %v4977, %v4981
  %v5014 = vmax.f32 %v4978, %v4982
  %v5015 = vmax.f32 %v4979, %v4983
  %v5016 = vmax.f32 %v4980, %v4984
  %v5017 = vmax.f32 %v4985, %v4989
  %v5018 = vmax.f32 %v4986, %v4990
  %v5019 = vmax.f32 %v4987, %v4991
  %v5020 = vmax.f32 %v4988, %v4992
  %v5021 = vld [vmem:[%s4] sm:$0x3]
  %v5023 = vlaneseq
  %v5024 = vshrl.u32 %v5023, 7
  %v5025 = vsub.s32 0, %v5024
  %v5026 = vrot.slane %v5021, %v5025
  %v5027 = vlaneseq
  %v5028 = vshrl.u32 %v5027, 7
  %v5029 = vsub.s32 1, %v5028
  %v5030 = vrot.slane %v5021, %v5029
  %v5033 = vadd.f32 %v4993, %v5026
  %v5034 = vadd.f32 %v4994, %v5030
  %v5035 = vadd.f32 %v4995, %v5026
  %v5036 = vadd.f32 %v4996, %v5030
  %v5037 = vadd.f32 %v4997, %v5026
  %v5038 = vadd.f32 %v4998, %v5030
  %v5039 = vadd.f32 %v4999, %v5026
  %v5040 = vadd.f32 %v5000, %v5030
  %v5041 = vadd.f32 %v5001, %v5026
  %v5042 = vadd.f32 %v5002, %v5030
  %v5043 = vadd.f32 %v5003, %v5026
  %v5044 = vadd.f32 %v5004, %v5030
  %v5045 = vadd.f32 %v5005, %v5026
  %v5046 = vadd.f32 %v5006, %v5030
  %v5047 = vadd.f32 %v5007, %v5026
  %v5048 = vadd.f32 %v5008, %v5030
  %v5049 = vadd.f32 %v5009, %v5026
  %v5050 = vadd.f32 %v5010, %v5030
  %v5051 = vadd.f32 %v5011, %v5026
  %v5052 = vadd.f32 %v5012, %v5030
  %v5053 = vadd.f32 %v5013, %v5026
  %v5054 = vadd.f32 %v5014, %v5030
  %v5055 = vadd.f32 %v5015, %v5026
  %v5056 = vadd.f32 %v5016, %v5030
  %v5057 = vadd.f32 %v5017, %v5026
  %v5058 = vadd.f32 %v5018, %v5030
  %v5059 = vadd.f32 %v5019, %v5026
  %v5060 = vadd.f32 %v5020, %v5030
  %v5061 = vmax.f32 %v5033, 0.0
  %v5062 = vmax.f32 %v5034, 0.0
  %v5063 = vmax.f32 %v5035, 0.0
  %v5064 = vmax.f32 %v5036, 0.0
  %v5065 = vmax.f32 %v5037, 0.0
  %v5066 = vmax.f32 %v5038, 0.0
  %v5067 = vmax.f32 %v5039, 0.0
  %v5068 = vmax.f32 %v5040, 0.0
  %v5069 = vmax.f32 %v5041, 0.0
  %v5070 = vmax.f32 %v5042, 0.0
  %v5071 = vmax.f32 %v5043, 0.0
  %v5072 = vmax.f32 %v5044, 0.0
  %v5073 = vmax.f32 %v5045, 0.0
  %v5074 = vmax.f32 %v5046, 0.0
  %v5075 = vmax.f32 %v5047, 0.0
  %v5076 = vmax.f32 %v5048, 0.0
  %v5077 = vmax.f32 %v5049, 0.0
  %v5078 = vmax.f32 %v5050, 0.0
  %v5079 = vmax.f32 %v5051, 0.0
  %v5080 = vmax.f32 %v5052, 0.0
  %v5081 = vmax.f32 %v5053, 0.0
  %v5082 = vmax.f32 %v5054, 0.0
  %v5083 = vmax.f32 %v5055, 0.0
  %v5084 = vmax.f32 %v5056, 0.0
  %v5085 = vmax.f32 %v5057, 0.0
  %v5086 = vmax.f32 %v5058, 0.0
  %v5087 = vmax.f32 %v5059, 0.0
  %v5088 = vmax.f32 %v5060, 0.0
  %v5089 = vpack.c.bf16 %v5063, %v5061
  %v5090 = vpack.c.bf16 %v5064, %v5062
  %v5091 = vpack.c.bf16 %v5067, %v5065
  %v5092 = vpack.c.bf16 %v5068, %v5066
  %v5093 = vpack.c.bf16 %v5071, %v5069
  %v5094 = vpack.c.bf16 %v5072, %v5070
  %v5095 = vpack.c.bf16 %v5075, %v5073
  %v5096 = vpack.c.bf16 %v5076, %v5074
  %v5097 = vpack.c.bf16 %v5079, %v5077
  %v5098 = vpack.c.bf16 %v5080, %v5078
  %v5099 = vpack.c.bf16 %v5083, %v5081
  %v5100 = vpack.c.bf16 %v5084, %v5082
  %v5101 = vpack.c.bf16 %v5087, %v5085
  %v5102 = vpack.c.bf16 %v5088, %v5086
  %5103 = vst [vmem:[#allocation4 + $0x10] sm:$0xff] %v5089
  %5104 = vst [vmem:[#allocation4 + $0x18] sm:$0xff] %v5090
  %5105 = vst [vmem:[#allocation4 + $0x40] sm:$0xff] %v5091
  %5106 = vst [vmem:[#allocation4 + $0x48] sm:$0xff] %v5092
  %5107 = vst [vmem:[#allocation4 + $0x70] sm:$0xff] %v5093
  %5108 = vst [vmem:[#allocation4 + $0x78] sm:$0xff] %v5094
  %5109 = vst [vmem:[#allocation4 + $0xa0] sm:$0xff] %v5095
  %5110 = vst [vmem:[#allocation4 + $0xa8] sm:$0xff] %v5096
  %5111 = vst [vmem:[#allocation4 + $0xd0] sm:$0xff] %v5097
  %5112 = vst [vmem:[#allocation4 + $0xd8] sm:$0xff] %v5098
  %5113 = vst [vmem:[#allocation4 + $0x100] sm:$0xff] %v5099
  %5114 = vst [vmem:[#allocation4 + $0x108] sm:$0xff] %v5100
  %5115 = vst [vmem:[#allocation4 + $0x130] sm:$0xff] %v5101
  %5116 = vst [vmem:[#allocation4 + $0x138] sm:$0xff] %v5102
  %5117 = vst [vmem:[#allocation4] sm:$0xff] 0
  %5118 = vst [vmem:[#allocation4 + $0x8] sm:$0xff] 0
  %5119 = vst [vmem:[#allocation4 + $0x30] sm:$0xff] %v5089
  %5120 = vst [vmem:[#allocation4 + $0x38] sm:$0xff] %v5090
  %5121 = vst [vmem:[#allocation4 + $0x60] sm:$0xff] %v5091
  %5122 = vst [vmem:[#allocation4 + $0x68] sm:$0xff] %v5092
  %5123 = vst [vmem:[#allocation4 + $0x90] sm:$0xff] %v5093
  %5124 = vst [vmem:[#allocation4 + $0x98] sm:$0xff] %v5094
  %5125 = vst [vmem:[#allocation4 + $0xc0] sm:$0xff] %v5095
  %5126 = vst [vmem:[#allocation4 + $0xc8] sm:$0xff] %v5096
  %5127 = vst [vmem:[#allocation4 + $0xf0] sm:$0xff] %v5097
  %5128 = vst [vmem:[#allocation4 + $0xf8] sm:$0xff] %v5098
  %5129 = vst [vmem:[#allocation4 + $0x120] sm:$0xff] %v5099
  %5130 = vst [vmem:[#allocation4 + $0x128] sm:$0xff] %v5100
  %5131 = vst [vmem:[#allocation4 + $0x20] sm:$0xff] %v5091
  %5132 = vst [vmem:[#allocation4 + $0x28] sm:$0xff] %v5092
  %5133 = vst [vmem:[#allocation4 + $0x50] sm:$0xff] %v5093
  %5134 = vst [vmem:[#allocation4 + $0x58] sm:$0xff] %v5094
  %5135 = vst [vmem:[#allocation4 + $0x80] sm:$0xff] %v5095
  %5136 = vst [vmem:[#allocation4 + $0x88] sm:$0xff] %v5096
  %5137 = vst [vmem:[#allocation4 + $0xb0] sm:$0xff] %v5097
  %5138 = vst [vmem:[#allocation4 + $0xb8] sm:$0xff] %v5098
  %5139 = vst [vmem:[#allocation4 + $0xe0] sm:$0xff] %v5099
  %5140 = vst [vmem:[#allocation4 + $0xe8] sm:$0xff] %v5100
  %5141 = vst [vmem:[#allocation4 + $0x110] sm:$0xff] %v5101
  %5142 = vst [vmem:[#allocation4 + $0x118] sm:$0xff] %v5102
  %5143 = vst [vmem:[#allocation4 + $0x140] sm:$0xff] 0
  %5144 = vst [vmem:[#allocation4 + $0x148] sm:$0xff] 0
  %v5145 = vld [vmem:[#allocation4] sm:$0xff]
  %v5146 = vld [vmem:[#allocation4 + $0x8] sm:$0xff]
  %v5147 = vld [vmem:[#allocation4 + $0x10] sm:$0xff]
  %v5148 = vld [vmem:[#allocation4 + $0x18] sm:$0xff]
  %v5149 = vld [vmem:[#allocation4 + $0x20] sm:$0xff]
  %v5150 = vld [vmem:[#allocation4 + $0x28] sm:$0xff]
  %v5151 = vld [vmem:[#allocation4 + $0x30] sm:$0xff]
  %v5152 = vld [vmem:[#allocation4 + $0x38] sm:$0xff]
  %v5153 = vld [vmem:[#allocation4 + $0x40] sm:$0xff]
  %v5154 = vld [vmem:[#allocation4 + $0x48] sm:$0xff]
  %v5155 = vld [vmem:[#allocation4 + $0x50] sm:$0xff]
  %v5156 = vld [vmem:[#allocation4 + $0x58] sm:$0xff]
  %v5157 = vld [vmem:[#allocation4 + $0x60] sm:$0xff]
  %v5158 = vld [vmem:[#allocation4 + $0x68] sm:$0xff]
  %v5159 = vld [vmem:[#allocation4 + $0x70] sm:$0xff]
  %v5160 = vld [vmem:[#allocation4 + $0x78] sm:$0xff]
  %v5161 = vld [vmem:[#allocation4 + $0x80] sm:$0xff]
  %v5162 = vld [vmem:[#allocation4 + $0x88] sm:$0xff]
  %v5163 = vld [vmem:[#allocation4 + $0x90] sm:$0xff]
  %v5164 = vld [vmem:[#allocation4 + $0x98] sm:$0xff]
  %v5165 = vld [vmem:[#allocation4 + $0xa0] sm:$0xff]
  %v5166 = vld [vmem:[#allocation4 + $0xa8] sm:$0xff]
  %v5167 = vld [vmem:[#allocation4 + $0xb0] sm:$0xff]
  %v5168 = vld [vmem:[#allocation4 + $0xb8] sm:$0xff]
  %v5169 = vld [vmem:[#allocation4 + $0xc0] sm:$0xff]
  %v5170 = vld [vmem:[#allocation4 + $0xc8] sm:$0xff]
  %v5171 = vld [vmem:[#allocation4 + $0xd0] sm:$0xff]
  %v5172 = vld [vmem:[#allocation4 + $0xd8] sm:$0xff]
  %v5173 = vld [vmem:[#allocation4 + $0xe0] sm:$0xff]
  %v5174 = vld [vmem:[#allocation4 + $0xe8] sm:$0xff]
  %v5175 = vld [vmem:[#allocation4 + $0xf0] sm:$0xff]
  %v5176 = vld [vmem:[#allocation4 + $0xf8] sm:$0xff]
  %v5177 = vld [vmem:[#allocation4 + $0x100] sm:$0xff]
  %v5178 = vld [vmem:[#allocation4 + $0x108] sm:$0xff]
  %v5179 = vld [vmem:[#allocation4 + $0x110] sm:$0xff]
  %v5180 = vld [vmem:[#allocation4 + $0x118] sm:$0xff]
  %v5181 = vld [vmem:[#allocation4 + $0x120] sm:$0xff]
  %v5182 = vld [vmem:[#allocation4 + $0x128] sm:$0xff]
  %v5183 = vld [vmem:[#allocation4 + $0x130] sm:$0xff]
  %v5184 = vld [vmem:[#allocation4 + $0x138] sm:$0xff]
  %v5185 = vld [vmem:[#allocation4 + $0x140] sm:$0xff]
  %v5186 = vld [vmem:[#allocation4 + $0x148] sm:$0xff]
  %v5187 = vld [vmem:[%s5] sm:$0xff]
  %v5188 = vld [vmem:[%s5 + $0x8] sm:$0xff]
  %v5189 = vld [vmem:[%s5 + $0x10] sm:$0xff]
  %v5190 = vld [vmem:[%s5 + $0x18] sm:$0xff]
  %v5191 = vld [vmem:[%s5 + $0x20] sm:$0xff]
  %v5192 = vld [vmem:[%s5 + $0x28] sm:$0xff]
  %v5193 = vld [vmem:[%s5 + $0x30] sm:$0xff]
  %v5194 = vld [vmem:[%s5 + $0x38] sm:$0xff]
  %v5195 = vld [vmem:[%s5 + $0x40] sm:$0xff]
  %v5196 = vld [vmem:[%s5 + $0x48] sm:$0xff]
  %v5197 = vld [vmem:[%s5 + $0x50] sm:$0xff]
  %v5198 = vld [vmem:[%s5 + $0x58] sm:$0xff]
  %v5199 = vld [vmem:[%s5 + $0x60] sm:$0xff]
  %v5200 = vld [vmem:[%s5 + $0x68] sm:$0xff]
  %v5201 = vld [vmem:[%s5 + $0x70] sm:$0xff]
  %v5202 = vld [vmem:[%s5 + $0x78] sm:$0xff]
  %v5203 = vld [vmem:[%s5 + $0x80] sm:$0xff]
  %v5204 = vld [vmem:[%s5 + $0x88] sm:$0xff]
  %v5205 = vld [vmem:[%s5 + $0x90] sm:$0xff]
  %v5206 = vld [vmem:[%s5 + $0x98] sm:$0xff]
  %v5207 = vld [vmem:[%s5 + $0xa0] sm:$0xff]
  %v5208 = vld [vmem:[%s5 + $0xa8] sm:$0xff]
  %v5209 = vld [vmem:[%s5 + $0xb0] sm:$0xff]
  %v5210 = vld [vmem:[%s5 + $0xb8] sm:$0xff]
  %v5211 = vld [vmem:[%s5 + $0xc0] sm:$0xff]
  %v5212 = vld [vmem:[%s5 + $0xc8] sm:$0xff]
  %v5213 = vld [vmem:[%s5 + $0xd0] sm:$0xff]
  %v5214 = vld [vmem:[%s5 + $0xd8] sm:$0xff]
  %v5215 = vld [vmem:[%s5 + $0xe0] sm:$0xff]
  %v5216 = vld [vmem:[%s5 + $0xe8] sm:$0xff]
  %v5217 = vld [vmem:[%s5 + $0xf0] sm:$0xff]
  %v5218 = vld [vmem:[%s5 + $0xf8] sm:$0xff]
  %v5219 = vld [vmem:[%s5 + $0x100] sm:$0xff]
  %v5220 = vld [vmem:[%s5 + $0x108] sm:$0xff]
  %v5221 = vld [vmem:[%s5 + $0x110] sm:$0xff]
  %v5222 = vld [vmem:[%s5 + $0x118] sm:$0xff]
  %v5223 = vld [vmem:[%s5 + $0x120] sm:$0xff]
  %v5224 = vld [vmem:[%s5 + $0x128] sm:$0xff]
  %v5225 = vld [vmem:[%s5 + $0x130] sm:$0xff]
  %v5226 = vld [vmem:[%s5 + $0x138] sm:$0xff]
  %v5227 = vld [vmem:[%s5 + $0x140] sm:$0xff]
  %v5228 = vld [vmem:[%s5 + $0x148] sm:$0xff]
  %v5229 = vld [vmem:[%s5 + $0x150] sm:$0xff]
  %v5230 = vld [vmem:[%s5 + $0x158] sm:$0xff]
  %v5231 = vld [vmem:[%s5 + $0x160] sm:$0xff]
  %v5232 = vld [vmem:[%s5 + $0x168] sm:$0xff]
  %v5233 = vld [vmem:[%s5 + $0x170] sm:$0xff]
  %v5234 = vld [vmem:[%s5 + $0x178] sm:$0xff]
  %v5235 = vld [vmem:[%s5 + $0x180] sm:$0xff]
  %v5236 = vld [vmem:[%s5 + $0x188] sm:$0xff]
  %v5237 = vld [vmem:[%s5 + $0x190] sm:$0xff]
  %v5238 = vld [vmem:[%s5 + $0x198] sm:$0xff]
  %v5239 = vld [vmem:[%s5 + $0x1a0] sm:$0xff]
  %v5240 = vld [vmem:[%s5 + $0x1a8] sm:$0xff]
  %v5241 = vld [vmem:[%s5 + $0x1b0] sm:$0xff]
  %v5242 = vld [vmem:[%s5 + $0x1b8] sm:$0xff]
  %v5243 = vld [vmem:[%s5 + $0x1c0] sm:$0xff]
  %v5244 = vld [vmem:[%s5 + $0x1c8] sm:$0xff]
  %v5245 = vld [vmem:[%s5 + $0x1d0] sm:$0xff]
  %v5246 = vld [vmem:[%s5 + $0x1d8] sm:$0xff]
  %v5247 = vld [vmem:[%s5 + $0x1e0] sm:$0xff]
  %v5248 = vld [vmem:[%s5 + $0x1e8] sm:$0xff]
  %v5249 = vld [vmem:[%s5 + $0x1f0] sm:$0xff]
  %v5250 = vld [vmem:[%s5 + $0x1f8] sm:$0xff]
  %v5251 = vld [vmem:[%s5 + $0x200] sm:$0xff]
  %v5252 = vld [vmem:[%s5 + $0x208] sm:$0xff]
  %v5253 = vld [vmem:[%s5 + $0x210] sm:$0xff]
  %v5254 = vld [vmem:[%s5 + $0x218] sm:$0xff]
  %v5255 = vld [vmem:[%s5 + $0x220] sm:$0xff]
  %v5256 = vld [vmem:[%s5 + $0x228] sm:$0xff]
  %v5257 = vld [vmem:[%s5 + $0x230] sm:$0xff]
  %v5258 = vld [vmem:[%s5 + $0x238] sm:$0xff]
  %v5259 = vld [vmem:[%s5 + $0x240] sm:$0xff]
  %v5260 = vld [vmem:[%s5 + $0x248] sm:$0xff]
  %v5261 = vld [vmem:[%s5 + $0x250] sm:$0xff]
  %v5262 = vld [vmem:[%s5 + $0x258] sm:$0xff]
  %v5263 = vld [vmem:[%s5 + $0x260] sm:$0xff]
  %v5264 = vld [vmem:[%s5 + $0x268] sm:$0xff]
  %v5265 = vld [vmem:[%s5 + $0x270] sm:$0xff]
  %v5266 = vld [vmem:[%s5 + $0x278] sm:$0xff]
  %v5267 = vld [vmem:[%s5 + $0x280] sm:$0xff]
  %v5268 = vld [vmem:[%s5 + $0x288] sm:$0xff]
  %v5269 = vld [vmem:[%s5 + $0x290] sm:$0xff]
  %v5270 = vld [vmem:[%s5 + $0x298] sm:$0xff]
  %v5271 = vld [vmem:[%s5 + $0x2a0] sm:$0xff]
  %v5272 = vld [vmem:[%s5 + $0x2a8] sm:$0xff]
  %v5273 = vld [vmem:[%s5 + $0x2b0] sm:$0xff]
  %v5274 = vld [vmem:[%s5 + $0x2b8] sm:$0xff]
  %v5275 = vld [vmem:[%s5 + $0x2c0] sm:$0xff]
  %v5276 = vld [vmem:[%s5 + $0x2c8] sm:$0xff]
  %v5277 = vld [vmem:[%s5 + $0x2d0] sm:$0xff]
  %v5278 = vld [vmem:[%s5 + $0x2d8] sm:$0xff]
  %v5279 = vld [vmem:[%s5 + $0x2e0] sm:$0xff]
  %v5280 = vld [vmem:[%s5 + $0x2e8] sm:$0xff]
  %v5281 = vld [vmem:[%s5 + $0x2f0] sm:$0xff]
  %v5282 = vld [vmem:[%s5 + $0x2f8] sm:$0xff]
  %v5283 = vld [vmem:[%s5 + $0x300] sm:$0xff]
  %v5284 = vld [vmem:[%s5 + $0x308] sm:$0xff]
  %v5285 = vld [vmem:[%s5 + $0x310] sm:$0xff]
  %v5286 = vld [vmem:[%s5 + $0x318] sm:$0xff]
  %v5287 = vld [vmem:[%s5 + $0x320] sm:$0xff]
  %v5288 = vld [vmem:[%s5 + $0x328] sm:$0xff]
  %v5289 = vld [vmem:[%s5 + $0x330] sm:$0xff]
  %v5290 = vld [vmem:[%s5 + $0x338] sm:$0xff]
  %v5291 = vld [vmem:[%s5 + $0x340] sm:$0xff]
  %v5292 = vld [vmem:[%s5 + $0x348] sm:$0xff]
  %v5293 = vld [vmem:[%s5 + $0x350] sm:$0xff]
  %v5294 = vld [vmem:[%s5 + $0x358] sm:$0xff]
  %v5295 = vld [vmem:[%s5 + $0x360] sm:$0xff]
  %v5296 = vld [vmem:[%s5 + $0x368] sm:$0xff]
  %v5297 = vld [vmem:[%s5 + $0x370] sm:$0xff]
  %v5298 = vld [vmem:[%s5 + $0x378] sm:$0xff]
  %v5299 = vld [vmem:[%s5 + $0x380] sm:$0xff]
  %v5300 = vld [vmem:[%s5 + $0x388] sm:$0xff]
  %v5301 = vld [vmem:[%s5 + $0x390] sm:$0xff]
  %v5302 = vld [vmem:[%s5 + $0x398] sm:$0xff]
  %v5303 = vld [vmem:[%s5 + $0x3a0] sm:$0xff]
  %v5304 = vld [vmem:[%s5 + $0x3a8] sm:$0xff]
  %v5305 = vld [vmem:[%s5 + $0x3b0] sm:$0xff]
  %v5306 = vld [vmem:[%s5 + $0x3b8] sm:$0xff]
  %v5307 = vld [vmem:[%s5 + $0x3c0] sm:$0xff]
  %v5308 = vld [vmem:[%s5 + $0x3c8] sm:$0xff]
  %v5309 = vld [vmem:[%s5 + $0x3d0] sm:$0xff]
  %v5310 = vld [vmem:[%s5 + $0x3d8] sm:$0xff]
  %v5311 = vld [vmem:[%s5 + $0x3e0] sm:$0xff]
  %v5312 = vld [vmem:[%s5 + $0x3e8] sm:$0xff]
  %v5313 = vld [vmem:[%s5 + $0x3f0] sm:$0xff]
  %v5314 = vld [vmem:[%s5 + $0x3f8] sm:$0xff]
  %v5315 = vld [vmem:[%s5 + $0x400] sm:$0xff]
  %v5316 = vld [vmem:[%s5 + $0x408] sm:$0xff]
  %v5317 = vld [vmem:[%s5 + $0x410] sm:$0xff]
  %v5318 = vld [vmem:[%s5 + $0x418] sm:$0xff]
  %v5319 = vld [vmem:[%s5 + $0x420] sm:$0xff]
  %v5320 = vld [vmem:[%s5 + $0x428] sm:$0xff]
  %v5321 = vld [vmem:[%s5 + $0x430] sm:$0xff]
  %v5322 = vld [vmem:[%s5 + $0x438] sm:$0xff]
  %v5323 = vld [vmem:[%s5 + $0x440] sm:$0xff]
  %v5324 = vld [vmem:[%s5 + $0x448] sm:$0xff]
  %v5325 = vld [vmem:[%s5 + $0x450] sm:$0xff]
  %v5326 = vld [vmem:[%s5 + $0x458] sm:$0xff]
  %v5327 = vld [vmem:[%s5 + $0x460] sm:$0xff]
  %v5328 = vld [vmem:[%s5 + $0x468] sm:$0xff]
  %v5329 = vld [vmem:[%s5 + $0x470] sm:$0xff]
  %v5330 = vld [vmem:[%s5 + $0x478] sm:$0xff]
  %v5331 = vld [vmem:[%s5 + $0x480] sm:$0xff]
  %v5332 = vld [vmem:[%s5 + $0x488] sm:$0xff]
  %v5333 = vld [vmem:[%s5 + $0x490] sm:$0xff]
  %v5334 = vld [vmem:[%s5 + $0x498] sm:$0xff]
  %v5335 = vld [vmem:[%s5 + $0x4a0] sm:$0xff]
  %v5336 = vld [vmem:[%s5 + $0x4a8] sm:$0xff]
  %v5337 = vld [vmem:[%s5 + $0x4b0] sm:$0xff]
  %v5338 = vld [vmem:[%s5 + $0x4b8] sm:$0xff]
  %v5339 = vld [vmem:[%s5 + $0x4c0] sm:$0xff]
  %v5340 = vld [vmem:[%s5 + $0x4c8] sm:$0xff]
  %v5341 = vld [vmem:[%s5 + $0x4d0] sm:$0xff]
  %v5342 = vld [vmem:[%s5 + $0x4d8] sm:$0xff]
  %v5343 = vld [vmem:[%s5 + $0x4e0] sm:$0xff]
  %v5344 = vld [vmem:[%s5 + $0x4e8] sm:$0xff]
  %v5345 = vld [vmem:[%s5 + $0x4f0] sm:$0xff]
  %v5346 = vld [vmem:[%s5 + $0x4f8] sm:$0xff]
  %v5347 = vld [vmem:[%s5 + $0x500] sm:$0xff]
  %v5348 = vld [vmem:[%s5 + $0x508] sm:$0xff]
  %v5349 = vld [vmem:[%s5 + $0x510] sm:$0xff]
  %v5350 = vld [vmem:[%s5 + $0x518] sm:$0xff]
  %v5351 = vld [vmem:[%s5 + $0x520] sm:$0xff]
  %v5352 = vld [vmem:[%s5 + $0x528] sm:$0xff]
  %v5353 = vld [vmem:[%s5 + $0x530] sm:$0xff]
  %v5354 = vld [vmem:[%s5 + $0x538] sm:$0xff]
  %v5355 = vld [vmem:[%s5 + $0x540] sm:$0xff]
  %v5356 = vld [vmem:[%s5 + $0x548] sm:$0xff]
  %v5357 = vld [vmem:[%s5 + $0x550] sm:$0xff]
  %v5358 = vld [vmem:[%s5 + $0x558] sm:$0xff]
  %v5359 = vld [vmem:[%s5 + $0x560] sm:$0xff]
  %v5360 = vld [vmem:[%s5 + $0x568] sm:$0xff]
  %v5361 = vld [vmem:[%s5 + $0x570] sm:$0xff]
  %v5362 = vld [vmem:[%s5 + $0x578] sm:$0xff]
  %v5363 = vld [vmem:[%s5 + $0x580] sm:$0xff]
  %v5364 = vld [vmem:[%s5 + $0x588] sm:$0xff]
  %v5365 = vld [vmem:[%s5 + $0x590] sm:$0xff]
  %v5366 = vld [vmem:[%s5 + $0x598] sm:$0xff]
  %v5367 = vld [vmem:[%s5 + $0x5a0] sm:$0xff]
  %v5368 = vld [vmem:[%s5 + $0x5a8] sm:$0xff]
  %v5369 = vld [vmem:[%s5 + $0x5b0] sm:$0xff]
  %v5370 = vld [vmem:[%s5 + $0x5b8] sm:$0xff]
  %v5371 = vld [vmem:[%s5 + $0x5c0] sm:$0xff]
  %v5372 = vld [vmem:[%s5 + $0x5c8] sm:$0xff]
  %v5373 = vld [vmem:[%s5 + $0x5d0] sm:$0xff]
  %v5374 = vld [vmem:[%s5 + $0x5d8] sm:$0xff]
  %v5375 = vld [vmem:[%s5 + $0x5e0] sm:$0xff]
  %v5376 = vld [vmem:[%s5 + $0x5e8] sm:$0xff]
  %v5377 = vld [vmem:[%s5 + $0x5f0] sm:$0xff]
  %v5378 = vld [vmem:[%s5 + $0x5f8] sm:$0xff]
  %v5571 = vunpack.c.l.b16 %v5187
  %v5572 = vunpack.c.h.b16 %v5187
  %v5573 = vunpack.c.l.b16 %v5188
  %v5574 = vunpack.c.h.b16 %v5188
  %v5575 = vunpack.c.l.b16 %v5189
  %v5576 = vunpack.c.h.b16 %v5189
  %v5577 = vunpack.c.l.b16 %v5190
  %v5578 = vunpack.c.h.b16 %v5190
  %v5579 = vunpack.c.l.b16 %v5191
  %v5580 = vunpack.c.h.b16 %v5191
  %v5581 = vunpack.c.l.b16 %v5192
  %v5582 = vunpack.c.h.b16 %v5192
  %v5583 = vunpack.c.l.b16 %v5193
  %v5584 = vunpack.c.h.b16 %v5193
  %v5585 = vunpack.c.l.b16 %v5194
  %v5586 = vunpack.c.h.b16 %v5194
  %v5587 = vunpack.c.l.b16 %v5195
  %v5588 = vunpack.c.h.b16 %v5195
  %v5589 = vunpack.c.l.b16 %v5196
  %v5590 = vunpack.c.h.b16 %v5196
  %v5591 = vunpack.c.l.b16 %v5197
  %v5592 = vunpack.c.h.b16 %v5197
  %v5593 = vunpack.c.l.b16 %v5198
  %v5594 = vunpack.c.h.b16 %v5198
  %v5595 = vunpack.c.l.b16 %v5199
  %v5596 = vunpack.c.h.b16 %v5199
  %v5597 = vunpack.c.l.b16 %v5200
  %v5598 = vunpack.c.h.b16 %v5200
  %v5599 = vunpack.c.l.b16 %v5201
  %v5600 = vunpack.c.h.b16 %v5201
  %v5601 = vunpack.c.l.b16 %v5202
  %v5602 = vunpack.c.h.b16 %v5202
  %v5603 = vunpack.c.l.b16 %v5203
  %v5604 = vunpack.c.h.b16 %v5203
  %v5605 = vunpack.c.l.b16 %v5204
  %v5606 = vunpack.c.h.b16 %v5204
  %v5607 = vunpack.c.l.b16 %v5205
  %v5608 = vunpack.c.h.b16 %v5205
  %v5609 = vunpack.c.l.b16 %v5206
  %v5610 = vunpack.c.h.b16 %v5206
  %v5611 = vunpack.c.l.b16 %v5207
  %v5612 = vunpack.c.h.b16 %v5207
  %v5613 = vunpack.c.l.b16 %v5208
  %v5614 = vunpack.c.h.b16 %v5208
  %v5615 = vunpack.c.l.b16 %v5209
  %v5616 = vunpack.c.h.b16 %v5209
  %v5617 = vunpack.c.l.b16 %v5210
  %v5618 = vunpack.c.h.b16 %v5210
  %v5619 = vunpack.c.l.b16 %v5211
  %v5620 = vunpack.c.h.b16 %v5211
  %v5621 = vunpack.c.l.b16 %v5212
  %v5622 = vunpack.c.h.b16 %v5212
  %v5623 = vunpack.c.l.b16 %v5213
  %v5624 = vunpack.c.h.b16 %v5213
  %v5625 = vunpack.c.l.b16 %v5214
  %v5626 = vunpack.c.h.b16 %v5214
  %v5627 = vunpack.c.l.b16 %v5215
  %v5628 = vunpack.c.h.b16 %v5215
  %v5629 = vunpack.c.l.b16 %v5216
  %v5630 = vunpack.c.h.b16 %v5216
  %v5631 = vunpack.c.l.b16 %v5217
  %v5632 = vunpack.c.h.b16 %v5217
  %v5633 = vunpack.c.l.b16 %v5218
  %v5634 = vunpack.c.h.b16 %v5218
  %v5635 = vunpack.c.l.b16 %v5219
  %v5636 = vunpack.c.h.b16 %v5219
  %v5637 = vunpack.c.l.b16 %v5220
  %v5638 = vunpack.c.h.b16 %v5220
  %v5639 = vunpack.c.l.b16 %v5221
  %v5640 = vunpack.c.h.b16 %v5221
  %v5641 = vunpack.c.l.b16 %v5222
  %v5642 = vunpack.c.h.b16 %v5222
  %v5643 = vunpack.c.l.b16 %v5223
  %v5644 = vunpack.c.h.b16 %v5223
  %v5645 = vunpack.c.l.b16 %v5224
  %v5646 = vunpack.c.h.b16 %v5224
  %v5647 = vunpack.c.l.b16 %v5225
  %v5648 = vunpack.c.h.b16 %v5225
  %v5649 = vunpack.c.l.b16 %v5226
  %v5650 = vunpack.c.h.b16 %v5226
  %v5651 = vunpack.c.l.b16 %v5227
  %v5652 = vunpack.c.h.b16 %v5227
  %v5653 = vunpack.c.l.b16 %v5228
  %v5654 = vunpack.c.h.b16 %v5228
  %v5655 = vunpack.c.l.b16 %v5229
  %v5656 = vunpack.c.h.b16 %v5229
  %v5657 = vunpack.c.l.b16 %v5230
  %v5658 = vunpack.c.h.b16 %v5230
  %v5659 = vunpack.c.l.b16 %v5231
  %v5660 = vunpack.c.h.b16 %v5231
  %v5661 = vunpack.c.l.b16 %v5232
  %v5662 = vunpack.c.h.b16 %v5232
  %v5663 = vunpack.c.l.b16 %v5233
  %v5664 = vunpack.c.h.b16 %v5233
  %v5665 = vunpack.c.l.b16 %v5234
  %v5666 = vunpack.c.h.b16 %v5234
  %v5667 = vunpack.c.l.b16 %v5235
  %v5668 = vunpack.c.h.b16 %v5235
  %v5669 = vunpack.c.l.b16 %v5236
  %v5670 = vunpack.c.h.b16 %v5236
  %v5671 = vunpack.c.l.b16 %v5237
  %v5672 = vunpack.c.h.b16 %v5237
  %v5673 = vunpack.c.l.b16 %v5238
  %v5674 = vunpack.c.h.b16 %v5238
  %v5675 = vunpack.c.l.b16 %v5239
  %v5676 = vunpack.c.h.b16 %v5239
  %v5677 = vunpack.c.l.b16 %v5240
  %v5678 = vunpack.c.h.b16 %v5240
  %v5679 = vunpack.c.l.b16 %v5241
  %v5680 = vunpack.c.h.b16 %v5241
  %v5681 = vunpack.c.l.b16 %v5242
  %v5682 = vunpack.c.h.b16 %v5242
  %v5683 = vunpack.c.l.b16 %v5243
  %v5684 = vunpack.c.h.b16 %v5243
  %v5685 = vunpack.c.l.b16 %v5244
  %v5686 = vunpack.c.h.b16 %v5244
  %v5687 = vunpack.c.l.b16 %v5245
  %v5688 = vunpack.c.h.b16 %v5245
  %v5689 = vunpack.c.l.b16 %v5246
  %v5690 = vunpack.c.h.b16 %v5246
  %v5691 = vunpack.c.l.b16 %v5247
  %v5692 = vunpack.c.h.b16 %v5247
  %v5693 = vunpack.c.l.b16 %v5248
  %v5694 = vunpack.c.h.b16 %v5248
  %v5695 = vunpack.c.l.b16 %v5249
  %v5696 = vunpack.c.h.b16 %v5249
  %v5697 = vunpack.c.l.b16 %v5250
  %v5698 = vunpack.c.h.b16 %v5250
  %v5699 = vunpack.c.l.b16 %v5251
  %v5700 = vunpack.c.h.b16 %v5251
  %v5701 = vunpack.c.l.b16 %v5252
  %v5702 = vunpack.c.h.b16 %v5252
  %v5703 = vunpack.c.l.b16 %v5253
  %v5704 = vunpack.c.h.b16 %v5253
  %v5705 = vunpack.c.l.b16 %v5254
  %v5706 = vunpack.c.h.b16 %v5254
  %v5707 = vunpack.c.l.b16 %v5255
  %v5708 = vunpack.c.h.b16 %v5255
  %v5709 = vunpack.c.l.b16 %v5256
  %v5710 = vunpack.c.h.b16 %v5256
  %v5711 = vunpack.c.l.b16 %v5257
  %v5712 = vunpack.c.h.b16 %v5257
  %v5713 = vunpack.c.l.b16 %v5258
  %v5714 = vunpack.c.h.b16 %v5258
  %v5715 = vunpack.c.l.b16 %v5259
  %v5716 = vunpack.c.h.b16 %v5259
  %v5717 = vunpack.c.l.b16 %v5260
  %v5718 = vunpack.c.h.b16 %v5260
  %v5719 = vunpack.c.l.b16 %v5261
  %v5720 = vunpack.c.h.b16 %v5261
  %v5721 = vunpack.c.l.b16 %v5262
  %v5722 = vunpack.c.h.b16 %v5262
  %v5723 = vunpack.c.l.b16 %v5263
  %v5724 = vunpack.c.h.b16 %v5263
  %v5725 = vunpack.c.l.b16 %v5264
  %v5726 = vunpack.c.h.b16 %v5264
  %v5727 = vunpack.c.l.b16 %v5265
  %v5728 = vunpack.c.h.b16 %v5265
  %v5729 = vunpack.c.l.b16 %v5266
  %v5730 = vunpack.c.h.b16 %v5266
  %v5731 = vunpack.c.l.b16 %v5267
  %v5732 = vunpack.c.h.b16 %v5267
  %v5733 = vunpack.c.l.b16 %v5268
  %v5734 = vunpack.c.h.b16 %v5268
  %v5735 = vunpack.c.l.b16 %v5269
  %v5736 = vunpack.c.h.b16 %v5269
  %v5737 = vunpack.c.l.b16 %v5270
  %v5738 = vunpack.c.h.b16 %v5270
  %v5739 = vunpack.c.l.b16 %v5271
  %v5740 = vunpack.c.h.b16 %v5271
  %v5741 = vunpack.c.l.b16 %v5272
  %v5742 = vunpack.c.h.b16 %v5272
  %v5743 = vunpack.c.l.b16 %v5273
  %v5744 = vunpack.c.h.b16 %v5273
  %v5745 = vunpack.c.l.b16 %v5274
  %v5746 = vunpack.c.h.b16 %v5274
  %v5747 = vunpack.c.l.b16 %v5275
  %v5748 = vunpack.c.h.b16 %v5275
  %v5749 = vunpack.c.l.b16 %v5276
  %v5750 = vunpack.c.h.b16 %v5276
  %v5751 = vunpack.c.l.b16 %v5277
  %v5752 = vunpack.c.h.b16 %v5277
  %v5753 = vunpack.c.l.b16 %v5278
  %v5754 = vunpack.c.h.b16 %v5278
  %v5755 = vunpack.c.l.b16 %v5279
  %v5756 = vunpack.c.h.b16 %v5279
  %v5757 = vunpack.c.l.b16 %v5280
  %v5758 = vunpack.c.h.b16 %v5280
  %v5759 = vunpack.c.l.b16 %v5281
  %v5760 = vunpack.c.h.b16 %v5281
  %v5761 = vunpack.c.l.b16 %v5282
  %v5762 = vunpack.c.h.b16 %v5282
  %v5763 = vunpack.c.l.b16 %v5283
  %v5764 = vunpack.c.h.b16 %v5283
  %v5765 = vunpack.c.l.b16 %v5284
  %v5766 = vunpack.c.h.b16 %v5284
  %v5767 = vunpack.c.l.b16 %v5285
  %v5768 = vunpack.c.h.b16 %v5285
  %v5769 = vunpack.c.l.b16 %v5286
  %v5770 = vunpack.c.h.b16 %v5286
  %v5771 = vunpack.c.l.b16 %v5287
  %v5772 = vunpack.c.h.b16 %v5287
  %v5773 = vunpack.c.l.b16 %v5288
  %v5774 = vunpack.c.h.b16 %v5288
  %v5775 = vunpack.c.l.b16 %v5289
  %v5776 = vunpack.c.h.b16 %v5289
  %v5777 = vunpack.c.l.b16 %v5290
  %v5778 = vunpack.c.h.b16 %v5290
  %v5779 = vunpack.c.l.b16 %v5291
  %v5780 = vunpack.c.h.b16 %v5291
  %v5781 = vunpack.c.l.b16 %v5292
  %v5782 = vunpack.c.h.b16 %v5292
  %v5783 = vunpack.c.l.b16 %v5293
  %v5784 = vunpack.c.h.b16 %v5293
  %v5785 = vunpack.c.l.b16 %v5294
  %v5786 = vunpack.c.h.b16 %v5294
  %v5787 = vunpack.c.l.b16 %v5295
  %v5788 = vunpack.c.h.b16 %v5295
  %v5789 = vunpack.c.l.b16 %v5296
  %v5790 = vunpack.c.h.b16 %v5296
  %v5791 = vunpack.c.l.b16 %v5297
  %v5792 = vunpack.c.h.b16 %v5297
  %v5793 = vunpack.c.l.b16 %v5298
  %v5794 = vunpack.c.h.b16 %v5298
  %v5795 = vunpack.c.l.b16 %v5299
  %v5796 = vunpack.c.h.b16 %v5299
  %v5797 = vunpack.c.l.b16 %v5300
  %v5798 = vunpack.c.h.b16 %v5300
  %v5799 = vunpack.c.l.b16 %v5301
  %v5800 = vunpack.c.h.b16 %v5301
  %v5801 = vunpack.c.l.b16 %v5302
  %v5802 = vunpack.c.h.b16 %v5302
  %v5803 = vunpack.c.l.b16 %v5303
  %v5804 = vunpack.c.h.b16 %v5303
  %v5805 = vunpack.c.l.b16 %v5304
  %v5806 = vunpack.c.h.b16 %v5304
  %v5807 = vunpack.c.l.b16 %v5305
  %v5808 = vunpack.c.h.b16 %v5305
  %v5809 = vunpack.c.l.b16 %v5306
  %v5810 = vunpack.c.h.b16 %v5306
  %v5811 = vunpack.c.l.b16 %v5307
  %v5812 = vunpack.c.h.b16 %v5307
  %v5813 = vunpack.c.l.b16 %v5308
  %v5814 = vunpack.c.h.b16 %v5308
  %v5815 = vunpack.c.l.b16 %v5309
  %v5816 = vunpack.c.h.b16 %v5309
  %v5817 = vunpack.c.l.b16 %v5310
  %v5818 = vunpack.c.h.b16 %v5310
  %v5819 = vunpack.c.l.b16 %v5311
  %v5820 = vunpack.c.h.b16 %v5311
  %v5821 = vunpack.c.l.b16 %v5312
  %v5822 = vunpack.c.h.b16 %v5312
  %v5823 = vunpack.c.l.b16 %v5313
  %v5824 = vunpack.c.h.b16 %v5313
  %v5825 = vunpack.c.l.b16 %v5314
  %v5826 = vunpack.c.h.b16 %v5314
  %v5827 = vunpack.c.l.b16 %v5315
  %v5828 = vunpack.c.h.b16 %v5315
  %v5829 = vunpack.c.l.b16 %v5316
  %v5830 = vunpack.c.h.b16 %v5316
  %v5831 = vunpack.c.l.b16 %v5317
  %v5832 = vunpack.c.h.b16 %v5317
  %v5833 = vunpack.c.l.b16 %v5318
  %v5834 = vunpack.c.h.b16 %v5318
  %v5835 = vunpack.c.l.b16 %v5319
  %v5836 = vunpack.c.h.b16 %v5319
  %v5837 = vunpack.c.l.b16 %v5320
  %v5838 = vunpack.c.h.b16 %v5320
  %v5839 = vunpack.c.l.b16 %v5321
  %v5840 = vunpack.c.h.b16 %v5321
  %v5841 = vunpack.c.l.b16 %v5322
  %v5842 = vunpack.c.h.b16 %v5322
  %v5843 = vunpack.c.l.b16 %v5323
  %v5844 = vunpack.c.h.b16 %v5323
  %v5845 = vunpack.c.l.b16 %v5324
  %v5846 = vunpack.c.h.b16 %v5324
  %v5847 = vunpack.c.l.b16 %v5325
  %v5848 = vunpack.c.h.b16 %v5325
  %v5849 = vunpack.c.l.b16 %v5326
  %v5850 = vunpack.c.h.b16 %v5326
  %v5851 = vunpack.c.l.b16 %v5327
  %v5852 = vunpack.c.h.b16 %v5327
  %v5853 = vunpack.c.l.b16 %v5328
  %v5854 = vunpack.c.h.b16 %v5328
  %v5855 = vunpack.c.l.b16 %v5329
  %v5856 = vunpack.c.h.b16 %v5329
  %v5857 = vunpack.c.l.b16 %v5330
  %v5858 = vunpack.c.h.b16 %v5330
  %v5859 = vunpack.c.l.b16 %v5331
  %v5860 = vunpack.c.h.b16 %v5331
  %v5861 = vunpack.c.l.b16 %v5332
  %v5862 = vunpack.c.h.b16 %v5332
  %v5863 = vunpack.c.l.b16 %v5333
  %v5864 = vunpack.c.h.b16 %v5333
  %v5865 = vunpack.c.l.b16 %v5334
  %v5866 = vunpack.c.h.b16 %v5334
  %v5867 = vunpack.c.l.b16 %v5335
  %v5868 = vunpack.c.h.b16 %v5335
  %v5869 = vunpack.c.l.b16 %v5336
  %v5870 = vunpack.c.h.b16 %v5336
  %v5871 = vunpack.c.l.b16 %v5337
  %v5872 = vunpack.c.h.b16 %v5337
  %v5873 = vunpack.c.l.b16 %v5338
  %v5874 = vunpack.c.h.b16 %v5338
  %v5875 = vunpack.c.l.b16 %v5339
  %v5876 = vunpack.c.h.b16 %v5339
  %v5877 = vunpack.c.l.b16 %v5340
  %v5878 = vunpack.c.h.b16 %v5340
  %v5879 = vunpack.c.l.b16 %v5341
  %v5880 = vunpack.c.h.b16 %v5341
  %v5881 = vunpack.c.l.b16 %v5342
  %v5882 = vunpack.c.h.b16 %v5342
  %v5883 = vunpack.c.l.b16 %v5343
  %v5884 = vunpack.c.h.b16 %v5343
  %v5885 = vunpack.c.l.b16 %v5344
  %v5886 = vunpack.c.h.b16 %v5344
  %v5887 = vunpack.c.l.b16 %v5345
  %v5888 = vunpack.c.h.b16 %v5345
  %v5889 = vunpack.c.l.b16 %v5346
  %v5890 = vunpack.c.h.b16 %v5346
  %v5891 = vunpack.c.l.b16 %v5347
  %v5892 = vunpack.c.h.b16 %v5347
  %v5893 = vunpack.c.l.b16 %v5348
  %v5894 = vunpack.c.h.b16 %v5348
  %v5895 = vunpack.c.l.b16 %v5349
  %v5896 = vunpack.c.h.b16 %v5349
  %v5897 = vunpack.c.l.b16 %v5350
  %v5898 = vunpack.c.h.b16 %v5350
  %v5899 = vunpack.c.l.b16 %v5351
  %v5900 = vunpack.c.h.b16 %v5351
  %v5901 = vunpack.c.l.b16 %v5352
  %v5902 = vunpack.c.h.b16 %v5352
  %v5903 = vunpack.c.l.b16 %v5353
  %v5904 = vunpack.c.h.b16 %v5353
  %v5905 = vunpack.c.l.b16 %v5354
  %v5906 = vunpack.c.h.b16 %v5354
  %v5907 = vunpack.c.l.b16 %v5355
  %v5908 = vunpack.c.h.b16 %v5355
  %v5909 = vunpack.c.l.b16 %v5356
  %v5910 = vunpack.c.h.b16 %v5356
  %v5911 = vunpack.c.l.b16 %v5357
  %v5912 = vunpack.c.h.b16 %v5357
  %v5913 = vunpack.c.l.b16 %v5358
  %v5914 = vunpack.c.h.b16 %v5358
  %v5915 = vunpack.c.l.b16 %v5359
  %v5916 = vunpack.c.h.b16 %v5359
  %v5917 = vunpack.c.l.b16 %v5360
  %v5918 = vunpack.c.h.b16 %v5360
  %v5919 = vunpack.c.l.b16 %v5361
  %v5920 = vunpack.c.h.b16 %v5361
  %v5921 = vunpack.c.l.b16 %v5362
  %v5922 = vunpack.c.h.b16 %v5362
  %v5923 = vunpack.c.l.b16 %v5363
  %v5924 = vunpack.c.h.b16 %v5363
  %v5925 = vunpack.c.l.b16 %v5364
  %v5926 = vunpack.c.h.b16 %v5364
  %v5927 = vunpack.c.l.b16 %v5365
  %v5928 = vunpack.c.h.b16 %v5365
  %v5929 = vunpack.c.l.b16 %v5366
  %v5930 = vunpack.c.h.b16 %v5366
  %v5931 = vunpack.c.l.b16 %v5367
  %v5932 = vunpack.c.h.b16 %v5367
  %v5933 = vunpack.c.l.b16 %v5368
  %v5934 = vunpack.c.h.b16 %v5368
  %v5935 = vunpack.c.l.b16 %v5369
  %v5936 = vunpack.c.h.b16 %v5369
  %v5937 = vunpack.c.l.b16 %v5370
  %v5938 = vunpack.c.h.b16 %v5370
  %v5939 = vunpack.c.l.b16 %v5371
  %v5940 = vunpack.c.h.b16 %v5371
  %v5941 = vunpack.c.l.b16 %v5372
  %v5942 = vunpack.c.h.b16 %v5372
  %v5943 = vunpack.c.l.b16 %v5373
  %v5944 = vunpack.c.h.b16 %v5373
  %v5945 = vunpack.c.l.b16 %v5374
  %v5946 = vunpack.c.h.b16 %v5374
  %v5947 = vunpack.c.l.b16 %v5375
  %v5948 = vunpack.c.h.b16 %v5375
  %v5949 = vunpack.c.l.b16 %v5376
  %v5950 = vunpack.c.h.b16 %v5376
  %v5951 = vunpack.c.l.b16 %v5377
  %v5952 = vunpack.c.h.b16 %v5377
  %v5953 = vunpack.c.l.b16 %v5378
  %v5954 = vunpack.c.h.b16 %v5378
  %v5955 = vpack.c.b16 %v5575, %v5571
  %v5956 = vpack.c.b16 %v5576, %v5572
  %v5957 = vpack.c.b16 %v5577, %v5573
  %v5958 = vpack.c.b16 %v5578, %v5574
  %v5959 = vpack.c.b16 %v5583, %v5579
  %v5960 = vpack.c.b16 %v5584, %v5580
  %v5961 = vpack.c.b16 %v5585, %v5581
  %v5962 = vpack.c.b16 %v5586, %v5582
  %v5963 = vpack.c.b16 %v5591, %v5587
  %v5964 = vpack.c.b16 %v5592, %v5588
  %v5965 = vpack.c.b16 %v5593, %v5589
  %v5966 = vpack.c.b16 %v5594, %v5590
  %v5967 = vpack.c.b16 %v5599, %v5595
  %v5968 = vpack.c.b16 %v5600, %v5596
  %v5969 = vpack.c.b16 %v5601, %v5597
  %v5970 = vpack.c.b16 %v5602, %v5598
  %v5971 = vpack.c.b16 %v5607, %v5603
  %v5972 = vpack.c.b16 %v5608, %v5604
  %v5973 = vpack.c.b16 %v5609, %v5605
  %v5974 = vpack.c.b16 %v5610, %v5606
  %v5975 = vpack.c.b16 %v5615, %v5611
  %v5976 = vpack.c.b16 %v5616, %v5612
  %v5977 = vpack.c.b16 %v5617, %v5613
  %v5978 = vpack.c.b16 %v5618, %v5614
  %v5979 = vpack.c.b16 %v5623, %v5619
  %v5980 = vpack.c.b16 %v5624, %v5620
  %v5981 = vpack.c.b16 %v5625, %v5621
  %v5982 = vpack.c.b16 %v5626, %v5622
  %v5983 = vpack.c.b16 %v5631, %v5627
  %v5984 = vpack.c.b16 %v5632, %v5628
  %v5985 = vpack.c.b16 %v5633, %v5629
  %v5986 = vpack.c.b16 %v5634, %v5630
  %v5987 = vpack.c.b16 %v5639, %v5635
  %v5988 = vpack.c.b16 %v5640, %v5636
  %v5989 = vpack.c.b16 %v5641, %v5637
  %v5990 = vpack.c.b16 %v5642, %v5638
  %v5991 = vpack.c.b16 %v5647, %v5643
  %v5992 = vpack.c.b16 %v5648, %v5644
  %v5993 = vpack.c.b16 %v5649, %v5645
  %v5994 = vpack.c.b16 %v5650, %v5646
  %v5995 = vpack.c.b16 %v5655, %v5651
  %v5996 = vpack.c.b16 %v5656, %v5652
  %v5997 = vpack.c.b16 %v5657, %v5653
  %v5998 = vpack.c.b16 %v5658, %v5654
  %v5999 = vpack.c.b16 %v5663, %v5659
  %v6000 = vpack.c.b16 %v5664, %v5660
  %v6001 = vpack.c.b16 %v5665, %v5661
  %v6002 = vpack.c.b16 %v5666, %v5662
  %v6003 = vpack.c.b16 %v5671, %v5667
  %v6004 = vpack.c.b16 %v5672, %v5668
  %v6005 = vpack.c.b16 %v5673, %v5669
  %v6006 = vpack.c.b16 %v5674, %v5670
  %v6007 = vpack.c.b16 %v5679, %v5675
  %v6008 = vpack.c.b16 %v5680, %v5676
  %v6009 = vpack.c.b16 %v5681, %v5677
  %v6010 = vpack.c.b16 %v5682, %v5678
  %v6011 = vpack.c.b16 %v5687, %v5683
  %v6012 = vpack.c.b16 %v5688, %v5684
  %v6013 = vpack.c.b16 %v5689, %v5685
  %v6014 = vpack.c.b16 %v5690, %v5686
  %v6015 = vpack.c.b16 %v5695, %v5691
  %v6016 = vpack.c.b16 %v5696, %v5692
  %v6017 = vpack.c.b16 %v5697, %v5693
  %v6018 = vpack.c.b16 %v5698, %v5694
  %v6019 = vpack.c.b16 %v5703, %v5699
  %v6020 = vpack.c.b16 %v5704, %v5700
  %v6021 = vpack.c.b16 %v5705, %v5701
  %v6022 = vpack.c.b16 %v5706, %v5702
  %v6023 = vpack.c.b16 %v5711, %v5707
  %v6024 = vpack.c.b16 %v5712, %v5708
  %v6025 = vpack.c.b16 %v5713, %v5709
  %v6026 = vpack.c.b16 %v5714, %v5710
  %v6027 = vpack.c.b16 %v5719, %v5715
  %v6028 = vpack.c.b16 %v5720, %v5716
  %v6029 = vpack.c.b16 %v5721, %v5717
  %v6030 = vpack.c.b16 %v5722, %v5718
  %v6031 = vpack.c.b16 %v5727, %v5723
  %v6032 = vpack.c.b16 %v5728, %v5724
  %v6033 = vpack.c.b16 %v5729, %v5725
  %v6034 = vpack.c.b16 %v5730, %v5726
  %v6035 = vpack.c.b16 %v5735, %v5731
  %v6036 = vpack.c.b16 %v5736, %v5732
  %v6037 = vpack.c.b16 %v5737, %v5733
  %v6038 = vpack.c.b16 %v5738, %v5734
  %v6039 = vpack.c.b16 %v5743, %v5739
  %v6040 = vpack.c.b16 %v5744, %v5740
  %v6041 = vpack.c.b16 %v5745, %v5741
  %v6042 = vpack.c.b16 %v5746, %v5742
  %v6043 = vpack.c.b16 %v5751, %v5747
  %v6044 = vpack.c.b16 %v5752, %v5748
  %v6045 = vpack.c.b16 %v5753, %v5749
  %v6046 = vpack.c.b16 %v5754, %v5750
  %v6047 = vpack.c.b16 %v5759, %v5755
  %v6048 = vpack.c.b16 %v5760, %v5756
  %v6049 = vpack.c.b16 %v5761, %v5757
  %v6050 = vpack.c.b16 %v5762, %v5758
  %v6051 = vpack.c.b16 %v5767, %v5763
  %v6052 = vpack.c.b16 %v5768, %v5764
  %v6053 = vpack.c.b16 %v5769, %v5765
  %v6054 = vpack.c.b16 %v5770, %v5766
  %v6055 = vpack.c.b16 %v5775, %v5771
  %v6056 = vpack.c.b16 %v5776, %v5772
  %v6057 = vpack.c.b16 %v5777, %v5773
  %v6058 = vpack.c.b16 %v5778, %v5774
  %v6059 = vpack.c.b16 %v5783, %v5779
  %v6060 = vpack.c.b16 %v5784, %v5780
  %v6061 = vpack.c.b16 %v5785, %v5781
  %v6062 = vpack.c.b16 %v5786, %v5782
  %v6063 = vpack.c.b16 %v5791, %v5787
  %v6064 = vpack.c.b16 %v5792, %v5788
  %v6065 = vpack.c.b16 %v5793, %v5789
  %v6066 = vpack.c.b16 %v5794, %v5790
  %v6067 = vpack.c.b16 %v5799, %v5795
  %v6068 = vpack.c.b16 %v5800, %v5796
  %v6069 = vpack.c.b16 %v5801, %v5797
  %v6070 = vpack.c.b16 %v5802, %v5798
  %v6071 = vpack.c.b16 %v5807, %v5803
  %v6072 = vpack.c.b16 %v5808, %v5804
  %v6073 = vpack.c.b16 %v5809, %v5805
  %v6074 = vpack.c.b16 %v5810, %v5806
  %v6075 = vpack.c.b16 %v5815, %v5811
  %v6076 = vpack.c.b16 %v5816, %v5812
  %v6077 = vpack.c.b16 %v5817, %v5813
  %v6078 = vpack.c.b16 %v5818, %v5814
  %v6079 = vpack.c.b16 %v5823, %v5819
  %v6080 = vpack.c.b16 %v5824, %v5820
  %v6081 = vpack.c.b16 %v5825, %v5821
  %v6082 = vpack.c.b16 %v5826, %v5822
  %v6083 = vpack.c.b16 %v5831, %v5827
  %v6084 = vpack.c.b16 %v5832, %v5828
  %v6085 = vpack.c.b16 %v5833, %v5829
  %v6086 = vpack.c.b16 %v5834, %v5830
  %v6087 = vpack.c.b16 %v5839, %v5835
  %v6088 = vpack.c.b16 %v5840, %v5836
  %v6089 = vpack.c.b16 %v5841, %v5837
  %v6090 = vpack.c.b16 %v5842, %v5838
  %v6091 = vpack.c.b16 %v5847, %v5843
  %v6092 = vpack.c.b16 %v5848, %v5844
  %v6093 = vpack.c.b16 %v5849, %v5845
  %v6094 = vpack.c.b16 %v5850, %v5846
  %v6095 = vpack.c.b16 %v5855, %v5851
  %v6096 = vpack.c.b16 %v5856, %v5852
  %v6097 = vpack.c.b16 %v5857, %v5853
  %v6098 = vpack.c.b16 %v5858, %v5854
  %v6099 = vpack.c.b16 %v5863, %v5859
  %v6100 = vpack.c.b16 %v5864, %v5860
  %v6101 = vpack.c.b16 %v5865, %v5861
  %v6102 = vpack.c.b16 %v5866, %v5862
  %v6103 = vpack.c.b16 %v5871, %v5867
  %v6104 = vpack.c.b16 %v5872, %v5868
  %v6105 = vpack.c.b16 %v5873, %v5869
  %v6106 = vpack.c.b16 %v5874, %v5870
  %v6107 = vpack.c.b16 %v5879, %v5875
  %v6108 = vpack.c.b16 %v5880, %v5876
  %v6109 = vpack.c.b16 %v5881, %v5877
  %v6110 = vpack.c.b16 %v5882, %v5878
  %v6111 = vpack.c.b16 %v5887, %v5883
  %v6112 = vpack.c.b16 %v5888, %v5884
  %v6113 = vpack.c.b16 %v5889, %v5885
  %v6114 = vpack.c.b16 %v5890, %v5886
  %v6115 = vpack.c.b16 %v5895, %v5891
  %v6116 = vpack.c.b16 %v5896, %v5892
  %v6117 = vpack.c.b16 %v5897, %v5893
  %v6118 = vpack.c.b16 %v5898, %v5894
  %v6119 = vpack.c.b16 %v5903, %v5899
  %v6120 = vpack.c.b16 %v5904, %v5900
  %v6121 = vpack.c.b16 %v5905, %v5901
  %v6122 = vpack.c.b16 %v5906, %v5902
  %v6123 = vpack.c.b16 %v5911, %v5907
  %v6124 = vpack.c.b16 %v5912, %v5908
  %v6125 = vpack.c.b16 %v5913, %v5909
  %v6126 = vpack.c.b16 %v5914, %v5910
  %v6127 = vpack.c.b16 %v5919, %v5915
  %v6128 = vpack.c.b16 %v5920, %v5916
  %v6129 = vpack.c.b16 %v5921, %v5917
  %v6130 = vpack.c.b16 %v5922, %v5918
  %v6131 = vpack.c.b16 %v5927, %v5923
  %v6132 = vpack.c.b16 %v5928, %v5924
  %v6133 = vpack.c.b16 %v5929, %v5925
  %v6134 = vpack.c.b16 %v5930, %v5926
  %v6135 = vpack.c.b16 %v5935, %v5931
  %v6136 = vpack.c.b16 %v5936, %v5932
  %v6137 = vpack.c.b16 %v5937, %v5933
  %v6138 = vpack.c.b16 %v5938, %v5934
  %v6139 = vpack.c.b16 %v5943, %v5939
  %v6140 = vpack.c.b16 %v5944, %v5940
  %v6141 = vpack.c.b16 %v5945, %v5941
  %v6142 = vpack.c.b16 %v5946, %v5942
  %v6143 = vpack.c.b16 %v5951, %v5947
  %v6144 = vpack.c.b16 %v5952, %v5948
  %v6145 = vpack.c.b16 %v5953, %v5949
  %v6146 = vpack.c.b16 %v5954, %v5950
  %6339 = vmatprep.subr.bf16.mxu0 %v5956
  %6340 = vmatpush1.bf16.msra.mxu0 %v5955
  %6341 = vmatprep.subr.bf16.mxu0 %v5960
  %6342 = vmatpush1.bf16.msra.mxu0 %v5959
  %6343 = vmatprep.subr.bf16.mxu0 %v5964
  %6344 = vmatpush1.bf16.msra.mxu0 %v5963
  %6345 = vmatprep.subr.bf16.mxu0 %v5968
  %6346 = vmatpush1.bf16.msra.mxu0 %v5967
  %6347 = vmatprep.subr.bf16.mxu0 %v5972
  %6348 = vmatpush1.bf16.msra.mxu0 %v5971
  %6349 = vmatprep.subr.bf16.mxu0 %v5976
  %6350 = vmatpush1.bf16.msra.mxu0 %v5975
  %6351 = vmatprep.subr.bf16.mxu0 %v5980
  %6352 = vmatpush1.bf16.msra.mxu0 %v5979
  %6353 = vmatprep.subr.bf16.mxu0 %v5984
  %6354 = vmatpush1.bf16.msra.mxu0 %v5983
  %6355 = vmatprep.subr.bf16.mxu0 %v5988
  %6356 = vmatpush1.bf16.msra.mxu0 %v5987
  %6357 = vmatprep.subr.bf16.mxu0 %v5992
  %6358 = vmatpush1.bf16.msra.mxu0 %v5991
  %6359 = vmatprep.subr.bf16.mxu0 %v5996
  %6360 = vmatpush1.bf16.msra.mxu0 %v5995
  %6361 = vmatprep.subr.bf16.mxu0 %v6000
  %6362 = vmatpush1.bf16.msra.mxu0 %v5999
  %6363 = vmatprep.subr.bf16.mxu0 %v6004
  %6364 = vmatpush1.bf16.msra.mxu0 %v6003
  %6365 = vmatprep.subr.bf16.mxu0 %v6008
  %6366 = vmatpush1.bf16.msra.mxu0 %v6007
  %6367 = vmatprep.subr.bf16.mxu0 %v6012
  %6368 = vmatpush1.bf16.msra.mxu0 %v6011
  %6369 = vmatprep.subr.bf16.mxu0 %v6016
  %6370 = vmatpush1.bf16.msra.mxu0 %v6015
  %6371 = vmatprep.mubr.bf16.mxu0 %v5146
  %6372 = vmatmul.mubr.bf16.gmra.mrb[0].mxu0 %v5145
  %v6373 = vpop.f32.mrb[0].mxu0
  %v6374 = vadd.f32 0.0, %v6373
  %v6375 = vpop.f32.mrb[0].mxu0
  %v6376 = vadd.f32 0.0, %v6375
  %v6377 = vpop.f32.mrb[0].mxu0
  %v6378 = vadd.f32 0.0, %v6377
  %v6379 = vpop.f32.mrb[0].mxu0
  %v6380 = vadd.f32 0.0, %v6379
  %6381 = vmatprep.mubr.bf16.mxu0 %v5152
  %6382 = vmatmul.mubr.bf16.gmra.mrb[0].mxu0 %v5151
  %v6383 = vpop.f32.mrb[0].mxu0
  %v6384 = vadd.f32 0.0, %v6383
  %v6385 = vpop.f32.mrb[0].mxu0
  %v6386 = vadd.f32 0.0, %v6385
  %v6387 = vpop.f32.mrb[0].mxu0
  %v6388 = vadd.f32 0.0, %v6387
  %v6389 = vpop.f32.mrb[0].mxu0
  %v6390 = vadd.f32 0.0, %v6389
  %6391 = vmatprep.mubr.bf16.mxu0 %v5158
  %6392 = vmatmul.mubr.bf16.gmra.mrb[0].mxu0 %v5157
  %v6393 = vpop.f32.mrb[0].mxu0
  %v6394 = vadd.f32 0.0, %v6393
  %v6395 = vpop.f32.mrb[0].mxu0
  %v6396 = vadd.f32 0.0, %v6395
  %v6397 = vpop.f32.mrb[0].mxu0
  %v6398 = vadd.f32 0.0, %v6397
  %v6399 = vpop.f32.mrb[0].mxu0
  %v6400 = vadd.f32 0.0, %v6399
  %6401 = vmatprep.mubr.bf16.mxu0 %v5164
  %6402 = vmatmul.mubr.bf16.gmra.mrb[0].mxu0 %v5163
  %v6403 = vpop.f32.mrb[0].mxu0
  %v6404 = vadd.f32 0.0, %v6403
  %v6405 = vpop.f32.mrb[0].mxu0
  %v6406 = vadd.f32 0.0, %v6405
  %v6407 = vpop.f32.mrb[0].mxu0
  %v6408 = vadd.f32 0.0, %v6407
  %v6409 = vpop.f32.mrb[0].mxu0
  %v6410 = vadd.f32 0.0, %v6409
  %6411 = vmatprep.mubr.bf16.mxu0 %v5170
  %6412 = vmatmul.mubr.bf16.gmra.mrb[0].mxu0 %v5169
  %v6413 = vpop.f32.mrb[0].mxu0
  %v6414 = vadd.f32 0.0, %v6413
  %v6415 = vpop.f32.mrb[0].mxu0
  %v6416 = vadd.f32 0.0, %v6415
  %v6417 = vpop.f32.mrb[0].mxu0
  %v6418 = vadd.f32 0.0, %v6417
  %v6419 = vpop.f32.mrb[0].mxu0
  %v6420 = vadd.f32 0.0, %v6419
  %6421 = vmatprep.mubr.bf16.mxu0 %v5176
  %6422 = vmatmul.mubr.bf16.gmra.mrb[0].mxu0 %v5175
  %v6423 = vpop.f32.mrb[0].mxu0
  %v6424 = vadd.f32 0.0, %v6423
  %v6425 = vpop.f32.mrb[0].mxu0
  %v6426 = vadd.f32 0.0, %v6425
  %v6427 = vpop.f32.mrb[0].mxu0
  %v6428 = vadd.f32 0.0, %v6427
  %v6429 = vpop.f32.mrb[0].mxu0
  %v6430 = vadd.f32 0.0, %v6429
  %6431 = vmatprep.mubr.bf16.mxu0 %v5182
  %6432 = vmatmul.mubr.bf16.gmra.mrb[0].mxu0 %v5181
  %v6433 = vpop.f32.mrb[0].mxu0
  %v6434 = vpop.f32.mrb[0].mxu0
  %v6435 = vpop.f32.mrb[0].mxu0
  %v6436 = vpop.f32.mrb[0].mxu0
  %6437 = vdwg.mxu0
  %6438 = vmatprep.subr.bf16.mxu0 %v6020
  %6439 = vmatpush1.bf16.msra.mxu0 %v6019
  %6440 = vmatprep.subr.bf16.mxu0 %v6024
  %6441 = vmatpush1.bf16.msra.mxu0 %v6023
  %6442 = vmatprep.subr.bf16.mxu0 %v6028
  %6443 = vmatpush1.bf16.msra.mxu0 %v6027
  %6444 = vmatprep.subr.bf16.mxu0 %v6032
  %6445 = vmatpush1.bf16.msra.mxu0 %v6031
  %6446 = vmatprep.subr.bf16.mxu0 %v6036
  %6447 = vmatpush1.bf16.msra.mxu0 %v6035
  %6448 = vmatprep.subr.bf16.mxu0 %v6040
  %6449 = vmatpush1.bf16.msra.mxu0 %v6039
  %6450 = vmatprep.subr.bf16.mxu0 %v6044
  %6451 = vmatpush1.bf16.msra.mxu0 %v6043
  %6452 = vmatprep.subr.bf16.mxu0 %v6048
  %6453 = vmatpush1.bf16.msra.mxu0 %v6047
  %6454 = vmatprep.subr.bf16.mxu0 %v6052
  %6455 = vmatpush1.bf16.msra.mxu0 %v6051
  %6456 = vmatprep.subr.bf16.mxu0 %v6056
  %6457 = vmatpush1.bf16.msra.mxu0 %v6055
  %6458 = vmatprep.subr.bf16.mxu0 %v6060
  %6459 = vmatpush1.bf16.msra.mxu0 %v6059
  %6460 = vmatprep.subr.bf16.mxu0 %v6064
  %6461 = vmatpush1.bf16.msra.mxu0 %v6063
  %6462 = vmatprep.subr.bf16.mxu0 %v6068
  %6463 = vmatpush1.bf16.msra.mxu0 %v6067
  %6464 = vmatprep.subr.bf16.mxu0 %v6072
  %6465 = vmatpush1.bf16.msra.mxu0 %v6071
  %6466 = vmatprep.subr.bf16.mxu0 %v6076
  %6467 = vmatpush1.bf16.msra.mxu0 %v6075
  %6468 = vmatprep.subr.bf16.mxu0 %v6080
  %6469 = vmatpush1.bf16.msra.mxu0 %v6079
  %6470 = vmatprep.mubr.bf16.mxu0 %v5148
  %6471 = vmatmul.mubr.bf16.gmra.mrb[0].mxu0 %v5147
  %v6472 = vpop.f32.mrb[0].mxu0
  %v6473 = vadd.f32 %v6374, %v6472
  %v6474 = vpop.f32.mrb[0].mxu0
  %v6475 = vadd.f32 %v6376, %v6474
  %v6476 = vpop.f32.mrb[0].mxu0
  %v6477 = vadd.f32 %v6378, %v6476
  %v6478 = vpop.f32.mrb[0].mxu0
  %v6479 = vadd.f32 %v6380, %v6478
  %6480 = vmatprep.mubr.bf16.mxu0 %v5154
  %6481 = vmatmul.mubr.bf16.gmra.mrb[0].mxu0 %v5153
  %v6482 = vpop.f32.mrb[0].mxu0
  %v6483 = vadd.f32 %v6384, %v6482
  %v6484 = vpop.f32.mrb[0].mxu0
  %v6485 = vadd.f32 %v6386, %v6484
  %v6486 = vpop.f32.mrb[0].mxu0
  %v6487 = vadd.f32 %v6388, %v6486
  %v6488 = vpop.f32.mrb[0].mxu0
  %v6489 = vadd.f32 %v6390, %v6488
  %6490 = vmatprep.mubr.bf16.mxu0 %v5160
  %6491 = vmatmul.mubr.bf16.gmra.mrb[0].mxu0 %v5159
  %v6492 = vpop.f32.mrb[0].mxu0
  %v6493 = vadd.f32 %v6394, %v6492
  %v6494 = vpop.f32.mrb[0].mxu0
  %v6495 = vadd.f32 %v6396, %v6494
  %v6496 = vpop.f32.mrb[0].mxu0
  %v6497 = vadd.f32 %v6398, %v6496
  %v6498 = vpop.f32.mrb[0].mxu0
  %v6499 = vadd.f32 %v6400, %v6498
  %6500 = vmatprep.mubr.bf16.mxu0 %v5166
  %6501 = vmatmul.mubr.bf16.gmra.mrb[0].mxu0 %v5165
  %v6502 = vpop.f32.mrb[0].mxu0
  %v6503 = vadd.f32 %v6404, %v6502
  %v6504 = vpop.f32.mrb[0].mxu0
  %v6505 = vadd.f32 %v6406, %v6504
  %v6506 = vpop.f32.mrb[0].mxu0
  %v6507 = vadd.f32 %v6408, %v6506
  %v6508 = vpop.f32.mrb[0].mxu0
  %v6509 = vadd.f32 %v6410, %v6508
  %6510 = vmatprep.mubr.bf16.mxu0 %v5172
  %6511 = vmatmul.mubr.bf16.gmra.mrb[0].mxu0 %v5171
  %v6512 = vpop.f32.mrb[0].mxu0
  %v6513 = vadd.f32 %v6414, %v6512
  %v6514 = vpop.f32.mrb[0].mxu0
  %v6515 = vadd.f32 %v6416, %v6514
  %v6516 = vpop.f32.mrb[0].mxu0
  %v6517 = vadd.f32 %v6418, %v6516
  %v6518 = vpop.f32.mrb[0].mxu0
  %v6519 = vadd.f32 %v6420, %v6518
  %6520 = vmatprep.mubr.bf16.mxu0 %v5178
  %6521 = vmatmul.mubr.bf16.gmra.mrb[0].mxu0 %v5177
  %v6522 = vpop.f32.mrb[0].mxu0
  %v6523 = vadd.f32 %v6424, %v6522
  %v6524 = vpop.f32.mrb[0].mxu0
  %v6525 = vadd.f32 %v6426, %v6524
  %v6526 = vpop.f32.mrb[0].mxu0
  %v6527 = vadd.f32 %v6428, %v6526
  %v6528 = vpop.f32.mrb[0].mxu0
  %v6529 = vadd.f32 %v6430, %v6528
  %6530 = vmatprep.mubr.bf16.mxu0 %v5184
  %6531 = vmatmul.mubr.bf16.gmra.mrb[0].mxu0 %v5183
  %v6532 = vpop.f32.mrb[0].mxu0
  %v6533 = vpop.f32.mrb[0].mxu0
  %v6534 = vpop.f32.mrb[0].mxu0
  %v6535 = vpop.f32.mrb[0].mxu0
  %6536 = vdwg.mxu0
  %6537 = vmatprep.subr.bf16.mxu0 %v6084
  %6538 = vmatpush1.bf16.msra.mxu0 %v6083
  %6539 = vmatprep.subr.bf16.mxu0 %v6088
  %6540 = vmatpush1.bf16.msra.mxu0 %v6087
  %6541 = vmatprep.subr.bf16.mxu0 %v6092
  %6542 = vmatpush1.bf16.msra.mxu0 %v6091
  %6543 = vmatprep.subr.bf16.mxu0 %v6096
  %6544 = vmatpush1.bf16.msra.mxu0 %v6095
  %6545 = vmatprep.subr.bf16.mxu0 %v6100
  %6546 = vmatpush1.bf16.msra.mxu0 %v6099
  %6547 = vmatprep.subr.bf16.mxu0 %v6104
  %6548 = vmatpush1.bf16.msra.mxu0 %v6103
  %6549 = vmatprep.subr.bf16.mxu0 %v6108
  %6550 = vmatpush1.bf16.msra.mxu0 %v6107
  %6551 = vmatprep.subr.bf16.mxu0 %v6112
  %6552 = vmatpush1.bf16.msra.mxu0 %v6111
  %6553 = vmatprep.subr.bf16.mxu0 %v6116
  %6554 = vmatpush1.bf16.msra.mxu0 %v6115
  %6555 = vmatprep.subr.bf16.mxu0 %v6120
  %6556 = vmatpush1.bf16.msra.mxu0 %v6119
  %6557 = vmatprep.subr.bf16.mxu0 %v6124
  %6558 = vmatpush1.bf16.msra.mxu0 %v6123
  %6559 = vmatprep.subr.bf16.mxu0 %v6128
  %6560 = vmatpush1.bf16.msra.mxu0 %v6127
  %6561 = vmatprep.subr.bf16.mxu0 %v6132
  %6562 = vmatpush1.bf16.msra.mxu0 %v6131
  %6563 = vmatprep.subr.bf16.mxu0 %v6136
  %6564 = vmatpush1.bf16.msra.mxu0 %v6135
  %6565 = vmatprep.subr.bf16.mxu0 %v6140
  %6566 = vmatpush1.bf16.msra.mxu0 %v6139
  %6567 = vmatprep.subr.bf16.mxu0 %v6144
  %6568 = vmatpush1.bf16.msra.mxu0 %v6143
  %6569 = vmatprep.mubr.bf16.mxu0 %v5150
  %6570 = vmatmul.mubr.bf16.gmra.mrb[0].mxu0 %v5149
  %v6571 = vpop.f32.mrb[0].mxu0
  %v6572 = vadd.f32 %v6473, %v6571
  %v6573 = vpop.f32.mrb[0].mxu0
  %v6574 = vadd.f32 %v6475, %v6573
  %v6575 = vpop.f32.mrb[0].mxu0
  %v6576 = vadd.f32 %v6477, %v6575
  %v6577 = vpop.f32.mrb[0].mxu0
  %v6578 = vadd.f32 %v6479, %v6577
  %6579 = vmatprep.mubr.bf16.mxu0 %v5156
  %6580 = vmatmul.mubr.bf16.gmra.mrb[0].mxu0 %v5155
  %v6581 = vpop.f32.mrb[0].mxu0
  %v6582 = vadd.f32 %v6483, %v6581
  %v6583 = vpop.f32.mrb[0].mxu0
  %v6584 = vadd.f32 %v6485, %v6583
  %v6585 = vpop.f32.mrb[0].mxu0
  %v6586 = vadd.f32 %v6487, %v6585
  %v6587 = vpop.f32.mrb[0].mxu0
  %v6588 = vadd.f32 %v6489, %v6587
  %6589 = vmatprep.mubr.bf16.mxu0 %v5162
  %6590 = vmatmul.mubr.bf16.gmra.mrb[0].mxu0 %v5161
  %v6591 = vpop.f32.mrb[0].mxu0
  %v6592 = vadd.f32 %v6493, %v6591
  %v6593 = vpop.f32.mrb[0].mxu0
  %v6594 = vadd.f32 %v6495, %v6593
  %v6595 = vpop.f32.mrb[0].mxu0
  %v6596 = vadd.f32 %v6497, %v6595
  %v6597 = vpop.f32.mrb[0].mxu0
  %v6598 = vadd.f32 %v6499, %v6597
  %6599 = vmatprep.mubr.bf16.mxu0 %v5168
  %6600 = vmatmul.mubr.bf16.gmra.mrb[0].mxu0 %v5167
  %v6601 = vpop.f32.mrb[0].mxu0
  %v6602 = vadd.f32 %v6503, %v6601
  %v6603 = vpop.f32.mrb[0].mxu0
  %v6604 = vadd.f32 %v6505, %v6603
  %v6605 = vpop.f32.mrb[0].mxu0
  %v6606 = vadd.f32 %v6507, %v6605
  %v6607 = vpop.f32.mrb[0].mxu0
  %v6608 = vadd.f32 %v6509, %v6607
  %6609 = vmatprep.mubr.bf16.mxu0 %v5174
  %6610 = vmatmul.mubr.bf16.gmra.mrb[0].mxu0 %v5173
  %v6611 = vpop.f32.mrb[0].mxu0
  %v6612 = vadd.f32 %v6513, %v6611
  %v6613 = vpop.f32.mrb[0].mxu0
  %v6614 = vadd.f32 %v6515, %v6613
  %v6615 = vpop.f32.mrb[0].mxu0
  %v6616 = vadd.f32 %v6517, %v6615
  %v6617 = vpop.f32.mrb[0].mxu0
  %v6618 = vadd.f32 %v6519, %v6617
  %6619 = vmatprep.mubr.bf16.mxu0 %v5180
  %6620 = vmatmul.mubr.bf16.gmra.mrb[0].mxu0 %v5179
  %v6621 = vpop.f32.mrb[0].mxu0
  %v6622 = vadd.f32 %v6523, %v6621
  %v6623 = vpop.f32.mrb[0].mxu0
  %v6624 = vadd.f32 %v6525, %v6623
  %v6625 = vpop.f32.mrb[0].mxu0
  %v6626 = vadd.f32 %v6527, %v6625
  %v6627 = vpop.f32.mrb[0].mxu0
  %v6628 = vadd.f32 %v6529, %v6627
  %6629 = vmatprep.mubr.bf16.mxu0 %v5186
  %6630 = vmatmul.mubr.bf16.gmra.mrb[0].mxu0 %v5185
  %v6631 = vpop.f32.mrb[0].mxu0
  %v6632 = vpop.f32.mrb[0].mxu0
  %v6633 = vpop.f32.mrb[0].mxu0
  %v6634 = vpop.f32.mrb[0].mxu0
  %6635 = vdwg.mxu0
  %6636 = vmatprep.subr.bf16.mxu0 %v5958
  %6637 = vmatpush1.bf16.msra.mxu0 %v5957
  %6638 = vmatprep.subr.bf16.mxu0 %v5962
  %6639 = vmatpush1.bf16.msra.mxu0 %v5961
  %6640 = vmatprep.subr.bf16.mxu0 %v5966
  %6641 = vmatpush1.bf16.msra.mxu0 %v5965
  %6642 = vmatprep.subr.bf16.mxu0 %v5970
  %6643 = vmatpush1.bf16.msra.mxu0 %v5969
  %6644 = vmatprep.subr.bf16.mxu0 %v5974
  %6645 = vmatpush1.bf16.msra.mxu0 %v5973
  %6646 = vmatprep.subr.bf16.mxu0 %v5978
  %6647 = vmatpush1.bf16.msra.mxu0 %v5977
  %6648 = vmatprep.subr.bf16.mxu0 %v5982
  %6649 = vmatpush1.bf16.msra.mxu0 %v5981
  %6650 = vmatprep.subr.bf16.mxu0 %v5986
  %6651 = vmatpush1.bf16.msra.mxu0 %v5985
  %6652 = vmatprep.subr.bf16.mxu0 %v5990
  %6653 = vmatpush1.bf16.msra.mxu0 %v5989
  %6654 = vmatprep.subr.bf16.mxu0 %v5994
  %6655 = vmatpush1.bf16.msra.mxu0 %v5993
  %6656 = vmatprep.subr.bf16.mxu0 %v5998
  %6657 = vmatpush1.bf16.msra.mxu0 %v5997
  %6658 = vmatprep.subr.bf16.mxu0 %v6002
  %6659 = vmatpush1.bf16.msra.mxu0 %v6001
  %6660 = vmatprep.subr.bf16.mxu0 %v6006
  %6661 = vmatpush1.bf16.msra.mxu0 %v6005
  %6662 = vmatprep.subr.bf16.mxu0 %v6010
  %6663 = vmatpush1.bf16.msra.mxu0 %v6009
  %6664 = vmatprep.subr.bf16.mxu0 %v6014
  %6665 = vmatpush1.bf16.msra.mxu0 %v6013
  %6666 = vmatprep.subr.bf16.mxu0 %v6018
  %6667 = vmatpush1.bf16.msra.mxu0 %v6017
  %6668 = vmatprep.mubr.bf16.mxu0 %v5146
  %6669 = vmatmul.mubr.bf16.gmra.mrb[0].mxu0 %v5145
  %v6670 = vpop.f32.mrb[0].mxu0
  %v6671 = vadd.f32 0.0, %v6670
  %v6672 = vpop.f32.mrb[0].mxu0
  %v6673 = vadd.f32 0.0, %v6672
  %v6674 = vpop.f32.mrb[0].mxu0
  %v6675 = vadd.f32 0.0, %v6674
  %v6676 = vpop.f32.mrb[0].mxu0
  %v6677 = vadd.f32 0.0, %v6676
  %6678 = vmatprep.mubr.bf16.mxu0 %v5152
  %6679 = vmatmul.mubr.bf16.gmra.mrb[0].mxu0 %v5151
  %v6680 = vpop.f32.mrb[0].mxu0
  %v6681 = vadd.f32 0.0, %v6680
  %v6682 = vpop.f32.mrb[0].mxu0
  %v6683 = vadd.f32 0.0, %v6682
  %v6684 = vpop.f32.mrb[0].mxu0
  %v6685 = vadd.f32 0.0, %v6684
  %v6686 = vpop.f32.mrb[0].mxu0
  %v6687 = vadd.f32 0.0, %v6686
  %6688 = vmatprep.mubr.bf16.mxu0 %v5158
  %6689 = vmatmul.mubr.bf16.gmra.mrb[0].mxu0 %v5157
  %v6690 = vpop.f32.mrb[0].mxu0
  %v6691 = vadd.f32 0.0, %v6690
  %v6692 = vpop.f32.mrb[0].mxu0
  %v6693 = vadd.f32 0.0, %v6692
  %v6694 = vpop.f32.mrb[0].mxu0
  %v6695 = vadd.f32 0.0, %v6694
  %v6696 = vpop.f32.mrb[0].mxu0
  %v6697 = vadd.f32 0.0, %v6696
  %6698 = vmatprep.mubr.bf16.mxu0 %v5164
  %6699 = vmatmul.mubr.bf16.gmra.mrb[0].mxu0 %v5163
  %v6700 = vpop.f32.mrb[0].mxu0
  %v6701 = vadd.f32 0.0, %v6700
  %v6702 = vpop.f32.mrb[0].mxu0
  %v6703 = vadd.f32 0.0, %v6702
  %v6704 = vpop.f32.mrb[0].mxu0
  %v6705 = vadd.f32 0.0, %v6704
  %v6706 = vpop.f32.mrb[0].mxu0
  %v6707 = vadd.f32 0.0, %v6706
  %6708 = vmatprep.mubr.bf16.mxu0 %v5170
  %6709 = vmatmul.mubr.bf16.gmra.mrb[0].mxu0 %v5169
  %v6710 = vpop.f32.mrb[0].mxu0
  %v6711 = vadd.f32 0.0, %v6710
  %v6712 = vpop.f32.mrb[0].mxu0
  %v6713 = vadd.f32 0.0, %v6712
  %v6714 = vpop.f32.mrb[0].mxu0
  %v6715 = vadd.f32 0.0, %v6714
  %v6716 = vpop.f32.mrb[0].mxu0
  %v6717 = vadd.f32 0.0, %v6716
  %6718 = vmatprep.mubr.bf16.mxu0 %v5176
  %6719 = vmatmul.mubr.bf16.gmra.mrb[0].mxu0 %v5175
  %v6720 = vpop.f32.mrb[0].mxu0
  %v6721 = vadd.f32 0.0, %v6720
  %v6722 = vpop.f32.mrb[0].mxu0
  %v6723 = vadd.f32 0.0, %v6722
  %v6724 = vpop.f32.mrb[0].mxu0
  %v6725 = vadd.f32 0.0, %v6724
  %v6726 = vpop.f32.mrb[0].mxu0
  %v6727 = vadd.f32 0.0, %v6726
  %6728 = vmatprep.mubr.bf16.mxu0 %v5182
  %6729 = vmatmul.mubr.bf16.gmra.mrb[0].mxu0 %v5181
  %v6730 = vpop.f32.mrb[0].mxu0
  %v6731 = vpop.f32.mrb[0].mxu0
  %v6732 = vpop.f32.mrb[0].mxu0
  %v6733 = vpop.f32.mrb[0].mxu0
  %6734 = vdwg.mxu0
  %6735 = vmatprep.subr.bf16.mxu0 %v6022
  %6736 = vmatpush1.bf16.msra.mxu0 %v6021
  %6737 = vmatprep.subr.bf16.mxu0 %v6026
  %6738 = vmatpush1.bf16.msra.mxu0 %v6025
  %6739 = vmatprep.subr.bf16.mxu0 %v6030
  %6740 = vmatpush1.bf16.msra.mxu0 %v6029
  %6741 = vmatprep.subr.bf16.mxu0 %v6034
  %6742 = vmatpush1.bf16.msra.mxu0 %v6033
  %6743 = vmatprep.subr.bf16.mxu0 %v6038
  %6744 = vmatpush1.bf16.msra.mxu0 %v6037
  %6745 = vmatprep.subr.bf16.mxu0 %v6042
  %6746 = vmatpush1.bf16.msra.mxu0 %v6041
  %6747 = vmatprep.subr.bf16.mxu0 %v6046
  %6748 = vmatpush1.bf16.msra.mxu0 %v6045
  %6749 = vmatprep.subr.bf16.mxu0 %v6050
  %6750 = vmatpush1.bf16.msra.mxu0 %v6049
  %6751 = vmatprep.subr.bf16.mxu0 %v6054
  %6752 = vmatpush1.bf16.msra.mxu0 %v6053
  %6753 = vmatprep.subr.bf16.mxu0 %v6058
  %6754 = vmatpush1.bf16.msra.mxu0 %v6057
  %6755 = vmatprep.subr.bf16.mxu0 %v6062
  %6756 = vmatpush1.bf16.msra.mxu0 %v6061
  %6757 = vmatprep.subr.bf16.mxu0 %v6066
  %6758 = vmatpush1.bf16.msra.mxu0 %v6065
  %6759 = vmatprep.subr.bf16.mxu0 %v6070
  %6760 = vmatpush1.bf16.msra.mxu0 %v6069
  %6761 = vmatprep.subr.bf16.mxu0 %v6074
  %6762 = vmatpush1.bf16.msra.mxu0 %v6073
  %6763 = vmatprep.subr.bf16.mxu0 %v6078
  %6764 = vmatpush1.bf16.msra.mxu0 %v6077
  %6765 = vmatprep.subr.bf16.mxu0 %v6082
  %6766 = vmatpush1.bf16.msra.mxu0 %v6081
  %6767 = vmatprep.mubr.bf16.mxu0 %v5148
  %6768 = vmatmul.mubr.bf16.gmra.mrb[0].mxu0 %v5147
  %v6769 = vpop.f32.mrb[0].mxu0
  %v6770 = vadd.f32 %v6671, %v6769
  %v6771 = vpop.f32.mrb[0].mxu0
  %v6772 = vadd.f32 %v6673, %v6771
  %v6773 = vpop.f32.mrb[0].mxu0
  %v6774 = vadd.f32 %v6675, %v6773
  %v6775 = vpop.f32.mrb[0].mxu0
  %v6776 = vadd.f32 %v6677, %v6775
  %6777 = vmatprep.mubr.bf16.mxu0 %v5154
  %6778 = vmatmul.mubr.bf16.gmra.mrb[0].mxu0 %v5153
  %v6779 = vpop.f32.mrb[0].mxu0
  %v6780 = vadd.f32 %v6681, %v6779
  %v6781 = vpop.f32.mrb[0].mxu0
  %v6782 = vadd.f32 %v6683, %v6781
  %v6783 = vpop.f32.mrb[0].mxu0
  %v6784 = vadd.f32 %v6685, %v6783
  %v6785 = vpop.f32.mrb[0].mxu0
  %v6786 = vadd.f32 %v6687, %v6785
  %6787 = vmatprep.mubr.bf16.mxu0 %v5160
  %6788 = vmatmul.mubr.bf16.gmra.mrb[0].mxu0 %v5159
  %v6789 = vpop.f32.mrb[0].mxu0
  %v6790 = vadd.f32 %v6691, %v6789
  %v6791 = vpop.f32.mrb[0].mxu0
  %v6792 = vadd.f32 %v6693, %v6791
  %v6793 = vpop.f32.mrb[0].mxu0
  %v6794 = vadd.f32 %v6695, %v6793
  %v6795 = vpop.f32.mrb[0].mxu0
  %v6796 = vadd.f32 %v6697, %v6795
  %6797 = vmatprep.mubr.bf16.mxu0 %v5166
  %6798 = vmatmul.mubr.bf16.gmra.mrb[0].mxu0 %v5165
  %v6799 = vpop.f32.mrb[0].mxu0
  %v6800 = vadd.f32 %v6701, %v6799
  %v6801 = vpop.f32.mrb[0].mxu0
  %v6802 = vadd.f32 %v6703, %v6801
  %v6803 = vpop.f32.mrb[0].mxu0
  %v6804 = vadd.f32 %v6705, %v6803
  %v6805 = vpop.f32.mrb[0].mxu0
  %v6806 = vadd.f32 %v6707, %v6805
  %6807 = vmatprep.mubr.bf16.mxu0 %v5172
  %6808 = vmatmul.mubr.bf16.gmra.mrb[0].mxu0 %v5171
  %v6809 = vpop.f32.mrb[0].mxu0
  %v6810 = vadd.f32 %v6711, %v6809
  %v6811 = vpop.f32.mrb[0].mxu0
  %v6812 = vadd.f32 %v6713, %v6811
  %v6813 = vpop.f32.mrb[0].mxu0
  %v6814 = vadd.f32 %v6715, %v6813
  %v6815 = vpop.f32.mrb[0].mxu0
  %v6816 = vadd.f32 %v6717, %v6815
  %6817 = vmatprep.mubr.bf16.mxu0 %v5178
  %6818 = vmatmul.mubr.bf16.gmra.mrb[0].mxu0 %v5177
  %v6819 = vpop.f32.mrb[0].mxu0
  %v6820 = vadd.f32 %v6721, %v6819
  %v6821 = vpop.f32.mrb[0].mxu0
  %v6822 = vadd.f32 %v6723, %v6821
  %v6823 = vpop.f32.mrb[0].mxu0
  %v6824 = vadd.f32 %v6725, %v6823
  %v6825 = vpop.f32.mrb[0].mxu0
  %v6826 = vadd.f32 %v6727, %v6825
  %6827 = vmatprep.mubr.bf16.mxu0 %v5184
  %6828 = vmatmul.mubr.bf16.gmra.mrb[0].mxu0 %v5183
  %v6829 = vpop.f32.mrb[0].mxu0
  %v6830 = vpop.f32.mrb[0].mxu0
  %v6831 = vpop.f32.mrb[0].mxu0
  %v6832 = vpop.f32.mrb[0].mxu0
  %6833 = vdwg.mxu0
  %6834 = vmatprep.subr.bf16.mxu0 %v6086
  %6835 = vmatpush1.bf16.msra.mxu0 %v6085
  %6836 = vmatprep.subr.bf16.mxu0 %v6090
  %6837 = vmatpush1.bf16.msra.mxu0 %v6089
  %6838 = vmatprep.subr.bf16.mxu0 %v6094
  %6839 = vmatpush1.bf16.msra.mxu0 %v6093
  %6840 = vmatprep.subr.bf16.mxu0 %v6098
  %6841 = vmatpush1.bf16.msra.mxu0 %v6097
  %6842 = vmatprep.subr.bf16.mxu0 %v6102
  %6843 = vmatpush1.bf16.msra.mxu0 %v6101
  %6844 = vmatprep.subr.bf16.mxu0 %v6106
  %6845 = vmatpush1.bf16.msra.mxu0 %v6105
  %6846 = vmatprep.subr.bf16.mxu0 %v6110
  %6847 = vmatpush1.bf16.msra.mxu0 %v6109
  %6848 = vmatprep.subr.bf16.mxu0 %v6114
  %6849 = vmatpush1.bf16.msra.mxu0 %v6113
  %6850 = vmatprep.subr.bf16.mxu0 %v6118
  %6851 = vmatpush1.bf16.msra.mxu0 %v6117
  %6852 = vmatprep.subr.bf16.mxu0 %v6122
  %6853 = vmatpush1.bf16.msra.mxu0 %v6121
  %6854 = vmatprep.subr.bf16.mxu0 %v6126
  %6855 = vmatpush1.bf16.msra.mxu0 %v6125
  %6856 = vmatprep.subr.bf16.mxu0 %v6130
  %6857 = vmatpush1.bf16.msra.mxu0 %v6129
  %6858 = vmatprep.subr.bf16.mxu0 %v6134
  %6859 = vmatpush1.bf16.msra.mxu0 %v6133
  %6860 = vmatprep.subr.bf16.mxu0 %v6138
  %6861 = vmatpush1.bf16.msra.mxu0 %v6137
  %6862 = vmatprep.subr.bf16.mxu0 %v6142
  %6863 = vmatpush1.bf16.msra.mxu0 %v6141
  %6864 = vmatprep.subr.bf16.mxu0 %v6146
  %6865 = vmatpush1.bf16.msra.mxu0 %v6145
  %6866 = vmatprep.mubr.bf16.mxu0 %v5150
  %6867 = vmatmul.mubr.bf16.gmra.mrb[0].mxu0 %v5149
  %v6868 = vpop.f32.mrb[0].mxu0
  %v6869 = vadd.f32 %v6770, %v6868
  %v6870 = vpop.f32.mrb[0].mxu0
  %v6871 = vadd.f32 %v6772, %v6870
  %v6872 = vpop.f32.mrb[0].mxu0
  %v6873 = vadd.f32 %v6774, %v6872
  %v6874 = vpop.f32.mrb[0].mxu0
  %v6875 = vadd.f32 %v6776, %v6874
  %6876 = vmatprep.mubr.bf16.mxu0 %v5156
  %6877 = vmatmul.mubr.bf16.gmra.mrb[0].mxu0 %v5155
  %v6878 = vpop.f32.mrb[0].mxu0
  %v6879 = vadd.f32 %v6780, %v6878
  %v6880 = vpop.f32.mrb[0].mxu0
  %v6881 = vadd.f32 %v6782, %v6880
  %v6882 = vpop.f32.mrb[0].mxu0
  %v6883 = vadd.f32 %v6784, %v6882
  %v6884 = vpop.f32.mrb[0].mxu0
  %v6885 = vadd.f32 %v6786, %v6884
  %6886 = vmatprep.mubr.bf16.mxu0 %v5162
  %6887 = vmatmul.mubr.bf16.gmra.mrb[0].mxu0 %v5161
  %v6888 = vpop.f32.mrb[0].mxu0
  %v6889 = vadd.f32 %v6790, %v6888
  %v6890 = vpop.f32.mrb[0].mxu0
  %v6891 = vadd.f32 %v6792, %v6890
  %v6892 = vpop.f32.mrb[0].mxu0
  %v6893 = vadd.f32 %v6794, %v6892
  %v6894 = vpop.f32.mrb[0].mxu0
  %v6895 = vadd.f32 %v6796, %v6894
  %6896 = vmatprep.mubr.bf16.mxu0 %v5168
  %6897 = vmatmul.mubr.bf16.gmra.mrb[0].mxu0 %v5167
  %v6898 = vpop.f32.mrb[0].mxu0
  %v6899 = vadd.f32 %v6800, %v6898
  %v6900 = vpop.f32.mrb[0].mxu0
  %v6901 = vadd.f32 %v6802, %v6900
  %v6902 = vpop.f32.mrb[0].mxu0
  %v6903 = vadd.f32 %v6804, %v6902
  %v6904 = vpop.f32.mrb[0].mxu0
  %v6905 = vadd.f32 %v6806, %v6904
  %6906 = vmatprep.mubr.bf16.mxu0 %v5174
  %6907 = vmatmul.mubr.bf16.gmra.mrb[0].mxu0 %v5173
  %v6908 = vpop.f32.mrb[0].mxu0
  %v6909 = vadd.f32 %v6810, %v6908
  %v6910 = vpop.f32.mrb[0].mxu0
  %v6911 = vadd.f32 %v6812, %v6910
  %v6912 = vpop.f32.mrb[0].mxu0
  %v6913 = vadd.f32 %v6814, %v6912
  %v6914 = vpop.f32.mrb[0].mxu0
  %v6915 = vadd.f32 %v6816, %v6914
  %6916 = vmatprep.mubr.bf16.mxu0 %v5180
  %6917 = vmatmul.mubr.bf16.gmra.mrb[0].mxu0 %v5179
  %v6918 = vpop.f32.mrb[0].mxu0
  %v6919 = vadd.f32 %v6820, %v6918
  %v6920 = vpop.f32.mrb[0].mxu0
  %v6921 = vadd.f32 %v6822, %v6920
  %v6922 = vpop.f32.mrb[0].mxu0
  %v6923 = vadd.f32 %v6824, %v6922
  %v6924 = vpop.f32.mrb[0].mxu0
  %v6925 = vadd.f32 %v6826, %v6924
  %6926 = vmatprep.mubr.bf16.mxu0 %v5186
  %6927 = vmatmul.mubr.bf16.gmra.mrb[0].mxu0 %v5185
  %v6928 = vpop.f32.mrb[0].mxu0
  %v6929 = vpop.f32.mrb[0].mxu0
  %v6930 = vpop.f32.mrb[0].mxu0
  %v6931 = vpop.f32.mrb[0].mxu0
  %6932 = vdwg.mxu0
  %v6933 = vmax.f32 %v6572, %v6869
  %v6934 = vmax.f32 %v6574, %v6871
  %v6935 = vmax.f32 %v6576, %v6873
  %v6936 = vmax.f32 %v6578, %v6875
  %v6937 = vmax.f32 %v6582, %v6879
  %v6938 = vmax.f32 %v6584, %v6881
  %v6939 = vmax.f32 %v6586, %v6883
  %v6940 = vmax.f32 %v6588, %v6885
  %v6941 = vmax.f32 %v6592, %v6889
  %v6942 = vmax.f32 %v6594, %v6891
  %v6943 = vmax.f32 %v6596, %v6893
  %v6944 = vmax.f32 %v6598, %v6895
  %v6945 = vmax.f32 %v6602, %v6899
  %v6946 = vmax.f32 %v6604, %v6901
  %v6947 = vmax.f32 %v6606, %v6903
  %v6948 = vmax.f32 %v6608, %v6905
  %v6949 = vmax.f32 %v6612, %v6909
  %v6950 = vmax.f32 %v6614, %v6911
  %v6951 = vmax.f32 %v6616, %v6913
  %v6952 = vmax.f32 %v6618, %v6915
  %v6953 = vmax.f32 %v6622, %v6919
  %v6954 = vmax.f32 %v6624, %v6921
  %v6955 = vmax.f32 %v6626, %v6923
  %v6956 = vmax.f32 %v6628, %v6925
  %v6957 = vmax.f32 %v6933, %v6937
  %v6958 = vmax.f32 %v6934, %v6938
  %v6959 = vmax.f32 %v6935, %v6939
  %v6960 = vmax.f32 %v6936, %v6940
  %v6961 = vmax.f32 %v6941, %v6945
  %v6962 = vmax.f32 %v6942, %v6946
  %v6963 = vmax.f32 %v6943, %v6947
  %v6964 = vmax.f32 %v6944, %v6948
  %v6965 = vmax.f32 %v6949, %v6953
  %v6966 = vmax.f32 %v6950, %v6954
  %v6967 = vmax.f32 %v6951, %v6955
  %v6968 = vmax.f32 %v6952, %v6956
  %v6969 = vld [vmem:[%s6] sm:$0x3]
  %v6971 = vlaneseq
  %v6972 = vshrl.u32 %v6971, 7
  %v6973 = vsub.s32 0, %v6972
  %v6974 = vrot.slane %v6969, %v6973
  %v6975 = vlaneseq
  %v6976 = vshrl.u32 %v6975, 7
  %v6977 = vsub.s32 1, %v6976
  %v6978 = vrot.slane %v6969, %v6977
  %v6981 = vadd.f32 %v6957, %v6974
  %v6982 = vadd.f32 %v6958, %v6978
  %v6983 = vadd.f32 %v6959, %v6974
  %v6984 = vadd.f32 %v6960, %v6978
  %v6985 = vadd.f32 %v6961, %v6974
  %v6986 = vadd.f32 %v6962, %v6978
  %v6987 = vadd.f32 %v6963, %v6974
  %v6988 = vadd.f32 %v6964, %v6978
  %v6989 = vadd.f32 %v6965, %v6974
  %v6990 = vadd.f32 %v6966, %v6978
  %v6991 = vadd.f32 %v6967, %v6974
  %v6992 = vadd.f32 %v6968, %v6978
  %v6993 = vmax.f32 %v6981, 0.0
  %v6994 = vmax.f32 %v6982, 0.0
  %v6995 = vmax.f32 %v6983, 0.0
  %v6996 = vmax.f32 %v6984, 0.0
  %v6997 = vmax.f32 %v6985, 0.0
  %v6998 = vmax.f32 %v6986, 0.0
  %v6999 = vmax.f32 %v6987, 0.0
  %v7000 = vmax.f32 %v6988, 0.0
  %v7001 = vmax.f32 %v6989, 0.0
  %v7002 = vmax.f32 %v6990, 0.0
  %v7003 = vmax.f32 %v6991, 0.0
  %v7004 = vmax.f32 %v6992, 0.0
  %v7005 = vpack.c.bf16 %v6995, %v6993
  %v7006 = vpack.c.bf16 %v6996, %v6994
  %v7007 = vpack.c.bf16 %v6999, %v6997
  %v7008 = vpack.c.bf16 %v7000, %v6998
  %v7009 = vpack.c.bf16 %v7003, %v7001
  %v7010 = vpack.c.bf16 %v7004, %v7002
  %7011 = vst [vmem:[#allocation5] sm:$0xff] %v7005
  %7012 = vst [vmem:[#allocation5 + $0x8] sm:$0xff] %v7006
  %7013 = vst [vmem:[#allocation5 + $0x10] sm:$0xff] %v7007
  %7014 = vst [vmem:[#allocation5 + $0x18] sm:$0xff] %v7008
  %7015 = vst [vmem:[#allocation5 + $0x20] sm:$0xff] %v7009
  %7016 = vst [vmem:[#allocation5 + $0x28] sm:$0xff] %v7010
  %v7017 = vld [vmem:[#allocation5] sm:$0xff]
  %v7018 = vld [vmem:[#allocation5 + $0x8] sm:$0xff]
  %v7019 = vld [vmem:[#allocation5 + $0x10] sm:$0xff]
  %v7020 = vld [vmem:[#allocation5 + $0x18] sm:$0xff]
  %v7021 = vld [vmem:[#allocation5 + $0x20] sm:$0xff]
  %v7022 = vld [vmem:[#allocation5 + $0x28] sm:$0xff]
  %v7023 = vld [vmem:[%s7] sm:$0xf]
  %v7024 = vld [vmem:[%s7 + $0x4] sm:$0xf]
  %v7025 = vld [vmem:[%s7 + $0x8] sm:$0xf]
  %v7026 = vld [vmem:[%s7 + $0xc] sm:$0xf]
  %v7027 = vld [vmem:[%s7 + $0x10] sm:$0xf]
  %v7028 = vld [vmem:[%s7 + $0x14] sm:$0xf]
  %v7029 = vld [vmem:[%s7 + $0x18] sm:$0xf]
  %v7030 = vld [vmem:[%s7 + $0x1c] sm:$0xf]
  %v7031 = vld [vmem:[%s7 + $0x20] sm:$0xf]
  %v7032 = vld [vmem:[%s7 + $0x24] sm:$0xf]
  %v7033 = vld [vmem:[%s7 + $0x28] sm:$0xf]
  %v7034 = vld [vmem:[%s7 + $0x2c] sm:$0xf]
  %v7035 = vld [vmem:[%s7 + $0x30] sm:$0xf]
  %v7036 = vld [vmem:[%s7 + $0x34] sm:$0xf]
  %v7037 = vld [vmem:[%s7 + $0x38] sm:$0xf]
  %v7038 = vld [vmem:[%s7 + $0x3c] sm:$0xf]
  %v7039 = vld [vmem:[%s7 + $0x40] sm:$0xf]
  %v7040 = vld [vmem:[%s7 + $0x44] sm:$0xf]
  %v7041 = vld [vmem:[%s7 + $0x48] sm:$0xf]
  %v7042 = vld [vmem:[%s7 + $0x4c] sm:$0xf]
  %v7043 = vld [vmem:[%s7 + $0x50] sm:$0xf]
  %v7044 = vld [vmem:[%s7 + $0x54] sm:$0xf]
  %v7045 = vld [vmem:[%s7 + $0x58] sm:$0xf]
  %v7046 = vld [vmem:[%s7 + $0x5c] sm:$0xf]
  %v7047 = vld [vmem:[%s7 + $0x60] sm:$0xf]
  %v7048 = vld [vmem:[%s7 + $0x64] sm:$0xf]
  %v7049 = vld [vmem:[%s7 + $0x68] sm:$0xf]
  %v7050 = vld [vmem:[%s7 + $0x6c] sm:$0xf]
  %v7051 = vld [vmem:[%s7 + $0x70] sm:$0xf]
  %v7052 = vld [vmem:[%s7 + $0x74] sm:$0xf]
  %v7053 = vld [vmem:[%s7 + $0x78] sm:$0xf]
  %v7054 = vld [vmem:[%s7 + $0x7c] sm:$0xf]
  %v7055 = vld [vmem:[%s7 + $0x80] sm:$0xf]
  %v7056 = vld [vmem:[%s7 + $0x84] sm:$0xf]
  %v7057 = vld [vmem:[%s7 + $0x88] sm:$0xf]
  %v7058 = vld [vmem:[%s7 + $0x8c] sm:$0xf]
  %v7059 = vld [vmem:[%s7 + $0x90] sm:$0xf]
  %v7060 = vld [vmem:[%s7 + $0x94] sm:$0xf]
  %v7061 = vld [vmem:[%s7 + $0x98] sm:$0xf]
  %v7062 = vld [vmem:[%s7 + $0x9c] sm:$0xf]
  %v7063 = vld [vmem:[%s7 + $0xa0] sm:$0xf]
  %v7064 = vld [vmem:[%s7 + $0xa4] sm:$0xf]
  %v7065 = vld [vmem:[%s7 + $0xa8] sm:$0xf]
  %v7066 = vld [vmem:[%s7 + $0xac] sm:$0xf]
  %v7067 = vld [vmem:[%s7 + $0xb0] sm:$0xf]
  %v7068 = vld [vmem:[%s7 + $0xb4] sm:$0xf]
  %v7069 = vld [vmem:[%s7 + $0xb8] sm:$0xf]
  %v7070 = vld [vmem:[%s7 + $0xbc] sm:$0xf]
  %v7071 = vld [vmem:[%s7 + $0xc0] sm:$0xf]
  %v7072 = vld [vmem:[%s7 + $0xc4] sm:$0xf]
  %v7073 = vld [vmem:[%s7 + $0xc8] sm:$0xf]
  %v7074 = vld [vmem:[%s7 + $0xcc] sm:$0xf]
  %v7075 = vld [vmem:[%s7 + $0xd0] sm:$0xf]
  %v7076 = vld [vmem:[%s7 + $0xd4] sm:$0xf]
  %v7077 = vld [vmem:[%s7 + $0xd8] sm:$0xf]
  %v7078 = vld [vmem:[%s7 + $0xdc] sm:$0xf]
  %v7079 = vld [vmem:[%s7 + $0xe0] sm:$0xf]
  %v7080 = vld [vmem:[%s7 + $0xe4] sm:$0xf]
  %v7081 = vld [vmem:[%s7 + $0xe8] sm:$0xf]
  %v7082 = vld [vmem:[%s7 + $0xec] sm:$0xf]
  %v7083 = vld [vmem:[%s7 + $0xf0] sm:$0xf]
  %v7084 = vld [vmem:[%s7 + $0xf4] sm:$0xf]
  %v7085 = vld [vmem:[%s7 + $0xf8] sm:$0xf]
  %v7086 = vld [vmem:[%s7 + $0xfc] sm:$0xf]
  %v7087 = vld [vmem:[%s7 + $0x100] sm:$0xf]
  %v7088 = vld [vmem:[%s7 + $0x104] sm:$0xf]
  %v7089 = vld [vmem:[%s7 + $0x108] sm:$0xf]
  %v7090 = vld [vmem:[%s7 + $0x10c] sm:$0xf]
  %v7091 = vld [vmem:[%s7 + $0x110] sm:$0xf]
  %v7092 = vld [vmem:[%s7 + $0x114] sm:$0xf]
  %v7093 = vld [vmem:[%s7 + $0x118] sm:$0xf]
  %v7094 = vld [vmem:[%s7 + $0x11c] sm:$0xf]
  %v7095 = vld [vmem:[%s7 + $0x120] sm:$0xf]
  %v7096 = vld [vmem:[%s7 + $0x124] sm:$0xf]
  %v7097 = vld [vmem:[%s7 + $0x128] sm:$0xf]
  %v7098 = vld [vmem:[%s7 + $0x12c] sm:$0xf]
  %v7099 = vld [vmem:[%s7 + $0x130] sm:$0xf]
  %v7100 = vld [vmem:[%s7 + $0x134] sm:$0xf]
  %v7101 = vld [vmem:[%s7 + $0x138] sm:$0xf]
  %v7102 = vld [vmem:[%s7 + $0x13c] sm:$0xf]
  %v7103 = vld [vmem:[%s7 + $0x140] sm:$0xf]
  %v7104 = vld [vmem:[%s7 + $0x144] sm:$0xf]
  %v7105 = vld [vmem:[%s7 + $0x148] sm:$0xf]
  %v7106 = vld [vmem:[%s7 + $0x14c] sm:$0xf]
  %v7107 = vld [vmem:[%s7 + $0x150] sm:$0xf]
  %v7108 = vld [vmem:[%s7 + $0x154] sm:$0xf]
  %v7109 = vld [vmem:[%s7 + $0x158] sm:$0xf]
  %v7110 = vld [vmem:[%s7 + $0x15c] sm:$0xf]
  %v7111 = vld [vmem:[%s7 + $0x160] sm:$0xf]
  %v7112 = vld [vmem:[%s7 + $0x164] sm:$0xf]
  %v7113 = vld [vmem:[%s7 + $0x168] sm:$0xf]
  %v7114 = vld [vmem:[%s7 + $0x16c] sm:$0xf]
  %v7115 = vld [vmem:[%s7 + $0x170] sm:$0xf]
  %v7116 = vld [vmem:[%s7 + $0x174] sm:$0xf]
  %v7117 = vld [vmem:[%s7 + $0x178] sm:$0xf]
  %v7118 = vld [vmem:[%s7 + $0x17c] sm:$0xf]
  %v7119 = vld [vmem:[%s8] sm:$0x1]
  %v7121 = vlaneseq
  %v7122 = vshrl.u32 %v7121, 7
  %v7123 = vsub.s32 0, %v7122
  %v7124 = vrot.slane %v7119, %v7123
  %v7222 = vunpack.c.l.b16 %v7023
  %v7223 = vunpack.c.l.b16 %v7024
  %v7224 = vunpack.c.l.b16 %v7025
  %v7225 = vunpack.c.l.b16 %v7026
  %v7226 = vunpack.c.l.b16 %v7027
  %v7227 = vunpack.c.l.b16 %v7028
  %v7228 = vunpack.c.l.b16 %v7029
  %v7229 = vunpack.c.l.b16 %v7030
  %v7230 = vunpack.c.l.b16 %v7031
  %v7231 = vunpack.c.l.b16 %v7032
  %v7232 = vunpack.c.l.b16 %v7033
  %v7233 = vunpack.c.l.b16 %v7034
  %v7234 = vunpack.c.l.b16 %v7035
  %v7235 = vunpack.c.l.b16 %v7036
  %v7236 = vunpack.c.l.b16 %v7037
  %v7237 = vunpack.c.l.b16 %v7038
  %v7238 = vunpack.c.l.b16 %v7039
  %v7239 = vunpack.c.l.b16 %v7040
  %v7240 = vunpack.c.l.b16 %v7041
  %v7241 = vunpack.c.l.b16 %v7042
  %v7242 = vunpack.c.l.b16 %v7043
  %v7243 = vunpack.c.l.b16 %v7044
  %v7244 = vunpack.c.l.b16 %v7045
  %v7245 = vunpack.c.l.b16 %v7046
  %v7246 = vunpack.c.l.b16 %v7047
  %v7247 = vunpack.c.l.b16 %v7048
  %v7248 = vunpack.c.l.b16 %v7049
  %v7249 = vunpack.c.l.b16 %v7050
  %v7250 = vunpack.c.l.b16 %v7051
  %v7251 = vunpack.c.l.b16 %v7052
  %v7252 = vunpack.c.l.b16 %v7053
  %v7253 = vunpack.c.l.b16 %v7054
  %v7254 = vunpack.c.l.b16 %v7055
  %v7255 = vunpack.c.l.b16 %v7056
  %v7256 = vunpack.c.l.b16 %v7057
  %v7257 = vunpack.c.l.b16 %v7058
  %v7258 = vunpack.c.l.b16 %v7059
  %v7259 = vunpack.c.l.b16 %v7060
  %v7260 = vunpack.c.l.b16 %v7061
  %v7261 = vunpack.c.l.b16 %v7062
  %v7262 = vunpack.c.l.b16 %v7063
  %v7263 = vunpack.c.l.b16 %v7064
  %v7264 = vunpack.c.l.b16 %v7065
  %v7265 = vunpack.c.l.b16 %v7066
  %v7266 = vunpack.c.l.b16 %v7067
  %v7267 = vunpack.c.l.b16 %v7068
  %v7268 = vunpack.c.l.b16 %v7069
  %v7269 = vunpack.c.l.b16 %v7070
  %v7270 = vunpack.c.l.b16 %v7071
  %v7271 = vunpack.c.l.b16 %v7072
  %v7272 = vunpack.c.l.b16 %v7073
  %v7273 = vunpack.c.l.b16 %v7074
  %v7274 = vunpack.c.l.b16 %v7075
  %v7275 = vunpack.c.l.b16 %v7076
  %v7276 = vunpack.c.l.b16 %v7077
  %v7277 = vunpack.c.l.b16 %v7078
  %v7278 = vunpack.c.l.b16 %v7079
  %v7279 = vunpack.c.l.b16 %v7080
  %v7280 = vunpack.c.l.b16 %v7081
  %v7281 = vunpack.c.l.b16 %v7082
  %v7282 = vunpack.c.l.b16 %v7083
  %v7283 = vunpack.c.l.b16 %v7084
  %v7284 = vunpack.c.l.b16 %v7085
  %v7285 = vunpack.c.l.b16 %v7086
  %v7286 = vunpack.c.l.b16 %v7087
  %v7287 = vunpack.c.l.b16 %v7088
  %v7288 = vunpack.c.l.b16 %v7089
  %v7289 = vunpack.c.l.b16 %v7090
  %v7290 = vunpack.c.l.b16 %v7091
  %v7291 = vunpack.c.l.b16 %v7092
  %v7292 = vunpack.c.l.b16 %v7093
  %v7293 = vunpack.c.l.b16 %v7094
  %v7294 = vunpack.c.l.b16 %v7095
  %v7295 = vunpack.c.l.b16 %v7096
  %v7296 = vunpack.c.l.b16 %v7097
  %v7297 = vunpack.c.l.b16 %v7098
  %v7298 = vunpack.c.l.b16 %v7099
  %v7299 = vunpack.c.l.b16 %v7100
  %v7300 = vunpack.c.l.b16 %v7101
  %v7301 = vunpack.c.l.b16 %v7102
  %v7302 = vunpack.c.l.b16 %v7103
  %v7303 = vunpack.c.l.b16 %v7104
  %v7304 = vunpack.c.l.b16 %v7105
  %v7305 = vunpack.c.l.b16 %v7106
  %v7306 = vunpack.c.l.b16 %v7107
  %v7307 = vunpack.c.l.b16 %v7108
  %v7308 = vunpack.c.l.b16 %v7109
  %v7309 = vunpack.c.l.b16 %v7110
  %v7310 = vunpack.c.l.b16 %v7111
  %v7311 = vunpack.c.l.b16 %v7112
  %v7312 = vunpack.c.l.b16 %v7113
  %v7313 = vunpack.c.l.b16 %v7114
  %v7314 = vunpack.c.l.b16 %v7115
  %v7315 = vunpack.c.l.b16 %v7116
  %v7316 = vunpack.c.l.b16 %v7117
  %v7317 = vunpack.c.l.b16 %v7118
  %v7318 = vpack.c.b16 %v7223, %v7222
  %v7319 = vpack.c.b16 %v7225, %v7224
  %v7320 = vpack.c.b16 %v7227, %v7226
  %v7321 = vpack.c.b16 %v7229, %v7228
  %v7322 = vpack.c.b16 %v7231, %v7230
  %v7323 = vpack.c.b16 %v7233, %v7232
  %v7324 = vpack.c.b16 %v7235, %v7234
  %v7325 = vpack.c.b16 %v7237, %v7236
  %v7326 = vpack.c.b16 %v7239, %v7238
  %v7327 = vpack.c.b16 %v7241, %v7240
  %v7328 = vpack.c.b16 %v7243, %v7242
  %v7329 = vpack.c.b16 %v7245, %v7244
  %v7330 = vpack.c.b16 %v7247, %v7246
  %v7331 = vpack.c.b16 %v7249, %v7248
  %v7332 = vpack.c.b16 %v7251, %v7250
  %v7333 = vpack.c.b16 %v7253, %v7252
  %v7334 = vpack.c.b16 %v7255, %v7254
  %v7335 = vpack.c.b16 %v7257, %v7256
  %v7336 = vpack.c.b16 %v7259, %v7258
  %v7337 = vpack.c.b16 %v7261, %v7260
  %v7338 = vpack.c.b16 %v7263, %v7262
  %v7339 = vpack.c.b16 %v7265, %v7264
  %v7340 = vpack.c.b16 %v7267, %v7266
  %v7341 = vpack.c.b16 %v7269, %v7268
  %v7342 = vpack.c.b16 %v7271, %v7270
  %v7343 = vpack.c.b16 %v7273, %v7272
  %v7344 = vpack.c.b16 %v7275, %v7274
  %v7345 = vpack.c.b16 %v7277, %v7276
  %v7346 = vpack.c.b16 %v7279, %v7278
  %v7347 = vpack.c.b16 %v7281, %v7280
  %v7348 = vpack.c.b16 %v7283, %v7282
  %v7349 = vpack.c.b16 %v7285, %v7284
  %v7350 = vpack.c.b16 %v7287, %v7286
  %v7351 = vpack.c.b16 %v7289, %v7288
  %v7352 = vpack.c.b16 %v7291, %v7290
  %v7353 = vpack.c.b16 %v7293, %v7292
  %v7354 = vpack.c.b16 %v7295, %v7294
  %v7355 = vpack.c.b16 %v7297, %v7296
  %v7356 = vpack.c.b16 %v7299, %v7298
  %v7357 = vpack.c.b16 %v7301, %v7300
  %v7358 = vpack.c.b16 %v7303, %v7302
  %v7359 = vpack.c.b16 %v7305, %v7304
  %v7360 = vpack.c.b16 %v7307, %v7306
  %v7361 = vpack.c.b16 %v7309, %v7308
  %v7362 = vpack.c.b16 %v7311, %v7310
  %v7363 = vpack.c.b16 %v7313, %v7312
  %v7364 = vpack.c.b16 %v7315, %v7314
  %v7365 = vpack.c.b16 %v7317, %v7316
  %7414 = vmatprep.subr.bf16.mxu0 0
  %7415 = vmatpush1.bf16.msra.mxu0 %v7318
  %7416 = vmatprep.subr.bf16.mxu0 0
  %7417 = vmatpush1.bf16.msra.mxu0 %v7319
  %7418 = vmatprep.subr.bf16.mxu0 0
  %7419 = vmatpush1.bf16.msra.mxu0 %v7320
  %7420 = vmatprep.subr.bf16.mxu0 0
  %7421 = vmatpush1.bf16.msra.mxu0 %v7321
  %7422 = vmatprep.subr.bf16.mxu0 0
  %7423 = vmatpush1.bf16.msra.mxu0 %v7322
  %7424 = vmatprep.subr.bf16.mxu0 0
  %7425 = vmatpush1.bf16.msra.mxu0 %v7323
  %7426 = vmatprep.subr.bf16.mxu0 0
  %7427 = vmatpush1.bf16.msra.mxu0 %v7324
  %7428 = vmatprep.subr.bf16.mxu0 0
  %7429 = vmatpush1.bf16.msra.mxu0 %v7325
  %7430 = vmatprep.subr.bf16.mxu0 0
  %7431 = vmatpush1.bf16.msra.mxu0 %v7326
  %7432 = vmatprep.subr.bf16.mxu0 0
  %7433 = vmatpush1.bf16.msra.mxu0 %v7327
  %7434 = vmatprep.subr.bf16.mxu0 0
  %7435 = vmatpush1.bf16.msra.mxu0 %v7328
  %7436 = vmatprep.subr.bf16.mxu0 0
  %7437 = vmatpush1.bf16.msra.mxu0 %v7329
  %7438 = vmatprep.subr.bf16.mxu0 0
  %7439 = vmatpush1.bf16.msra.mxu0 %v7330
  %7440 = vmatprep.subr.bf16.mxu0 0
  %7441 = vmatpush1.bf16.msra.mxu0 %v7331
  %7442 = vmatprep.subr.bf16.mxu0 0
  %7443 = vmatpush1.bf16.msra.mxu0 %v7332
  %7444 = vmatprep.subr.bf16.mxu0 0
  %7445 = vmatpush1.bf16.msra.mxu0 %v7333
  %7446 = vmatprep.mubr.bf16.mxu0 %v7018
  %7447 = vmatmul.mubr.bf16.gmra.mrb[0].mxu0 %v7017
  %v7448 = vpop.f32.mrb[0].mxu0
  %v7449 = vadd.f32 %v7124, %v7448
  %v7450 = vpop.f32.mrb[0].mxu0
  %v7451 = vpop.f32.mrb[0].mxu0
  %v7452 = vadd.f32 %v7124, %v7451
  %v7453 = vpop.f32.mrb[0].mxu0
  %7454 = vdwg.mxu0
  %7455 = vmatprep.subr.bf16.mxu0 0
  %7456 = vmatpush1.bf16.msra.mxu0 %v7334
  %7457 = vmatprep.subr.bf16.mxu0 0
  %7458 = vmatpush1.bf16.msra.mxu0 %v7335
  %7459 = vmatprep.subr.bf16.mxu0 0
  %7460 = vmatpush1.bf16.msra.mxu0 %v7336
  %7461 = vmatprep.subr.bf16.mxu0 0
  %7462 = vmatpush1.bf16.msra.mxu0 %v7337
  %7463 = vmatprep.subr.bf16.mxu0 0
  %7464 = vmatpush1.bf16.msra.mxu0 %v7338
  %7465 = vmatprep.subr.bf16.mxu0 0
  %7466 = vmatpush1.bf16.msra.mxu0 %v7339
  %7467 = vmatprep.subr.bf16.mxu0 0
  %7468 = vmatpush1.bf16.msra.mxu0 %v7340
  %7469 = vmatprep.subr.bf16.mxu0 0
  %7470 = vmatpush1.bf16.msra.mxu0 %v7341
  %7471 = vmatprep.subr.bf16.mxu0 0
  %7472 = vmatpush1.bf16.msra.mxu0 %v7342
  %7473 = vmatprep.subr.bf16.mxu0 0
  %7474 = vmatpush1.bf16.msra.mxu0 %v7343
  %7475 = vmatprep.subr.bf16.mxu0 0
  %7476 = vmatpush1.bf16.msra.mxu0 %v7344
  %7477 = vmatprep.subr.bf16.mxu0 0
  %7478 = vmatpush1.bf16.msra.mxu0 %v7345
  %7479 = vmatprep.subr.bf16.mxu0 0
  %7480 = vmatpush1.bf16.msra.mxu0 %v7346
  %7481 = vmatprep.subr.bf16.mxu0 0
  %7482 = vmatpush1.bf16.msra.mxu0 %v7347
  %7483 = vmatprep.subr.bf16.mxu0 0
  %7484 = vmatpush1.bf16.msra.mxu0 %v7348
  %7485 = vmatprep.subr.bf16.mxu0 0
  %7486 = vmatpush1.bf16.msra.mxu0 %v7349
  %7487 = vmatprep.mubr.bf16.mxu0 %v7020
  %7488 = vmatmul.mubr.bf16.gmra.mrb[0].mxu0 %v7019
  %v7489 = vpop.f32.mrb[0].mxu0
  %v7490 = vadd.f32 %v7449, %v7489
  %v7491 = vpop.f32.mrb[0].mxu0
  %v7492 = vpop.f32.mrb[0].mxu0
  %v7493 = vadd.f32 %v7452, %v7492
  %v7494 = vpop.f32.mrb[0].mxu0
  %7495 = vdwg.mxu0
  %7496 = vmatprep.subr.bf16.mxu0 0
  %7497 = vmatpush1.bf16.msra.mxu0 %v7350
  %7498 = vmatprep.subr.bf16.mxu0 0
  %7499 = vmatpush1.bf16.msra.mxu0 %v7351
  %7500 = vmatprep.subr.bf16.mxu0 0
  %7501 = vmatpush1.bf16.msra.mxu0 %v7352
  %7502 = vmatprep.subr.bf16.mxu0 0
  %7503 = vmatpush1.bf16.msra.mxu0 %v7353
  %7504 = vmatprep.subr.bf16.mxu0 0
  %7505 = vmatpush1.bf16.msra.mxu0 %v7354
  %7506 = vmatprep.subr.bf16.mxu0 0
  %7507 = vmatpush1.bf16.msra.mxu0 %v7355
  %7508 = vmatprep.subr.bf16.mxu0 0
  %7509 = vmatpush1.bf16.msra.mxu0 %v7356
  %7510 = vmatprep.subr.bf16.mxu0 0
  %7511 = vmatpush1.bf16.msra.mxu0 %v7357
  %7512 = vmatprep.subr.bf16.mxu0 0
  %7513 = vmatpush1.bf16.msra.mxu0 %v7358
  %7514 = vmatprep.subr.bf16.mxu0 0
  %7515 = vmatpush1.bf16.msra.mxu0 %v7359
  %7516 = vmatprep.subr.bf16.mxu0 0
  %7517 = vmatpush1.bf16.msra.mxu0 %v7360
  %7518 = vmatprep.subr.bf16.mxu0 0
  %7519 = vmatpush1.bf16.msra.mxu0 %v7361
  %7520 = vmatprep.subr.bf16.mxu0 0
  %7521 = vmatpush1.bf16.msra.mxu0 %v7362
  %7522 = vmatprep.subr.bf16.mxu0 0
  %7523 = vmatpush1.bf16.msra.mxu0 %v7363
  %7524 = vmatprep.subr.bf16.mxu0 0
  %7525 = vmatpush1.bf16.msra.mxu0 %v7364
  %7526 = vmatprep.subr.bf16.mxu0 0
  %7527 = vmatpush1.bf16.msra.mxu0 %v7365
  %7528 = vmatprep.mubr.bf16.mxu0 %v7022
  %7529 = vmatmul.mubr.bf16.gmra.mrb[0].mxu0 %v7021
  %v7530 = vpop.f32.mrb[0].mxu0
  %v7531 = vadd.f32 %v7490, %v7530
  %v7532 = vpop.f32.mrb[0].mxu0
  %v7533 = vpop.f32.mrb[0].mxu0
  %v7534 = vadd.f32 %v7493, %v7533
  %v7535 = vpop.f32.mrb[0].mxu0
  %7536 = vdwg.mxu0
  %v7537 = vmax.f32 %v7531, 0.0
  %v7538 = vmax.f32 %v7534, 0.0
  %v7539 = vpack.c.bf16 %v7538, %v7537
  %v7540 = vld [vmem:[%s9] sm:$0xf]
  %v7541 = vld [vmem:[%s9 + $0x4] sm:$0xf]
  %v7542 = vld [vmem:[%s9 + $0x8] sm:$0xf]
  %v7543 = vld [vmem:[%s9 + $0xc] sm:$0xf]
  %v7544 = vld [vmem:[%s9 + $0x10] sm:$0xf]
  %v7545 = vld [vmem:[%s9 + $0x14] sm:$0xf]
  %v7546 = vld [vmem:[%s9 + $0x18] sm:$0xf]
  %v7547 = vld [vmem:[%s9 + $0x1c] sm:$0xf]
  %v7548 = vld [vmem:[%s9 + $0x20] sm:$0xf]
  %v7549 = vld [vmem:[%s9 + $0x24] sm:$0xf]
  %v7550 = vld [vmem:[%s9 + $0x28] sm:$0xf]
  %v7551 = vld [vmem:[%s9 + $0x2c] sm:$0xf]
  %v7552 = vld [vmem:[%s9 + $0x30] sm:$0xf]
  %v7553 = vld [vmem:[%s9 + $0x34] sm:$0xf]
  %v7554 = vld [vmem:[%s9 + $0x38] sm:$0xf]
  %v7555 = vld [vmem:[%s9 + $0x3c] sm:$0xf]
  %v7556 = vld [vmem:[%s10] sm:$0x1]
  %v7558 = vlaneseq
  %v7559 = vshrl.u32 %v7558, 7
  %v7560 = vsub.s32 0, %v7559
  %v7561 = vrot.slane %v7556, %v7560
  %v7579 = vunpack.c.l.b16 %v7540
  %v7580 = vunpack.c.l.b16 %v7541
  %v7581 = vunpack.c.l.b16 %v7542
  %v7582 = vunpack.c.l.b16 %v7543
  %v7583 = vunpack.c.l.b16 %v7544
  %v7584 = vunpack.c.l.b16 %v7545
  %v7585 = vunpack.c.l.b16 %v7546
  %v7586 = vunpack.c.l.b16 %v7547
  %v7587 = vunpack.c.l.b16 %v7548
  %v7588 = vunpack.c.l.b16 %v7549
  %v7589 = vunpack.c.l.b16 %v7550
  %v7590 = vunpack.c.l.b16 %v7551
  %v7591 = vunpack.c.l.b16 %v7552
  %v7592 = vunpack.c.l.b16 %v7553
  %v7593 = vunpack.c.l.b16 %v7554
  %v7594 = vunpack.c.l.b16 %v7555
  %v7595 = vpack.c.b16 %v7580, %v7579
  %v7596 = vpack.c.b16 %v7582, %v7581
  %v7597 = vpack.c.b16 %v7584, %v7583
  %v7598 = vpack.c.b16 %v7586, %v7585
  %v7599 = vpack.c.b16 %v7588, %v7587
  %v7600 = vpack.c.b16 %v7590, %v7589
  %v7601 = vpack.c.b16 %v7592, %v7591
  %v7602 = vpack.c.b16 %v7594, %v7593
  %7611 = vmatprep.subr.bf16.mxu0 0
  %7612 = vmatpush1.bf16.msra.mxu0 %v7595
  %7613 = vmatprep.subr.bf16.mxu0 0
  %7614 = vmatpush1.bf16.msra.mxu0 %v7596
  %7615 = vmatprep.subr.bf16.mxu0 0
  %7616 = vmatpush1.bf16.msra.mxu0 %v7597
  %7617 = vmatprep.subr.bf16.mxu0 0
  %7618 = vmatpush1.bf16.msra.mxu0 %v7598
  %7619 = vmatprep.subr.bf16.mxu0 0
  %7620 = vmatpush1.bf16.msra.mxu0 %v7599
  %7621 = vmatprep.subr.bf16.mxu0 0
  %7622 = vmatpush1.bf16.msra.mxu0 %v7600
  %7623 = vmatprep.subr.bf16.mxu0 0
  %7624 = vmatpush1.bf16.msra.mxu0 %v7601
  %7625 = vmatprep.subr.bf16.mxu0 0
  %7626 = vmatpush1.bf16.msra.mxu0 %v7602
  %7627 = vmatprep.subr.bf16.mxu0 0
  %7628 = vmatpush1.bf16.msra.mxu0 0
  %7629 = vmatprep.subr.bf16.mxu0 0
  %7630 = vmatpush1.bf16.msra.mxu0 0
  %7631 = vmatprep.subr.bf16.mxu0 0
  %7632 = vmatpush1.bf16.msra.mxu0 0
  %7633 = vmatprep.subr.bf16.mxu0 0
  %7634 = vmatpush1.bf16.msra.mxu0 0
  %7635 = vmatprep.subr.bf16.mxu0 0
  %7636 = vmatpush1.bf16.msra.mxu0 0
  %7637 = vmatprep.subr.bf16.mxu0 0
  %7638 = vmatpush1.bf16.msra.mxu0 0
  %7639 = vmatprep.subr.bf16.mxu0 0
  %7640 = vmatpush1.bf16.msra.mxu0 0
  %7641 = vmatprep.subr.bf16.mxu0 0
  %7642 = vmatpush1.bf16.msra.mxu0 0
  %7643 = vmatprep.mubr.bf16.mxu0 0
  %7644 = vmatmul.mubr.bf16.gmra.mrb[0].mxu0 %v7539
  %v7645 = vpop.f32.mrb[0].mxu0
  %v7646 = vadd.f32 %v7561, %v7645
  %v7647 = vpop.f32.mrb[0].mxu0
  %v7648 = vpop.f32.mrb[0].mxu0
  %v7649 = vadd.f32 %v7561, %v7648
  %v7650 = vpop.f32.mrb[0].mxu0
  %7651 = vdwg.mxu0
  %7652 = vst [vmem:[%s11] sm:$0xff] %v7646
  %7653 = vst [vmem:[%s11 + $0x8] sm:$0xff] %v7649
  // Predicated region
  $region46: #{_lambda_.1} parent=0 // pred_check
    _
  $region47: #{_lambda_.1} parent=0 // pred_check_branch
    %7655 = sbr.rel (0) target = $region49
  $region48: #{_lambda_.1} parent=0 // pred_region
    _
  $region49: #{_lambda_.1} parent=0 // pred_fallthru
    _
  // Predicated region
  $region50: #{_lambda_.1} parent=0 // pred_check
    _
  $region51: #{_lambda_.1} parent=0 // pred_check_branch
    %7657 = sbr.rel (0) target = $region53
  $region52: #{_lambda_.1} parent=0 // pred_region
    _
  $region53: #{_lambda_.1} parent=0 // pred_fallthru
    _

</llo_original>
